<compile_context>
chip_gen: v5e
topology: v5e:2x2
jax: 0.10.0
libtpu: 0.0.40
codegen_flags: <defaults>
</compile_context>

<pallas_src>
import math

import jax
import jax.numpy as jnp
from jax.experimental import pallas as pl
from jax.experimental.pallas import tpu as pltpu

# ----------------------------- model hyperparameters -----------------------------
C_IO = 4          # io_channels (latent audio channels)
D = 64            # transformer embed dim
NUM_HEADS = 4
DH = D // NUM_HEADS
DEPTH = 2
COND_DIM = 32     # cross-attention conditioning token dim
GLOBAL_DIM = 16   # global conditioning dim
FOURIER = 16      # fourier feature half-dim (timestep features dim = 2*FOURIER)
FF_MULT = 4

CROSS_ATTN_COND_IDS = ["prompt"]
GLOBAL_COND_IDS = ["seconds"]
INPUT_CONCAT_IDS = []
PREPEND_COND_IDS = []

_ATTN_SCALE = 1.0 / math.sqrt(DH)
_NEG_INF = -1e9

# Kernel argument order: per-call tensors first, then (pre-fused) weights.
_PER_CALL_ARGS = ("t_feats", "g_cond", "cross_flat", "self_bias", "cross_bias", "xt")
_WEIGHT_ARGS = (
    "Wt1", "bt1", "Wt2", "bt2",
    "Wg1", "bg1", "Wg2", "bg2",
    "Wc1", "bc1", "Wc2", "bc2",
    "W_in_f", "b_in_f",
    "lnf_g", "lnf_b",
    "W_out_fT", "b_out_col",
    "ln1_g", "ln1_b", "Wqkv", "bqkv", "Wo", "bo",
    "lnc_g", "lnc_b", "Wcq", "bcq", "Wckv", "bckv", "Wco", "bco",
    "ln2_g", "ln2_b", "Wff1", "bff1", "Wff2", "bff2",
)
ARG_NAMES = _PER_CALL_ARGS + _WEIGHT_ARGS


# ============================ in-kernel helper math =============================

def _lin(x, w, b):
    return jnp.dot(x, w, preferred_element_type=jnp.float32) + b


def _layernorm(x, g, b):
    m = jnp.mean(x, axis=-1, keepdims=True)
    v = jnp.mean(jnp.square(x - m), axis=-1, keepdims=True)
    return (x - m) * jax.lax.rsqrt(v + 1e-5) * g + b


def _softmax_rows(s):
    s = s - jnp.max(s, axis=-1, keepdims=True)
    e = jnp.exp(s)
    return e * pl.reciprocal(jnp.sum(e, axis=-1, keepdims=True), approx=True)


def _mha(q_all, k_all, v_all, bias):
    """Multi-head attention over batch-merged rows.

    q_all: (Rq, D), k_all/v_all: (Rk, D), bias: (Rq, Rk) additive (block-diagonal batch
    mask, and key-padding mask for cross-attention).  Heads are static lane slices; the
    concat of per-head outputs feeds a single output-projection matmul in the caller.
    """
    heads = []
    for hh in range(NUM_HEADS):
        sl = slice(hh * DH, (hh + 1) * DH)
        q = q_all[:, sl]
        k = k_all[:, sl]
        v = v_all[:, sl]
        # contract last dims -> no explicit transpose of k
        s = jax.lax.dot_general(q, k, (((1,), (1,)), ((), ())),
                                preferred_element_type=jnp.float32) * _ATTN_SCALE + bias
        p = _softmax_rows(s)
        heads.append(jnp.dot(p, v, preferred_element_type=jnp.float32))
    return jnp.concatenate(heads, axis=1)                              # (Rq, D)


# ============================== fused Pallas kernel =============================

def _fused_transformer_kernel(*refs):
    r = dict(zip(ARG_NAMES, refs[: len(ARG_NAMES)]))
    o_ref = refs[len(ARG_NAMES)]
    B, _, T = o_ref.shape
    T1 = T + 1

    # ---- per-call tensors (loaded once) ----
    t_feats = r["t_feats"][...]          # (B, 2*FOURIER)
    g_cond = r["g_cond"][...]            # (B, GLOBAL_DIM)
    cross = r["cross_flat"][...]         # (B*Lc, COND_DIM)
    sbias = r["self_bias"][...]          # (B*(T+1), B*(T+1)) block-diagonal 0/-1e9
    cbias = r["cross_bias"][...]         # (B*(T+1), B*Lc)     block + key mask 0/-1e9

    # ---- global (non-layer) weights, loaded once ----
    Wt1 = r["Wt1"][...]; bt1 = r["bt1"][...]
    Wt2 = r["Wt2"][...]; bt2 = r["bt2"][...]
    Wg1 = r["Wg1"][...]; bg1 = r["bg1"][...]
    Wg2 = r["Wg2"][...]; bg2 = r["bg2"][...]
    Wc1 = r["Wc1"][...]; bc1 = r["bc1"][...]
    Wc2 = r["Wc2"][...]; bc2 = r["bc2"][...]
    W_in_f = r["W_in_f"][...]; b_in_f = r["b_in_f"][...]
    lnf_g = r["lnf_g"][...]; lnf_b = r["lnf_b"][...]
    W_out_fT = r["W_out_fT"][...]; b_out_col = r["b_out_col"][...]

    # ---- conditioning MLPs (batch-merged: one pass over all rows) ----
    te = _lin(jax.nn.silu(_lin(t_feats, Wt1, bt1)), Wt2, bt2)          # (B, D)
    ge = _lin(jax.nn.silu(_lin(g_cond, Wg1, bg1)), Wg2, bg2)           # (B, D)
    glob = te + ge                                                     # (B, D)
    cross_proj = _lin(jax.nn.silu(_lin(cross, Wc1, bc1)), Wc2, bc2)    # (B*Lc, D)

    # ---- folded (pre-conv + residual + project-in); prepend one global token / batch.
    # Single concatenate assembles the flattened (B*(T+1), D) token block.
    pieces = []
    for b in range(B):
        xp = _lin(r["xt"][b], W_in_f, b_in_f)                          # (T, D)
        pieces.append(glob[b:b + 1, :])
        pieces.append(xp)
    h = jnp.concatenate(pieces, axis=0)                                # (B*(T+1), D)
    # TODO(synk): rotary positional embedding of the continuous transformer is omitted.

    for l in range(DEPTH):  # static unroll; per-layer weights loaded exactly once
        ln1g = r["ln1_g"][l]; ln1b = r["ln1_b"][l]
        Wqkv = r["Wqkv"][l];  bqkv = r["bqkv"][l]
        Wo = r["Wo"][l];      bo = r["bo"][l]
        lncg = r["lnc_g"][l]; lncb = r["lnc_b"][l]
        Wcq = r["Wcq"][l];    bcq = r["bcq"][l]
        Wckv = r["Wckv"][l];  bckv = r["bckv"][l]
        Wco = r["Wco"][l];    bco = r["bco"][l]
        ln2g = r["ln2_g"][l]; ln2b = r["ln2_b"][l]
        Wff1 = r["Wff1"][l];  bff1 = r["bff1"][l]
        Wff2 = r["Wff2"][l];  bff2 = r["bff2"][l]

        # self-attention: projections over ALL B*(T+1) rows at once; the block-diagonal
        # bias keeps batches from attending to each other.
        hn = _layernorm(h, ln1g, ln1b)
        qkv = _lin(hn, Wqkv, bqkv)                                     # (rows, 3D)
        attn = _mha(qkv[:, :D], qkv[:, D:2 * D], qkv[:, 2 * D:], sbias)
        h = h + _lin(attn, Wo, bo)

        # cross-attention: batch-merged query / key-value projections; per-batch key
        # padding mask is pre-folded into cbias.
        hn = _layernorm(h, lncg, lncb)
        qc = _lin(hn, Wcq, bcq)                                        # (rows, D)
        kv = _lin(cross_proj, Wckv, bckv)                              # (B*Lc, 2D)
        attn = _mha(qc, kv[:, :D], kv[:, D:], cbias)
        h = h + _lin(attn, Wco, bco)

        # feed-forward
        hn = _layernorm(h, ln2g, ln2b)
        # TODO(synk): jax.nn.gelu tanh approximation; PyTorch nn.GELU default is exact erf.
        h = h + _lin(jax.nn.gelu(_lin(hn, Wff1, bff1)), Wff2, bff2)

    hf = _layernorm(h, lnf_g, lnf_b)

    # folded (project-out + post-conv + residual), computed channel-major so the store is
    # (C_IO, T) with T on the lane axis (lane-dense as T grows).  Global token dropped.
    for b in range(B):
        tok = hf[b * T1 + 1: b * T1 + T1, :]                           # (T, D)
        out_ct = jax.lax.dot_general(W_out_fT, tok, (((1,), (1,)), ((), ())),
                                     preferred_element_type=jnp.float32) + b_out_col
        o_ref[b] = out_ct.astype(o_ref.dtype)


def _full_block(shape):
    nd = len(shape)
    return pl.BlockSpec(shape, lambda *_args, _nd=nd: (0,) * _nd)


# ================================ plain-JAX glue ================================

def get_conditioning_inputs(cond):
    """Mirror of ConditionedDiffusionModelWrapper.get_conditioning_inputs."""
    cross_attn_cond = None
    cross_attn_mask = None
    global_cond = None
    input_concat_cond = None
    prepend_cond = None
    prepend_cond_mask = None

    if len(CROSS_ATTN_COND_IDS) > 0:
        ins, masks = [], []
        for key in CROSS_ATTN_COND_IDS:
            ci, cm = cond[key]
            if ci.ndim == 2:
                ci = ci[:, None, :]
                cm = cm[:, None]
            ins.append(ci)
            masks.append(cm)
        cross_attn_cond = jnp.concatenate(ins, axis=1)
        cross_attn_mask = jnp.concatenate(masks, axis=1)

    if len(GLOBAL_COND_IDS) > 0:
        gs = [cond[key][0] for key in GLOBAL_COND_IDS]
        global_cond = jnp.concatenate(gs, axis=-1)
        if global_cond.ndim == 3:
            global_cond = jnp.squeeze(global_cond, axis=1)

    if len(INPUT_CONCAT_IDS) > 0:
        input_concat_cond = jnp.concatenate(
            [cond[key][0] for key in INPUT_CONCAT_IDS], axis=1)

    if len(PREPEND_COND_IDS) > 0:
        prepend_cond = jnp.concatenate([cond[key][0] for key in PREPEND_COND_IDS], axis=1)
        prepend_cond_mask = jnp.concatenate([cond[key][1] for key in PREPEND_COND_IDS], axis=1)

    return dict(cross_attn_cond=cross_attn_cond, cross_attn_mask=cross_attn_mask,
                global_cond=global_cond, input_concat_cond=input_concat_cond,
                prepend_cond=prepend_cond, prepend_cond_mask=prepend_cond_mask)


def diffusion_transformer_forward(fused, x, t, *, cross_attn_cond=None,
                                  cross_attn_mask=None, global_cond=None,
                                  input_concat_cond=None, prepend_cond=None,
                                  prepend_cond_mask=None):
    B, C, T = x.shape
    assert C == C_IO
    assert cross_attn_cond is not None and global_cond is not None, \
        "this configuration always provides cross-attn and global conditioning"
    if input_concat_cond is not None:
        # TODO(synk): input-concat conditioning path not exercised by this configuration.
        x = jnp.concatenate([x, input_concat_cond], axis=1)
    # TODO(synk): prepend_cond path not exercised by this configuration.

    Lc = cross_attn_cond.shape[1]
    T1 = T + 1

    # timestep Fourier features (tiny, plain JAX)
    f = 2.0 * math.pi * t[:, None] * fused["fourier_w"][None, :]
    t_feats = jnp.concatenate([jnp.cos(f), jnp.sin(f)], axis=-1)       # (B, 2*FOURIER)

    if cross_attn_mask is None:
        cross_attn_mask = jnp.ones((B, Lc), dtype=bool)
    mask_flat = cross_attn_mask.reshape(B * Lc).astype(bool)
    cross_flat = cross_attn_cond.reshape(B * Lc, COND_DIM)

    # additive attention biases: block-diagonal so batch-merged rows never attend across
    # batches; cross bias additionally folds the key padding mask.
    row_batch = jnp.repeat(jnp.arange(B, dtype=jnp.int32), T1)         # (B*(T+1),)
    key_batch = jnp.repeat(jnp.arange(B, dtype=jnp.int32), Lc)         # (B*Lc,)
    self_bias = jnp.where(row_batch[:, None] == row_batch[None, :],
                          0.0, _NEG_INF).astype(jnp.float32)
    cross_ok = (row_batch[:, None] == key_batch[None, :]) & mask_flat[None, :]
    cross_bias = jnp.where(cross_ok, 0.0, _NEG_INF).astype(jnp.float32)

    call_args = dict(
        t_feats=t_feats, g_cond=global_cond,
        cross_flat=cross_flat, self_bias=self_bias, cross_bias=cross_bias,
        # TODO(synk): keep x in (B, C, T) and contract channels in-kernel once the
        # transposed-LHS matmul path is validated; this transpose is tiny here.
        xt=jnp.transpose(x, (0, 2, 1)),                                # (B, T, C)
    )
    flat = [call_args[n] if n in call_args else fused[n] for n in ARG_NAMES]

    out = pl.pallas_call(
        _fused_transformer_kernel,
        out_shape=jax.ShapeDtypeStruct((B, C_IO, T), x.dtype),
        in_specs=[_full_block(a.shape) for a in flat],
        out_specs=_full_block((B, C_IO, T)),
        compiler_params=pltpu.CompilerParams(vmem_limit_bytes=32 * 1024 * 1024),
    )(*flat)
    return out                                                          # (B, C, T)


@jax.jit
def conditioned_diffusion_forward(fused, x, t, cond):
    """ConditionedDiffusionModelWrapper.forward"""
    conds = get_conditioning_inputs(cond)
    return diffusion_transformer_forward(fused, x, t, **conds)


# ===================== one-time weight fusion (outside the jitted forward) =====================

def fuse_params(p):
    """Fold 1x1 pre/post convs (+ residuals) into in/out projections (exact), fuse QKV /
    cross-KV weights, stack per-layer tensors, pre-transpose the output projection.
    Called ONCE; the result is what the jitted forward (and the kernel) consume."""
    eye = jnp.eye(C_IO, dtype=jnp.float32)
    W_in_f = (p["W_pre"] + eye) @ p["W_in"]
    b_in_f = (p["b_pre"] @ p["W_in"] + p["b_in"])[None, :]
    W_post_r = p["W_post"] + eye
    W_out_f = p["W_out"] @ W_post_r                                    # (D, C_IO)
    b_out = p["b_out"] @ W_post_r + p["b_post"]                        # (C_IO,)

    L = p["layers"]

    def sw(k):
        return jnp.stack([L[l][k] for l in range(DEPTH)])

    def sb(k):
        return jnp.stack([L[l][k][None, :] for l in range(DEPTH)])

    Wqkv = jnp.stack([jnp.concatenate([L[l]["Wq"], L[l]["Wk"], L[l]["Wv"]], axis=1)
                      for l in range(DEPTH)])
    bqkv = jnp.stack([jnp.concatenate([L[l]["bq"], L[l]["bk"], L[l]["bv"]])[None, :]
                      for l in range(DEPTH)])
    Wckv = jnp.stack([jnp.concatenate([L[l]["Wck"], L[l]["Wcv"]], axis=1)
                      for l in range(DEPTH)])
    bckv = jnp.stack([jnp.concatenate([L[l]["bck"], L[l]["bcv"]])[None, :]
                      for l in range(DEPTH)])

    return dict(
        fourier_w=p["fourier_w"],
        Wt1=p["Wt1"], bt1=p["bt1"][None, :], Wt2=p["Wt2"], bt2=p["bt2"][None, :],
        Wg1=p["Wg1"], bg1=p["bg1"][None, :], Wg2=p["Wg2"], bg2=p["bg2"][None, :],
        Wc1=p["Wc1"], bc1=p["bc1"][None, :], Wc2=p["Wc2"], bc2=p["bc2"][None, :],
        W_in_f=W_in_f, b_in_f=b_in_f,
        lnf_g=p["lnf_g"][None, :], lnf_b=p["lnf_b"][None, :],
        W_out_fT=W_out_f.T, b_out_col=b_out[:, None],
        ln1_g=sb("ln1_g"), ln1_b=sb("ln1_b"),
        Wqkv=Wqkv, bqkv=bqkv, Wo=sw("Wo"), bo=sb("bo"),
        lnc_g=sb("lnc_g"), lnc_b=sb("lnc_b"),
        Wcq=sw("Wcq"), bcq=sb("bcq"),
        Wckv=Wckv, bckv=bckv, Wco=sw("Wco"), bco=sb("bco"),
        ln2_g=sb("ln2_g"), ln2_b=sb("ln2_b"),
        Wff1=sw("Wff1"), bff1=sb("bff1"), Wff2=sw("Wff2"), bff2=sb("bff2"),
    )


# ============================== deterministic init ==============================

def init_params(key):
    keys = iter(jax.random.split(key, 256))

    def w(shape, scale=0.02):
        return (scale * jax.random.normal(next(keys), shape)).astype(jnp.float32)

    def zeros(shape):
        return jnp.zeros(shape, jnp.float32)

    def ones(shape):
        return jnp.ones(shape, jnp.float32)

    params = dict(
        fourier_w=w((FOURIER,), 1.0),
        Wt1=w((2 * FOURIER, D)), bt1=zeros((D,)),
        Wt2=w((D, D)), bt2=zeros((D,)),
        Wg1=w((GLOBAL_DIM, D)), bg1=zeros((D,)),
        Wg2=w((D, D)), bg2=zeros((D,)),
        Wc1=w((COND_DIM, D)), bc1=zeros((D,)),
        Wc2=w((D, D)), bc2=zeros((D,)),
        W_pre=w((C_IO, C_IO)), b_pre=zeros((C_IO,)),
        W_in=w((C_IO, D)), b_in=zeros((D,)),
        lnf_g=ones((D,)), lnf_b=zeros((D,)),
        W_out=w((D, C_IO)), b_out=zeros((C_IO,)),
        W_post=w((C_IO, C_IO)), b_post=zeros((C_IO,)),
        layers=[],
    )
    for _ in range(DEPTH):
        params["layers"].append(dict(
            ln1_g=ones((D,)), ln1_b=zeros((D,)),
            Wq=w((D, D)), bq=zeros((D,)),
            Wk=w((D, D)), bk=zeros((D,)),
            Wv=w((D, D)), bv=zeros((D,)),
            Wo=w((D, D)), bo=zeros((D,)),
            lnc_g=ones((D,)), lnc_b=zeros((D,)),
            Wcq=w((D, D)), bcq=zeros((D,)),
            Wck=w((D, D)), bck=zeros((D,)),
            Wcv=w((D, D)), bcv=zeros((D,)),
            Wco=w((D, D)), bco=zeros((D,)),
            ln2_g=ones((D,)), ln2_b=zeros((D,)),
            Wff1=w((D, FF_MULT * D)), bff1=zeros((FF_MULT * D,)),
            Wff2=w((FF_MULT * D, D)), bff2=zeros((D,)),
        ))
    return params


# ===================================== main =====================================

if __name__ == "__main__":
    key = jax.random.PRNGKey(0)
    kp, kx, kt, kc, ks = jax.random.split(key, 5)

    params = init_params(kp)
    fused = fuse_params(params)    # one-time weight fusion (not rebuilt per forward)

    B, T, Lc = 2, 16, 8
    x = jax.random.normal(kx, (B, C_IO, T), jnp.float32)       # (B, C, T), NCL like PyTorch
    t = jax.random.uniform(kt, (B,), jnp.float32)

    prompt = jax.random.normal(kc, (B, Lc, COND_DIM), jnp.float32)
    prompt_mask = jnp.arange(Lc)[None, :] < jnp.array([Lc, Lc - 2])[:, None]  # (B, Lc) bool
    seconds = jax.random.normal(ks, (B, 1, GLOBAL_DIM), jnp.float32)
    seconds_mask = jnp.ones((B, 1), dtype=bool)

    cond = {
        "prompt": (prompt, prompt_mask),      # cross-attention conditioning
        "seconds": (seconds, seconds_mask),   # global conditioning
    }

    out = conditioned_diffusion_forward(fused, x, t, cond)
    out = jax.block_until_ready(out)

    assert out.shape == (B, C_IO, T), out.shape
    assert out.dtype == jnp.float32
    assert bool(jnp.all(jnp.isfinite(out)))
    print("KERNEL_OK")
</pallas_src>

<mosaic_0001>
module attributes {stable_mosaic.version = 11 : i64} {
  func.func @_fused_transformer_kernel(%arg0: memref<2x32xf32, #tpu.memory_space<vmem>>, %arg1: memref<2x16xf32, #tpu.memory_space<vmem>>, %arg2: memref<16x32xf32, #tpu.memory_space<vmem>>, %arg3: memref<34x34xf32, #tpu.memory_space<vmem>>, %arg4: memref<34x16xf32, #tpu.memory_space<vmem>>, %arg5: memref<2x16x4xf32, #tpu.memory_space<vmem>>, %arg6: memref<32x64xf32, #tpu.memory_space<vmem>>, %arg7: memref<1x64xf32, #tpu.memory_space<vmem>>, %arg8: memref<64x64xf32, #tpu.memory_space<vmem>>, %arg9: memref<1x64xf32, #tpu.memory_space<vmem>>, %arg10: memref<16x64xf32, #tpu.memory_space<vmem>>, %arg11: memref<1x64xf32, #tpu.memory_space<vmem>>, %arg12: memref<64x64xf32, #tpu.memory_space<vmem>>, %arg13: memref<1x64xf32, #tpu.memory_space<vmem>>, %arg14: memref<32x64xf32, #tpu.memory_space<vmem>>, %arg15: memref<1x64xf32, #tpu.memory_space<vmem>>, %arg16: memref<64x64xf32, #tpu.memory_space<vmem>>, %arg17: memref<1x64xf32, #tpu.memory_space<vmem>>, %arg18: memref<4x64xf32, #tpu.memory_space<vmem>>, %arg19: memref<1x64xf32, #tpu.memory_space<vmem>>, %arg20: memref<1x64xf32, #tpu.memory_space<vmem>>, %arg21: memref<1x64xf32, #tpu.memory_space<vmem>>, %arg22: memref<4x64xf32, #tpu.memory_space<vmem>>, %arg23: memref<4x1xf32, #tpu.memory_space<vmem>>, %arg24: memref<2x1x64xf32, #tpu.memory_space<vmem>>, %arg25: memref<2x1x64xf32, #tpu.memory_space<vmem>>, %arg26: memref<2x64x192xf32, #tpu.memory_space<vmem>>, %arg27: memref<2x1x192xf32, #tpu.memory_space<vmem>>, %arg28: memref<2x64x64xf32, #tpu.memory_space<vmem>>, %arg29: memref<2x1x64xf32, #tpu.memory_space<vmem>>, %arg30: memref<2x1x64xf32, #tpu.memory_space<vmem>>, %arg31: memref<2x1x64xf32, #tpu.memory_space<vmem>>, %arg32: memref<2x64x64xf32, #tpu.memory_space<vmem>>, %arg33: memref<2x1x64xf32, #tpu.memory_space<vmem>>, %arg34: memref<2x64x128xf32, #tpu.memory_space<vmem>>, %arg35: memref<2x1x128xf32, #tpu.memory_space<vmem>>, %arg36: memref<2x64x64xf32, #tpu.memory_space<vmem>>, %arg37: memref<2x1x64xf32, #tpu.memory_space<vmem>>, %arg38: memref<2x1x64xf32, #tpu.memory_space<vmem>>, %arg39: memref<2x1x64xf32, #tpu.memory_space<vmem>>, %arg40: memref<2x64x256xf32, #tpu.memory_space<vmem>>, %arg41: memref<2x1x256xf32, #tpu.memory_space<vmem>>, %arg42: memref<2x256x64xf32, #tpu.memory_space<vmem>>, %arg43: memref<2x1x64xf32, #tpu.memory_space<vmem>>, %arg44: memref<2x4x16xf32, #tpu.memory_space<vmem>>) attributes {dimension_semantics = [], scalar_prefetch = 0 : i64, scratch_operands = 0 : i64, tpu.core_type = #tpu.core_type<tc>} {
    %c0 = arith.constant 0 : index
    %c0_0 = arith.constant 0 : index
    %0 = vector.load %arg0[%c0, %c0_0] : memref<2x32xf32, #tpu.memory_space<vmem>>, vector<2x32xf32>
    %c0_1 = arith.constant 0 : index
    %c0_2 = arith.constant 0 : index
    %1 = vector.load %arg1[%c0_1, %c0_2] : memref<2x16xf32, #tpu.memory_space<vmem>>, vector<2x16xf32>
    %c0_3 = arith.constant 0 : index
    %c0_4 = arith.constant 0 : index
    %2 = vector.load %arg2[%c0_3, %c0_4] : memref<16x32xf32, #tpu.memory_space<vmem>>, vector<16x32xf32>
    %c0_5 = arith.constant 0 : index
    %c0_6 = arith.constant 0 : index
    %3 = vector.load %arg3[%c0_5, %c0_6] : memref<34x34xf32, #tpu.memory_space<vmem>>, vector<34x34xf32>
    %c0_7 = arith.constant 0 : index
    %c0_8 = arith.constant 0 : index
    %4 = vector.load %arg4[%c0_7, %c0_8] : memref<34x16xf32, #tpu.memory_space<vmem>>, vector<34x16xf32>
    %c0_9 = arith.constant 0 : index
    %c0_10 = arith.constant 0 : index
    %5 = vector.load %arg6[%c0_9, %c0_10] : memref<32x64xf32, #tpu.memory_space<vmem>>, vector<32x64xf32>
    %c0_11 = arith.constant 0 : index
    %c0_12 = arith.constant 0 : index
    %6 = vector.load %arg7[%c0_11, %c0_12] : memref<1x64xf32, #tpu.memory_space<vmem>>, vector<1x64xf32>
    %c0_13 = arith.constant 0 : index
    %c0_14 = arith.constant 0 : index
    %7 = vector.load %arg8[%c0_13, %c0_14] : memref<64x64xf32, #tpu.memory_space<vmem>>, vector<64x64xf32>
    %c0_15 = arith.constant 0 : index
    %c0_16 = arith.constant 0 : index
    %8 = vector.load %arg9[%c0_15, %c0_16] : memref<1x64xf32, #tpu.memory_space<vmem>>, vector<1x64xf32>
    %c0_17 = arith.constant 0 : index
    %c0_18 = arith.constant 0 : index
    %9 = vector.load %arg10[%c0_17, %c0_18] : memref<16x64xf32, #tpu.memory_space<vmem>>, vector<16x64xf32>
    %c0_19 = arith.constant 0 : index
    %c0_20 = arith.constant 0 : index
    %10 = vector.load %arg11[%c0_19, %c0_20] : memref<1x64xf32, #tpu.memory_space<vmem>>, vector<1x64xf32>
    %c0_21 = arith.constant 0 : index
    %c0_22 = arith.constant 0 : index
    %11 = vector.load %arg12[%c0_21, %c0_22] : memref<64x64xf32, #tpu.memory_space<vmem>>, vector<64x64xf32>
    %c0_23 = arith.constant 0 : index
    %c0_24 = arith.constant 0 : index
    %12 = vector.load %arg13[%c0_23, %c0_24] : memref<1x64xf32, #tpu.memory_space<vmem>>, vector<1x64xf32>
    %c0_25 = arith.constant 0 : index
    %c0_26 = arith.constant 0 : index
    %13 = vector.load %arg14[%c0_25, %c0_26] : memref<32x64xf32, #tpu.memory_space<vmem>>, vector<32x64xf32>
    %c0_27 = arith.constant 0 : index
    %c0_28 = arith.constant 0 : index
    %14 = vector.load %arg15[%c0_27, %c0_28] : memref<1x64xf32, #tpu.memory_space<vmem>>, vector<1x64xf32>
    %c0_29 = arith.constant 0 : index
    %c0_30 = arith.constant 0 : index
    %15 = vector.load %arg16[%c0_29, %c0_30] : memref<64x64xf32, #tpu.memory_space<vmem>>, vector<64x64xf32>
    %c0_31 = arith.constant 0 : index
    %c0_32 = arith.constant 0 : index
    %16 = vector.load %arg17[%c0_31, %c0_32] : memref<1x64xf32, #tpu.memory_space<vmem>>, vector<1x64xf32>
    %c0_33 = arith.constant 0 : index
    %c0_34 = arith.constant 0 : index
    %17 = vector.load %arg18[%c0_33, %c0_34] : memref<4x64xf32, #tpu.memory_space<vmem>>, vector<4x64xf32>
    %c0_35 = arith.constant 0 : index
    %c0_36 = arith.constant 0 : index
    %18 = vector.load %arg19[%c0_35, %c0_36] : memref<1x64xf32, #tpu.memory_space<vmem>>, vector<1x64xf32>
    %c0_37 = arith.constant 0 : index
    %c0_38 = arith.constant 0 : index
    %19 = vector.load %arg20[%c0_37, %c0_38] : memref<1x64xf32, #tpu.memory_space<vmem>>, vector<1x64xf32>
    %c0_39 = arith.constant 0 : index
    %c0_40 = arith.constant 0 : index
    %20 = vector.load %arg21[%c0_39, %c0_40] : memref<1x64xf32, #tpu.memory_space<vmem>>, vector<1x64xf32>
    %c0_41 = arith.constant 0 : index
    %c0_42 = arith.constant 0 : index
    %21 = vector.load %arg22[%c0_41, %c0_42] : memref<4x64xf32, #tpu.memory_space<vmem>>, vector<4x64xf32>
    %c0_43 = arith.constant 0 : index
    %c0_44 = arith.constant 0 : index
    %22 = vector.load %arg23[%c0_43, %c0_44] : memref<4x1xf32, #tpu.memory_space<vmem>>, vector<4x1xf32>
    %cst = arith.constant dense<0.000000e+00> : vector<2x64xf32>
    %23 = tpu.matmul %0, %5, %cst {dimension_numbers = #tpu.dot_dimension_numbers<[1], [0], [0], [1], [0, 0, 1, 1], [], []>} : vector<2x32xf32>, vector<32x64xf32>, vector<2x64xf32> -> vector<2x64xf32>
    %24 = vector.broadcast %6 : vector<1x64xf32> to vector<2x64xf32>
    %25 = arith.addf %23, %24 : vector<2x64xf32>
    %26 = arith.negf %25 : vector<2x64xf32>
    %27 = math.exp %26 : vector<2x64xf32>
    %cst_45 = arith.constant 1.000000e+00 : f32
    %28 = vector.broadcast %cst_45 : f32 to vector<2x64xf32>
    %29 = arith.addf %28, %27 : vector<2x64xf32>
    %30 = arith.divf %28, %29 : vector<2x64xf32>
    %31 = arith.mulf %25, %30 : vector<2x64xf32>
    %cst_46 = arith.constant dense<0.000000e+00> : vector<2x64xf32>
    %32 = tpu.matmul %31, %7, %cst_46 {dimension_numbers = #tpu.dot_dimension_numbers<[1], [0], [0], [1], [0, 0, 1, 1], [], []>} : vector<2x64xf32>, vector<64x64xf32>, vector<2x64xf32> -> vector<2x64xf32>
    %33 = vector.broadcast %8 : vector<1x64xf32> to vector<2x64xf32>
    %34 = arith.addf %32, %33 : vector<2x64xf32>
    %cst_47 = arith.constant dense<0.000000e+00> : vector<2x64xf32>
    %35 = tpu.matmul %1, %9, %cst_47 {dimension_numbers = #tpu.dot_dimension_numbers<[1], [0], [0], [1], [0, 0, 1, 1], [], []>} : vector<2x16xf32>, vector<16x64xf32>, vector<2x64xf32> -> vector<2x64xf32>
    %36 = vector.broadcast %10 : vector<1x64xf32> to vector<2x64xf32>
    %37 = arith.addf %35, %36 : vector<2x64xf32>
    %38 = arith.negf %37 : vector<2x64xf32>
    %39 = math.exp %38 : vector<2x64xf32>
    %cst_48 = arith.constant 1.000000e+00 : f32
    %40 = vector.broadcast %cst_48 : f32 to vector<2x64xf32>
    %41 = arith.addf %40, %39 : vector<2x64xf32>
    %42 = arith.divf %40, %41 : vector<2x64xf32>
    %43 = arith.mulf %37, %42 : vector<2x64xf32>
    %cst_49 = arith.constant dense<0.000000e+00> : vector<2x64xf32>
    %44 = tpu.matmul %43, %11, %cst_49 {dimension_numbers = #tpu.dot_dimension_numbers<[1], [0], [0], [1], [0, 0, 1, 1], [], []>} : vector<2x64xf32>, vector<64x64xf32>, vector<2x64xf32> -> vector<2x64xf32>
    %45 = vector.broadcast %12 : vector<1x64xf32> to vector<2x64xf32>
    %46 = arith.addf %44, %45 : vector<2x64xf32>
    %47 = arith.addf %34, %46 : vector<2x64xf32>
    %cst_50 = arith.constant dense<0.000000e+00> : vector<16x64xf32>
    %48 = tpu.matmul %2, %13, %cst_50 {dimension_numbers = #tpu.dot_dimension_numbers<[1], [0], [0], [1], [0, 0, 1, 1], [], []>} : vector<16x32xf32>, vector<32x64xf32>, vector<16x64xf32> -> vector<16x64xf32>
    %49 = vector.broadcast %14 : vector<1x64xf32> to vector<16x64xf32>
    %50 = arith.addf %48, %49 : vector<16x64xf32>
    %51 = arith.negf %50 : vector<16x64xf32>
    %52 = math.exp %51 : vector<16x64xf32>
    %cst_51 = arith.constant 1.000000e+00 : f32
    %53 = vector.broadcast %cst_51 : f32 to vector<16x64xf32>
    %54 = arith.addf %53, %52 : vector<16x64xf32>
    %55 = arith.divf %53, %54 : vector<16x64xf32>
    %56 = arith.mulf %50, %55 : vector<16x64xf32>
    %cst_52 = arith.constant dense<0.000000e+00> : vector<16x64xf32>
    %57 = tpu.matmul %56, %15, %cst_52 {dimension_numbers = #tpu.dot_dimension_numbers<[1], [0], [0], [1], [0, 0, 1, 1], [], []>} : vector<16x64xf32>, vector<64x64xf32>, vector<16x64xf32> -> vector<16x64xf32>
    %58 = vector.broadcast %16 : vector<1x64xf32> to vector<16x64xf32>
    %59 = arith.addf %57, %58 : vector<16x64xf32>
    %c0_53 = arith.constant 0 : index
    %c0_54 = arith.constant 0 : index
    %c0_55 = arith.constant 0 : index
    %60 = vector.load %arg5[%c0_53, %c0_54, %c0_55] : memref<2x16x4xf32, #tpu.memory_space<vmem>>, vector<1x16x4xf32>
    %61 = vector.shape_cast %60 : vector<1x16x4xf32> to vector<16x4xf32>
    %cst_56 = arith.constant dense<0.000000e+00> : vector<16x64xf32>
    %62 = tpu.matmul %61, %17, %cst_56 {dimension_numbers = #tpu.dot_dimension_numbers<[1], [0], [0], [1], [0, 0, 1, 1], [], []>} : vector<16x4xf32>, vector<4x64xf32>, vector<16x64xf32> -> vector<16x64xf32>
    %63 = vector.broadcast %18 : vector<1x64xf32> to vector<16x64xf32>
    %64 = arith.addf %62, %63 : vector<16x64xf32>
    %65 = vector.extract_strided_slice %47 {offsets = [0, 0], sizes = [1, 64], strides = [1, 1]} : vector<2x64xf32> to vector<1x64xf32>
    %c1 = arith.constant 1 : index
    %c0_57 = arith.constant 0 : index
    %c0_58 = arith.constant 0 : index
    %66 = vector.load %arg5[%c1, %c0_57, %c0_58] : memref<2x16x4xf32, #tpu.memory_space<vmem>>, vector<1x16x4xf32>
    %67 = vector.shape_cast %66 : vector<1x16x4xf32> to vector<16x4xf32>
    %cst_59 = arith.constant dense<0.000000e+00> : vector<16x64xf32>
    %68 = tpu.matmul %67, %17, %cst_59 {dimension_numbers = #tpu.dot_dimension_numbers<[1], [0], [0], [1], [0, 0, 1, 1], [], []>} : vector<16x4xf32>, vector<4x64xf32>, vector<16x64xf32> -> vector<16x64xf32>
    %69 = vector.broadcast %18 : vector<1x64xf32> to vector<16x64xf32>
    %70 = arith.addf %68, %69 : vector<16x64xf32>
    %71 = vector.extract_strided_slice %47 {offsets = [1, 0], sizes = [1, 64], strides = [1, 1]} : vector<2x64xf32> to vector<1x64xf32>
    %72 = tpu.concatenate %65, %64, %71, %70 in 0 : vector<1x64xf32>, vector<16x64xf32>, vector<1x64xf32>, vector<16x64xf32> -> vector<34x64xf32>
    %c0_60 = arith.constant 0 : index
    %c0_61 = arith.constant 0 : index
    %c0_62 = arith.constant 0 : index
    %73 = vector.load %arg24[%c0_60, %c0_61, %c0_62] : memref<2x1x64xf32, #tpu.memory_space<vmem>>, vector<1x1x64xf32>
    %74 = vector.shape_cast %73 : vector<1x1x64xf32> to vector<1x64xf32>
    %c0_63 = arith.constant 0 : index
    %c0_64 = arith.constant 0 : index
    %c0_65 = arith.constant 0 : index
    %75 = vector.load %arg25[%c0_63, %c0_64, %c0_65] : memref<2x1x64xf32, #tpu.memory_space<vmem>>, vector<1x1x64xf32>
    %76 = vector.shape_cast %75 : vector<1x1x64xf32> to vector<1x64xf32>
    %c0_66 = arith.constant 0 : index
    %c0_67 = arith.constant 0 : index
    %c0_68 = arith.constant 0 : index
    %77 = vector.load %arg26[%c0_66, %c0_67, %c0_68] : memref<2x64x192xf32, #tpu.memory_space<vmem>>, vector<1x64x192xf32>
    %78 = vector.shape_cast %77 : vector<1x64x192xf32> to vector<64x192xf32>
    %c0_69 = arith.constant 0 : index
    %c0_70 = arith.constant 0 : index
    %c0_71 = arith.constant 0 : index
    %79 = vector.load %arg27[%c0_69, %c0_70, %c0_71] : memref<2x1x192xf32, #tpu.memory_space<vmem>>, vector<1x1x192xf32>
    %80 = vector.shape_cast %79 : vector<1x1x192xf32> to vector<1x192xf32>
    %c0_72 = arith.constant 0 : index
    %c0_73 = arith.constant 0 : index
    %c0_74 = arith.constant 0 : index
    %81 = vector.load %arg28[%c0_72, %c0_73, %c0_74] : memref<2x64x64xf32, #tpu.memory_space<vmem>>, vector<1x64x64xf32>
    %82 = vector.shape_cast %81 : vector<1x64x64xf32> to vector<64x64xf32>
    %c0_75 = arith.constant 0 : index
    %c0_76 = arith.constant 0 : index
    %c0_77 = arith.constant 0 : index
    %83 = vector.load %arg29[%c0_75, %c0_76, %c0_77] : memref<2x1x64xf32, #tpu.memory_space<vmem>>, vector<1x1x64xf32>
    %84 = vector.shape_cast %83 : vector<1x1x64xf32> to vector<1x64xf32>
    %c0_78 = arith.constant 0 : index
    %c0_79 = arith.constant 0 : index
    %c0_80 = arith.constant 0 : index
    %85 = vector.load %arg30[%c0_78, %c0_79, %c0_80] : memref<2x1x64xf32, #tpu.memory_space<vmem>>, vector<1x1x64xf32>
    %86 = vector.shape_cast %85 : vector<1x1x64xf32> to vector<1x64xf32>
    %c0_81 = arith.constant 0 : index
    %c0_82 = arith.constant 0 : index
    %c0_83 = arith.constant 0 : index
    %87 = vector.load %arg31[%c0_81, %c0_82, %c0_83] : memref<2x1x64xf32, #tpu.memory_space<vmem>>, vector<1x1x64xf32>
    %88 = vector.shape_cast %87 : vector<1x1x64xf32> to vector<1x64xf32>
    %c0_84 = arith.constant 0 : index
    %c0_85 = arith.constant 0 : index
    %c0_86 = arith.constant 0 : index
    %89 = vector.load %arg32[%c0_84, %c0_85, %c0_86] : memref<2x64x64xf32, #tpu.memory_space<vmem>>, vector<1x64x64xf32>
    %90 = vector.shape_cast %89 : vector<1x64x64xf32> to vector<64x64xf32>
    %c0_87 = arith.constant 0 : index
    %c0_88 = arith.constant 0 : index
    %c0_89 = arith.constant 0 : index
    %91 = vector.load %arg33[%c0_87, %c0_88, %c0_89] : memref<2x1x64xf32, #tpu.memory_space<vmem>>, vector<1x1x64xf32>
    %92 = vector.shape_cast %91 : vector<1x1x64xf32> to vector<1x64xf32>
    %c0_90 = arith.constant 0 : index
    %c0_91 = arith.constant 0 : index
    %c0_92 = arith.constant 0 : index
    %93 = vector.load %arg34[%c0_90, %c0_91, %c0_92] : memref<2x64x128xf32, #tpu.memory_space<vmem>>, vector<1x64x128xf32>
    %94 = vector.shape_cast %93 : vector<1x64x128xf32> to vector<64x128xf32>
    %c0_93 = arith.constant 0 : index
    %c0_94 = arith.constant 0 : index
    %c0_95 = arith.constant 0 : index
    %95 = vector.load %arg35[%c0_93, %c0_94, %c0_95] : memref<2x1x128xf32, #tpu.memory_space<vmem>>, vector<1x1x128xf32>
    %96 = vector.shape_cast %95 : vector<1x1x128xf32> to vector<1x128xf32>
    %c0_96 = arith.constant 0 : index
    %c0_97 = arith.constant 0 : index
    %c0_98 = arith.constant 0 : index
    %97 = vector.load %arg36[%c0_96, %c0_97, %c0_98] : memref<2x64x64xf32, #tpu.memory_space<vmem>>, vector<1x64x64xf32>
    %98 = vector.shape_cast %97 : vector<1x64x64xf32> to vector<64x64xf32>
    %c0_99 = arith.constant 0 : index
    %c0_100 = arith.constant 0 : index
    %c0_101 = arith.constant 0 : index
    %99 = vector.load %arg37[%c0_99, %c0_100, %c0_101] : memref<2x1x64xf32, #tpu.memory_space<vmem>>, vector<1x1x64xf32>
    %100 = vector.shape_cast %99 : vector<1x1x64xf32> to vector<1x64xf32>
    %c0_102 = arith.constant 0 : index
    %c0_103 = arith.constant 0 : index
    %c0_104 = arith.constant 0 : index
    %101 = vector.load %arg38[%c0_102, %c0_103, %c0_104] : memref<2x1x64xf32, #tpu.memory_space<vmem>>, vector<1x1x64xf32>
    %102 = vector.shape_cast %101 : vector<1x1x64xf32> to vector<1x64xf32>
    %c0_105 = arith.constant 0 : index
    %c0_106 = arith.constant 0 : index
    %c0_107 = arith.constant 0 : index
    %103 = vector.load %arg39[%c0_105, %c0_106, %c0_107] : memref<2x1x64xf32, #tpu.memory_space<vmem>>, vector<1x1x64xf32>
    %104 = vector.shape_cast %103 : vector<1x1x64xf32> to vector<1x64xf32>
    %c0_108 = arith.constant 0 : index
    %c0_109 = arith.constant 0 : index
    %c0_110 = arith.constant 0 : index
    %105 = vector.load %arg40[%c0_108, %c0_109, %c0_110] : memref<2x64x256xf32, #tpu.memory_space<vmem>>, vector<1x64x256xf32>
    %106 = vector.shape_cast %105 : vector<1x64x256xf32> to vector<64x256xf32>
    %c0_111 = arith.constant 0 : index
    %c0_112 = arith.constant 0 : index
    %c0_113 = arith.constant 0 : index
    %107 = vector.load %arg41[%c0_111, %c0_112, %c0_113] : memref<2x1x256xf32, #tpu.memory_space<vmem>>, vector<1x1x256xf32>
    %108 = vector.shape_cast %107 : vector<1x1x256xf32> to vector<1x256xf32>
    %c0_114 = arith.constant 0 : index
    %c0_115 = arith.constant 0 : index
    %c0_116 = arith.constant 0 : index
    %109 = vector.load %arg42[%c0_114, %c0_115, %c0_116] : memref<2x256x64xf32, #tpu.memory_space<vmem>>, vector<1x256x64xf32>
    %110 = vector.shape_cast %109 : vector<1x256x64xf32> to vector<256x64xf32>
    %c0_117 = arith.constant 0 : index
    %c0_118 = arith.constant 0 : index
    %c0_119 = arith.constant 0 : index
    %111 = vector.load %arg43[%c0_117, %c0_118, %c0_119] : memref<2x1x64xf32, #tpu.memory_space<vmem>>, vector<1x1x64xf32>
    %112 = vector.shape_cast %111 : vector<1x1x64xf32> to vector<1x64xf32>
    %cst_120 = arith.constant dense<0.000000e+00> : vector<34xf32>
    %113 = vector.multi_reduction <add>, %72, %cst_120 [1] : vector<34x64xf32> to vector<34xf32>
    %114 = vector.shape_cast %113 : vector<34xf32> to vector<34x1xf32>
    %cst_121 = arith.constant 6.400000e+01 : f32
    %115 = vector.broadcast %cst_121 : f32 to vector<34x1xf32>
    %116 = arith.divf %114, %115 : vector<34x1xf32>
    %117 = vector.broadcast %116 : vector<34x1xf32> to vector<34x64xf32>
    %118 = arith.subf %72, %117 : vector<34x64xf32>
    %119 = arith.mulf %118, %118 : vector<34x64xf32>
    %cst_122 = arith.constant dense<0.000000e+00> : vector<34xf32>
    %120 = vector.multi_reduction <add>, %119, %cst_122 [1] : vector<34x64xf32> to vector<34xf32>
    %121 = vector.shape_cast %120 : vector<34xf32> to vector<34x1xf32>
    %cst_123 = arith.constant 6.400000e+01 : f32
    %122 = vector.broadcast %cst_123 : f32 to vector<34x1xf32>
    %123 = arith.divf %121, %122 : vector<34x1xf32>
    %124 = vector.broadcast %116 : vector<34x1xf32> to vector<34x64xf32>
    %125 = arith.subf %72, %124 : vector<34x64xf32>
    %cst_124 = arith.constant 9.99999974E-6 : f32
    %126 = vector.broadcast %cst_124 : f32 to vector<34x1xf32>
    %127 = arith.addf %123, %126 : vector<34x1xf32>
    %128 = math.rsqrt %127 : vector<34x1xf32>
    %129 = vector.broadcast %128 : vector<34x1xf32> to vector<34x64xf32>
    %130 = arith.mulf %125, %129 : vector<34x64xf32>
    %131 = vector.broadcast %74 : vector<1x64xf32> to vector<34x64xf32>
    %132 = arith.mulf %130, %131 : vector<34x64xf32>
    %133 = vector.broadcast %76 : vector<1x64xf32> to vector<34x64xf32>
    %134 = arith.addf %132, %133 : vector<34x64xf32>
    %cst_125 = arith.constant dense<0.000000e+00> : vector<34x192xf32>
    %135 = tpu.matmul %134, %78, %cst_125 {dimension_numbers = #tpu.dot_dimension_numbers<[1], [0], [0], [1], [0, 0, 1, 1], [], []>} : vector<34x64xf32>, vector<64x192xf32>, vector<34x192xf32> -> vector<34x192xf32>
    %136 = vector.broadcast %80 : vector<1x192xf32> to vector<34x192xf32>
    %137 = arith.addf %135, %136 : vector<34x192xf32>
    %138 = vector.extract_strided_slice %137 {offsets = [0, 0], sizes = [34, 64], strides = [1, 1]} : vector<34x192xf32> to vector<34x64xf32>
    %139 = vector.extract_strided_slice %137 {offsets = [0, 64], sizes = [34, 64], strides = [1, 1]} : vector<34x192xf32> to vector<34x64xf32>
    %140 = vector.extract_strided_slice %137 {offsets = [0, 128], sizes = [34, 64], strides = [1, 1]} : vector<34x192xf32> to vector<34x64xf32>
    %141 = vector.extract_strided_slice %138 {offsets = [0, 0], sizes = [34, 16], strides = [1, 1]} : vector<34x64xf32> to vector<34x16xf32>
    %142 = vector.extract_strided_slice %139 {offsets = [0, 0], sizes = [34, 16], strides = [1, 1]} : vector<34x64xf32> to vector<34x16xf32>
    %143 = vector.extract_strided_slice %140 {offsets = [0, 0], sizes = [34, 16], strides = [1, 1]} : vector<34x64xf32> to vector<34x16xf32>
    %cst_126 = arith.constant dense<0.000000e+00> : vector<34x34xf32>
    %144 = tpu.matmul %141, %142, %cst_126 {dimension_numbers = #tpu.dot_dimension_numbers<[1], [1], [0], [0], [0, 0, 1, 0], [], []>} : vector<34x16xf32>, vector<34x16xf32>, vector<34x34xf32> -> vector<34x34xf32>
    %cst_127 = arith.constant 2.500000e-01 : f32
    %145 = vector.broadcast %cst_127 : f32 to vector<34x34xf32>
    %146 = arith.mulf %144, %145 : vector<34x34xf32>
    %147 = arith.addf %146, %3 : vector<34x34xf32>
    %cst_128 = arith.constant dense<0xFF800000> : vector<34xf32>
    %148 = vector.multi_reduction <maximumf>, %147, %cst_128 [1] : vector<34x34xf32> to vector<34xf32>
    %149 = vector.shape_cast %148 : vector<34xf32> to vector<34x1xf32>
    %150 = vector.broadcast %149 : vector<34x1xf32> to vector<34x34xf32>
    %151 = arith.subf %147, %150 : vector<34x34xf32>
    %152 = math.exp %151 : vector<34x34xf32>
    %cst_129 = arith.constant dense<0.000000e+00> : vector<34xf32>
    %153 = vector.multi_reduction <add>, %152, %cst_129 [1] : vector<34x34xf32> to vector<34xf32>
    %154 = vector.shape_cast %153 : vector<34xf32> to vector<34x1xf32>
    %155 = tpu.reciprocal %154 {approx = true} : vector<34x1xf32> -> vector<34x1xf32>
    %156 = vector.broadcast %155 : vector<34x1xf32> to vector<34x34xf32>
    %157 = arith.mulf %152, %156 : vector<34x34xf32>
    %cst_130 = arith.constant dense<0.000000e+00> : vector<34x16xf32>
    %158 = tpu.matmul %157, %143, %cst_130 {dimension_numbers = #tpu.dot_dimension_numbers<[1], [0], [0], [1], [0, 0, 1, 1], [], []>} : vector<34x34xf32>, vector<34x16xf32>, vector<34x16xf32> -> vector<34x16xf32>
    %159 = vector.extract_strided_slice %138 {offsets = [0, 16], sizes = [34, 16], strides = [1, 1]} : vector<34x64xf32> to vector<34x16xf32>
    %160 = vector.extract_strided_slice %139 {offsets = [0, 16], sizes = [34, 16], strides = [1, 1]} : vector<34x64xf32> to vector<34x16xf32>
    %161 = vector.extract_strided_slice %140 {offsets = [0, 16], sizes = [34, 16], strides = [1, 1]} : vector<34x64xf32> to vector<34x16xf32>
    %cst_131 = arith.constant dense<0.000000e+00> : vector<34x34xf32>
    %162 = tpu.matmul %159, %160, %cst_131 {dimension_numbers = #tpu.dot_dimension_numbers<[1], [1], [0], [0], [0, 0, 1, 0], [], []>} : vector<34x16xf32>, vector<34x16xf32>, vector<34x34xf32> -> vector<34x34xf32>
    %cst_132 = arith.constant 2.500000e-01 : f32
    %163 = vector.broadcast %cst_132 : f32 to vector<34x34xf32>
    %164 = arith.mulf %162, %163 : vector<34x34xf32>
    %165 = arith.addf %164, %3 : vector<34x34xf32>
    %cst_133 = arith.constant dense<0xFF800000> : vector<34xf32>
    %166 = vector.multi_reduction <maximumf>, %165, %cst_133 [1] : vector<34x34xf32> to vector<34xf32>
    %167 = vector.shape_cast %166 : vector<34xf32> to vector<34x1xf32>
    %168 = vector.broadcast %167 : vector<34x1xf32> to vector<34x34xf32>
    %169 = arith.subf %165, %168 : vector<34x34xf32>
    %170 = math.exp %169 : vector<34x34xf32>
    %cst_134 = arith.constant dense<0.000000e+00> : vector<34xf32>
    %171 = vector.multi_reduction <add>, %170, %cst_134 [1] : vector<34x34xf32> to vector<34xf32>
    %172 = vector.shape_cast %171 : vector<34xf32> to vector<34x1xf32>
    %173 = tpu.reciprocal %172 {approx = true} : vector<34x1xf32> -> vector<34x1xf32>
    %174 = vector.broadcast %173 : vector<34x1xf32> to vector<34x34xf32>
    %175 = arith.mulf %170, %174 : vector<34x34xf32>
    %cst_135 = arith.constant dense<0.000000e+00> : vector<34x16xf32>
    %176 = tpu.matmul %175, %161, %cst_135 {dimension_numbers = #tpu.dot_dimension_numbers<[1], [0], [0], [1], [0, 0, 1, 1], [], []>} : vector<34x34xf32>, vector<34x16xf32>, vector<34x16xf32> -> vector<34x16xf32>
    %177 = vector.extract_strided_slice %138 {offsets = [0, 32], sizes = [34, 16], strides = [1, 1]} : vector<34x64xf32> to vector<34x16xf32>
    %178 = vector.extract_strided_slice %139 {offsets = [0, 32], sizes = [34, 16], strides = [1, 1]} : vector<34x64xf32> to vector<34x16xf32>
    %179 = vector.extract_strided_slice %140 {offsets = [0, 32], sizes = [34, 16], strides = [1, 1]} : vector<34x64xf32> to vector<34x16xf32>
    %cst_136 = arith.constant dense<0.000000e+00> : vector<34x34xf32>
    %180 = tpu.matmul %177, %178, %cst_136 {dimension_numbers = #tpu.dot_dimension_numbers<[1], [1], [0], [0], [0, 0, 1, 0], [], []>} : vector<34x16xf32>, vector<34x16xf32>, vector<34x34xf32> -> vector<34x34xf32>
    %cst_137 = arith.constant 2.500000e-01 : f32
    %181 = vector.broadcast %cst_137 : f32 to vector<34x34xf32>
    %182 = arith.mulf %180, %181 : vector<34x34xf32>
    %183 = arith.addf %182, %3 : vector<34x34xf32>
    %cst_138 = arith.constant dense<0xFF800000> : vector<34xf32>
    %184 = vector.multi_reduction <maximumf>, %183, %cst_138 [1] : vector<34x34xf32> to vector<34xf32>
    %185 = vector.shape_cast %184 : vector<34xf32> to vector<34x1xf32>
    %186 = vector.broadcast %185 : vector<34x1xf32> to vector<34x34xf32>
    %187 = arith.subf %183, %186 : vector<34x34xf32>
    %188 = math.exp %187 : vector<34x34xf32>
    %cst_139 = arith.constant dense<0.000000e+00> : vector<34xf32>
    %189 = vector.multi_reduction <add>, %188, %cst_139 [1] : vector<34x34xf32> to vector<34xf32>
    %190 = vector.shape_cast %189 : vector<34xf32> to vector<34x1xf32>
    %191 = tpu.reciprocal %190 {approx = true} : vector<34x1xf32> -> vector<34x1xf32>
    %192 = vector.broadcast %191 : vector<34x1xf32> to vector<34x34xf32>
    %193 = arith.mulf %188, %192 : vector<34x34xf32>
    %cst_140 = arith.constant dense<0.000000e+00> : vector<34x16xf32>
    %194 = tpu.matmul %193, %179, %cst_140 {dimension_numbers = #tpu.dot_dimension_numbers<[1], [0], [0], [1], [0, 0, 1, 1], [], []>} : vector<34x34xf32>, vector<34x16xf32>, vector<34x16xf32> -> vector<34x16xf32>
    %195 = vector.extract_strided_slice %138 {offsets = [0, 48], sizes = [34, 16], strides = [1, 1]} : vector<34x64xf32> to vector<34x16xf32>
    %196 = vector.extract_strided_slice %139 {offsets = [0, 48], sizes = [34, 16], strides = [1, 1]} : vector<34x64xf32> to vector<34x16xf32>
    %197 = vector.extract_strided_slice %140 {offsets = [0, 48], sizes = [34, 16], strides = [1, 1]} : vector<34x64xf32> to vector<34x16xf32>
    %cst_141 = arith.constant dense<0.000000e+00> : vector<34x34xf32>
    %198 = tpu.matmul %195, %196, %cst_141 {dimension_numbers = #tpu.dot_dimension_numbers<[1], [1], [0], [0], [0, 0, 1, 0], [], []>} : vector<34x16xf32>, vector<34x16xf32>, vector<34x34xf32> -> vector<34x34xf32>
    %cst_142 = arith.constant 2.500000e-01 : f32
    %199 = vector.broadcast %cst_142 : f32 to vector<34x34xf32>
    %200 = arith.mulf %198, %199 : vector<34x34xf32>
    %201 = arith.addf %200, %3 : vector<34x34xf32>
    %cst_143 = arith.constant dense<0xFF800000> : vector<34xf32>
    %202 = vector.multi_reduction <maximumf>, %201, %cst_143 [1] : vector<34x34xf32> to vector<34xf32>
    %203 = vector.shape_cast %202 : vector<34xf32> to vector<34x1xf32>
    %204 = vector.broadcast %203 : vector<34x1xf32> to vector<34x34xf32>
    %205 = arith.subf %201, %204 : vector<34x34xf32>
    %206 = math.exp %205 : vector<34x34xf32>
    %cst_144 = arith.constant dense<0.000000e+00> : vector<34xf32>
    %207 = vector.multi_reduction <add>, %206, %cst_144 [1] : vector<34x34xf32> to vector<34xf32>
    %208 = vector.shape_cast %207 : vector<34xf32> to vector<34x1xf32>
    %209 = tpu.reciprocal %208 {approx = true} : vector<34x1xf32> -> vector<34x1xf32>
    %210 = vector.broadcast %209 : vector<34x1xf32> to vector<34x34xf32>
    %211 = arith.mulf %206, %210 : vector<34x34xf32>
    %cst_145 = arith.constant dense<0.000000e+00> : vector<34x16xf32>
    %212 = tpu.matmul %211, %197, %cst_145 {dimension_numbers = #tpu.dot_dimension_numbers<[1], [0], [0], [1], [0, 0, 1, 1], [], []>} : vector<34x34xf32>, vector<34x16xf32>, vector<34x16xf32> -> vector<34x16xf32>
    %213 = tpu.concatenate %158, %176, %194, %212 in 1 : vector<34x16xf32>, vector<34x16xf32>, vector<34x16xf32>, vector<34x16xf32> -> vector<34x64xf32>
    %cst_146 = arith.constant dense<0.000000e+00> : vector<34x64xf32>
    %214 = tpu.matmul %213, %82, %cst_146 {dimension_numbers = #tpu.dot_dimension_numbers<[1], [0], [0], [1], [0, 0, 1, 1], [], []>} : vector<34x64xf32>, vector<64x64xf32>, vector<34x64xf32> -> vector<34x64xf32>
    %215 = vector.broadcast %84 : vector<1x64xf32> to vector<34x64xf32>
    %216 = arith.addf %214, %215 : vector<34x64xf32>
    %217 = arith.addf %72, %216 : vector<34x64xf32>
    %cst_147 = arith.constant dense<0.000000e+00> : vector<34xf32>
    %218 = vector.multi_reduction <add>, %217, %cst_147 [1] : vector<34x64xf32> to vector<34xf32>
    %219 = vector.shape_cast %218 : vector<34xf32> to vector<34x1xf32>
    %cst_148 = arith.constant 6.400000e+01 : f32
    %220 = vector.broadcast %cst_148 : f32 to vector<34x1xf32>
    %221 = arith.divf %219, %220 : vector<34x1xf32>
    %222 = vector.broadcast %221 : vector<34x1xf32> to vector<34x64xf32>
    %223 = arith.subf %217, %222 : vector<34x64xf32>
    %224 = arith.mulf %223, %223 : vector<34x64xf32>
    %cst_149 = arith.constant dense<0.000000e+00> : vector<34xf32>
    %225 = vector.multi_reduction <add>, %224, %cst_149 [1] : vector<34x64xf32> to vector<34xf32>
    %226 = vector.shape_cast %225 : vector<34xf32> to vector<34x1xf32>
    %cst_150 = arith.constant 6.400000e+01 : f32
    %227 = vector.broadcast %cst_150 : f32 to vector<34x1xf32>
    %228 = arith.divf %226, %227 : vector<34x1xf32>
    %229 = vector.broadcast %221 : vector<34x1xf32> to vector<34x64xf32>
    %230 = arith.subf %217, %229 : vector<34x64xf32>
    %cst_151 = arith.constant 9.99999974E-6 : f32
    %231 = vector.broadcast %cst_151 : f32 to vector<34x1xf32>
    %232 = arith.addf %228, %231 : vector<34x1xf32>
    %233 = math.rsqrt %232 : vector<34x1xf32>
    %234 = vector.broadcast %233 : vector<34x1xf32> to vector<34x64xf32>
    %235 = arith.mulf %230, %234 : vector<34x64xf32>
    %236 = vector.broadcast %86 : vector<1x64xf32> to vector<34x64xf32>
    %237 = arith.mulf %235, %236 : vector<34x64xf32>
    %238 = vector.broadcast %88 : vector<1x64xf32> to vector<34x64xf32>
    %239 = arith.addf %237, %238 : vector<34x64xf32>
    %cst_152 = arith.constant dense<0.000000e+00> : vector<34x64xf32>
    %240 = tpu.matmul %239, %90, %cst_152 {dimension_numbers = #tpu.dot_dimension_numbers<[1], [0], [0], [1], [0, 0, 1, 1], [], []>} : vector<34x64xf32>, vector<64x64xf32>, vector<34x64xf32> -> vector<34x64xf32>
    %241 = vector.broadcast %92 : vector<1x64xf32> to vector<34x64xf32>
    %242 = arith.addf %240, %241 : vector<34x64xf32>
    %cst_153 = arith.constant dense<0.000000e+00> : vector<16x128xf32>
    %243 = tpu.matmul %59, %94, %cst_153 {dimension_numbers = #tpu.dot_dimension_numbers<[1], [0], [0], [1], [0, 0, 1, 1], [], []>} : vector<16x64xf32>, vector<64x128xf32>, vector<16x128xf32> -> vector<16x128xf32>
    %244 = vector.broadcast %96 : vector<1x128xf32> to vector<16x128xf32>
    %245 = arith.addf %243, %244 : vector<16x128xf32>
    %246 = vector.extract_strided_slice %245 {offsets = [0, 0], sizes = [16, 64], strides = [1, 1]} : vector<16x128xf32> to vector<16x64xf32>
    %247 = vector.extract_strided_slice %245 {offsets = [0, 64], sizes = [16, 64], strides = [1, 1]} : vector<16x128xf32> to vector<16x64xf32>
    %248 = vector.extract_strided_slice %242 {offsets = [0, 0], sizes = [34, 16], strides = [1, 1]} : vector<34x64xf32> to vector<34x16xf32>
    %249 = vector.extract_strided_slice %246 {offsets = [0, 0], sizes = [16, 16], strides = [1, 1]} : vector<16x64xf32> to vector<16x16xf32>
    %250 = vector.extract_strided_slice %247 {offsets = [0, 0], sizes = [16, 16], strides = [1, 1]} : vector<16x64xf32> to vector<16x16xf32>
    %cst_154 = arith.constant dense<0.000000e+00> : vector<34x16xf32>
    %251 = tpu.matmul %248, %249, %cst_154 {dimension_numbers = #tpu.dot_dimension_numbers<[1], [1], [0], [0], [0, 0, 1, 0], [], []>} : vector<34x16xf32>, vector<16x16xf32>, vector<34x16xf32> -> vector<34x16xf32>
    %cst_155 = arith.constant 2.500000e-01 : f32
    %252 = vector.broadcast %cst_155 : f32 to vector<34x16xf32>
    %253 = arith.mulf %251, %252 : vector<34x16xf32>
    %254 = arith.addf %253, %4 : vector<34x16xf32>
    %cst_156 = arith.constant dense<0xFF800000> : vector<34xf32>
    %255 = vector.multi_reduction <maximumf>, %254, %cst_156 [1] : vector<34x16xf32> to vector<34xf32>
    %256 = vector.shape_cast %255 : vector<34xf32> to vector<34x1xf32>
    %257 = vector.broadcast %256 : vector<34x1xf32> to vector<34x16xf32>
    %258 = arith.subf %254, %257 : vector<34x16xf32>
    %259 = math.exp %258 : vector<34x16xf32>
    %cst_157 = arith.constant dense<0.000000e+00> : vector<34xf32>
    %260 = vector.multi_reduction <add>, %259, %cst_157 [1] : vector<34x16xf32> to vector<34xf32>
    %261 = vector.shape_cast %260 : vector<34xf32> to vector<34x1xf32>
    %262 = tpu.reciprocal %261 {approx = true} : vector<34x1xf32> -> vector<34x1xf32>
    %263 = vector.broadcast %262 : vector<34x1xf32> to vector<34x16xf32>
    %264 = arith.mulf %259, %263 : vector<34x16xf32>
    %cst_158 = arith.constant dense<0.000000e+00> : vector<34x16xf32>
    %265 = tpu.matmul %264, %250, %cst_158 {dimension_numbers = #tpu.dot_dimension_numbers<[1], [0], [0], [1], [0, 0, 1, 1], [], []>} : vector<34x16xf32>, vector<16x16xf32>, vector<34x16xf32> -> vector<34x16xf32>
    %266 = vector.extract_strided_slice %242 {offsets = [0, 16], sizes = [34, 16], strides = [1, 1]} : vector<34x64xf32> to vector<34x16xf32>
    %267 = vector.extract_strided_slice %246 {offsets = [0, 16], sizes = [16, 16], strides = [1, 1]} : vector<16x64xf32> to vector<16x16xf32>
    %268 = vector.extract_strided_slice %247 {offsets = [0, 16], sizes = [16, 16], strides = [1, 1]} : vector<16x64xf32> to vector<16x16xf32>
    %cst_159 = arith.constant dense<0.000000e+00> : vector<34x16xf32>
    %269 = tpu.matmul %266, %267, %cst_159 {dimension_numbers = #tpu.dot_dimension_numbers<[1], [1], [0], [0], [0, 0, 1, 0], [], []>} : vector<34x16xf32>, vector<16x16xf32>, vector<34x16xf32> -> vector<34x16xf32>
    %cst_160 = arith.constant 2.500000e-01 : f32
    %270 = vector.broadcast %cst_160 : f32 to vector<34x16xf32>
    %271 = arith.mulf %269, %270 : vector<34x16xf32>
    %272 = arith.addf %271, %4 : vector<34x16xf32>
    %cst_161 = arith.constant dense<0xFF800000> : vector<34xf32>
    %273 = vector.multi_reduction <maximumf>, %272, %cst_161 [1] : vector<34x16xf32> to vector<34xf32>
    %274 = vector.shape_cast %273 : vector<34xf32> to vector<34x1xf32>
    %275 = vector.broadcast %274 : vector<34x1xf32> to vector<34x16xf32>
    %276 = arith.subf %272, %275 : vector<34x16xf32>
    %277 = math.exp %276 : vector<34x16xf32>
    %cst_162 = arith.constant dense<0.000000e+00> : vector<34xf32>
    %278 = vector.multi_reduction <add>, %277, %cst_162 [1] : vector<34x16xf32> to vector<34xf32>
    %279 = vector.shape_cast %278 : vector<34xf32> to vector<34x1xf32>
    %280 = tpu.reciprocal %279 {approx = true} : vector<34x1xf32> -> vector<34x1xf32>
    %281 = vector.broadcast %280 : vector<34x1xf32> to vector<34x16xf32>
    %282 = arith.mulf %277, %281 : vector<34x16xf32>
    %cst_163 = arith.constant dense<0.000000e+00> : vector<34x16xf32>
    %283 = tpu.matmul %282, %268, %cst_163 {dimension_numbers = #tpu.dot_dimension_numbers<[1], [0], [0], [1], [0, 0, 1, 1], [], []>} : vector<34x16xf32>, vector<16x16xf32>, vector<34x16xf32> -> vector<34x16xf32>
    %284 = vector.extract_strided_slice %242 {offsets = [0, 32], sizes = [34, 16], strides = [1, 1]} : vector<34x64xf32> to vector<34x16xf32>
    %285 = vector.extract_strided_slice %246 {offsets = [0, 32], sizes = [16, 16], strides = [1, 1]} : vector<16x64xf32> to vector<16x16xf32>
    %286 = vector.extract_strided_slice %247 {offsets = [0, 32], sizes = [16, 16], strides = [1, 1]} : vector<16x64xf32> to vector<16x16xf32>
    %cst_164 = arith.constant dense<0.000000e+00> : vector<34x16xf32>
    %287 = tpu.matmul %284, %285, %cst_164 {dimension_numbers = #tpu.dot_dimension_numbers<[1], [1], [0], [0], [0, 0, 1, 0], [], []>} : vector<34x16xf32>, vector<16x16xf32>, vector<34x16xf32> -> vector<34x16xf32>
    %cst_165 = arith.constant 2.500000e-01 : f32
    %288 = vector.broadcast %cst_165 : f32 to vector<34x16xf32>
    %289 = arith.mulf %287, %288 : vector<34x16xf32>
    %290 = arith.addf %289, %4 : vector<34x16xf32>
    %cst_166 = arith.constant dense<0xFF800000> : vector<34xf32>
    %291 = vector.multi_reduction <maximumf>, %290, %cst_166 [1] : vector<34x16xf32> to vector<34xf32>
    %292 = vector.shape_cast %291 : vector<34xf32> to vector<34x1xf32>
    %293 = vector.broadcast %292 : vector<34x1xf32> to vector<34x16xf32>
    %294 = arith.subf %290, %293 : vector<34x16xf32>
    %295 = math.exp %294 : vector<34x16xf32>
    %cst_167 = arith.constant dense<0.000000e+00> : vector<34xf32>
    %296 = vector.multi_reduction <add>, %295, %cst_167 [1] : vector<34x16xf32> to vector<34xf32>
    %297 = vector.shape_cast %296 : vector<34xf32> to vector<34x1xf32>
    %298 = tpu.reciprocal %297 {approx = true} : vector<34x1xf32> -> vector<34x1xf32>
    %299 = vector.broadcast %298 : vector<34x1xf32> to vector<34x16xf32>
    %300 = arith.mulf %295, %299 : vector<34x16xf32>
    %cst_168 = arith.constant dense<0.000000e+00> : vector<34x16xf32>
    %301 = tpu.matmul %300, %286, %cst_168 {dimension_numbers = #tpu.dot_dimension_numbers<[1], [0], [0], [1], [0, 0, 1, 1], [], []>} : vector<34x16xf32>, vector<16x16xf32>, vector<34x16xf32> -> vector<34x16xf32>
    %302 = vector.extract_strided_slice %242 {offsets = [0, 48], sizes = [34, 16], strides = [1, 1]} : vector<34x64xf32> to vector<34x16xf32>
    %303 = vector.extract_strided_slice %246 {offsets = [0, 48], sizes = [16, 16], strides = [1, 1]} : vector<16x64xf32> to vector<16x16xf32>
    %304 = vector.extract_strided_slice %247 {offsets = [0, 48], sizes = [16, 16], strides = [1, 1]} : vector<16x64xf32> to vector<16x16xf32>
    %cst_169 = arith.constant dense<0.000000e+00> : vector<34x16xf32>
    %305 = tpu.matmul %302, %303, %cst_169 {dimension_numbers = #tpu.dot_dimension_numbers<[1], [1], [0], [0], [0, 0, 1, 0], [], []>} : vector<34x16xf32>, vector<16x16xf32>, vector<34x16xf32> -> vector<34x16xf32>
    %cst_170 = arith.constant 2.500000e-01 : f32
    %306 = vector.broadcast %cst_170 : f32 to vector<34x16xf32>
    %307 = arith.mulf %305, %306 : vector<34x16xf32>
    %308 = arith.addf %307, %4 : vector<34x16xf32>
    %cst_171 = arith.constant dense<0xFF800000> : vector<34xf32>
    %309 = vector.multi_reduction <maximumf>, %308, %cst_171 [1] : vector<34x16xf32> to vector<34xf32>
    %310 = vector.shape_cast %309 : vector<34xf32> to vector<34x1xf32>
    %311 = vector.broadcast %310 : vector<34x1xf32> to vector<34x16xf32>
    %312 = arith.subf %308, %311 : vector<34x16xf32>
    %313 = math.exp %312 : vector<34x16xf32>
    %cst_172 = arith.constant dense<0.000000e+00> : vector<34xf32>
    %314 = vector.multi_reduction <add>, %313, %cst_172 [1] : vector<34x16xf32> to vector<34xf32>
    %315 = vector.shape_cast %314 : vector<34xf32> to vector<34x1xf32>
    %316 = tpu.reciprocal %315 {approx = true} : vector<34x1xf32> -> vector<34x1xf32>
    %317 = vector.broadcast %316 : vector<34x1xf32> to vector<34x16xf32>
    %318 = arith.mulf %313, %317 : vector<34x16xf32>
    %cst_173 = arith.constant dense<0.000000e+00> : vector<34x16xf32>
    %319 = tpu.matmul %318, %304, %cst_173 {dimension_numbers = #tpu.dot_dimension_numbers<[1], [0], [0], [1], [0, 0, 1, 1], [], []>} : vector<34x16xf32>, vector<16x16xf32>, vector<34x16xf32> -> vector<34x16xf32>
    %320 = tpu.concatenate %265, %283, %301, %319 in 1 : vector<34x16xf32>, vector<34x16xf32>, vector<34x16xf32>, vector<34x16xf32> -> vector<34x64xf32>
    %cst_174 = arith.constant dense<0.000000e+00> : vector<34x64xf32>
    %321 = tpu.matmul %320, %98, %cst_174 {dimension_numbers = #tpu.dot_dimension_numbers<[1], [0], [0], [1], [0, 0, 1, 1], [], []>} : vector<34x64xf32>, vector<64x64xf32>, vector<34x64xf32> -> vector<34x64xf32>
    %322 = vector.broadcast %100 : vector<1x64xf32> to vector<34x64xf32>
    %323 = arith.addf %321, %322 : vector<34x64xf32>
    %324 = arith.addf %217, %323 : vector<34x64xf32>
    %cst_175 = arith.constant dense<0.000000e+00> : vector<34xf32>
    %325 = vector.multi_reduction <add>, %324, %cst_175 [1] : vector<34x64xf32> to vector<34xf32>
    %326 = vector.shape_cast %325 : vector<34xf32> to vector<34x1xf32>
    %cst_176 = arith.constant 6.400000e+01 : f32
    %327 = vector.broadcast %cst_176 : f32 to vector<34x1xf32>
    %328 = arith.divf %326, %327 : vector<34x1xf32>
    %329 = vector.broadcast %328 : vector<34x1xf32> to vector<34x64xf32>
    %330 = arith.subf %324, %329 : vector<34x64xf32>
    %331 = arith.mulf %330, %330 : vector<34x64xf32>
    %cst_177 = arith.constant dense<0.000000e+00> : vector<34xf32>
    %332 = vector.multi_reduction <add>, %331, %cst_177 [1] : vector<34x64xf32> to vector<34xf32>
    %333 = vector.shape_cast %332 : vector<34xf32> to vector<34x1xf32>
    %cst_178 = arith.constant 6.400000e+01 : f32
    %334 = vector.broadcast %cst_178 : f32 to vector<34x1xf32>
    %335 = arith.divf %333, %334 : vector<34x1xf32>
    %336 = vector.broadcast %328 : vector<34x1xf32> to vector<34x64xf32>
    %337 = arith.subf %324, %336 : vector<34x64xf32>
    %cst_179 = arith.constant 9.99999974E-6 : f32
    %338 = vector.broadcast %cst_179 : f32 to vector<34x1xf32>
    %339 = arith.addf %335, %338 : vector<34x1xf32>
    %340 = math.rsqrt %339 : vector<34x1xf32>
    %341 = vector.broadcast %340 : vector<34x1xf32> to vector<34x64xf32>
    %342 = arith.mulf %337, %341 : vector<34x64xf32>
    %343 = vector.broadcast %102 : vector<1x64xf32> to vector<34x64xf32>
    %344 = arith.mulf %342, %343 : vector<34x64xf32>
    %345 = vector.broadcast %104 : vector<1x64xf32> to vector<34x64xf32>
    %346 = arith.addf %344, %345 : vector<34x64xf32>
    %cst_180 = arith.constant dense<0.000000e+00> : vector<34x256xf32>
    %347 = tpu.matmul %346, %106, %cst_180 {dimension_numbers = #tpu.dot_dimension_numbers<[1], [0], [0], [1], [0, 0, 1, 1], [], []>} : vector<34x64xf32>, vector<64x256xf32>, vector<34x256xf32> -> vector<34x256xf32>
    %348 = vector.broadcast %108 : vector<1x256xf32> to vector<34x256xf32>
    %349 = arith.addf %347, %348 : vector<34x256xf32>
    %350 = arith.mulf %349, %349 : vector<34x256xf32>
    %351 = arith.mulf %349, %350 : vector<34x256xf32>
    %cst_181 = arith.constant 4.471500e-02 : f32
    %352 = vector.broadcast %cst_181 : f32 to vector<34x256xf32>
    %353 = arith.mulf %352, %351 : vector<34x256xf32>
    %354 = arith.addf %349, %353 : vector<34x256xf32>
    %cst_182 = arith.constant 0.797884583 : f32
    %355 = vector.broadcast %cst_182 : f32 to vector<34x256xf32>
    %356 = arith.mulf %355, %354 : vector<34x256xf32>
    %357 = math.tanh %356 : vector<34x256xf32>
    %cst_183 = arith.constant 1.000000e+00 : f32
    %358 = vector.broadcast %cst_183 : f32 to vector<34x256xf32>
    %359 = arith.addf %358, %357 : vector<34x256xf32>
    %cst_184 = arith.constant 5.000000e-01 : f32
    %360 = vector.broadcast %cst_184 : f32 to vector<34x256xf32>
    %361 = arith.mulf %360, %359 : vector<34x256xf32>
    %362 = arith.mulf %349, %361 : vector<34x256xf32>
    %cst_185 = arith.constant dense<0.000000e+00> : vector<34x64xf32>
    %363 = tpu.matmul %362, %110, %cst_185 {dimension_numbers = #tpu.dot_dimension_numbers<[1], [0], [0], [1], [0, 0, 1, 1], [], []>} : vector<34x256xf32>, vector<256x64xf32>, vector<34x64xf32> -> vector<34x64xf32>
    %364 = vector.broadcast %112 : vector<1x64xf32> to vector<34x64xf32>
    %365 = arith.addf %363, %364 : vector<34x64xf32>
    %366 = arith.addf %324, %365 : vector<34x64xf32>
    %c1_186 = arith.constant 1 : index
    %c0_187 = arith.constant 0 : index
    %c0_188 = arith.constant 0 : index
    %367 = vector.load %arg24[%c1_186, %c0_187, %c0_188] : memref<2x1x64xf32, #tpu.memory_space<vmem>>, vector<1x1x64xf32>
    %368 = vector.shape_cast %367 : vector<1x1x64xf32> to vector<1x64xf32>
    %c1_189 = arith.constant 1 : index
    %c0_190 = arith.constant 0 : index
    %c0_191 = arith.constant 0 : index
    %369 = vector.load %arg25[%c1_189, %c0_190, %c0_191] : memref<2x1x64xf32, #tpu.memory_space<vmem>>, vector<1x1x64xf32>
    %370 = vector.shape_cast %369 : vector<1x1x64xf32> to vector<1x64xf32>
    %c1_192 = arith.constant 1 : index
    %c0_193 = arith.constant 0 : index
    %c0_194 = arith.constant 0 : index
    %371 = vector.load %arg26[%c1_192, %c0_193, %c0_194] : memref<2x64x192xf32, #tpu.memory_space<vmem>>, vector<1x64x192xf32>
    %372 = vector.shape_cast %371 : vector<1x64x192xf32> to vector<64x192xf32>
    %c1_195 = arith.constant 1 : index
    %c0_196 = arith.constant 0 : index
    %c0_197 = arith.constant 0 : index
    %373 = vector.load %arg27[%c1_195, %c0_196, %c0_197] : memref<2x1x192xf32, #tpu.memory_space<vmem>>, vector<1x1x192xf32>
    %374 = vector.shape_cast %373 : vector<1x1x192xf32> to vector<1x192xf32>
    %c1_198 = arith.constant 1 : index
    %c0_199 = arith.constant 0 : index
    %c0_200 = arith.constant 0 : index
    %375 = vector.load %arg28[%c1_198, %c0_199, %c0_200] : memref<2x64x64xf32, #tpu.memory_space<vmem>>, vector<1x64x64xf32>
    %376 = vector.shape_cast %375 : vector<1x64x64xf32> to vector<64x64xf32>
    %c1_201 = arith.constant 1 : index
    %c0_202 = arith.constant 0 : index
    %c0_203 = arith.constant 0 : index
    %377 = vector.load %arg29[%c1_201, %c0_202, %c0_203] : memref<2x1x64xf32, #tpu.memory_space<vmem>>, vector<1x1x64xf32>
    %378 = vector.shape_cast %377 : vector<1x1x64xf32> to vector<1x64xf32>
    %c1_204 = arith.constant 1 : index
    %c0_205 = arith.constant 0 : index
    %c0_206 = arith.constant 0 : index
    %379 = vector.load %arg30[%c1_204, %c0_205, %c0_206] : memref<2x1x64xf32, #tpu.memory_space<vmem>>, vector<1x1x64xf32>
    %380 = vector.shape_cast %379 : vector<1x1x64xf32> to vector<1x64xf32>
    %c1_207 = arith.constant 1 : index
    %c0_208 = arith.constant 0 : index
    %c0_209 = arith.constant 0 : index
    %381 = vector.load %arg31[%c1_207, %c0_208, %c0_209] : memref<2x1x64xf32, #tpu.memory_space<vmem>>, vector<1x1x64xf32>
    %382 = vector.shape_cast %381 : vector<1x1x64xf32> to vector<1x64xf32>
    %c1_210 = arith.constant 1 : index
    %c0_211 = arith.constant 0 : index
    %c0_212 = arith.constant 0 : index
    %383 = vector.load %arg32[%c1_210, %c0_211, %c0_212] : memref<2x64x64xf32, #tpu.memory_space<vmem>>, vector<1x64x64xf32>
    %384 = vector.shape_cast %383 : vector<1x64x64xf32> to vector<64x64xf32>
    %c1_213 = arith.constant 1 : index
    %c0_214 = arith.constant 0 : index
    %c0_215 = arith.constant 0 : index
    %385 = vector.load %arg33[%c1_213, %c0_214, %c0_215] : memref<2x1x64xf32, #tpu.memory_space<vmem>>, vector<1x1x64xf32>
    %386 = vector.shape_cast %385 : vector<1x1x64xf32> to vector<1x64xf32>
    %c1_216 = arith.constant 1 : index
    %c0_217 = arith.constant 0 : index
    %c0_218 = arith.constant 0 : index
    %387 = vector.load %arg34[%c1_216, %c0_217, %c0_218] : memref<2x64x128xf32, #tpu.memory_space<vmem>>, vector<1x64x128xf32>
    %388 = vector.shape_cast %387 : vector<1x64x128xf32> to vector<64x128xf32>
    %c1_219 = arith.constant 1 : index
    %c0_220 = arith.constant 0 : index
    %c0_221 = arith.constant 0 : index
    %389 = vector.load %arg35[%c1_219, %c0_220, %c0_221] : memref<2x1x128xf32, #tpu.memory_space<vmem>>, vector<1x1x128xf32>
    %390 = vector.shape_cast %389 : vector<1x1x128xf32> to vector<1x128xf32>
    %c1_222 = arith.constant 1 : index
    %c0_223 = arith.constant 0 : index
    %c0_224 = arith.constant 0 : index
    %391 = vector.load %arg36[%c1_222, %c0_223, %c0_224] : memref<2x64x64xf32, #tpu.memory_space<vmem>>, vector<1x64x64xf32>
    %392 = vector.shape_cast %391 : vector<1x64x64xf32> to vector<64x64xf32>
    %c1_225 = arith.constant 1 : index
    %c0_226 = arith.constant 0 : index
    %c0_227 = arith.constant 0 : index
    %393 = vector.load %arg37[%c1_225, %c0_226, %c0_227] : memref<2x1x64xf32, #tpu.memory_space<vmem>>, vector<1x1x64xf32>
    %394 = vector.shape_cast %393 : vector<1x1x64xf32> to vector<1x64xf32>
    %c1_228 = arith.constant 1 : index
    %c0_229 = arith.constant 0 : index
    %c0_230 = arith.constant 0 : index
    %395 = vector.load %arg38[%c1_228, %c0_229, %c0_230] : memref<2x1x64xf32, #tpu.memory_space<vmem>>, vector<1x1x64xf32>
    %396 = vector.shape_cast %395 : vector<1x1x64xf32> to vector<1x64xf32>
    %c1_231 = arith.constant 1 : index
    %c0_232 = arith.constant 0 : index
    %c0_233 = arith.constant 0 : index
    %397 = vector.load %arg39[%c1_231, %c0_232, %c0_233] : memref<2x1x64xf32, #tpu.memory_space<vmem>>, vector<1x1x64xf32>
    %398 = vector.shape_cast %397 : vector<1x1x64xf32> to vector<1x64xf32>
    %c1_234 = arith.constant 1 : index
    %c0_235 = arith.constant 0 : index
    %c0_236 = arith.constant 0 : index
    %399 = vector.load %arg40[%c1_234, %c0_235, %c0_236] : memref<2x64x256xf32, #tpu.memory_space<vmem>>, vector<1x64x256xf32>
    %400 = vector.shape_cast %399 : vector<1x64x256xf32> to vector<64x256xf32>
    %c1_237 = arith.constant 1 : index
    %c0_238 = arith.constant 0 : index
    %c0_239 = arith.constant 0 : index
    %401 = vector.load %arg41[%c1_237, %c0_238, %c0_239] : memref<2x1x256xf32, #tpu.memory_space<vmem>>, vector<1x1x256xf32>
    %402 = vector.shape_cast %401 : vector<1x1x256xf32> to vector<1x256xf32>
    %c1_240 = arith.constant 1 : index
    %c0_241 = arith.constant 0 : index
    %c0_242 = arith.constant 0 : index
    %403 = vector.load %arg42[%c1_240, %c0_241, %c0_242] : memref<2x256x64xf32, #tpu.memory_space<vmem>>, vector<1x256x64xf32>
    %404 = vector.shape_cast %403 : vector<1x256x64xf32> to vector<256x64xf32>
    %c1_243 = arith.constant 1 : index
    %c0_244 = arith.constant 0 : index
    %c0_245 = arith.constant 0 : index
    %405 = vector.load %arg43[%c1_243, %c0_244, %c0_245] : memref<2x1x64xf32, #tpu.memory_space<vmem>>, vector<1x1x64xf32>
    %406 = vector.shape_cast %405 : vector<1x1x64xf32> to vector<1x64xf32>
    %cst_246 = arith.constant dense<0.000000e+00> : vector<34xf32>
    %407 = vector.multi_reduction <add>, %366, %cst_246 [1] : vector<34x64xf32> to vector<34xf32>
    %408 = vector.shape_cast %407 : vector<34xf32> to vector<34x1xf32>
    %cst_247 = arith.constant 6.400000e+01 : f32
    %409 = vector.broadcast %cst_247 : f32 to vector<34x1xf32>
    %410 = arith.divf %408, %409 : vector<34x1xf32>
    %411 = vector.broadcast %410 : vector<34x1xf32> to vector<34x64xf32>
    %412 = arith.subf %366, %411 : vector<34x64xf32>
    %413 = arith.mulf %412, %412 : vector<34x64xf32>
    %cst_248 = arith.constant dense<0.000000e+00> : vector<34xf32>
    %414 = vector.multi_reduction <add>, %413, %cst_248 [1] : vector<34x64xf32> to vector<34xf32>
    %415 = vector.shape_cast %414 : vector<34xf32> to vector<34x1xf32>
    %cst_249 = arith.constant 6.400000e+01 : f32
    %416 = vector.broadcast %cst_249 : f32 to vector<34x1xf32>
    %417 = arith.divf %415, %416 : vector<34x1xf32>
    %418 = vector.broadcast %410 : vector<34x1xf32> to vector<34x64xf32>
    %419 = arith.subf %366, %418 : vector<34x64xf32>
    %cst_250 = arith.constant 9.99999974E-6 : f32
    %420 = vector.broadcast %cst_250 : f32 to vector<34x1xf32>
    %421 = arith.addf %417, %420 : vector<34x1xf32>
    %422 = math.rsqrt %421 : vector<34x1xf32>
    %423 = vector.broadcast %422 : vector<34x1xf32> to vector<34x64xf32>
    %424 = arith.mulf %419, %423 : vector<34x64xf32>
    %425 = vector.broadcast %368 : vector<1x64xf32> to vector<34x64xf32>
    %426 = arith.mulf %424, %425 : vector<34x64xf32>
    %427 = vector.broadcast %370 : vector<1x64xf32> to vector<34x64xf32>
    %428 = arith.addf %426, %427 : vector<34x64xf32>
    %cst_251 = arith.constant dense<0.000000e+00> : vector<34x192xf32>
    %429 = tpu.matmul %428, %372, %cst_251 {dimension_numbers = #tpu.dot_dimension_numbers<[1], [0], [0], [1], [0, 0, 1, 1], [], []>} : vector<34x64xf32>, vector<64x192xf32>, vector<34x192xf32> -> vector<34x192xf32>
    %430 = vector.broadcast %374 : vector<1x192xf32> to vector<34x192xf32>
    %431 = arith.addf %429, %430 : vector<34x192xf32>
    %432 = vector.extract_strided_slice %431 {offsets = [0, 0], sizes = [34, 64], strides = [1, 1]} : vector<34x192xf32> to vector<34x64xf32>
    %433 = vector.extract_strided_slice %431 {offsets = [0, 64], sizes = [34, 64], strides = [1, 1]} : vector<34x192xf32> to vector<34x64xf32>
    %434 = vector.extract_strided_slice %431 {offsets = [0, 128], sizes = [34, 64], strides = [1, 1]} : vector<34x192xf32> to vector<34x64xf32>
    %435 = vector.extract_strided_slice %432 {offsets = [0, 0], sizes = [34, 16], strides = [1, 1]} : vector<34x64xf32> to vector<34x16xf32>
    %436 = vector.extract_strided_slice %433 {offsets = [0, 0], sizes = [34, 16], strides = [1, 1]} : vector<34x64xf32> to vector<34x16xf32>
    %437 = vector.extract_strided_slice %434 {offsets = [0, 0], sizes = [34, 16], strides = [1, 1]} : vector<34x64xf32> to vector<34x16xf32>
    %cst_252 = arith.constant dense<0.000000e+00> : vector<34x34xf32>
    %438 = tpu.matmul %435, %436, %cst_252 {dimension_numbers = #tpu.dot_dimension_numbers<[1], [1], [0], [0], [0, 0, 1, 0], [], []>} : vector<34x16xf32>, vector<34x16xf32>, vector<34x34xf32> -> vector<34x34xf32>
    %cst_253 = arith.constant 2.500000e-01 : f32
    %439 = vector.broadcast %cst_253 : f32 to vector<34x34xf32>
    %440 = arith.mulf %438, %439 : vector<34x34xf32>
    %441 = arith.addf %440, %3 : vector<34x34xf32>
    %cst_254 = arith.constant dense<0xFF800000> : vector<34xf32>
    %442 = vector.multi_reduction <maximumf>, %441, %cst_254 [1] : vector<34x34xf32> to vector<34xf32>
    %443 = vector.shape_cast %442 : vector<34xf32> to vector<34x1xf32>
    %444 = vector.broadcast %443 : vector<34x1xf32> to vector<34x34xf32>
    %445 = arith.subf %441, %444 : vector<34x34xf32>
    %446 = math.exp %445 : vector<34x34xf32>
    %cst_255 = arith.constant dense<0.000000e+00> : vector<34xf32>
    %447 = vector.multi_reduction <add>, %446, %cst_255 [1] : vector<34x34xf32> to vector<34xf32>
    %448 = vector.shape_cast %447 : vector<34xf32> to vector<34x1xf32>
    %449 = tpu.reciprocal %448 {approx = true} : vector<34x1xf32> -> vector<34x1xf32>
    %450 = vector.broadcast %449 : vector<34x1xf32> to vector<34x34xf32>
    %451 = arith.mulf %446, %450 : vector<34x34xf32>
    %cst_256 = arith.constant dense<0.000000e+00> : vector<34x16xf32>
    %452 = tpu.matmul %451, %437, %cst_256 {dimension_numbers = #tpu.dot_dimension_numbers<[1], [0], [0], [1], [0, 0, 1, 1], [], []>} : vector<34x34xf32>, vector<34x16xf32>, vector<34x16xf32> -> vector<34x16xf32>
    %453 = vector.extract_strided_slice %432 {offsets = [0, 16], sizes = [34, 16], strides = [1, 1]} : vector<34x64xf32> to vector<34x16xf32>
    %454 = vector.extract_strided_slice %433 {offsets = [0, 16], sizes = [34, 16], strides = [1, 1]} : vector<34x64xf32> to vector<34x16xf32>
    %455 = vector.extract_strided_slice %434 {offsets = [0, 16], sizes = [34, 16], strides = [1, 1]} : vector<34x64xf32> to vector<34x16xf32>
    %cst_257 = arith.constant dense<0.000000e+00> : vector<34x34xf32>
    %456 = tpu.matmul %453, %454, %cst_257 {dimension_numbers = #tpu.dot_dimension_numbers<[1], [1], [0], [0], [0, 0, 1, 0], [], []>} : vector<34x16xf32>, vector<34x16xf32>, vector<34x34xf32> -> vector<34x34xf32>
    %cst_258 = arith.constant 2.500000e-01 : f32
    %457 = vector.broadcast %cst_258 : f32 to vector<34x34xf32>
    %458 = arith.mulf %456, %457 : vector<34x34xf32>
    %459 = arith.addf %458, %3 : vector<34x34xf32>
    %cst_259 = arith.constant dense<0xFF800000> : vector<34xf32>
    %460 = vector.multi_reduction <maximumf>, %459, %cst_259 [1] : vector<34x34xf32> to vector<34xf32>
    %461 = vector.shape_cast %460 : vector<34xf32> to vector<34x1xf32>
    %462 = vector.broadcast %461 : vector<34x1xf32> to vector<34x34xf32>
    %463 = arith.subf %459, %462 : vector<34x34xf32>
    %464 = math.exp %463 : vector<34x34xf32>
    %cst_260 = arith.constant dense<0.000000e+00> : vector<34xf32>
    %465 = vector.multi_reduction <add>, %464, %cst_260 [1] : vector<34x34xf32> to vector<34xf32>
    %466 = vector.shape_cast %465 : vector<34xf32> to vector<34x1xf32>
    %467 = tpu.reciprocal %466 {approx = true} : vector<34x1xf32> -> vector<34x1xf32>
    %468 = vector.broadcast %467 : vector<34x1xf32> to vector<34x34xf32>
    %469 = arith.mulf %464, %468 : vector<34x34xf32>
    %cst_261 = arith.constant dense<0.000000e+00> : vector<34x16xf32>
    %470 = tpu.matmul %469, %455, %cst_261 {dimension_numbers = #tpu.dot_dimension_numbers<[1], [0], [0], [1], [0, 0, 1, 1], [], []>} : vector<34x34xf32>, vector<34x16xf32>, vector<34x16xf32> -> vector<34x16xf32>
    %471 = vector.extract_strided_slice %432 {offsets = [0, 32], sizes = [34, 16], strides = [1, 1]} : vector<34x64xf32> to vector<34x16xf32>
    %472 = vector.extract_strided_slice %433 {offsets = [0, 32], sizes = [34, 16], strides = [1, 1]} : vector<34x64xf32> to vector<34x16xf32>
    %473 = vector.extract_strided_slice %434 {offsets = [0, 32], sizes = [34, 16], strides = [1, 1]} : vector<34x64xf32> to vector<34x16xf32>
    %cst_262 = arith.constant dense<0.000000e+00> : vector<34x34xf32>
    %474 = tpu.matmul %471, %472, %cst_262 {dimension_numbers = #tpu.dot_dimension_numbers<[1], [1], [0], [0], [0, 0, 1, 0], [], []>} : vector<34x16xf32>, vector<34x16xf32>, vector<34x34xf32> -> vector<34x34xf32>
    %cst_263 = arith.constant 2.500000e-01 : f32
    %475 = vector.broadcast %cst_263 : f32 to vector<34x34xf32>
    %476 = arith.mulf %474, %475 : vector<34x34xf32>
    %477 = arith.addf %476, %3 : vector<34x34xf32>
    %cst_264 = arith.constant dense<0xFF800000> : vector<34xf32>
    %478 = vector.multi_reduction <maximumf>, %477, %cst_264 [1] : vector<34x34xf32> to vector<34xf32>
    %479 = vector.shape_cast %478 : vector<34xf32> to vector<34x1xf32>
    %480 = vector.broadcast %479 : vector<34x1xf32> to vector<34x34xf32>
    %481 = arith.subf %477, %480 : vector<34x34xf32>
    %482 = math.exp %481 : vector<34x34xf32>
    %cst_265 = arith.constant dense<0.000000e+00> : vector<34xf32>
    %483 = vector.multi_reduction <add>, %482, %cst_265 [1] : vector<34x34xf32> to vector<34xf32>
    %484 = vector.shape_cast %483 : vector<34xf32> to vector<34x1xf32>
    %485 = tpu.reciprocal %484 {approx = true} : vector<34x1xf32> -> vector<34x1xf32>
    %486 = vector.broadcast %485 : vector<34x1xf32> to vector<34x34xf32>
    %487 = arith.mulf %482, %486 : vector<34x34xf32>
    %cst_266 = arith.constant dense<0.000000e+00> : vector<34x16xf32>
    %488 = tpu.matmul %487, %473, %cst_266 {dimension_numbers = #tpu.dot_dimension_numbers<[1], [0], [0], [1], [0, 0, 1, 1], [], []>} : vector<34x34xf32>, vector<34x16xf32>, vector<34x16xf32> -> vector<34x16xf32>
    %489 = vector.extract_strided_slice %432 {offsets = [0, 48], sizes = [34, 16], strides = [1, 1]} : vector<34x64xf32> to vector<34x16xf32>
    %490 = vector.extract_strided_slice %433 {offsets = [0, 48], sizes = [34, 16], strides = [1, 1]} : vector<34x64xf32> to vector<34x16xf32>
    %491 = vector.extract_strided_slice %434 {offsets = [0, 48], sizes = [34, 16], strides = [1, 1]} : vector<34x64xf32> to vector<34x16xf32>
    %cst_267 = arith.constant dense<0.000000e+00> : vector<34x34xf32>
    %492 = tpu.matmul %489, %490, %cst_267 {dimension_numbers = #tpu.dot_dimension_numbers<[1], [1], [0], [0], [0, 0, 1, 0], [], []>} : vector<34x16xf32>, vector<34x16xf32>, vector<34x34xf32> -> vector<34x34xf32>
    %cst_268 = arith.constant 2.500000e-01 : f32
    %493 = vector.broadcast %cst_268 : f32 to vector<34x34xf32>
    %494 = arith.mulf %492, %493 : vector<34x34xf32>
    %495 = arith.addf %494, %3 : vector<34x34xf32>
    %cst_269 = arith.constant dense<0xFF800000> : vector<34xf32>
    %496 = vector.multi_reduction <maximumf>, %495, %cst_269 [1] : vector<34x34xf32> to vector<34xf32>
    %497 = vector.shape_cast %496 : vector<34xf32> to vector<34x1xf32>
    %498 = vector.broadcast %497 : vector<34x1xf32> to vector<34x34xf32>
    %499 = arith.subf %495, %498 : vector<34x34xf32>
    %500 = math.exp %499 : vector<34x34xf32>
    %cst_270 = arith.constant dense<0.000000e+00> : vector<34xf32>
    %501 = vector.multi_reduction <add>, %500, %cst_270 [1] : vector<34x34xf32> to vector<34xf32>
    %502 = vector.shape_cast %501 : vector<34xf32> to vector<34x1xf32>
    %503 = tpu.reciprocal %502 {approx = true} : vector<34x1xf32> -> vector<34x1xf32>
    %504 = vector.broadcast %503 : vector<34x1xf32> to vector<34x34xf32>
    %505 = arith.mulf %500, %504 : vector<34x34xf32>
    %cst_271 = arith.constant dense<0.000000e+00> : vector<34x16xf32>
    %506 = tpu.matmul %505, %491, %cst_271 {dimension_numbers = #tpu.dot_dimension_numbers<[1], [0], [0], [1], [0, 0, 1, 1], [], []>} : vector<34x34xf32>, vector<34x16xf32>, vector<34x16xf32> -> vector<34x16xf32>
    %507 = tpu.concatenate %452, %470, %488, %506 in 1 : vector<34x16xf32>, vector<34x16xf32>, vector<34x16xf32>, vector<34x16xf32> -> vector<34x64xf32>
    %cst_272 = arith.constant dense<0.000000e+00> : vector<34x64xf32>
    %508 = tpu.matmul %507, %376, %cst_272 {dimension_numbers = #tpu.dot_dimension_numbers<[1], [0], [0], [1], [0, 0, 1, 1], [], []>} : vector<34x64xf32>, vector<64x64xf32>, vector<34x64xf32> -> vector<34x64xf32>
    %509 = vector.broadcast %378 : vector<1x64xf32> to vector<34x64xf32>
    %510 = arith.addf %508, %509 : vector<34x64xf32>
    %511 = arith.addf %366, %510 : vector<34x64xf32>
    %cst_273 = arith.constant dense<0.000000e+00> : vector<34xf32>
    %512 = vector.multi_reduction <add>, %511, %cst_273 [1] : vector<34x64xf32> to vector<34xf32>
    %513 = vector.shape_cast %512 : vector<34xf32> to vector<34x1xf32>
    %cst_274 = arith.constant 6.400000e+01 : f32
    %514 = vector.broadcast %cst_274 : f32 to vector<34x1xf32>
    %515 = arith.divf %513, %514 : vector<34x1xf32>
    %516 = vector.broadcast %515 : vector<34x1xf32> to vector<34x64xf32>
    %517 = arith.subf %511, %516 : vector<34x64xf32>
    %518 = arith.mulf %517, %517 : vector<34x64xf32>
    %cst_275 = arith.constant dense<0.000000e+00> : vector<34xf32>
    %519 = vector.multi_reduction <add>, %518, %cst_275 [1] : vector<34x64xf32> to vector<34xf32>
    %520 = vector.shape_cast %519 : vector<34xf32> to vector<34x1xf32>
    %cst_276 = arith.constant 6.400000e+01 : f32
    %521 = vector.broadcast %cst_276 : f32 to vector<34x1xf32>
    %522 = arith.divf %520, %521 : vector<34x1xf32>
    %523 = vector.broadcast %515 : vector<34x1xf32> to vector<34x64xf32>
    %524 = arith.subf %511, %523 : vector<34x64xf32>
    %cst_277 = arith.constant 9.99999974E-6 : f32
    %525 = vector.broadcast %cst_277 : f32 to vector<34x1xf32>
    %526 = arith.addf %522, %525 : vector<34x1xf32>
    %527 = math.rsqrt %526 : vector<34x1xf32>
    %528 = vector.broadcast %527 : vector<34x1xf32> to vector<34x64xf32>
    %529 = arith.mulf %524, %528 : vector<34x64xf32>
    %530 = vector.broadcast %380 : vector<1x64xf32> to vector<34x64xf32>
    %531 = arith.mulf %529, %530 : vector<34x64xf32>
    %532 = vector.broadcast %382 : vector<1x64xf32> to vector<34x64xf32>
    %533 = arith.addf %531, %532 : vector<34x64xf32>
    %cst_278 = arith.constant dense<0.000000e+00> : vector<34x64xf32>
    %534 = tpu.matmul %533, %384, %cst_278 {dimension_numbers = #tpu.dot_dimension_numbers<[1], [0], [0], [1], [0, 0, 1, 1], [], []>} : vector<34x64xf32>, vector<64x64xf32>, vector<34x64xf32> -> vector<34x64xf32>
    %535 = vector.broadcast %386 : vector<1x64xf32> to vector<34x64xf32>
    %536 = arith.addf %534, %535 : vector<34x64xf32>
    %cst_279 = arith.constant dense<0.000000e+00> : vector<16x128xf32>
    %537 = tpu.matmul %59, %388, %cst_279 {dimension_numbers = #tpu.dot_dimension_numbers<[1], [0], [0], [1], [0, 0, 1, 1], [], []>} : vector<16x64xf32>, vector<64x128xf32>, vector<16x128xf32> -> vector<16x128xf32>
    %538 = vector.broadcast %390 : vector<1x128xf32> to vector<16x128xf32>
    %539 = arith.addf %537, %538 : vector<16x128xf32>
    %540 = vector.extract_strided_slice %539 {offsets = [0, 0], sizes = [16, 64], strides = [1, 1]} : vector<16x128xf32> to vector<16x64xf32>
    %541 = vector.extract_strided_slice %539 {offsets = [0, 64], sizes = [16, 64], strides = [1, 1]} : vector<16x128xf32> to vector<16x64xf32>
    %542 = vector.extract_strided_slice %536 {offsets = [0, 0], sizes = [34, 16], strides = [1, 1]} : vector<34x64xf32> to vector<34x16xf32>
    %543 = vector.extract_strided_slice %540 {offsets = [0, 0], sizes = [16, 16], strides = [1, 1]} : vector<16x64xf32> to vector<16x16xf32>
    %544 = vector.extract_strided_slice %541 {offsets = [0, 0], sizes = [16, 16], strides = [1, 1]} : vector<16x64xf32> to vector<16x16xf32>
    %cst_280 = arith.constant dense<0.000000e+00> : vector<34x16xf32>
    %545 = tpu.matmul %542, %543, %cst_280 {dimension_numbers = #tpu.dot_dimension_numbers<[1], [1], [0], [0], [0, 0, 1, 0], [], []>} : vector<34x16xf32>, vector<16x16xf32>, vector<34x16xf32> -> vector<34x16xf32>
    %cst_281 = arith.constant 2.500000e-01 : f32
    %546 = vector.broadcast %cst_281 : f32 to vector<34x16xf32>
    %547 = arith.mulf %545, %546 : vector<34x16xf32>
    %548 = arith.addf %547, %4 : vector<34x16xf32>
    %cst_282 = arith.constant dense<0xFF800000> : vector<34xf32>
    %549 = vector.multi_reduction <maximumf>, %548, %cst_282 [1] : vector<34x16xf32> to vector<34xf32>
    %550 = vector.shape_cast %549 : vector<34xf32> to vector<34x1xf32>
    %551 = vector.broadcast %550 : vector<34x1xf32> to vector<34x16xf32>
    %552 = arith.subf %548, %551 : vector<34x16xf32>
    %553 = math.exp %552 : vector<34x16xf32>
    %cst_283 = arith.constant dense<0.000000e+00> : vector<34xf32>
    %554 = vector.multi_reduction <add>, %553, %cst_283 [1] : vector<34x16xf32> to vector<34xf32>
    %555 = vector.shape_cast %554 : vector<34xf32> to vector<34x1xf32>
    %556 = tpu.reciprocal %555 {approx = true} : vector<34x1xf32> -> vector<34x1xf32>
    %557 = vector.broadcast %556 : vector<34x1xf32> to vector<34x16xf32>
    %558 = arith.mulf %553, %557 : vector<34x16xf32>
    %cst_284 = arith.constant dense<0.000000e+00> : vector<34x16xf32>
    %559 = tpu.matmul %558, %544, %cst_284 {dimension_numbers = #tpu.dot_dimension_numbers<[1], [0], [0], [1], [0, 0, 1, 1], [], []>} : vector<34x16xf32>, vector<16x16xf32>, vector<34x16xf32> -> vector<34x16xf32>
    %560 = vector.extract_strided_slice %536 {offsets = [0, 16], sizes = [34, 16], strides = [1, 1]} : vector<34x64xf32> to vector<34x16xf32>
    %561 = vector.extract_strided_slice %540 {offsets = [0, 16], sizes = [16, 16], strides = [1, 1]} : vector<16x64xf32> to vector<16x16xf32>
    %562 = vector.extract_strided_slice %541 {offsets = [0, 16], sizes = [16, 16], strides = [1, 1]} : vector<16x64xf32> to vector<16x16xf32>
    %cst_285 = arith.constant dense<0.000000e+00> : vector<34x16xf32>
    %563 = tpu.matmul %560, %561, %cst_285 {dimension_numbers = #tpu.dot_dimension_numbers<[1], [1], [0], [0], [0, 0, 1, 0], [], []>} : vector<34x16xf32>, vector<16x16xf32>, vector<34x16xf32> -> vector<34x16xf32>
    %cst_286 = arith.constant 2.500000e-01 : f32
    %564 = vector.broadcast %cst_286 : f32 to vector<34x16xf32>
    %565 = arith.mulf %563, %564 : vector<34x16xf32>
    %566 = arith.addf %565, %4 : vector<34x16xf32>
    %cst_287 = arith.constant dense<0xFF800000> : vector<34xf32>
    %567 = vector.multi_reduction <maximumf>, %566, %cst_287 [1] : vector<34x16xf32> to vector<34xf32>
    %568 = vector.shape_cast %567 : vector<34xf32> to vector<34x1xf32>
    %569 = vector.broadcast %568 : vector<34x1xf32> to vector<34x16xf32>
    %570 = arith.subf %566, %569 : vector<34x16xf32>
    %571 = math.exp %570 : vector<34x16xf32>
    %cst_288 = arith.constant dense<0.000000e+00> : vector<34xf32>
    %572 = vector.multi_reduction <add>, %571, %cst_288 [1] : vector<34x16xf32> to vector<34xf32>
    %573 = vector.shape_cast %572 : vector<34xf32> to vector<34x1xf32>
    %574 = tpu.reciprocal %573 {approx = true} : vector<34x1xf32> -> vector<34x1xf32>
    %575 = vector.broadcast %574 : vector<34x1xf32> to vector<34x16xf32>
    %576 = arith.mulf %571, %575 : vector<34x16xf32>
    %cst_289 = arith.constant dense<0.000000e+00> : vector<34x16xf32>
    %577 = tpu.matmul %576, %562, %cst_289 {dimension_numbers = #tpu.dot_dimension_numbers<[1], [0], [0], [1], [0, 0, 1, 1], [], []>} : vector<34x16xf32>, vector<16x16xf32>, vector<34x16xf32> -> vector<34x16xf32>
    %578 = vector.extract_strided_slice %536 {offsets = [0, 32], sizes = [34, 16], strides = [1, 1]} : vector<34x64xf32> to vector<34x16xf32>
    %579 = vector.extract_strided_slice %540 {offsets = [0, 32], sizes = [16, 16], strides = [1, 1]} : vector<16x64xf32> to vector<16x16xf32>
    %580 = vector.extract_strided_slice %541 {offsets = [0, 32], sizes = [16, 16], strides = [1, 1]} : vector<16x64xf32> to vector<16x16xf32>
    %cst_290 = arith.constant dense<0.000000e+00> : vector<34x16xf32>
    %581 = tpu.matmul %578, %579, %cst_290 {dimension_numbers = #tpu.dot_dimension_numbers<[1], [1], [0], [0], [0, 0, 1, 0], [], []>} : vector<34x16xf32>, vector<16x16xf32>, vector<34x16xf32> -> vector<34x16xf32>
    %cst_291 = arith.constant 2.500000e-01 : f32
    %582 = vector.broadcast %cst_291 : f32 to vector<34x16xf32>
    %583 = arith.mulf %581, %582 : vector<34x16xf32>
    %584 = arith.addf %583, %4 : vector<34x16xf32>
    %cst_292 = arith.constant dense<0xFF800000> : vector<34xf32>
    %585 = vector.multi_reduction <maximumf>, %584, %cst_292 [1] : vector<34x16xf32> to vector<34xf32>
    %586 = vector.shape_cast %585 : vector<34xf32> to vector<34x1xf32>
    %587 = vector.broadcast %586 : vector<34x1xf32> to vector<34x16xf32>
    %588 = arith.subf %584, %587 : vector<34x16xf32>
    %589 = math.exp %588 : vector<34x16xf32>
    %cst_293 = arith.constant dense<0.000000e+00> : vector<34xf32>
    %590 = vector.multi_reduction <add>, %589, %cst_293 [1] : vector<34x16xf32> to vector<34xf32>
    %591 = vector.shape_cast %590 : vector<34xf32> to vector<34x1xf32>
    %592 = tpu.reciprocal %591 {approx = true} : vector<34x1xf32> -> vector<34x1xf32>
    %593 = vector.broadcast %592 : vector<34x1xf32> to vector<34x16xf32>
    %594 = arith.mulf %589, %593 : vector<34x16xf32>
    %cst_294 = arith.constant dense<0.000000e+00> : vector<34x16xf32>
    %595 = tpu.matmul %594, %580, %cst_294 {dimension_numbers = #tpu.dot_dimension_numbers<[1], [0], [0], [1], [0, 0, 1, 1], [], []>} : vector<34x16xf32>, vector<16x16xf32>, vector<34x16xf32> -> vector<34x16xf32>
    %596 = vector.extract_strided_slice %536 {offsets = [0, 48], sizes = [34, 16], strides = [1, 1]} : vector<34x64xf32> to vector<34x16xf32>
    %597 = vector.extract_strided_slice %540 {offsets = [0, 48], sizes = [16, 16], strides = [1, 1]} : vector<16x64xf32> to vector<16x16xf32>
    %598 = vector.extract_strided_slice %541 {offsets = [0, 48], sizes = [16, 16], strides = [1, 1]} : vector<16x64xf32> to vector<16x16xf32>
    %cst_295 = arith.constant dense<0.000000e+00> : vector<34x16xf32>
    %599 = tpu.matmul %596, %597, %cst_295 {dimension_numbers = #tpu.dot_dimension_numbers<[1], [1], [0], [0], [0, 0, 1, 0], [], []>} : vector<34x16xf32>, vector<16x16xf32>, vector<34x16xf32> -> vector<34x16xf32>
    %cst_296 = arith.constant 2.500000e-01 : f32
    %600 = vector.broadcast %cst_296 : f32 to vector<34x16xf32>
    %601 = arith.mulf %599, %600 : vector<34x16xf32>
    %602 = arith.addf %601, %4 : vector<34x16xf32>
    %cst_297 = arith.constant dense<0xFF800000> : vector<34xf32>
    %603 = vector.multi_reduction <maximumf>, %602, %cst_297 [1] : vector<34x16xf32> to vector<34xf32>
    %604 = vector.shape_cast %603 : vector<34xf32> to vector<34x1xf32>
    %605 = vector.broadcast %604 : vector<34x1xf32> to vector<34x16xf32>
    %606 = arith.subf %602, %605 : vector<34x16xf32>
    %607 = math.exp %606 : vector<34x16xf32>
    %cst_298 = arith.constant dense<0.000000e+00> : vector<34xf32>
    %608 = vector.multi_reduction <add>, %607, %cst_298 [1] : vector<34x16xf32> to vector<34xf32>
    %609 = vector.shape_cast %608 : vector<34xf32> to vector<34x1xf32>
    %610 = tpu.reciprocal %609 {approx = true} : vector<34x1xf32> -> vector<34x1xf32>
    %611 = vector.broadcast %610 : vector<34x1xf32> to vector<34x16xf32>
    %612 = arith.mulf %607, %611 : vector<34x16xf32>
    %cst_299 = arith.constant dense<0.000000e+00> : vector<34x16xf32>
    %613 = tpu.matmul %612, %598, %cst_299 {dimension_numbers = #tpu.dot_dimension_numbers<[1], [0], [0], [1], [0, 0, 1, 1], [], []>} : vector<34x16xf32>, vector<16x16xf32>, vector<34x16xf32> -> vector<34x16xf32>
    %614 = tpu.concatenate %559, %577, %595, %613 in 1 : vector<34x16xf32>, vector<34x16xf32>, vector<34x16xf32>, vector<34x16xf32> -> vector<34x64xf32>
    %cst_300 = arith.constant dense<0.000000e+00> : vector<34x64xf32>
    %615 = tpu.matmul %614, %392, %cst_300 {dimension_numbers = #tpu.dot_dimension_numbers<[1], [0], [0], [1], [0, 0, 1, 1], [], []>} : vector<34x64xf32>, vector<64x64xf32>, vector<34x64xf32> -> vector<34x64xf32>
    %616 = vector.broadcast %394 : vector<1x64xf32> to vector<34x64xf32>
    %617 = arith.addf %615, %616 : vector<34x64xf32>
    %618 = arith.addf %511, %617 : vector<34x64xf32>
    %cst_301 = arith.constant dense<0.000000e+00> : vector<34xf32>
    %619 = vector.multi_reduction <add>, %618, %cst_301 [1] : vector<34x64xf32> to vector<34xf32>
    %620 = vector.shape_cast %619 : vector<34xf32> to vector<34x1xf32>
    %cst_302 = arith.constant 6.400000e+01 : f32
    %621 = vector.broadcast %cst_302 : f32 to vector<34x1xf32>
    %622 = arith.divf %620, %621 : vector<34x1xf32>
    %623 = vector.broadcast %622 : vector<34x1xf32> to vector<34x64xf32>
    %624 = arith.subf %618, %623 : vector<34x64xf32>
    %625 = arith.mulf %624, %624 : vector<34x64xf32>
    %cst_303 = arith.constant dense<0.000000e+00> : vector<34xf32>
    %626 = vector.multi_reduction <add>, %625, %cst_303 [1] : vector<34x64xf32> to vector<34xf32>
    %627 = vector.shape_cast %626 : vector<34xf32> to vector<34x1xf32>
    %cst_304 = arith.constant 6.400000e+01 : f32
    %628 = vector.broadcast %cst_304 : f32 to vector<34x1xf32>
    %629 = arith.divf %627, %628 : vector<34x1xf32>
    %630 = vector.broadcast %622 : vector<34x1xf32> to vector<34x64xf32>
    %631 = arith.subf %618, %630 : vector<34x64xf32>
    %cst_305 = arith.constant 9.99999974E-6 : f32
    %632 = vector.broadcast %cst_305 : f32 to vector<34x1xf32>
    %633 = arith.addf %629, %632 : vector<34x1xf32>
    %634 = math.rsqrt %633 : vector<34x1xf32>
    %635 = vector.broadcast %634 : vector<34x1xf32> to vector<34x64xf32>
    %636 = arith.mulf %631, %635 : vector<34x64xf32>
    %637 = vector.broadcast %396 : vector<1x64xf32> to vector<34x64xf32>
    %638 = arith.mulf %636, %637 : vector<34x64xf32>
    %639 = vector.broadcast %398 : vector<1x64xf32> to vector<34x64xf32>
    %640 = arith.addf %638, %639 : vector<34x64xf32>
    %cst_306 = arith.constant dense<0.000000e+00> : vector<34x256xf32>
    %641 = tpu.matmul %640, %400, %cst_306 {dimension_numbers = #tpu.dot_dimension_numbers<[1], [0], [0], [1], [0, 0, 1, 1], [], []>} : vector<34x64xf32>, vector<64x256xf32>, vector<34x256xf32> -> vector<34x256xf32>
    %642 = vector.broadcast %402 : vector<1x256xf32> to vector<34x256xf32>
    %643 = arith.addf %641, %642 : vector<34x256xf32>
    %644 = arith.mulf %643, %643 : vector<34x256xf32>
    %645 = arith.mulf %643, %644 : vector<34x256xf32>
    %cst_307 = arith.constant 4.471500e-02 : f32
    %646 = vector.broadcast %cst_307 : f32 to vector<34x256xf32>
    %647 = arith.mulf %646, %645 : vector<34x256xf32>
    %648 = arith.addf %643, %647 : vector<34x256xf32>
    %cst_308 = arith.constant 0.797884583 : f32
    %649 = vector.broadcast %cst_308 : f32 to vector<34x256xf32>
    %650 = arith.mulf %649, %648 : vector<34x256xf32>
    %651 = math.tanh %650 : vector<34x256xf32>
    %cst_309 = arith.constant 1.000000e+00 : f32
    %652 = vector.broadcast %cst_309 : f32 to vector<34x256xf32>
    %653 = arith.addf %652, %651 : vector<34x256xf32>
    %cst_310 = arith.constant 5.000000e-01 : f32
    %654 = vector.broadcast %cst_310 : f32 to vector<34x256xf32>
    %655 = arith.mulf %654, %653 : vector<34x256xf32>
    %656 = arith.mulf %643, %655 : vector<34x256xf32>
    %cst_311 = arith.constant dense<0.000000e+00> : vector<34x64xf32>
    %657 = tpu.matmul %656, %404, %cst_311 {dimension_numbers = #tpu.dot_dimension_numbers<[1], [0], [0], [1], [0, 0, 1, 1], [], []>} : vector<34x256xf32>, vector<256x64xf32>, vector<34x64xf32> -> vector<34x64xf32>
    %658 = vector.broadcast %406 : vector<1x64xf32> to vector<34x64xf32>
    %659 = arith.addf %657, %658 : vector<34x64xf32>
    %660 = arith.addf %618, %659 : vector<34x64xf32>
    %cst_312 = arith.constant dense<0.000000e+00> : vector<34xf32>
    %661 = vector.multi_reduction <add>, %660, %cst_312 [1] : vector<34x64xf32> to vector<34xf32>
    %662 = vector.shape_cast %661 : vector<34xf32> to vector<34x1xf32>
    %cst_313 = arith.constant 6.400000e+01 : f32
    %663 = vector.broadcast %cst_313 : f32 to vector<34x1xf32>
    %664 = arith.divf %662, %663 : vector<34x1xf32>
    %665 = vector.broadcast %664 : vector<34x1xf32> to vector<34x64xf32>
    %666 = arith.subf %660, %665 : vector<34x64xf32>
    %667 = arith.mulf %666, %666 : vector<34x64xf32>
    %cst_314 = arith.constant dense<0.000000e+00> : vector<34xf32>
    %668 = vector.multi_reduction <add>, %667, %cst_314 [1] : vector<34x64xf32> to vector<34xf32>
    %669 = vector.shape_cast %668 : vector<34xf32> to vector<34x1xf32>
    %cst_315 = arith.constant 6.400000e+01 : f32
    %670 = vector.broadcast %cst_315 : f32 to vector<34x1xf32>
    %671 = arith.divf %669, %670 : vector<34x1xf32>
    %672 = vector.broadcast %664 : vector<34x1xf32> to vector<34x64xf32>
    %673 = arith.subf %660, %672 : vector<34x64xf32>
    %cst_316 = arith.constant 9.99999974E-6 : f32
    %674 = vector.broadcast %cst_316 : f32 to vector<34x1xf32>
    %675 = arith.addf %671, %674 : vector<34x1xf32>
    %676 = math.rsqrt %675 : vector<34x1xf32>
    %677 = vector.broadcast %676 : vector<34x1xf32> to vector<34x64xf32>
    %678 = arith.mulf %673, %677 : vector<34x64xf32>
    %679 = vector.broadcast %19 : vector<1x64xf32> to vector<34x64xf32>
    %680 = arith.mulf %678, %679 : vector<34x64xf32>
    %681 = vector.broadcast %20 : vector<1x64xf32> to vector<34x64xf32>
    %682 = arith.addf %680, %681 : vector<34x64xf32>
    %683 = vector.extract_strided_slice %682 {offsets = [1, 0], sizes = [16, 64], strides = [1, 1]} : vector<34x64xf32> to vector<16x64xf32>
    %cst_317 = arith.constant dense<0.000000e+00> : vector<4x16xf32>
    %684 = tpu.matmul %21, %683, %cst_317 {dimension_numbers = #tpu.dot_dimension_numbers<[1], [1], [0], [0], [0, 0, 1, 0], [], []>} : vector<4x64xf32>, vector<16x64xf32>, vector<4x16xf32> -> vector<4x16xf32>
    %685 = vector.broadcast %22 : vector<4x1xf32> to vector<4x16xf32>
    %686 = arith.addf %684, %685 : vector<4x16xf32>
    %c0_318 = arith.constant 0 : index
    %c0_319 = arith.constant 0 : index
    %c0_320 = arith.constant 0 : index
    %687 = vector.load %arg44[%c0_318, %c0_319, %c0_320] : memref<2x4x16xf32, #tpu.memory_space<vmem>>, vector<1x4x16xf32>
    %688 = vector.shape_cast %687 : vector<1x4x16xf32> to vector<4x16xf32>
    %689 = vector.shape_cast %686 : vector<4x16xf32> to vector<1x4x16xf32>
    tpu.vector_store %arg44[%c0_318, %c0_319, %c0_320], %689 {strides = array<i32>} : memref<2x4x16xf32, #tpu.memory_space<vmem>>, vector<1x4x16xf32>,
    %690 = vector.extract_strided_slice %682 {offsets = [18, 0], sizes = [16, 64], strides = [1, 1]} : vector<34x64xf32> to vector<16x64xf32>
    %cst_321 = arith.constant dense<0.000000e+00> : vector<4x16xf32>
    %691 = tpu.matmul %21, %690, %cst_321 {dimension_numbers = #tpu.dot_dimension_numbers<[1], [1], [0], [0], [0, 0, 1, 0], [], []>} : vector<4x64xf32>, vector<16x64xf32>, vector<4x16xf32> -> vector<4x16xf32>
    %692 = vector.broadcast %22 : vector<4x1xf32> to vector<4x16xf32>
    %693 = arith.addf %691, %692 : vector<4x16xf32>
    %c1_322 = arith.constant 1 : index
    %c0_323 = arith.constant 0 : index
    %c0_324 = arith.constant 0 : index
    %694 = vector.load %arg44[%c1_322, %c0_323, %c0_324] : memref<2x4x16xf32, #tpu.memory_space<vmem>>, vector<1x4x16xf32>
    %695 = vector.shape_cast %694 : vector<1x4x16xf32> to vector<4x16xf32>
    %696 = vector.shape_cast %693 : vector<4x16xf32> to vector<1x4x16xf32>
    tpu.vector_store %arg44[%c1_322, %c0_323, %c0_324], %696 {strides = array<i32>} : memref<2x4x16xf32, #tpu.memory_space<vmem>>, vector<1x4x16xf32>,
    return
  }
}

</mosaic_0001>

<llo_original>
// kernel: eq.25
$region0: #{eq.25}
  %s0 = inlined_call_operand.vmem [shape: s32[2,8], index: 0, kind: input, shape index: {}]
  %s1 = inlined_call_operand.vmem [shape: s32[16], index: 1, kind: output, shape index: {}]
  $region1: #{eq.25} parent=0
    #allocation0 [shape = 'u8[4096]{0}', space=vmem, size = 0x1000, scoped, tag = 'scoped mem for output reshape']
    #allocation1 [shape = 'u8[4096]{0}', space=vmem, size = 0x1000, scoped, tag = 'scoped mem for input reshape']
    %s3 = ssub.s32 4, 1
    %v4 = vld [vmem:[%s0] sm:%s3]
    %5 = vst [vmem:[#allocation1] sm:%s3] %v4
    %v6 = vld [vmem:[#allocation1] sm:$0x1]
    %vm7 = vcmask 64512
    %8 = vst.msk [vmem:[#allocation0] sm:$0x1] %vm7, %v6
    %s9 = scalar_lea.vmem [#allocation1], 1
    %v10 = vld [vmem:[%s9] sm:$0x1]
    %11 = vrot.lane.b32.xlu0 %v10, 8
    %v12 = vpop.permute.xlu0 %11
    %vm13 = vcmask 130112
    %14 = vst.msk [vmem:[#allocation0] sm:$0x1] %vm13, %v12
    %s16 = ssub.s32 2, 1
    %v17 = vld [vmem:[#allocation0] sm:%s16]
    %s19 = ssub.s32 2, 1
    %20 = vst [vmem:[%s1] sm:%s19] %v17

// kernel: eq.15
$region0: #{eq.15}
  %s0 = inlined_call_operand.vmem [shape: s32[2,17], index: 0, kind: input, shape index: {}]
  %s1 = inlined_call_operand.vmem [shape: s32[34], index: 1, kind: output, shape index: {}]
  $region1: #{eq.15} parent=0
    #allocation0 [shape = 'u8[4096]{0}', space=vmem, size = 0x1000, scoped, tag = 'scoped mem for output reshape']
    #allocation1 [shape = 'u8[4096]{0}', space=vmem, size = 0x1000, scoped, tag = 'scoped mem for input reshape']
    %s3 = ssub.s32 4, 1
    %v4 = vld [vmem:[%s0] sm:%s3]
    %5 = vst [vmem:[#allocation1] sm:%s3] %v4
    %v6 = vld [vmem:[#allocation1] sm:$0x1]
    %vm7 = vcmask 138240
    %8 = vst.msk [vmem:[#allocation0] sm:$0x1] %vm7, %v6
    %s9 = scalar_lea.vmem [#allocation1], 1
    %v10 = vld [vmem:[%s9] sm:$0x1]
    %11 = vrot.lane.b32.xlu0 %v10, 17
    %v12 = vpop.permute.xlu0 %11
    %vm13 = vcmask 277640
    %14 = vst.msk [vmem:[#allocation0] sm:$0x1] %vm13, %v12
    %s16 = ssub.s32 2, 1
    %v17 = vld [vmem:[#allocation0] sm:%s16]
    %s19 = ssub.s32 2, 1
    %20 = vst [vmem:[%s1] sm:%s19] %v17

// kernel: conditioned_diffusion_forward.1
$region0: #{conditioned_diffusion_forward.1}
  #allocation0 [shape = 'u32[]', space=smem, size = 0x4, offset = 0x4, fixed_abs, tag = 'smem constant byte address 0x4 - core index']
  #allocation1 [shape = 'u32[72,128]{1,0:T(1,128)}', space=vmem, size = 0x9000, scoped, tag = 'internal scratch']
  %s0 = inlined_call_operand.smem [shape: u32[45], index: -1, kind: input, shape index: {}]
  %s1 = sld [smem:[%s0]]
  %s2 = scalar_lea.smem %s0, 1
  %s3 = sld [smem:[%s2]]
  %s4 = scalar_lea.smem %s0, 2
  %s5 = sld [smem:[%s4]]
  %s6 = scalar_lea.smem %s0, 3
  %s7 = sld [smem:[%s6]]
  %s8 = scalar_lea.smem %s0, 4
  %s9 = sld [smem:[%s8]]
  %s10 = scalar_lea.smem %s0, 5
  %s11 = sld [smem:[%s10]]
  %s12 = scalar_lea.smem %s0, 6
  %s13 = sld [smem:[%s12]]
  %s14 = scalar_lea.smem %s0, 7
  %s15 = sld [smem:[%s14]]
  %s16 = scalar_lea.smem %s0, 8
  %s17 = sld [smem:[%s16]]
  %s18 = scalar_lea.smem %s0, 9
  %s19 = sld [smem:[%s18]]
  %s20 = scalar_lea.smem %s0, 10
  %s21 = sld [smem:[%s20]]
  %s22 = scalar_lea.smem %s0, 11
  %s23 = sld [smem:[%s22]]
  %s24 = scalar_lea.smem %s0, 12
  %s25 = sld [smem:[%s24]]
  %s26 = scalar_lea.smem %s0, 13
  %s27 = sld [smem:[%s26]]
  %s28 = scalar_lea.smem %s0, 14
  %s29 = sld [smem:[%s28]]
  %s30 = scalar_lea.smem %s0, 15
  %s31 = sld [smem:[%s30]]
  %s32 = scalar_lea.smem %s0, 16
  %s33 = sld [smem:[%s32]]
  %s34 = scalar_lea.smem %s0, 17
  %s35 = sld [smem:[%s34]]
  %s36 = scalar_lea.smem %s0, 18
  %s37 = sld [smem:[%s36]]
  %s38 = scalar_lea.smem %s0, 19
  %s39 = sld [smem:[%s38]]
  %s40 = scalar_lea.smem %s0, 20
  %s41 = sld [smem:[%s40]]
  %s42 = scalar_lea.smem %s0, 21
  %s43 = sld [smem:[%s42]]
  %s44 = scalar_lea.smem %s0, 22
  %s45 = sld [smem:[%s44]]
  %s46 = scalar_lea.smem %s0, 23
  %s47 = sld [smem:[%s46]]
  %s48 = scalar_lea.smem %s0, 24
  %s49 = sld [smem:[%s48]]
  %s50 = scalar_lea.smem %s0, 25
  %s51 = sld [smem:[%s50]]
  %s52 = scalar_lea.smem %s0, 26
  %s53 = sld [smem:[%s52]]
  %s54 = scalar_lea.smem %s0, 27
  %s55 = sld [smem:[%s54]]
  %s56 = scalar_lea.smem %s0, 28
  %s57 = sld [smem:[%s56]]
  %s58 = scalar_lea.smem %s0, 29
  %s59 = sld [smem:[%s58]]
  %s60 = scalar_lea.smem %s0, 30
  %s61 = sld [smem:[%s60]]
  %s62 = scalar_lea.smem %s0, 31
  %s63 = sld [smem:[%s62]]
  %s64 = scalar_lea.smem %s0, 32
  %s65 = sld [smem:[%s64]]
  %s66 = scalar_lea.smem %s0, 33
  %s67 = sld [smem:[%s66]]
  %s68 = scalar_lea.smem %s0, 34
  %s69 = sld [smem:[%s68]]
  %s70 = scalar_lea.smem %s0, 35
  %s71 = sld [smem:[%s70]]
  %s72 = scalar_lea.smem %s0, 36
  %s73 = sld [smem:[%s72]]
  %s74 = scalar_lea.smem %s0, 37
  %s75 = sld [smem:[%s74]]
  %s76 = scalar_lea.smem %s0, 38
  %s77 = sld [smem:[%s76]]
  %s78 = scalar_lea.smem %s0, 39
  %s79 = sld [smem:[%s78]]
  %s80 = scalar_lea.smem %s0, 40
  %s81 = sld [smem:[%s80]]
  %s82 = scalar_lea.smem %s0, 41
  %s83 = sld [smem:[%s82]]
  %s84 = scalar_lea.smem %s0, 42
  %s85 = sld [smem:[%s84]]
  %s86 = scalar_lea.smem %s0, 43
  %s87 = sld [smem:[%s86]]
  %s88 = scalar_lea.smem %s0, 44
  %s89 = sld [smem:[%s88]]
  %s90 = sld [smem:[#allocation0]]
  $region258: #{conditioned_diffusion_forward.1} parent=0
    _
  %s92 = ssub.s32 1, %s90
  %s93 = scalar_select 0, %s92, %s90
  $region1: #{conditioned_diffusion_forward.1} parent=0
    #allocation2 [shape = 'u8[16384]{0}', space=vmem, size = 0x4000, scoped, tag = 'input window, operand 6, single buffered']
    #allocation3 [shape = 's32[1]{0}', space=sflag, size = 0x4, scoped, tag = 'scoped memory for conditioned_diffusion_forward.1']
    #allocation4 [shape = 's32[1]{0}', space=sflag, size = 0x4, scoped, tag = 'scoped memory for conditioned_diffusion_forward.1']
    #allocation5 [shape = 'u8[32768]{0}', space=vmem, size = 0x8000, scoped, tag = 'input window, operand 8, single buffered']
    #allocation6 [shape = 's32[1]{0}', space=sflag, size = 0x4, scoped, tag = 'scoped memory for conditioned_diffusion_forward.1']
    #allocation7 [shape = 'u8[8192]{0}', space=vmem, size = 0x2000, scoped, tag = 'input window, operand 10, single buffered']
    #allocation8 [shape = 'u8[512]{0}', space=vmem, size = 0x400, scoped, tag = 'input window, operand 11, single buffered']
    #allocation9 [shape = 's32[1]{0}', space=sflag, size = 0x4, scoped, tag = 'scoped memory for conditioned_diffusion_forward.1']
    #allocation10 [shape = 'u8[32768]{0}', space=vmem, size = 0x8000, scoped, tag = 'input window, operand 12, single buffered']
    #allocation11 [shape = 'u8[512]{0}', space=vmem, size = 0x400, scoped, tag = 'input window, operand 13, single buffered']
    #allocation12 [shape = 's32[1]{0}', space=sflag, size = 0x4, scoped, tag = 'scoped memory for conditioned_diffusion_forward.1']
    #allocation13 [shape = 'u8[16384]{0}', space=vmem, size = 0x4000, scoped, tag = 'input window, operand 14, single buffered']
    #allocation14 [shape = 'u8[512]{0}', space=vmem, size = 0x400, scoped, tag = 'input window, operand 15, single buffered']
    #allocation15 [shape = 's32[1]{0}', space=sflag, size = 0x4, scoped, tag = 'scoped memory for conditioned_diffusion_forward.1']
    #allocation16 [shape = 'u8[32768]{0}', space=vmem, size = 0x8000, scoped, tag = 'input window, operand 16, single buffered']
    #allocation17 [shape = 'u8[512]{0}', space=vmem, size = 0x400, scoped, tag = 'input window, operand 17, single buffered']
    #allocation18 [shape = 's32[1]{0}', space=sflag, size = 0x4, scoped, tag = 'scoped memory for conditioned_diffusion_forward.1']
    #allocation19 [shape = 'u8[512]{0}', space=vmem, size = 0x400, scoped, tag = 'input window, operand 19, single buffered']
    #allocation20 [shape = 'u8[512]{0}', space=vmem, size = 0x400, scoped, tag = 'input window, operand 21, single buffered']
    #allocation21 [shape = 's32[1]{0}', space=sflag, size = 0x4, scoped, tag = 'scoped memory for conditioned_diffusion_forward.1']
    #allocation22 [shape = 'u8[1024]{0}', space=vmem, size = 0x400, scoped, tag = 'input window, operand 29, single buffered']
    #allocation23 [shape = 'u8[1024]{0}', space=vmem, size = 0x400, scoped, tag = 'input window, operand 33, single buffered']
    #allocation24 [shape = 's32[1]{0}', space=sflag, size = 0x4, scoped, tag = 'scoped memory for conditioned_diffusion_forward.1']
    #allocation25 [shape = 'u8[1024]{0}', space=vmem, size = 0x400, scoped, tag = 'input window, operand 35, single buffered']
    #allocation26 [shape = 'u8[65536]{0}', space=vmem, size = 0x10000, scoped, tag = 'input window, operand 36, single buffered']
    #allocation27 [shape = 's32[1]{0}', space=sflag, size = 0x4, scoped, tag = 'scoped memory for conditioned_diffusion_forward.1']
    #allocation28 [shape = 'u8[1024]{0}', space=vmem, size = 0x400, scoped, tag = 'input window, operand 37, single buffered']
    #allocation29 [shape = 'u8[1024]{0}', space=vmem, size = 0x400, scoped, tag = 'input window, operand 43, single buffered']
    #allocation30 [shape = 's32[1]{0}', space=sflag, size = 0x4, scoped, tag = 'scoped memory for conditioned_diffusion_forward.1']
    #allocation31 [shape = 'u8[4096]{0}', space=vmem, size = 0x1000, scoped, tag = 'output window, operand 0, single buffered']
    %94 = vsyncpa [#allocation3], 0
    %95 = vsyncpa [#allocation6], 0
    %96 = vsyncpa [#allocation9], 0
    %97 = vsyncpa [#allocation12], 0
    %98 = vsyncpa [#allocation15], 0
    %99 = vsyncpa [#allocation18], 0
    %100 = vsyncpa [#allocation21], 0
    %101 = vsyncpa [#allocation24], 0
    %102 = vsyncpa [#allocation27], 0
    %103 = vsyncpa [#allocation30], 0
    %104 = vsyncpa [#allocation4], 0
    // Predicated region
    $region2: #{conditioned_diffusion_forward.1} parent=1 // pred_check
      _
    $region3: #{conditioned_diffusion_forward.1} parent=1 // pred_check_branch
      %106 = sbr.rel (0) target = $region5
    $region4: #{conditioned_diffusion_forward.1} parent=1 // pred_region
      _
    $region5: #{conditioned_diffusion_forward.1} parent=1 // pred_fallthru
      _
    // Predicated region
    $region6: #{conditioned_diffusion_forward.1} parent=1 // pred_check
      _
    $region7: #{conditioned_diffusion_forward.1} parent=1 // pred_check_branch
      %108 = sbr.rel (0) target = $region9
    $region8: #{conditioned_diffusion_forward.1} parent=1 // pred_region
      _
    $region9: #{conditioned_diffusion_forward.1} parent=1 // pred_fallthru
      _
    // Predicated region
    $region10: #{conditioned_diffusion_forward.1} parent=1 // pred_check
      _
    $region11: #{conditioned_diffusion_forward.1} parent=1 // pred_check_branch
      %110 = sbr.rel (0) target = $region13
    $region12: #{conditioned_diffusion_forward.1} parent=1 // pred_region
      _
    $region13: #{conditioned_diffusion_forward.1} parent=1 // pred_fallthru
      _
    // Predicated region
    $region14: #{conditioned_diffusion_forward.1} parent=1 // pred_check
      _
    $region15: #{conditioned_diffusion_forward.1} parent=1 // pred_check_branch
      %112 = sbr.rel (0) target = $region17
    $region16: #{conditioned_diffusion_forward.1} parent=1 // pred_region
      _
    $region17: #{conditioned_diffusion_forward.1} parent=1 // pred_fallthru
      _
    // Predicated region
    $region18: #{conditioned_diffusion_forward.1} parent=1 // pred_check
      _
    $region19: #{conditioned_diffusion_forward.1} parent=1 // pred_check_branch
      %114 = sbr.rel (0) target = $region21
    $region20: #{conditioned_diffusion_forward.1} parent=1 // pred_region
      _
    $region21: #{conditioned_diffusion_forward.1} parent=1 // pred_fallthru
      _
    // Predicated region
    $region22: #{conditioned_diffusion_forward.1} parent=1 // pred_check
      _
    $region23: #{conditioned_diffusion_forward.1} parent=1 // pred_check_branch
      %116 = sbr.rel (0) target = $region25
    $region24: #{conditioned_diffusion_forward.1} parent=1 // pred_region
      _
    $region25: #{conditioned_diffusion_forward.1} parent=1 // pred_fallthru
      _
    // Predicated region
    $region26: #{conditioned_diffusion_forward.1} parent=1 // pred_check
      _
    $region27: #{conditioned_diffusion_forward.1} parent=1 // pred_check_branch
      %118 = sbr.rel (0) target = $region29
    $region28: #{conditioned_diffusion_forward.1} parent=1 // pred_region
      %120 = vsyncadd [#allocation3], 0
      %s121 = sshll.u32 %s13, 4
      %s122 = int_to_ptr.hbm [resolvable:$true] %s121
      %s123 = sshll.u32 [#allocation2], 4
      %s124 = int_to_ptr.vmem [resolvable:$true] %s123
      %129 = dma.hbm_to_vmem [thread:$0]  %s122, 512, %s124, [#allocation3], 128, 128, 8
    $region29: #{conditioned_diffusion_forward.1} parent=1 // pred_fallthru
      _
    // Predicated region
    $region30: #{conditioned_diffusion_forward.1} parent=1 // pred_check
      _
    $region31: #{conditioned_diffusion_forward.1} parent=1 // pred_check_branch
      %131 = sbr.rel (0) target = $region33
    $region32: #{conditioned_diffusion_forward.1} parent=1 // pred_region
      _
    $region33: #{conditioned_diffusion_forward.1} parent=1 // pred_fallthru
      _
    // Predicated region
    $region34: #{conditioned_diffusion_forward.1} parent=1 // pred_check
      _
    $region35: #{conditioned_diffusion_forward.1} parent=1 // pred_check_branch
      %133 = sbr.rel (0) target = $region37
    $region36: #{conditioned_diffusion_forward.1} parent=1 // pred_region
      %135 = vsyncadd [#allocation6], 0
      %s136 = sshll.u32 %s17, 4
      %s137 = int_to_ptr.hbm [resolvable:$true] %s136
      %s138 = sshll.u32 [#allocation5], 4
      %s139 = int_to_ptr.vmem [resolvable:$true] %s138
      %144 = dma.hbm_to_vmem [thread:$0]  %s137, 1024, %s139, [#allocation6], 128, 128, 8
    $region37: #{conditioned_diffusion_forward.1} parent=1 // pred_fallthru
      _
    // Predicated region
    $region38: #{conditioned_diffusion_forward.1} parent=1 // pred_check
      _
    $region39: #{conditioned_diffusion_forward.1} parent=1 // pred_check_branch
      %146 = sbr.rel (0) target = $region41
    $region40: #{conditioned_diffusion_forward.1} parent=1 // pred_region
      _
    $region41: #{conditioned_diffusion_forward.1} parent=1 // pred_fallthru
      _
    // Predicated region
    $region42: #{conditioned_diffusion_forward.1} parent=1 // pred_check
      _
    $region43: #{conditioned_diffusion_forward.1} parent=1 // pred_check_branch
      %148 = sbr.rel (0) target = $region45
    $region44: #{conditioned_diffusion_forward.1} parent=1 // pred_region
      %150 = vsyncadd [#allocation6], 0
      %s151 = sshll.u32 %s21, 4
      %s152 = int_to_ptr.hbm [resolvable:$true] %s151
      %s153 = sshll.u32 [#allocation7], 4
      %s154 = int_to_ptr.vmem [resolvable:$true] %s153
      %159 = dma.hbm_to_vmem [thread:$0]  %s152, 256, %s154, [#allocation6], 128, 128, 8
    $region45: #{conditioned_diffusion_forward.1} parent=1 // pred_fallthru
      _
    // Predicated region
    $region46: #{conditioned_diffusion_forward.1} parent=1 // pred_check
      _
    $region47: #{conditioned_diffusion_forward.1} parent=1 // pred_check_branch
      %161 = sbr.rel (0) target = $region49
    $region48: #{conditioned_diffusion_forward.1} parent=1 // pred_region
      %163 = vsyncadd [#allocation9], 0
      %s165 = sshll.u32 %s23, 4
      %s166 = int_to_ptr.hbm [resolvable:$true] %s165
      %s167 = sshll.u32 [#allocation8], 4
      %s168 = int_to_ptr.vmem [resolvable:$true] %s167
      %170 = dma.hbm_to_vmem [thread:$0]  %s166, 16, %s168, [#allocation9]
    $region49: #{conditioned_diffusion_forward.1} parent=1 // pred_fallthru
      _
    // Predicated region
    $region50: #{conditioned_diffusion_forward.1} parent=1 // pred_check
      _
    $region51: #{conditioned_diffusion_forward.1} parent=1 // pred_check_branch
      %172 = sbr.rel (0) target = $region53
    $region52: #{conditioned_diffusion_forward.1} parent=1 // pred_region
      %174 = vsyncadd [#allocation9], 0
      %s175 = sshll.u32 %s25, 4
      %s176 = int_to_ptr.hbm [resolvable:$true] %s175
      %s177 = sshll.u32 [#allocation10], 4
      %s178 = int_to_ptr.vmem [resolvable:$true] %s177
      %183 = dma.hbm_to_vmem [thread:$0]  %s176, 1024, %s178, [#allocation9], 128, 128, 8
    $region53: #{conditioned_diffusion_forward.1} parent=1 // pred_fallthru
      _
    // Predicated region
    $region54: #{conditioned_diffusion_forward.1} parent=1 // pred_check
      _
    $region55: #{conditioned_diffusion_forward.1} parent=1 // pred_check_branch
      %185 = sbr.rel (0) target = $region57
    $region56: #{conditioned_diffusion_forward.1} parent=1 // pred_region
      %187 = vsyncadd [#allocation12], 0
      %s189 = sshll.u32 %s27, 4
      %s190 = int_to_ptr.hbm [resolvable:$true] %s189
      %s191 = sshll.u32 [#allocation11], 4
      %s192 = int_to_ptr.vmem [resolvable:$true] %s191
      %194 = dma.hbm_to_vmem [thread:$0]  %s190, 16, %s192, [#allocation12]
    $region57: #{conditioned_diffusion_forward.1} parent=1 // pred_fallthru
      _
    // Predicated region
    $region58: #{conditioned_diffusion_forward.1} parent=1 // pred_check
      _
    $region59: #{conditioned_diffusion_forward.1} parent=1 // pred_check_branch
      %196 = sbr.rel (0) target = $region61
    $region60: #{conditioned_diffusion_forward.1} parent=1 // pred_region
      %198 = vsyncadd [#allocation12], 0
      %s199 = sshll.u32 %s29, 4
      %s200 = int_to_ptr.hbm [resolvable:$true] %s199
      %s201 = sshll.u32 [#allocation13], 4
      %s202 = int_to_ptr.vmem [resolvable:$true] %s201
      %207 = dma.hbm_to_vmem [thread:$0]  %s200, 512, %s202, [#allocation12], 128, 128, 8
    $region61: #{conditioned_diffusion_forward.1} parent=1 // pred_fallthru
      _
    // Predicated region
    $region62: #{conditioned_diffusion_forward.1} parent=1 // pred_check
      _
    $region63: #{conditioned_diffusion_forward.1} parent=1 // pred_check_branch
      %209 = sbr.rel (0) target = $region65
    $region64: #{conditioned_diffusion_forward.1} parent=1 // pred_region
      %211 = vsyncadd [#allocation15], 0
      %s213 = sshll.u32 %s31, 4
      %s214 = int_to_ptr.hbm [resolvable:$true] %s213
      %s215 = sshll.u32 [#allocation14], 4
      %s216 = int_to_ptr.vmem [resolvable:$true] %s215
      %218 = dma.hbm_to_vmem [thread:$0]  %s214, 16, %s216, [#allocation15]
    $region65: #{conditioned_diffusion_forward.1} parent=1 // pred_fallthru
      _
    // Predicated region
    $region66: #{conditioned_diffusion_forward.1} parent=1 // pred_check
      _
    $region67: #{conditioned_diffusion_forward.1} parent=1 // pred_check_branch
      %220 = sbr.rel (0) target = $region69
    $region68: #{conditioned_diffusion_forward.1} parent=1 // pred_region
      %222 = vsyncadd [#allocation15], 0
      %s223 = sshll.u32 %s33, 4
      %s224 = int_to_ptr.hbm [resolvable:$true] %s223
      %s225 = sshll.u32 [#allocation16], 4
      %s226 = int_to_ptr.vmem [resolvable:$true] %s225
      %231 = dma.hbm_to_vmem [thread:$0]  %s224, 1024, %s226, [#allocation15], 128, 128, 8
    $region69: #{conditioned_diffusion_forward.1} parent=1 // pred_fallthru
      _
    // Predicated region
    $region70: #{conditioned_diffusion_forward.1} parent=1 // pred_check
      _
    $region71: #{conditioned_diffusion_forward.1} parent=1 // pred_check_branch
      %233 = sbr.rel (0) target = $region73
    $region72: #{conditioned_diffusion_forward.1} parent=1 // pred_region
      %235 = vsyncadd [#allocation18], 0
      %s237 = sshll.u32 %s35, 4
      %s238 = int_to_ptr.hbm [resolvable:$true] %s237
      %s239 = sshll.u32 [#allocation17], 4
      %s240 = int_to_ptr.vmem [resolvable:$true] %s239
      %242 = dma.hbm_to_vmem [thread:$0]  %s238, 16, %s240, [#allocation18]
    $region73: #{conditioned_diffusion_forward.1} parent=1 // pred_fallthru
      _
    // Predicated region
    $region74: #{conditioned_diffusion_forward.1} parent=1 // pred_check
      _
    $region75: #{conditioned_diffusion_forward.1} parent=1 // pred_check_branch
      %244 = sbr.rel (0) target = $region77
    $region76: #{conditioned_diffusion_forward.1} parent=1 // pred_region
      _
    $region77: #{conditioned_diffusion_forward.1} parent=1 // pred_fallthru
      _
    // Predicated region
    $region78: #{conditioned_diffusion_forward.1} parent=1 // pred_check
      _
    $region79: #{conditioned_diffusion_forward.1} parent=1 // pred_check_branch
      %246 = sbr.rel (0) target = $region81
    $region80: #{conditioned_diffusion_forward.1} parent=1 // pred_region
      %248 = vsyncadd [#allocation18], 0
      %s250 = sshll.u32 %s39, 4
      %s251 = int_to_ptr.hbm [resolvable:$true] %s250
      %s252 = sshll.u32 [#allocation19], 4
      %s253 = int_to_ptr.vmem [resolvable:$true] %s252
      %255 = dma.hbm_to_vmem [thread:$0]  %s251, 16, %s253, [#allocation18]
    $region81: #{conditioned_diffusion_forward.1} parent=1 // pred_fallthru
      _
    // Predicated region
    $region82: #{conditioned_diffusion_forward.1} parent=1 // pred_check
      _
    $region83: #{conditioned_diffusion_forward.1} parent=1 // pred_check_branch
      %257 = sbr.rel (0) target = $region85
    $region84: #{conditioned_diffusion_forward.1} parent=1 // pred_region
      _
    $region85: #{conditioned_diffusion_forward.1} parent=1 // pred_fallthru
      _
    // Predicated region
    $region86: #{conditioned_diffusion_forward.1} parent=1 // pred_check
      _
    $region87: #{conditioned_diffusion_forward.1} parent=1 // pred_check_branch
      %259 = sbr.rel (0) target = $region89
    $region88: #{conditioned_diffusion_forward.1} parent=1 // pred_region
      %261 = vsyncadd [#allocation21], 0
      %s263 = sshll.u32 %s43, 4
      %s264 = int_to_ptr.hbm [resolvable:$true] %s263
      %s265 = sshll.u32 [#allocation20], 4
      %s266 = int_to_ptr.vmem [resolvable:$true] %s265
      %268 = dma.hbm_to_vmem [thread:$0]  %s264, 16, %s266, [#allocation21]
    $region89: #{conditioned_diffusion_forward.1} parent=1 // pred_fallthru
      _
    // Predicated region
    $region90: #{conditioned_diffusion_forward.1} parent=1 // pred_check
      _
    $region91: #{conditioned_diffusion_forward.1} parent=1 // pred_check_branch
      %270 = sbr.rel (0) target = $region93
    $region92: #{conditioned_diffusion_forward.1} parent=1 // pred_region
      _
    $region93: #{conditioned_diffusion_forward.1} parent=1 // pred_fallthru
      _
    // Predicated region
    $region94: #{conditioned_diffusion_forward.1} parent=1 // pred_check
      _
    $region95: #{conditioned_diffusion_forward.1} parent=1 // pred_check_branch
      %272 = sbr.rel (0) target = $region97
    $region96: #{conditioned_diffusion_forward.1} parent=1 // pred_region
      _
    $region97: #{conditioned_diffusion_forward.1} parent=1 // pred_fallthru
      _
    // Predicated region
    $region98: #{conditioned_diffusion_forward.1} parent=1 // pred_check
      _
    $region99: #{conditioned_diffusion_forward.1} parent=1 // pred_check_branch
      %274 = sbr.rel (0) target = $region101
    $region100: #{conditioned_diffusion_forward.1} parent=1 // pred_region
      _
    $region101: #{conditioned_diffusion_forward.1} parent=1 // pred_fallthru
      _
    // Predicated region
    $region102: #{conditioned_diffusion_forward.1} parent=1 // pred_check
      _
    $region103: #{conditioned_diffusion_forward.1} parent=1 // pred_check_branch
      %276 = sbr.rel (0) target = $region105
    $region104: #{conditioned_diffusion_forward.1} parent=1 // pred_region
      _
    $region105: #{conditioned_diffusion_forward.1} parent=1 // pred_fallthru
      _
    // Predicated region
    $region106: #{conditioned_diffusion_forward.1} parent=1 // pred_check
      _
    $region107: #{conditioned_diffusion_forward.1} parent=1 // pred_check_branch
      %278 = sbr.rel (0) target = $region109
    $region108: #{conditioned_diffusion_forward.1} parent=1 // pred_region
      _
    $region109: #{conditioned_diffusion_forward.1} parent=1 // pred_fallthru
      _
    // Predicated region
    $region110: #{conditioned_diffusion_forward.1} parent=1 // pred_check
      _
    $region111: #{conditioned_diffusion_forward.1} parent=1 // pred_check_branch
      %280 = sbr.rel (0) target = $region113
    $region112: #{conditioned_diffusion_forward.1} parent=1 // pred_region
      _
    $region113: #{conditioned_diffusion_forward.1} parent=1 // pred_fallthru
      _
    // Predicated region
    $region114: #{conditioned_diffusion_forward.1} parent=1 // pred_check
      _
    $region115: #{conditioned_diffusion_forward.1} parent=1 // pred_check_branch
      %282 = sbr.rel (0) target = $region117
    $region116: #{conditioned_diffusion_forward.1} parent=1 // pred_region
      _
    $region117: #{conditioned_diffusion_forward.1} parent=1 // pred_fallthru
      _
    // Predicated region
    $region118: #{conditioned_diffusion_forward.1} parent=1 // pred_check
      _
    $region119: #{conditioned_diffusion_forward.1} parent=1 // pred_check_branch
      %284 = sbr.rel (0) target = $region121
    $region120: #{conditioned_diffusion_forward.1} parent=1 // pred_region
      %286 = vsyncadd [#allocation21], 0
      %s287 = sshll.u32 %s59, 4
      %s288 = int_to_ptr.hbm [resolvable:$true] %s287
      %s289 = sshll.u32 [#allocation22], 4
      %s290 = int_to_ptr.vmem [resolvable:$true] %s289
      %295 = dma.hbm_to_vmem [thread:$0]  %s288, 32, %s290, [#allocation21], 16, 16, 1
    $region121: #{conditioned_diffusion_forward.1} parent=1 // pred_fallthru
      _
    // Predicated region
    $region122: #{conditioned_diffusion_forward.1} parent=1 // pred_check
      _
    $region123: #{conditioned_diffusion_forward.1} parent=1 // pred_check_branch
      %297 = sbr.rel (0) target = $region125
    $region124: #{conditioned_diffusion_forward.1} parent=1 // pred_region
      _
    $region125: #{conditioned_diffusion_forward.1} parent=1 // pred_fallthru
      _
    // Predicated region
    $region126: #{conditioned_diffusion_forward.1} parent=1 // pred_check
      _
    $region127: #{conditioned_diffusion_forward.1} parent=1 // pred_check_branch
      %299 = sbr.rel (0) target = $region129
    $region128: #{conditioned_diffusion_forward.1} parent=1 // pred_region
      _
    $region129: #{conditioned_diffusion_forward.1} parent=1 // pred_fallthru
      _
    // Predicated region
    $region130: #{conditioned_diffusion_forward.1} parent=1 // pred_check
      _
    $region131: #{conditioned_diffusion_forward.1} parent=1 // pred_check_branch
      %301 = sbr.rel (0) target = $region133
    $region132: #{conditioned_diffusion_forward.1} parent=1 // pred_region
      _
    $region133: #{conditioned_diffusion_forward.1} parent=1 // pred_fallthru
      _
    // Predicated region
    $region134: #{conditioned_diffusion_forward.1} parent=1 // pred_check
      _
    $region135: #{conditioned_diffusion_forward.1} parent=1 // pred_check_branch
      %303 = sbr.rel (0) target = $region137
    $region136: #{conditioned_diffusion_forward.1} parent=1 // pred_region
      %305 = vsyncadd [#allocation24], 0
      %s306 = sshll.u32 %s67, 4
      %s307 = int_to_ptr.hbm [resolvable:$true] %s306
      %s308 = sshll.u32 [#allocation23], 4
      %s309 = int_to_ptr.vmem [resolvable:$true] %s308
      %314 = dma.hbm_to_vmem [thread:$0]  %s307, 32, %s309, [#allocation24], 16, 16, 1
    $region137: #{conditioned_diffusion_forward.1} parent=1 // pred_fallthru
      _
    // Predicated region
    $region138: #{conditioned_diffusion_forward.1} parent=1 // pred_check
      _
    $region139: #{conditioned_diffusion_forward.1} parent=1 // pred_check_branch
      %316 = sbr.rel (0) target = $region141
    $region140: #{conditioned_diffusion_forward.1} parent=1 // pred_region
      _
    $region141: #{conditioned_diffusion_forward.1} parent=1 // pred_fallthru
      _
    // Predicated region
    $region142: #{conditioned_diffusion_forward.1} parent=1 // pred_check
      _
    $region143: #{conditioned_diffusion_forward.1} parent=1 // pred_check_branch
      %318 = sbr.rel (0) target = $region145
    $region144: #{conditioned_diffusion_forward.1} parent=1 // pred_region
      %320 = vsyncadd [#allocation24], 0
      %s321 = sshll.u32 %s71, 4
      %s322 = int_to_ptr.hbm [resolvable:$true] %s321
      %s323 = sshll.u32 [#allocation25], 4
      %s324 = int_to_ptr.vmem [resolvable:$true] %s323
      %329 = dma.hbm_to_vmem [thread:$0]  %s322, 32, %s324, [#allocation24], 16, 16, 1
    $region145: #{conditioned_diffusion_forward.1} parent=1 // pred_fallthru
      _
    // Predicated region
    $region146: #{conditioned_diffusion_forward.1} parent=1 // pred_check
      _
    $region147: #{conditioned_diffusion_forward.1} parent=1 // pred_check_branch
      %331 = sbr.rel (0) target = $region149
    $region148: #{conditioned_diffusion_forward.1} parent=1 // pred_region
      %333 = vsyncadd [#allocation27], 0
      %s334 = sshll.u32 %s73, 4
      %s335 = int_to_ptr.hbm [resolvable:$true] %s334
      %s336 = sshll.u32 [#allocation26], 4
      %s337 = int_to_ptr.vmem [resolvable:$true] %s336
      %342 = dma.hbm_to_vmem [thread:$0]  %s335, 2048, %s337, [#allocation27], 128, 128, 8
    $region149: #{conditioned_diffusion_forward.1} parent=1 // pred_fallthru
      _
    // Predicated region
    $region150: #{conditioned_diffusion_forward.1} parent=1 // pred_check
      _
    $region151: #{conditioned_diffusion_forward.1} parent=1 // pred_check_branch
      %344 = sbr.rel (0) target = $region153
    $region152: #{conditioned_diffusion_forward.1} parent=1 // pred_region
      %346 = vsyncadd [#allocation27], 0
      %s347 = sshll.u32 %s75, 4
      %s348 = int_to_ptr.hbm [resolvable:$true] %s347
      %s349 = sshll.u32 [#allocation28], 4
      %s350 = int_to_ptr.vmem [resolvable:$true] %s349
      %355 = dma.hbm_to_vmem [thread:$0]  %s348, 32, %s350, [#allocation27], 16, 16, 1
    $region153: #{conditioned_diffusion_forward.1} parent=1 // pred_fallthru
      _
    // Predicated region
    $region154: #{conditioned_diffusion_forward.1} parent=1 // pred_check
      _
    $region155: #{conditioned_diffusion_forward.1} parent=1 // pred_check_branch
      %357 = sbr.rel (0) target = $region157
    $region156: #{conditioned_diffusion_forward.1} parent=1 // pred_region
      _
    $region157: #{conditioned_diffusion_forward.1} parent=1 // pred_fallthru
      _
    // Predicated region
    $region158: #{conditioned_diffusion_forward.1} parent=1 // pred_check
      _
    $region159: #{conditioned_diffusion_forward.1} parent=1 // pred_check_branch
      %359 = sbr.rel (0) target = $region161
    $region160: #{conditioned_diffusion_forward.1} parent=1 // pred_region
      _
    $region161: #{conditioned_diffusion_forward.1} parent=1 // pred_fallthru
      _
    // Predicated region
    $region162: #{conditioned_diffusion_forward.1} parent=1 // pred_check
      _
    $region163: #{conditioned_diffusion_forward.1} parent=1 // pred_check_branch
      %361 = sbr.rel (0) target = $region165
    $region164: #{conditioned_diffusion_forward.1} parent=1 // pred_region
      _
    $region165: #{conditioned_diffusion_forward.1} parent=1 // pred_fallthru
      _
    // Predicated region
    $region166: #{conditioned_diffusion_forward.1} parent=1 // pred_check
      _
    $region167: #{conditioned_diffusion_forward.1} parent=1 // pred_check_branch
      %363 = sbr.rel (0) target = $region169
    $region168: #{conditioned_diffusion_forward.1} parent=1 // pred_region
      _
    $region169: #{conditioned_diffusion_forward.1} parent=1 // pred_fallthru
      _
    // Predicated region
    $region170: #{conditioned_diffusion_forward.1} parent=1 // pred_check
      _
    $region171: #{conditioned_diffusion_forward.1} parent=1 // pred_check_branch
      %365 = sbr.rel (0) target = $region173
    $region172: #{conditioned_diffusion_forward.1} parent=1 // pred_region
      _
    $region173: #{conditioned_diffusion_forward.1} parent=1 // pred_fallthru
      _
    // Predicated region
    $region174: #{conditioned_diffusion_forward.1} parent=1 // pred_check
      _
    $region175: #{conditioned_diffusion_forward.1} parent=1 // pred_check_branch
      %367 = sbr.rel (0) target = $region177
    $region176: #{conditioned_diffusion_forward.1} parent=1 // pred_region
      %369 = vsyncadd [#allocation30], 0
      %s370 = sshll.u32 %s87, 4
      %s371 = int_to_ptr.hbm [resolvable:$true] %s370
      %s372 = sshll.u32 [#allocation29], 4
      %s373 = int_to_ptr.vmem [resolvable:$true] %s372
      %378 = dma.hbm_to_vmem [thread:$0]  %s371, 32, %s373, [#allocation30], 16, 16, 1
    $region177: #{conditioned_diffusion_forward.1} parent=1 // pred_fallthru
      _
    // Predicated region
    $region178: #{conditioned_diffusion_forward.1} parent=1 // pred_check
      _
    $region179: #{conditioned_diffusion_forward.1} parent=1 // pred_check_branch
      %380 = sbr.rel (0) target = $region181
    $region180: #{conditioned_diffusion_forward.1} parent=1 // pred_region
      %382 = dma.done [#allocation3], 512
    $region181: #{conditioned_diffusion_forward.1} parent=1 // pred_fallthru
      _
    // Predicated region
    $region182: #{conditioned_diffusion_forward.1} parent=1 // pred_check
      _
    $region183: #{conditioned_diffusion_forward.1} parent=1 // pred_check_branch
      %384 = sbr.rel (0) target = $region185
    $region184: #{conditioned_diffusion_forward.1} parent=1 // pred_region
      %386 = dma.done [#allocation6], 1024
    $region185: #{conditioned_diffusion_forward.1} parent=1 // pred_fallthru
      _
    // Predicated region
    $region186: #{conditioned_diffusion_forward.1} parent=1 // pred_check
      _
    $region187: #{conditioned_diffusion_forward.1} parent=1 // pred_check_branch
      %388 = sbr.rel (0) target = $region189
    $region188: #{conditioned_diffusion_forward.1} parent=1 // pred_region
      %390 = dma.done [#allocation6], 256
    $region189: #{conditioned_diffusion_forward.1} parent=1 // pred_fallthru
      _
    // Predicated region
    $region190: #{conditioned_diffusion_forward.1} parent=1 // pred_check
      _
    $region191: #{conditioned_diffusion_forward.1} parent=1 // pred_check_branch
      %392 = sbr.rel (0) target = $region193
    $region192: #{conditioned_diffusion_forward.1} parent=1 // pred_region
      %394 = dma.done [#allocation9], 16
    $region193: #{conditioned_diffusion_forward.1} parent=1 // pred_fallthru
      _
    // Predicated region
    $region194: #{conditioned_diffusion_forward.1} parent=1 // pred_check
      _
    $region195: #{conditioned_diffusion_forward.1} parent=1 // pred_check_branch
      %396 = sbr.rel (0) target = $region197
    $region196: #{conditioned_diffusion_forward.1} parent=1 // pred_region
      %398 = dma.done [#allocation9], 1024
    $region197: #{conditioned_diffusion_forward.1} parent=1 // pred_fallthru
      _
    // Predicated region
    $region198: #{conditioned_diffusion_forward.1} parent=1 // pred_check
      _
    $region199: #{conditioned_diffusion_forward.1} parent=1 // pred_check_branch
      %400 = sbr.rel (0) target = $region201
    $region200: #{conditioned_diffusion_forward.1} parent=1 // pred_region
      %402 = dma.done [#allocation12], 16
    $region201: #{conditioned_diffusion_forward.1} parent=1 // pred_fallthru
      _
    // Predicated region
    $region202: #{conditioned_diffusion_forward.1} parent=1 // pred_check
      _
    $region203: #{conditioned_diffusion_forward.1} parent=1 // pred_check_branch
      %404 = sbr.rel (0) target = $region205
    $region204: #{conditioned_diffusion_forward.1} parent=1 // pred_region
      %406 = dma.done [#allocation12], 512
    $region205: #{conditioned_diffusion_forward.1} parent=1 // pred_fallthru
      _
    // Predicated region
    $region206: #{conditioned_diffusion_forward.1} parent=1 // pred_check
      _
    $region207: #{conditioned_diffusion_forward.1} parent=1 // pred_check_branch
      %408 = sbr.rel (0) target = $region209
    $region208: #{conditioned_diffusion_forward.1} parent=1 // pred_region
      %410 = dma.done [#allocation15], 16
    $region209: #{conditioned_diffusion_forward.1} parent=1 // pred_fallthru
      _
    // Predicated region
    $region210: #{conditioned_diffusion_forward.1} parent=1 // pred_check
      _
    $region211: #{conditioned_diffusion_forward.1} parent=1 // pred_check_branch
      %412 = sbr.rel (0) target = $region213
    $region212: #{conditioned_diffusion_forward.1} parent=1 // pred_region
      %414 = dma.done [#allocation15], 1024
    $region213: #{conditioned_diffusion_forward.1} parent=1 // pred_fallthru
      _
    // Predicated region
    $region214: #{conditioned_diffusion_forward.1} parent=1 // pred_check
      _
    $region215: #{conditioned_diffusion_forward.1} parent=1 // pred_check_branch
      %416 = sbr.rel (0) target = $region217
    $region216: #{conditioned_diffusion_forward.1} parent=1 // pred_region
      %418 = dma.done [#allocation18], 16
    $region217: #{conditioned_diffusion_forward.1} parent=1 // pred_fallthru
      _
    // Predicated region
    $region218: #{conditioned_diffusion_forward.1} parent=1 // pred_check
      _
    $region219: #{conditioned_diffusion_forward.1} parent=1 // pred_check_branch
      %420 = sbr.rel (0) target = $region221
    $region220: #{conditioned_diffusion_forward.1} parent=1 // pred_region
      %422 = dma.done [#allocation18], 16
    $region221: #{conditioned_diffusion_forward.1} parent=1 // pred_fallthru
      _
    // Predicated region
    $region222: #{conditioned_diffusion_forward.1} parent=1 // pred_check
      _
    $region223: #{conditioned_diffusion_forward.1} parent=1 // pred_check_branch
      %424 = sbr.rel (0) target = $region225
    $region224: #{conditioned_diffusion_forward.1} parent=1 // pred_region
      %426 = dma.done [#allocation21], 16
    $region225: #{conditioned_diffusion_forward.1} parent=1 // pred_fallthru
      _
    // Predicated region
    $region226: #{conditioned_diffusion_forward.1} parent=1 // pred_check
      _
    $region227: #{conditioned_diffusion_forward.1} parent=1 // pred_check_branch
      %428 = sbr.rel (0) target = $region229
    $region228: #{conditioned_diffusion_forward.1} parent=1 // pred_region
      %430 = dma.done [#allocation21], 32
    $region229: #{conditioned_diffusion_forward.1} parent=1 // pred_fallthru
      _
    // Predicated region
    $region230: #{conditioned_diffusion_forward.1} parent=1 // pred_check
      _
    $region231: #{conditioned_diffusion_forward.1} parent=1 // pred_check_branch
      %432 = sbr.rel (0) target = $region233
    $region232: #{conditioned_diffusion_forward.1} parent=1 // pred_region
      %434 = dma.done [#allocation24], 32
    $region233: #{conditioned_diffusion_forward.1} parent=1 // pred_fallthru
      _
    // Predicated region
    $region234: #{conditioned_diffusion_forward.1} parent=1 // pred_check
      _
    $region235: #{conditioned_diffusion_forward.1} parent=1 // pred_check_branch
      %436 = sbr.rel (0) target = $region237
    $region236: #{conditioned_diffusion_forward.1} parent=1 // pred_region
      %438 = dma.done [#allocation24], 32
    $region237: #{conditioned_diffusion_forward.1} parent=1 // pred_fallthru
      _
    // Predicated region
    $region238: #{conditioned_diffusion_forward.1} parent=1 // pred_check
      _
    $region239: #{conditioned_diffusion_forward.1} parent=1 // pred_check_branch
      %440 = sbr.rel (0) target = $region241
    $region240: #{conditioned_diffusion_forward.1} parent=1 // pred_region
      %442 = dma.done [#allocation27], 2048
    $region241: #{conditioned_diffusion_forward.1} parent=1 // pred_fallthru
      _
    // Predicated region
    $region242: #{conditioned_diffusion_forward.1} parent=1 // pred_check
      _
    $region243: #{conditioned_diffusion_forward.1} parent=1 // pred_check_branch
      %444 = sbr.rel (0) target = $region245
    $region244: #{conditioned_diffusion_forward.1} parent=1 // pred_region
      %446 = dma.done [#allocation27], 32
    $region245: #{conditioned_diffusion_forward.1} parent=1 // pred_fallthru
      _
    // Predicated region
    $region246: #{conditioned_diffusion_forward.1} parent=1 // pred_check
      _
    $region247: #{conditioned_diffusion_forward.1} parent=1 // pred_check_branch
      %448 = sbr.rel (0) target = $region249
    $region248: #{conditioned_diffusion_forward.1} parent=1 // pred_region
      %450 = dma.done [#allocation30], 32
    $region249: #{conditioned_diffusion_forward.1} parent=1 // pred_fallthru
      _
    %v451 = vld [vmem:[%s1] sm:$0x3]
    %v452 = vld [vmem:[%s3] sm:$0x3]
    %v453 = vld [vmem:[%s5] sm:$0xff]
    %v454 = vld [vmem:[%s5 + $0x8] sm:$0xff]
    %v455 = vld [vmem:[%s7] sm:$0xff]
    %v456 = vld [vmem:[%s7 + $0x8] sm:$0xff]
    %v457 = vld [vmem:[%s7 + $0x10] sm:$0xff]
    %v458 = vld [vmem:[%s7 + $0x18] sm:$0xff]
    %v459 = vld [vmem:[%s7 + $0x20] sm:$0x3]
    %v460 = vld [vmem:[%s9] sm:$0xff]
    %v461 = vld [vmem:[%s9 + $0x8] sm:$0xff]
    %v462 = vld [vmem:[%s9 + $0x10] sm:$0xff]
    %v463 = vld [vmem:[%s9 + $0x18] sm:$0xff]
    %v464 = vld [vmem:[%s9 + $0x20] sm:$0x3]
    %v465 = vld [vmem:[#allocation2] sm:$0xff]
    %v466 = vld [vmem:[#allocation2 + $0x8] sm:$0xff]
    %v467 = vld [vmem:[#allocation2 + $0x10] sm:$0xff]
    %v468 = vld [vmem:[#allocation2 + $0x18] sm:$0xff]
    %v469 = vld [vmem:[%s15] sm:$0x1]
    %v470 = vld [vmem:[#allocation5] sm:$0xff]
    %v471 = vld [vmem:[#allocation5 + $0x8] sm:$0xff]
    %v472 = vld [vmem:[#allocation5 + $0x10] sm:$0xff]
    %v473 = vld [vmem:[#allocation5 + $0x18] sm:$0xff]
    %v474 = vld [vmem:[#allocation5 + $0x20] sm:$0xff]
    %v475 = vld [vmem:[#allocation5 + $0x28] sm:$0xff]
    %v476 = vld [vmem:[#allocation5 + $0x30] sm:$0xff]
    %v477 = vld [vmem:[#allocation5 + $0x38] sm:$0xff]
    %v478 = vld [vmem:[%s19] sm:$0x1]
    %v479 = vld [vmem:[#allocation7] sm:$0xff]
    %v480 = vld [vmem:[#allocation7 + $0x8] sm:$0xff]
    %v481 = vld [vmem:[#allocation8] sm:$0x1]
    %v482 = vld [vmem:[#allocation10] sm:$0xff]
    %v483 = vld [vmem:[#allocation10 + $0x8] sm:$0xff]
    %v484 = vld [vmem:[#allocation10 + $0x10] sm:$0xff]
    %v485 = vld [vmem:[#allocation10 + $0x18] sm:$0xff]
    %v486 = vld [vmem:[#allocation10 + $0x20] sm:$0xff]
    %v487 = vld [vmem:[#allocation10 + $0x28] sm:$0xff]
    %v488 = vld [vmem:[#allocation10 + $0x30] sm:$0xff]
    %v489 = vld [vmem:[#allocation10 + $0x38] sm:$0xff]
    %v490 = vld [vmem:[#allocation11] sm:$0x1]
    %v491 = vld [vmem:[#allocation13] sm:$0xff]
    %v492 = vld [vmem:[#allocation13 + $0x8] sm:$0xff]
    %v493 = vld [vmem:[#allocation13 + $0x10] sm:$0xff]
    %v494 = vld [vmem:[#allocation13 + $0x18] sm:$0xff]
    %v495 = vld [vmem:[#allocation14] sm:$0x1]
    %v496 = vld [vmem:[#allocation16] sm:$0xff]
    %v497 = vld [vmem:[#allocation16 + $0x8] sm:$0xff]
    %v498 = vld [vmem:[#allocation16 + $0x10] sm:$0xff]
    %v499 = vld [vmem:[#allocation16 + $0x18] sm:$0xff]
    %v500 = vld [vmem:[#allocation16 + $0x20] sm:$0xff]
    %v501 = vld [vmem:[#allocation16 + $0x28] sm:$0xff]
    %v502 = vld [vmem:[#allocation16 + $0x30] sm:$0xff]
    %v503 = vld [vmem:[#allocation16 + $0x38] sm:$0xff]
    %v504 = vld [vmem:[#allocation17] sm:$0x1]
    %v505 = vld [vmem:[%s37] sm:$0xf]
    %v506 = vld [vmem:[#allocation19] sm:$0x1]
    %v507 = vld [vmem:[%s41] sm:$0x1]
    %v508 = vld [vmem:[#allocation20] sm:$0x1]
    %v509 = vld [vmem:[%s45] sm:$0xf]
    %v510 = vld [vmem:[%s47] sm:$0xf]
    %v512 = vperm.slane %v469, 0
    %vm514 = vcmask 261120
    %v516 = vsel %vm514, %v451, 0
    %518 = vmatpush.msra.mxu0 0.0
    %519 = vmatpush.msra.mxu0 0.0
    %520 = vmatpush.msra.mxu0 0.0
    %521 = vmatpush.msra.mxu0 0.0
    %522 = vmatpush.msra.mxu0 0.0
    %523 = vmatpush.msra.mxu0 0.0
    %524 = vmatpush.msra.mxu0 0.0
    %525 = vmatpush.msra.mxu0 0.0
    %526 = vmatpush.msra.mxu0 0.0
    %527 = vmatpush.msra.mxu0 0.0
    %528 = vmatpush.msra.mxu0 0.0
    %529 = vmatpush.msra.mxu0 0.0
    %530 = vmatpush.msra.mxu0 %v468
    %531 = vmatpush.msra.mxu0 %v467
    %532 = vmatpush.msra.mxu0 %v466
    %533 = vmatpush.msra.mxu0 %v465
    %534 = vmatmul.f32.gmra.mxu0 %v516
    %v535 = vpop.f32.mrf.mxu0
    %v536 = vadd.f32 %v512, %v535
    %537 = vdwg.mxu0
    %v538 = vxor.u32 %v536, 2147483648
    %v539 = vmul.f32 %v538, 1.442695
    %v540 = vpow.pop %v539
    %v541 = vadd.f32 %v540, 1.0
    %v542 = vrcp.pop %v541
    %v543 = vmul.f32 %v541, %v542
    %v544 = vsub.f32 1.0, %v543
    %v545 = vmul.f32 %v542, %v544
    %v546 = vadd.f32 %v542, %v545
    %vm547 = vweird.f32 %v541
    %vm548 = vweird.f32 %v542
    %vm549 = vmor %vm547, %vm548
    %v550 = vsel %vm549, %v542, %v546
    %v551 = vand.u32 2147483647, %v541
    %vm552 = vcmp.eq.f32.partialorder %v551, 8.507059e+37
    %v553 = vand.u32 %v541, 2147483648
    %v554 = vor.u32 1.1754944e-38, %v553
    %v555 = vsel %vm552, %v554, %v550
    %v556 = vmul.f32 1.0, %v555
    %v557 = vmul.f32 %v536, %v556
    %v559 = vperm.slane %v478, 0
    %vm561 = vcmask 523264
    %v563 = vsel %vm561, %v557, 0
    %565 = vmatpush.msra.mxu0 0.0
    %566 = vmatpush.msra.mxu0 0.0
    %567 = vmatpush.msra.mxu0 0.0
    %568 = vmatpush.msra.mxu0 0.0
    %569 = vmatpush.msra.mxu0 0.0
    %570 = vmatpush.msra.mxu0 0.0
    %571 = vmatpush.msra.mxu0 0.0
    %572 = vmatpush.msra.mxu0 0.0
    %573 = vmatpush.msra.mxu0 %v477
    %574 = vmatpush.msra.mxu0 %v476
    %575 = vmatpush.msra.mxu0 %v475
    %576 = vmatpush.msra.mxu0 %v474
    %577 = vmatpush.msra.mxu0 %v473
    %578 = vmatpush.msra.mxu0 %v472
    %579 = vmatpush.msra.mxu0 %v471
    %580 = vmatpush.msra.mxu0 %v470
    %581 = vmatmul.f32.gmra.mxu0 %v563
    %v582 = vpop.f32.mrf.mxu0
    %v583 = vadd.f32 %v559, %v582
    %584 = vdwg.mxu0
    %v586 = vperm.slane %v481, 0
    %vm588 = vcmask 130048
    %v590 = vsel %vm588, %v452, 0
    %592 = vmatpush.msra.mxu0 0.0
    %593 = vmatpush.msra.mxu0 0.0
    %594 = vmatpush.msra.mxu0 0.0
    %595 = vmatpush.msra.mxu0 0.0
    %596 = vmatpush.msra.mxu0 0.0
    %597 = vmatpush.msra.mxu0 0.0
    %598 = vmatpush.msra.mxu0 0.0
    %599 = vmatpush.msra.mxu0 0.0
    %600 = vmatpush.msra.mxu0 0.0
    %601 = vmatpush.msra.mxu0 0.0
    %602 = vmatpush.msra.mxu0 0.0
    %603 = vmatpush.msra.mxu0 0.0
    %604 = vmatpush.msra.mxu0 0.0
    %605 = vmatpush.msra.mxu0 0.0
    %606 = vmatpush.msra.mxu0 %v480
    %607 = vmatpush.msra.mxu0 %v479
    %608 = vmatmul.f32.gmra.mxu0 %v590
    %v609 = vpop.f32.mrf.mxu0
    %v610 = vadd.f32 %v586, %v609
    %611 = vdwg.mxu0
    %v612 = vxor.u32 %v610, 2147483648
    %v613 = vmul.f32 %v612, 1.442695
    %v614 = vpow.pop %v613
    %v615 = vadd.f32 %v614, 1.0
    %v616 = vrcp.pop %v615
    %v617 = vmul.f32 %v615, %v616
    %v618 = vsub.f32 1.0, %v617
    %v619 = vmul.f32 %v616, %v618
    %v620 = vadd.f32 %v616, %v619
    %vm621 = vweird.f32 %v615
    %vm622 = vweird.f32 %v616
    %vm623 = vmor %vm621, %vm622
    %v624 = vsel %vm623, %v616, %v620
    %v625 = vand.u32 2147483647, %v615
    %vm626 = vcmp.eq.f32.partialorder %v625, 8.507059e+37
    %v627 = vand.u32 %v615, 2147483648
    %v628 = vor.u32 1.1754944e-38, %v627
    %v629 = vsel %vm626, %v628, %v624
    %v630 = vmul.f32 1.0, %v629
    %v631 = vmul.f32 %v610, %v630
    %v633 = vperm.slane %v490, 0
    %v636 = vsel %vm561, %v631, 0
    %638 = vmatpush.msra.mxu0 0.0
    %639 = vmatpush.msra.mxu0 0.0
    %640 = vmatpush.msra.mxu0 0.0
    %641 = vmatpush.msra.mxu0 0.0
    %642 = vmatpush.msra.mxu0 0.0
    %643 = vmatpush.msra.mxu0 0.0
    %644 = vmatpush.msra.mxu0 0.0
    %645 = vmatpush.msra.mxu0 0.0
    %646 = vmatpush.msra.mxu0 %v489
    %647 = vmatpush.msra.mxu0 %v488
    %648 = vmatpush.msra.mxu0 %v487
    %649 = vmatpush.msra.mxu0 %v486
    %650 = vmatpush.msra.mxu0 %v485
    %651 = vmatpush.msra.mxu0 %v484
    %652 = vmatpush.msra.mxu0 %v483
    %653 = vmatpush.msra.mxu0 %v482
    %654 = vmatmul.f32.gmra.mxu0 %v636
    %v655 = vpop.f32.mrf.mxu0
    %v656 = vadd.f32 %v633, %v655
    %657 = vdwg.mxu0
    %v658 = vadd.f32 %v583, %v656
    %v660 = vperm.slane %v495, 0
    %v663 = vsel %vm514, %v453, 0
    %v666 = vsel %vm514, %v454, 0
    %668 = vmatpush.msra.mxu0 0.0
    %669 = vmatpush.msra.mxu0 0.0
    %670 = vmatpush.msra.mxu0 0.0
    %671 = vmatpush.msra.mxu0 0.0
    %672 = vmatpush.msra.mxu0 0.0
    %673 = vmatpush.msra.mxu0 0.0
    %674 = vmatpush.msra.mxu0 0.0
    %675 = vmatpush.msra.mxu0 0.0
    %676 = vmatpush.msra.mxu0 0.0
    %677 = vmatpush.msra.mxu0 0.0
    %678 = vmatpush.msra.mxu0 0.0
    %679 = vmatpush.msra.mxu0 0.0
    %680 = vmatpush.msra.mxu0 %v494
    %681 = vmatpush.msra.mxu0 %v493
    %682 = vmatpush.msra.mxu0 %v492
    %683 = vmatpush.msra.mxu0 %v491
    %684 = vmatmul.f32.gmra.mxu0 %v663
    %v685 = vpop.f32.mrf.mxu0
    %v686 = vadd.f32 %v660, %v685
    %687 = vmatmul.f32.gmra.mxu0 %v666
    %v688 = vpop.f32.mrf.mxu0
    %v689 = vadd.f32 %v660, %v688
    %690 = vdwg.mxu0
    %v691 = vxor.u32 %v686, 2147483648
    %v692 = vxor.u32 %v689, 2147483648
    %v693 = vmul.f32 %v691, 1.442695
    %v694 = vpow.pop %v693
    %v695 = vmul.f32 %v692, 1.442695
    %v696 = vpow.pop %v695
    %v697 = vadd.f32 %v694, 1.0
    %v698 = vadd.f32 %v696, 1.0
    %v699 = vrcp.pop %v697
    %v700 = vmul.f32 %v697, %v699
    %v701 = vsub.f32 1.0, %v700
    %v702 = vmul.f32 %v699, %v701
    %v703 = vadd.f32 %v699, %v702
    %vm704 = vweird.f32 %v697
    %vm705 = vweird.f32 %v699
    %vm706 = vmor %vm704, %vm705
    %v707 = vsel %vm706, %v699, %v703
    %v708 = vand.u32 2147483647, %v697
    %vm709 = vcmp.eq.f32.partialorder %v708, 8.507059e+37
    %v710 = vand.u32 %v697, 2147483648
    %v711 = vor.u32 1.1754944e-38, %v710
    %v712 = vsel %vm709, %v711, %v707
    %v713 = vmul.f32 1.0, %v712
    %v714 = vrcp.pop %v698
    %v715 = vmul.f32 %v698, %v714
    %v716 = vsub.f32 1.0, %v715
    %v717 = vmul.f32 %v714, %v716
    %v718 = vadd.f32 %v714, %v717
    %vm719 = vweird.f32 %v698
    %vm720 = vweird.f32 %v714
    %vm721 = vmor %vm719, %vm720
    %v722 = vsel %vm721, %v714, %v718
    %v723 = vand.u32 2147483647, %v698
    %vm724 = vcmp.eq.f32.partialorder %v723, 8.507059e+37
    %v725 = vand.u32 %v698, 2147483648
    %v726 = vor.u32 1.1754944e-38, %v725
    %v727 = vsel %vm724, %v726, %v722
    %v728 = vmul.f32 1.0, %v727
    %v729 = vmul.f32 %v686, %v713
    %v730 = vmul.f32 %v689, %v728
    %v732 = vperm.slane %v504, 0
    %v735 = vsel %vm561, %v729, 0
    %v738 = vsel %vm561, %v730, 0
    %740 = vmatpush.msra.mxu0 0.0
    %741 = vmatpush.msra.mxu0 0.0
    %742 = vmatpush.msra.mxu0 0.0
    %743 = vmatpush.msra.mxu0 0.0
    %744 = vmatpush.msra.mxu0 0.0
    %745 = vmatpush.msra.mxu0 0.0
    %746 = vmatpush.msra.mxu0 0.0
    %747 = vmatpush.msra.mxu0 0.0
    %748 = vmatpush.msra.mxu0 %v503
    %749 = vmatpush.msra.mxu0 %v502
    %750 = vmatpush.msra.mxu0 %v501
    %751 = vmatpush.msra.mxu0 %v500
    %752 = vmatpush.msra.mxu0 %v499
    %753 = vmatpush.msra.mxu0 %v498
    %754 = vmatpush.msra.mxu0 %v497
    %755 = vmatpush.msra.mxu0 %v496
    %756 = vmatmul.f32.gmra.mxu0 %v735
    %v757 = vpop.f32.mrf.mxu0
    %v758 = vadd.f32 %v732, %v757
    %759 = vmatmul.f32.gmra.mxu0 %v738
    %v760 = vpop.f32.mrf.mxu0
    %v761 = vadd.f32 %v732, %v760
    %762 = vdwg.mxu0
    %v763 = vld [vmem:[%s11] sm:$0xff]
    %v764 = vld [vmem:[%s11 + $0x8] sm:$0xff]
    %v766 = vperm.slane %v506, 0
    %vm768 = vcmask 31744
    %v770 = vsel %vm768, %v763, 0
    %v773 = vsel %vm768, %v764, 0
    %vm775 = vcmask 1043456
    %v777 = vsel %vm775, %v505, 0
    %779 = vmatpush.msra.mxu0 0.0
    %780 = vmatpush.msra.mxu0 0.0
    %781 = vmatpush.msra.mxu0 0.0
    %782 = vmatpush.msra.mxu0 0.0
    %783 = vmatpush.msra.mxu0 0.0
    %784 = vmatpush.msra.mxu0 0.0
    %785 = vmatpush.msra.mxu0 0.0
    %786 = vmatpush.msra.mxu0 0.0
    %787 = vmatpush.msra.mxu0 0.0
    %788 = vmatpush.msra.mxu0 0.0
    %789 = vmatpush.msra.mxu0 0.0
    %790 = vmatpush.msra.mxu0 0.0
    %791 = vmatpush.msra.mxu0 0.0
    %792 = vmatpush.msra.mxu0 0.0
    %793 = vmatpush.msra.mxu0 0.0
    %794 = vmatpush.msra.mxu0 %v777
    %795 = vmatmul.f32.gmra.mxu0 %v770
    %v796 = vpop.f32.mrf.mxu0
    %v797 = vadd.f32 %v766, %v796
    %798 = vmatmul.f32.gmra.mxu0 %v773
    %v799 = vpop.f32.mrf.mxu0
    %v800 = vadd.f32 %v766, %v799
    %801 = vdwg.mxu0
    %s802 = scalar_lea.vmem %s11, 16
    %v803 = vld [vmem:[%s802] sm:$0xff]
    %v804 = vld [vmem:[%s802 + $0x8] sm:$0xff]
    %v806 = vsel %vm768, %v803, 0
    %v809 = vsel %vm768, %v804, 0
    %811 = vmatpush.msra.mxu0 0.0
    %812 = vmatpush.msra.mxu0 0.0
    %813 = vmatpush.msra.mxu0 0.0
    %814 = vmatpush.msra.mxu0 0.0
    %815 = vmatpush.msra.mxu0 0.0
    %816 = vmatpush.msra.mxu0 0.0
    %817 = vmatpush.msra.mxu0 0.0
    %818 = vmatpush.msra.mxu0 0.0
    %819 = vmatpush.msra.mxu0 0.0
    %820 = vmatpush.msra.mxu0 0.0
    %821 = vmatpush.msra.mxu0 0.0
    %822 = vmatpush.msra.mxu0 0.0
    %823 = vmatpush.msra.mxu0 0.0
    %824 = vmatpush.msra.mxu0 0.0
    %825 = vmatpush.msra.mxu0 0.0
    %826 = vmatpush.msra.mxu0 %v777
    %827 = vmatmul.f32.gmra.mxu0 %v806
    %v828 = vpop.f32.mrf.mxu0
    %v829 = vadd.f32 %v766, %v828
    %830 = vmatmul.f32.gmra.mxu0 %v809
    %v831 = vpop.f32.mrf.mxu0
    %v832 = vadd.f32 %v766, %v831
    %833 = vdwg.mxu0
    %vm836 = vcmask 1040384
    %v837 = vrot.slane %v797, 7
    %v838 = vrot.slane %v800, 7
    %v839 = vsel %vm836, %v837, %v838
    %vm845 = vcmask 1041408
    %v846 = vrot.slane %v829, 6
    %v847 = vrot.slane %v832, 6
    %v848 = vsel %vm845, %v846, %v847
    %v852 = vsel %vm836, %v658, %v837
    %v853 = vsel %vm836, %v838, %v658
    %v854 = vsel %vm845, %v853, %v846
    %v855 = vld [vmem:[%s49] sm:$0x1]
    %v856 = vld [vmem:[%s51] sm:$0x1]
    %v857 = vld [vmem:[%s53] sm:$0xff]
    %v858 = vld [vmem:[%s53 + $0x8] sm:$0xff]
    %v859 = vld [vmem:[%s53 + $0x10] sm:$0xff]
    %v860 = vld [vmem:[%s53 + $0x18] sm:$0xff]
    %v861 = vld [vmem:[%s53 + $0x20] sm:$0xff]
    %v862 = vld [vmem:[%s53 + $0x28] sm:$0xff]
    %v863 = vld [vmem:[%s53 + $0x30] sm:$0xff]
    %v864 = vld [vmem:[%s53 + $0x38] sm:$0xff]
    %v865 = vld [vmem:[%s53 + $0x40] sm:$0xff]
    %v866 = vld [vmem:[%s53 + $0x48] sm:$0xff]
    %v867 = vld [vmem:[%s53 + $0x50] sm:$0xff]
    %v868 = vld [vmem:[%s53 + $0x58] sm:$0xff]
    %v869 = vld [vmem:[%s53 + $0x60] sm:$0xff]
    %v870 = vld [vmem:[%s53 + $0x68] sm:$0xff]
    %v871 = vld [vmem:[%s53 + $0x70] sm:$0xff]
    %v872 = vld [vmem:[%s53 + $0x78] sm:$0xff]
    %v873 = vld [vmem:[%s55] sm:$0x3]
    %v874 = vld [vmem:[%s57] sm:$0xff]
    %v875 = vld [vmem:[%s57 + $0x8] sm:$0xff]
    %v876 = vld [vmem:[%s57 + $0x10] sm:$0xff]
    %v877 = vld [vmem:[%s57 + $0x18] sm:$0xff]
    %v878 = vld [vmem:[%s57 + $0x20] sm:$0xff]
    %v879 = vld [vmem:[%s57 + $0x28] sm:$0xff]
    %v880 = vld [vmem:[%s57 + $0x30] sm:$0xff]
    %v881 = vld [vmem:[%s57 + $0x38] sm:$0xff]
    %v882 = vld [vmem:[#allocation22] sm:$0x1]
    %v883 = vld [vmem:[%s61] sm:$0x1]
    %v884 = vld [vmem:[%s63] sm:$0x1]
    %v885 = vld [vmem:[%s65] sm:$0xff]
    %v886 = vld [vmem:[%s65 + $0x8] sm:$0xff]
    %v887 = vld [vmem:[%s65 + $0x10] sm:$0xff]
    %v888 = vld [vmem:[%s65 + $0x18] sm:$0xff]
    %v889 = vld [vmem:[%s65 + $0x20] sm:$0xff]
    %v890 = vld [vmem:[%s65 + $0x28] sm:$0xff]
    %v891 = vld [vmem:[%s65 + $0x30] sm:$0xff]
    %v892 = vld [vmem:[%s65 + $0x38] sm:$0xff]
    %v893 = vld [vmem:[#allocation23] sm:$0x1]
    %v894 = vld [vmem:[%s69] sm:$0xff]
    %v895 = vld [vmem:[%s69 + $0x8] sm:$0xff]
    %v896 = vld [vmem:[%s69 + $0x10] sm:$0xff]
    %v897 = vld [vmem:[%s69 + $0x18] sm:$0xff]
    %v898 = vld [vmem:[%s69 + $0x20] sm:$0xff]
    %v899 = vld [vmem:[%s69 + $0x28] sm:$0xff]
    %v900 = vld [vmem:[%s69 + $0x30] sm:$0xff]
    %v901 = vld [vmem:[%s69 + $0x38] sm:$0xff]
    %v902 = vld [vmem:[#allocation25] sm:$0x1]
    %v903 = vld [vmem:[#allocation26] sm:$0xff]
    %v904 = vld [vmem:[#allocation26 + $0x8] sm:$0xff]
    %v905 = vld [vmem:[#allocation26 + $0x10] sm:$0xff]
    %v906 = vld [vmem:[#allocation26 + $0x18] sm:$0xff]
    %v907 = vld [vmem:[#allocation26 + $0x20] sm:$0xff]
    %v908 = vld [vmem:[#allocation26 + $0x28] sm:$0xff]
    %v909 = vld [vmem:[#allocation26 + $0x30] sm:$0xff]
    %v910 = vld [vmem:[#allocation26 + $0x38] sm:$0xff]
    %v911 = vld [vmem:[#allocation28] sm:$0x1]
    %v912 = vld [vmem:[%s77] sm:$0x1]
    %v913 = vld [vmem:[%s79] sm:$0x1]
    %v914 = vld [vmem:[%s81] sm:$0xff]
    %v915 = vld [vmem:[%s81 + $0x8] sm:$0xff]
    %v916 = vld [vmem:[%s81 + $0x10] sm:$0xff]
    %v917 = vld [vmem:[%s81 + $0x18] sm:$0xff]
    %v918 = vld [vmem:[%s81 + $0x20] sm:$0xff]
    %v919 = vld [vmem:[%s81 + $0x28] sm:$0xff]
    %v920 = vld [vmem:[%s81 + $0x30] sm:$0xff]
    %v921 = vld [vmem:[%s81 + $0x38] sm:$0xff]
    %v922 = vld [vmem:[%s81 + $0x40] sm:$0xff]
    %v923 = vld [vmem:[%s81 + $0x48] sm:$0xff]
    %v924 = vld [vmem:[%s81 + $0x50] sm:$0xff]
    %v925 = vld [vmem:[%s81 + $0x58] sm:$0xff]
    %v926 = vld [vmem:[%s81 + $0x60] sm:$0xff]
    %v927 = vld [vmem:[%s81 + $0x68] sm:$0xff]
    %v928 = vld [vmem:[%s81 + $0x70] sm:$0xff]
    %v929 = vld [vmem:[%s81 + $0x78] sm:$0xff]
    %v930 = vld [vmem:[%s83] sm:$0x3]
    %v931 = vld [vmem:[%s85] sm:$0xff]
    %v932 = vld [vmem:[%s85 + $0x8] sm:$0xff]
    %v933 = vld [vmem:[%s85 + $0x10] sm:$0xff]
    %v934 = vld [vmem:[%s85 + $0x18] sm:$0xff]
    %v935 = vld [vmem:[%s85 + $0x20] sm:$0xff]
    %v936 = vld [vmem:[%s85 + $0x28] sm:$0xff]
    %v937 = vld [vmem:[%s85 + $0x30] sm:$0xff]
    %v938 = vld [vmem:[%s85 + $0x38] sm:$0xff]
    %v939 = vld [vmem:[%s85 + $0x40] sm:$0xff]
    %v940 = vld [vmem:[%s85 + $0x48] sm:$0xff]
    %v941 = vld [vmem:[%s85 + $0x50] sm:$0xff]
    %v942 = vld [vmem:[%s85 + $0x58] sm:$0xff]
    %v943 = vld [vmem:[%s85 + $0x60] sm:$0xff]
    %v944 = vld [vmem:[%s85 + $0x68] sm:$0xff]
    %v945 = vld [vmem:[%s85 + $0x70] sm:$0xff]
    %v946 = vld [vmem:[%s85 + $0x78] sm:$0xff]
    %v947 = vld [vmem:[%s85 + $0x80] sm:$0xff]
    %v948 = vld [vmem:[%s85 + $0x88] sm:$0xff]
    %v949 = vld [vmem:[%s85 + $0x90] sm:$0xff]
    %v950 = vld [vmem:[%s85 + $0x98] sm:$0xff]
    %v951 = vld [vmem:[%s85 + $0xa0] sm:$0xff]
    %v952 = vld [vmem:[%s85 + $0xa8] sm:$0xff]
    %v953 = vld [vmem:[%s85 + $0xb0] sm:$0xff]
    %v954 = vld [vmem:[%s85 + $0xb8] sm:$0xff]
    %v955 = vld [vmem:[%s85 + $0xc0] sm:$0xff]
    %v956 = vld [vmem:[%s85 + $0xc8] sm:$0xff]
    %v957 = vld [vmem:[%s85 + $0xd0] sm:$0xff]
    %v958 = vld [vmem:[%s85 + $0xd8] sm:$0xff]
    %v959 = vld [vmem:[%s85 + $0xe0] sm:$0xff]
    %v960 = vld [vmem:[%s85 + $0xe8] sm:$0xff]
    %v961 = vld [vmem:[%s85 + $0xf0] sm:$0xff]
    %v962 = vld [vmem:[%s85 + $0xf8] sm:$0xff]
    %v963 = vld [vmem:[#allocation29] sm:$0x1]
    %v964 = vsel %vm561, %v852, 0.0
    %965 = vadd.xlane.f32.xlu0 %v964
    %v966 = vpop.xlane.xlu0 %965
    %v967 = vsel %vm561, %v839, 0.0
    %968 = vadd.xlane.f32.xlu0 %v967
    %v969 = vpop.xlane.xlu0 %968
    %v970 = vsel %vm561, %v854, 0.0
    %971 = vadd.xlane.f32.xlu0 %v970
    %v972 = vpop.xlane.xlu0 %971
    %v973 = vsel %vm561, %v848, 0.0
    %974 = vadd.xlane.f32.xlu0 %v973
    %v975 = vpop.xlane.xlu0 %974
    %vm976 = vcmask 517120
    %v977 = vsel %vm976, %v847, 0.0
    %978 = vadd.xlane.f32.xlu0 %v977
    %v979 = vpop.xlane.xlu0 %978
    %v980 = vrcp.pop 64.0
    %v981 = vmul.f32 64.0, %v980
    %v982 = vsub.f32 1.0, %v981
    %v983 = vmul.f32 %v980, %v982
    %v984 = vadd.f32 %v980, %v983
    %vm985 = vweird.f32 %v980
    %v986 = vsel %vm985, %v980, %v984
    %v987 = vmul.f32 %v966, %v986
    %v988 = vmul.f32 %v969, %v986
    %v989 = vmul.f32 %v972, %v986
    %v990 = vmul.f32 %v975, %v986
    %v991 = vmul.f32 %v979, %v986
    %v992 = vsub.f32 %v852, %v987
    %v993 = vsub.f32 %v839, %v988
    %v994 = vsub.f32 %v854, %v989
    %v995 = vsub.f32 %v848, %v990
    %v996 = vsub.f32 %v847, %v991
    %v997 = vmul.f32 %v992, %v992
    %v998 = vmul.f32 %v993, %v993
    %v999 = vmul.f32 %v994, %v994
    %v1000 = vmul.f32 %v995, %v995
    %v1001 = vmul.f32 %v996, %v996
    %v1002 = vsel %vm561, %v997, 0.0
    %1003 = vadd.xlane.f32.xlu0 %v1002
    %v1004 = vpop.xlane.xlu0 %1003
    %v1005 = vsel %vm561, %v998, 0.0
    %1006 = vadd.xlane.f32.xlu0 %v1005
    %v1007 = vpop.xlane.xlu0 %1006
    %v1008 = vsel %vm561, %v999, 0.0
    %1009 = vadd.xlane.f32.xlu0 %v1008
    %v1010 = vpop.xlane.xlu0 %1009
    %v1011 = vsel %vm561, %v1000, 0.0
    %1012 = vadd.xlane.f32.xlu0 %v1011
    %v1013 = vpop.xlane.xlu0 %1012
    %v1014 = vsel %vm976, %v1001, 0.0
    %1015 = vadd.xlane.f32.xlu0 %v1014
    %v1016 = vpop.xlane.xlu0 %1015
    %v1017 = vmul.f32 %v1004, %v986
    %v1018 = vmul.f32 %v1007, %v986
    %v1019 = vmul.f32 %v1010, %v986
    %v1020 = vmul.f32 %v1013, %v986
    %v1021 = vmul.f32 %v1016, %v986
    %v1022 = vadd.f32 %v1017, 1e-05
    %v1023 = vadd.f32 %v1018, 1e-05
    %v1024 = vadd.f32 %v1019, 1e-05
    %v1025 = vadd.f32 %v1020, 1e-05
    %v1026 = vadd.f32 %v1021, 1e-05
    %v1027 = vrsqrt.pop %v1022
    %v1028 = vmul.f32 %v1027, %v1022
    %v1029 = vmul.f32 %v1028, %v1027
    %v1030 = vmul.f32 0.5, %v1029
    %v1031 = vsub.f32 1.5, %v1030
    %v1032 = vmul.f32 %v1027, %v1031
    %vm1033 = vweird.f32 %v1022
    %vm1034 = vweird.f32 %v1027
    %vm1035 = vmor %vm1033, %vm1034
    %v1036 = vsel %vm1035, %v1027, %v1032
    %v1037 = vrsqrt.pop %v1023
    %v1038 = vmul.f32 %v1037, %v1023
    %v1039 = vmul.f32 %v1038, %v1037
    %v1040 = vmul.f32 0.5, %v1039
    %v1041 = vsub.f32 1.5, %v1040
    %v1042 = vmul.f32 %v1037, %v1041
    %vm1043 = vweird.f32 %v1023
    %vm1044 = vweird.f32 %v1037
    %vm1045 = vmor %vm1043, %vm1044
    %v1046 = vsel %vm1045, %v1037, %v1042
    %v1047 = vrsqrt.pop %v1024
    %v1048 = vmul.f32 %v1047, %v1024
    %v1049 = vmul.f32 %v1048, %v1047
    %v1050 = vmul.f32 0.5, %v1049
    %v1051 = vsub.f32 1.5, %v1050
    %v1052 = vmul.f32 %v1047, %v1051
    %vm1053 = vweird.f32 %v1024
    %vm1054 = vweird.f32 %v1047
    %vm1055 = vmor %vm1053, %vm1054
    %v1056 = vsel %vm1055, %v1047, %v1052
    %v1057 = vrsqrt.pop %v1025
    %v1058 = vmul.f32 %v1057, %v1025
    %v1059 = vmul.f32 %v1058, %v1057
    %v1060 = vmul.f32 0.5, %v1059
    %v1061 = vsub.f32 1.5, %v1060
    %v1062 = vmul.f32 %v1057, %v1061
    %vm1063 = vweird.f32 %v1025
    %vm1064 = vweird.f32 %v1057
    %vm1065 = vmor %vm1063, %vm1064
    %v1066 = vsel %vm1065, %v1057, %v1062
    %v1067 = vrsqrt.pop %v1026
    %v1068 = vmul.f32 %v1067, %v1026
    %v1069 = vmul.f32 %v1068, %v1067
    %v1070 = vmul.f32 0.5, %v1069
    %v1071 = vsub.f32 1.5, %v1070
    %v1072 = vmul.f32 %v1067, %v1071
    %vm1073 = vweird.f32 %v1026
    %vm1074 = vweird.f32 %v1067
    %vm1075 = vmor %vm1073, %vm1074
    %v1076 = vsel %vm1075, %v1067, %v1072
    %v1077 = vmul.f32 %v992, %v1036
    %v1078 = vmul.f32 %v993, %v1046
    %v1079 = vmul.f32 %v994, %v1056
    %v1080 = vmul.f32 %v995, %v1066
    %v1081 = vmul.f32 %v996, %v1076
    %v1083 = vperm.slane %v855, 0
    %v1085 = vmul.f32 %v1077, %v1083
    %v1086 = vmul.f32 %v1078, %v1083
    %v1087 = vmul.f32 %v1079, %v1083
    %v1088 = vmul.f32 %v1080, %v1083
    %v1089 = vmul.f32 %v1081, %v1083
    %v1091 = vperm.slane %v856, 0
    %v1093 = vadd.f32 %v1085, %v1091
    %v1094 = vadd.f32 %v1086, %v1091
    %v1095 = vadd.f32 %v1087, %v1091
    %v1096 = vadd.f32 %v1088, %v1091
    %v1097 = vadd.f32 %v1089, %v1091
    %v1099 = vperm.slane %v873, 0
    %v1100 = vperm.slane %v873, 1
    %v1104 = vsel %vm561, %v1093, 0
    %v1107 = vsel %vm561, %v1094, 0
    %v1110 = vsel %vm561, %v1095, 0
    %v1113 = vsel %vm561, %v1096, 0
    %v1116 = vsel %vm561, %v1097, 0
    %1118 = vmatpush.msra.mxu0 0.0
    %1119 = vmatpush.msra.mxu0 0.0
    %1120 = vmatpush.msra.mxu0 0.0
    %1121 = vmatpush.msra.mxu0 0.0
    %1122 = vmatpush.msra.mxu0 0.0
    %1123 = vmatpush.msra.mxu0 0.0
    %1124 = vmatpush.msra.mxu0 0.0
    %1125 = vmatpush.msra.mxu0 0.0
    %1126 = vmatpush.msra.mxu0 %v871
    %1127 = vmatpush.msra.mxu0 %v869
    %1128 = vmatpush.msra.mxu0 %v867
    %1129 = vmatpush.msra.mxu0 %v865
    %1130 = vmatpush.msra.mxu0 %v863
    %1131 = vmatpush.msra.mxu0 %v861
    %1132 = vmatpush.msra.mxu0 %v859
    %1133 = vmatpush.msra.mxu0 %v857
    %1134 = vmatmul.f32.gmra.mxu0 %v1104
    %v1135 = vpop.f32.mrf.mxu0
    %v1136 = vadd.f32 %v1099, %v1135
    %1137 = vmatmul.f32.gmra.mxu0 %v1107
    %v1138 = vpop.f32.mrf.mxu0
    %v1139 = vadd.f32 %v1099, %v1138
    %1140 = vmatmul.f32.gmra.mxu0 %v1110
    %v1141 = vpop.f32.mrf.mxu0
    %v1142 = vadd.f32 %v1099, %v1141
    %1143 = vmatmul.f32.gmra.mxu0 %v1113
    %v1144 = vpop.f32.mrf.mxu0
    %v1145 = vadd.f32 %v1099, %v1144
    %1146 = vmatmul.f32.gmra.mxu0 %v1116
    %v1147 = vpop.f32.mrf.mxu0
    %v1148 = vadd.f32 %v1099, %v1147
    %1149 = vdwg.mxu0
    %1150 = vmatpush.msra.mxu0 0.0
    %1151 = vmatpush.msra.mxu0 0.0
    %1152 = vmatpush.msra.mxu0 0.0
    %1153 = vmatpush.msra.mxu0 0.0
    %1154 = vmatpush.msra.mxu0 0.0
    %1155 = vmatpush.msra.mxu0 0.0
    %1156 = vmatpush.msra.mxu0 0.0
    %1157 = vmatpush.msra.mxu0 0.0
    %1158 = vmatpush.msra.mxu0 %v872
    %1159 = vmatpush.msra.mxu0 %v870
    %1160 = vmatpush.msra.mxu0 %v868
    %1161 = vmatpush.msra.mxu0 %v866
    %1162 = vmatpush.msra.mxu0 %v864
    %1163 = vmatpush.msra.mxu0 %v862
    %1164 = vmatpush.msra.mxu0 %v860
    %1165 = vmatpush.msra.mxu0 %v858
    %1166 = vmatmul.f32.gmra.mxu0 %v1104
    %v1167 = vpop.f32.mrf.mxu0
    %v1168 = vadd.f32 %v1100, %v1167
    %1169 = vmatmul.f32.gmra.mxu0 %v1107
    %v1170 = vpop.f32.mrf.mxu0
    %v1171 = vadd.f32 %v1100, %v1170
    %1172 = vmatmul.f32.gmra.mxu0 %v1110
    %v1173 = vpop.f32.mrf.mxu0
    %v1174 = vadd.f32 %v1100, %v1173
    %1175 = vmatmul.f32.gmra.mxu0 %v1113
    %v1176 = vpop.f32.mrf.mxu0
    %v1177 = vadd.f32 %v1100, %v1176
    %1178 = vmatmul.f32.gmra.mxu0 %v1116
    %v1179 = vpop.f32.mrf.mxu0
    %v1180 = vadd.f32 %v1100, %v1179
    %1181 = vdwg.mxu0
    %1187 = vrot.lane.b32.xlu0 %v1136, 64
    %v1188 = vpop.permute.xlu0 %1187
    %1189 = vrot.lane.b32.xlu0 %v1139, 64
    %v1190 = vpop.permute.xlu0 %1189
    %1191 = vrot.lane.b32.xlu0 %v1142, 64
    %v1192 = vpop.permute.xlu0 %1191
    %1193 = vrot.lane.b32.xlu0 %v1145, 64
    %v1194 = vpop.permute.xlu0 %1193
    %1195 = vrot.lane.b32.xlu0 %v1148, 64
    %v1196 = vpop.permute.xlu0 %1195
    %v1197 = vsel %vm588, %v1136, 0
    %v1199 = vsel %vm588, %v1139, 0
    %v1201 = vsel %vm588, %v1142, 0
    %v1203 = vsel %vm588, %v1145, 0
    %v1205 = vsel %vm588, %v1148, 0
    %v1207 = vsel %vm588, %v1188, 0
    %v1209 = vsel %vm588, %v1190, 0
    %v1211 = vsel %vm588, %v1192, 0
    %v1213 = vsel %vm588, %v1194, 0
    %v1215 = vsel %vm588, %v1196, 0
    %1217 = vmatpush.xpose.msra.mxu0 0.0
    %1218 = vmatpush.xpose.msra.mxu0 0.0
    %1219 = vmatpush.xpose.msra.mxu0 0.0
    %1220 = vmatpush.xpose.msra.mxu0 0.0
    %1221 = vmatpush.xpose.msra.mxu0 0.0
    %1222 = vmatpush.xpose.msra.mxu0 0.0
    %1223 = vmatpush.xpose.msra.mxu0 0.0
    %1224 = vmatpush.xpose.msra.mxu0 0.0
    %1225 = vmatpush.xpose.msra.mxu0 0.0
    %1226 = vmatpush.xpose.msra.mxu0 0.0
    %1227 = vmatpush.xpose.msra.mxu0 0.0
    %1228 = vmatpush.xpose.msra.mxu0 %v1215
    %1229 = vmatpush.xpose.msra.mxu0 %v1213
    %1230 = vmatpush.xpose.msra.mxu0 %v1211
    %1231 = vmatpush.xpose.msra.mxu0 %v1209
    %1232 = vmatpush.xpose.msra.mxu0 %v1207
    %1233 = vmatmul.f32.gmra.mxu0 %v1197
    %v1234 = vpop.f32.mrf.mxu0
    %v1235 = vadd.f32 0.0, %v1234
    %1236 = vmatmul.f32.gmra.mxu0 %v1199
    %v1237 = vpop.f32.mrf.mxu0
    %v1238 = vadd.f32 0.0, %v1237
    %1239 = vmatmul.f32.gmra.mxu0 %v1201
    %v1240 = vpop.f32.mrf.mxu0
    %v1241 = vadd.f32 0.0, %v1240
    %1242 = vmatmul.f32.gmra.mxu0 %v1203
    %v1243 = vpop.f32.mrf.mxu0
    %v1244 = vadd.f32 0.0, %v1243
    %1245 = vmatmul.f32.gmra.mxu0 %v1205
    %v1246 = vpop.f32.mrf.mxu0
    %v1247 = vadd.f32 0.0, %v1246
    %1248 = vdwg.mxu0
    %v1249 = vmul.f32 %v1235, 0.25
    %v1250 = vmul.f32 %v1238, 0.25
    %v1251 = vmul.f32 %v1241, 0.25
    %v1252 = vmul.f32 %v1244, 0.25
    %v1253 = vmul.f32 %v1247, 0.25
    %v1254 = vadd.f32 %v1249, %v455
    %v1255 = vadd.f32 %v1250, %v456
    %v1256 = vadd.f32 %v1251, %v457
    %v1257 = vadd.f32 %v1252, %v458
    %v1258 = vadd.f32 %v1253, %v459
    %vm1259 = vcmask 277504
    %v1260 = vsel %vm1259, %v1254, -inf
    %1261 = vmax.xlane.f32.xlu0 %v1260
    %v1262 = vpop.xlane.xlu0 %1261
    %v1263 = vsel %vm1259, %v1255, -inf
    %1264 = vmax.xlane.f32.xlu0 %v1263
    %v1265 = vpop.xlane.xlu0 %1264
    %v1266 = vsel %vm1259, %v1256, -inf
    %1267 = vmax.xlane.f32.xlu0 %v1266
    %v1268 = vpop.xlane.xlu0 %1267
    %v1269 = vsel %vm1259, %v1257, -inf
    %1270 = vmax.xlane.f32.xlu0 %v1269
    %v1271 = vpop.xlane.xlu0 %1270
    %vm1272 = vcmask 271360
    %v1273 = vsel %vm1272, %v1258, -inf
    %1274 = vmax.xlane.f32.xlu0 %v1273
    %v1275 = vpop.xlane.xlu0 %1274
    %v1276 = vsub.f32 %v1254, %v1262
    %v1277 = vsub.f32 %v1255, %v1265
    %v1278 = vsub.f32 %v1256, %v1268
    %v1279 = vsub.f32 %v1257, %v1271
    %v1280 = vsub.f32 %v1258, %v1275
    %v1281 = vmul.f32 %v1276, 1.442695
    %v1282 = vpow.pop %v1281
    %v1283 = vmul.f32 %v1277, 1.442695
    %v1284 = vpow.pop %v1283
    %v1285 = vmul.f32 %v1278, 1.442695
    %v1286 = vpow.pop %v1285
    %v1287 = vmul.f32 %v1279, 1.442695
    %v1288 = vpow.pop %v1287
    %v1289 = vmul.f32 %v1280, 1.442695
    %v1290 = vpow.pop %v1289
    %v1291 = vsel %vm1259, %v1282, 0.0
    %1292 = vadd.xlane.f32.xlu0 %v1291
    %v1293 = vpop.xlane.xlu0 %1292
    %v1294 = vsel %vm1259, %v1284, 0.0
    %1295 = vadd.xlane.f32.xlu0 %v1294
    %v1296 = vpop.xlane.xlu0 %1295
    %v1297 = vsel %vm1259, %v1286, 0.0
    %1298 = vadd.xlane.f32.xlu0 %v1297
    %v1299 = vpop.xlane.xlu0 %1298
    %v1300 = vsel %vm1259, %v1288, 0.0
    %1301 = vadd.xlane.f32.xlu0 %v1300
    %v1302 = vpop.xlane.xlu0 %1301
    %v1303 = vsel %vm1272, %v1290, 0.0
    %1304 = vadd.xlane.f32.xlu0 %v1303
    %v1305 = vpop.xlane.xlu0 %1304
    %v1306 = vrcp.pop %v1293
    %v1307 = vrcp.pop %v1296
    %v1308 = vrcp.pop %v1299
    %v1309 = vrcp.pop %v1302
    %v1310 = vrcp.pop %v1305
    %v1311 = vmul.f32 %v1282, %v1306
    %v1312 = vmul.f32 %v1284, %v1307
    %v1313 = vmul.f32 %v1286, %v1308
    %v1314 = vmul.f32 %v1288, %v1309
    %v1315 = vmul.f32 %v1290, %v1310
    %v1317 = vsel %vm1259, %v1311, 0
    %v1320 = vsel %vm1259, %v1312, 0
    %v1323 = vsel %vm1259, %v1313, 0
    %v1326 = vsel %vm1259, %v1314, 0
    %v1329 = vsel %vm1259, %v1315, 0
    %v1332 = vsel %vm845, %v1180, 0
    %1334 = vmatpush.msra.mxu0 0.0
    %1335 = vmatpush.msra.mxu0 0.0
    %1336 = vmatpush.msra.mxu0 0.0
    %1337 = vmatpush.msra.mxu0 0.0
    %1338 = vmatpush.msra.mxu0 0.0
    %1339 = vmatpush.msra.mxu0 0.0
    %1340 = vmatpush.msra.mxu0 0.0
    %1341 = vmatpush.msra.mxu0 0.0
    %1342 = vmatpush.msra.mxu0 0.0
    %1343 = vmatpush.msra.mxu0 0.0
    %1344 = vmatpush.msra.mxu0 0.0
    %1345 = vmatpush.msra.mxu0 %v1332
    %1346 = vmatpush.msra.mxu0 %v1177
    %1347 = vmatpush.msra.mxu0 %v1174
    %1348 = vmatpush.msra.mxu0 %v1171
    %1349 = vmatpush.msra.mxu0 %v1168
    %1350 = vmatmul.f32.gmra.mxu0 %v1317
    %v1351 = vpop.f32.mrf.mxu0
    %v1352 = vadd.f32 0.0, %v1351
    %1353 = vmatmul.f32.gmra.mxu0 %v1320
    %v1354 = vpop.f32.mrf.mxu0
    %v1355 = vadd.f32 0.0, %v1354
    %1356 = vmatmul.f32.gmra.mxu0 %v1323
    %v1357 = vpop.f32.mrf.mxu0
    %v1358 = vadd.f32 0.0, %v1357
    %1359 = vmatmul.f32.gmra.mxu0 %v1326
    %v1360 = vpop.f32.mrf.mxu0
    %v1361 = vadd.f32 0.0, %v1360
    %1362 = vmatmul.f32.gmra.mxu0 %v1329
    %v1363 = vpop.f32.mrf.mxu0
    %v1364 = vadd.f32 0.0, %v1363
    %1365 = vdwg.mxu0
    %1366 = vrot.lane.b32.xlu0 %v1136, 112
    %v1367 = vpop.permute.xlu0 %1366
    %1368 = vrot.lane.b32.xlu0 %v1139, 112
    %v1369 = vpop.permute.xlu0 %1368
    %1370 = vrot.lane.b32.xlu0 %v1142, 112
    %v1371 = vpop.permute.xlu0 %1370
    %1372 = vrot.lane.b32.xlu0 %v1145, 112
    %v1373 = vpop.permute.xlu0 %1372
    %1374 = vrot.lane.b32.xlu0 %v1148, 112
    %v1375 = vpop.permute.xlu0 %1374
    %1376 = vrot.lane.b32.xlu0 %v1136, 48
    %v1377 = vpop.permute.xlu0 %1376
    %1378 = vrot.lane.b32.xlu0 %v1139, 48
    %v1379 = vpop.permute.xlu0 %1378
    %1380 = vrot.lane.b32.xlu0 %v1142, 48
    %v1381 = vpop.permute.xlu0 %1380
    %1382 = vrot.lane.b32.xlu0 %v1145, 48
    %v1383 = vpop.permute.xlu0 %1382
    %1384 = vrot.lane.b32.xlu0 %v1148, 48
    %v1385 = vpop.permute.xlu0 %1384
    %v1386 = vsel %vm588, %v1367, 0
    %v1388 = vsel %vm588, %v1369, 0
    %v1390 = vsel %vm588, %v1371, 0
    %v1392 = vsel %vm588, %v1373, 0
    %v1394 = vsel %vm588, %v1375, 0
    %v1396 = vsel %vm588, %v1377, 0
    %v1398 = vsel %vm588, %v1379, 0
    %v1400 = vsel %vm588, %v1381, 0
    %v1402 = vsel %vm588, %v1383, 0
    %v1404 = vsel %vm588, %v1385, 0
    %1406 = vmatpush.xpose.msra.mxu0 0.0
    %1407 = vmatpush.xpose.msra.mxu0 0.0
    %1408 = vmatpush.xpose.msra.mxu0 0.0
    %1409 = vmatpush.xpose.msra.mxu0 0.0
    %1410 = vmatpush.xpose.msra.mxu0 0.0
    %1411 = vmatpush.xpose.msra.mxu0 0.0
    %1412 = vmatpush.xpose.msra.mxu0 0.0
    %1413 = vmatpush.xpose.msra.mxu0 0.0
    %1414 = vmatpush.xpose.msra.mxu0 0.0
    %1415 = vmatpush.xpose.msra.mxu0 0.0
    %1416 = vmatpush.xpose.msra.mxu0 0.0
    %1417 = vmatpush.xpose.msra.mxu0 %v1404
    %1418 = vmatpush.xpose.msra.mxu0 %v1402
    %1419 = vmatpush.xpose.msra.mxu0 %v1400
    %1420 = vmatpush.xpose.msra.mxu0 %v1398
    %1421 = vmatpush.xpose.msra.mxu0 %v1396
    %1422 = vmatmul.f32.gmra.mxu0 %v1386
    %v1423 = vpop.f32.mrf.mxu0
    %v1424 = vadd.f32 0.0, %v1423
    %1425 = vmatmul.f32.gmra.mxu0 %v1388
    %v1426 = vpop.f32.mrf.mxu0
    %v1427 = vadd.f32 0.0, %v1426
    %1428 = vmatmul.f32.gmra.mxu0 %v1390
    %v1429 = vpop.f32.mrf.mxu0
    %v1430 = vadd.f32 0.0, %v1429
    %1431 = vmatmul.f32.gmra.mxu0 %v1392
    %v1432 = vpop.f32.mrf.mxu0
    %v1433 = vadd.f32 0.0, %v1432
    %1434 = vmatmul.f32.gmra.mxu0 %v1394
    %v1435 = vpop.f32.mrf.mxu0
    %v1436 = vadd.f32 0.0, %v1435
    %1437 = vdwg.mxu0
    %v1438 = vmul.f32 %v1424, 0.25
    %v1439 = vmul.f32 %v1427, 0.25
    %v1440 = vmul.f32 %v1430, 0.25
    %v1441 = vmul.f32 %v1433, 0.25
    %v1442 = vmul.f32 %v1436, 0.25
    %v1443 = vadd.f32 %v1438, %v455
    %v1444 = vadd.f32 %v1439, %v456
    %v1445 = vadd.f32 %v1440, %v457
    %v1446 = vadd.f32 %v1441, %v458
    %v1447 = vadd.f32 %v1442, %v459
    %v1448 = vsel %vm1259, %v1443, -inf
    %1449 = vmax.xlane.f32.xlu0 %v1448
    %v1450 = vpop.xlane.xlu0 %1449
    %v1451 = vsel %vm1259, %v1444, -inf
    %1452 = vmax.xlane.f32.xlu0 %v1451
    %v1453 = vpop.xlane.xlu0 %1452
    %v1454 = vsel %vm1259, %v1445, -inf
    %1455 = vmax.xlane.f32.xlu0 %v1454
    %v1456 = vpop.xlane.xlu0 %1455
    %v1457 = vsel %vm1259, %v1446, -inf
    %1458 = vmax.xlane.f32.xlu0 %v1457
    %v1459 = vpop.xlane.xlu0 %1458
    %v1460 = vsel %vm1272, %v1447, -inf
    %1461 = vmax.xlane.f32.xlu0 %v1460
    %v1462 = vpop.xlane.xlu0 %1461
    %v1463 = vsub.f32 %v1443, %v1450
    %v1464 = vsub.f32 %v1444, %v1453
    %v1465 = vsub.f32 %v1445, %v1456
    %v1466 = vsub.f32 %v1446, %v1459
    %v1467 = vsub.f32 %v1447, %v1462
    %v1468 = vmul.f32 %v1463, 1.442695
    %v1469 = vpow.pop %v1468
    %v1470 = vmul.f32 %v1464, 1.442695
    %v1471 = vpow.pop %v1470
    %v1472 = vmul.f32 %v1465, 1.442695
    %v1473 = vpow.pop %v1472
    %v1474 = vmul.f32 %v1466, 1.442695
    %v1475 = vpow.pop %v1474
    %v1476 = vmul.f32 %v1467, 1.442695
    %v1477 = vpow.pop %v1476
    %v1478 = vsel %vm1259, %v1469, 0.0
    %1479 = vadd.xlane.f32.xlu0 %v1478
    %v1480 = vpop.xlane.xlu0 %1479
    %v1481 = vsel %vm1259, %v1471, 0.0
    %1482 = vadd.xlane.f32.xlu0 %v1481
    %v1483 = vpop.xlane.xlu0 %1482
    %v1484 = vsel %vm1259, %v1473, 0.0
    %1485 = vadd.xlane.f32.xlu0 %v1484
    %v1486 = vpop.xlane.xlu0 %1485
    %v1487 = vsel %vm1259, %v1475, 0.0
    %1488 = vadd.xlane.f32.xlu0 %v1487
    %v1489 = vpop.xlane.xlu0 %1488
    %v1490 = vsel %vm1272, %v1477, 0.0
    %1491 = vadd.xlane.f32.xlu0 %v1490
    %v1492 = vpop.xlane.xlu0 %1491
    %v1493 = vrcp.pop %v1480
    %v1494 = vrcp.pop %v1483
    %v1495 = vrcp.pop %v1486
    %v1496 = vrcp.pop %v1489
    %v1497 = vrcp.pop %v1492
    %v1498 = vmul.f32 %v1469, %v1493
    %v1499 = vmul.f32 %v1471, %v1494
    %v1500 = vmul.f32 %v1473, %v1495
    %v1501 = vmul.f32 %v1475, %v1496
    %v1502 = vmul.f32 %v1477, %v1497
    %1507 = vrot.lane.b32.xlu0 %v1168, 112
    %v1508 = vpop.permute.xlu0 %1507
    %1509 = vrot.lane.b32.xlu0 %v1171, 112
    %v1510 = vpop.permute.xlu0 %1509
    %1511 = vrot.lane.b32.xlu0 %v1174, 112
    %v1512 = vpop.permute.xlu0 %1511
    %1513 = vrot.lane.b32.xlu0 %v1177, 112
    %v1514 = vpop.permute.xlu0 %1513
    %1515 = vrot.lane.b32.xlu0 %v1180, 112
    %v1516 = vpop.permute.xlu0 %1515
    %v1522 = vsel %vm1259, %v1498, 0
    %v1525 = vsel %vm1259, %v1499, 0
    %v1528 = vsel %vm1259, %v1500, 0
    %v1531 = vsel %vm1259, %v1501, 0
    %v1534 = vsel %vm1259, %v1502, 0
    %v1536 = vsel %vm845, %v1516, 0
    %1538 = vmatpush.msra.mxu0 0.0
    %1539 = vmatpush.msra.mxu0 0.0
    %1540 = vmatpush.msra.mxu0 0.0
    %1541 = vmatpush.msra.mxu0 0.0
    %1542 = vmatpush.msra.mxu0 0.0
    %1543 = vmatpush.msra.mxu0 0.0
    %1544 = vmatpush.msra.mxu0 0.0
    %1545 = vmatpush.msra.mxu0 0.0
    %1546 = vmatpush.msra.mxu0 0.0
    %1547 = vmatpush.msra.mxu0 0.0
    %1548 = vmatpush.msra.mxu0 0.0
    %1549 = vmatpush.msra.mxu0 %v1536
    %1550 = vmatpush.msra.mxu0 %v1514
    %1551 = vmatpush.msra.mxu0 %v1512
    %1552 = vmatpush.msra.mxu0 %v1510
    %1553 = vmatpush.msra.mxu0 %v1508
    %1554 = vmatmul.f32.gmra.mxu0 %v1522
    %v1555 = vpop.f32.mrf.mxu0
    %v1556 = vadd.f32 0.0, %v1555
    %1557 = vmatmul.f32.gmra.mxu0 %v1525
    %v1558 = vpop.f32.mrf.mxu0
    %v1559 = vadd.f32 0.0, %v1558
    %1560 = vmatmul.f32.gmra.mxu0 %v1528
    %v1561 = vpop.f32.mrf.mxu0
    %v1562 = vadd.f32 0.0, %v1561
    %1563 = vmatmul.f32.gmra.mxu0 %v1531
    %v1564 = vpop.f32.mrf.mxu0
    %v1565 = vadd.f32 0.0, %v1564
    %1566 = vmatmul.f32.gmra.mxu0 %v1534
    %v1567 = vpop.f32.mrf.mxu0
    %v1568 = vadd.f32 0.0, %v1567
    %1569 = vdwg.mxu0
    %1570 = vrot.lane.b32.xlu0 %v1136, 96
    %v1571 = vpop.permute.xlu0 %1570
    %1572 = vrot.lane.b32.xlu0 %v1139, 96
    %v1573 = vpop.permute.xlu0 %1572
    %1574 = vrot.lane.b32.xlu0 %v1142, 96
    %v1575 = vpop.permute.xlu0 %1574
    %1576 = vrot.lane.b32.xlu0 %v1145, 96
    %v1577 = vpop.permute.xlu0 %1576
    %1578 = vrot.lane.b32.xlu0 %v1148, 96
    %v1579 = vpop.permute.xlu0 %1578
    %1580 = vrot.lane.b32.xlu0 %v1136, 32
    %v1581 = vpop.permute.xlu0 %1580
    %1582 = vrot.lane.b32.xlu0 %v1139, 32
    %v1583 = vpop.permute.xlu0 %1582
    %1584 = vrot.lane.b32.xlu0 %v1142, 32
    %v1585 = vpop.permute.xlu0 %1584
    %1586 = vrot.lane.b32.xlu0 %v1145, 32
    %v1587 = vpop.permute.xlu0 %1586
    %1588 = vrot.lane.b32.xlu0 %v1148, 32
    %v1589 = vpop.permute.xlu0 %1588
    %v1590 = vsel %vm588, %v1571, 0
    %v1592 = vsel %vm588, %v1573, 0
    %v1594 = vsel %vm588, %v1575, 0
    %v1596 = vsel %vm588, %v1577, 0
    %v1598 = vsel %vm588, %v1579, 0
    %v1600 = vsel %vm588, %v1581, 0
    %v1602 = vsel %vm588, %v1583, 0
    %v1604 = vsel %vm588, %v1585, 0
    %v1606 = vsel %vm588, %v1587, 0
    %v1608 = vsel %vm588, %v1589, 0
    %1610 = vmatpush.xpose.msra.mxu0 0.0
    %1611 = vmatpush.xpose.msra.mxu0 0.0
    %1612 = vmatpush.xpose.msra.mxu0 0.0
    %1613 = vmatpush.xpose.msra.mxu0 0.0
    %1614 = vmatpush.xpose.msra.mxu0 0.0
    %1615 = vmatpush.xpose.msra.mxu0 0.0
    %1616 = vmatpush.xpose.msra.mxu0 0.0
    %1617 = vmatpush.xpose.msra.mxu0 0.0
    %1618 = vmatpush.xpose.msra.mxu0 0.0
    %1619 = vmatpush.xpose.msra.mxu0 0.0
    %1620 = vmatpush.xpose.msra.mxu0 0.0
    %1621 = vmatpush.xpose.msra.mxu0 %v1608
    %1622 = vmatpush.xpose.msra.mxu0 %v1606
    %1623 = vmatpush.xpose.msra.mxu0 %v1604
    %1624 = vmatpush.xpose.msra.mxu0 %v1602
    %1625 = vmatpush.xpose.msra.mxu0 %v1600
    %1626 = vmatmul.f32.gmra.mxu0 %v1590
    %v1627 = vpop.f32.mrf.mxu0
    %v1628 = vadd.f32 0.0, %v1627
    %1629 = vmatmul.f32.gmra.mxu0 %v1592
    %v1630 = vpop.f32.mrf.mxu0
    %v1631 = vadd.f32 0.0, %v1630
    %1632 = vmatmul.f32.gmra.mxu0 %v1594
    %v1633 = vpop.f32.mrf.mxu0
    %v1634 = vadd.f32 0.0, %v1633
    %1635 = vmatmul.f32.gmra.mxu0 %v1596
    %v1636 = vpop.f32.mrf.mxu0
    %v1637 = vadd.f32 0.0, %v1636
    %1638 = vmatmul.f32.gmra.mxu0 %v1598
    %v1639 = vpop.f32.mrf.mxu0
    %v1640 = vadd.f32 0.0, %v1639
    %1641 = vdwg.mxu0
    %v1642 = vmul.f32 %v1628, 0.25
    %v1643 = vmul.f32 %v1631, 0.25
    %v1644 = vmul.f32 %v1634, 0.25
    %v1645 = vmul.f32 %v1637, 0.25
    %v1646 = vmul.f32 %v1640, 0.25
    %v1647 = vadd.f32 %v1642, %v455
    %v1648 = vadd.f32 %v1643, %v456
    %v1649 = vadd.f32 %v1644, %v457
    %v1650 = vadd.f32 %v1645, %v458
    %v1651 = vadd.f32 %v1646, %v459
    %v1652 = vsel %vm1259, %v1647, -inf
    %1653 = vmax.xlane.f32.xlu0 %v1652
    %v1654 = vpop.xlane.xlu0 %1653
    %v1655 = vsel %vm1259, %v1648, -inf
    %1656 = vmax.xlane.f32.xlu0 %v1655
    %v1657 = vpop.xlane.xlu0 %1656
    %v1658 = vsel %vm1259, %v1649, -inf
    %1659 = vmax.xlane.f32.xlu0 %v1658
    %v1660 = vpop.xlane.xlu0 %1659
    %v1661 = vsel %vm1259, %v1650, -inf
    %1662 = vmax.xlane.f32.xlu0 %v1661
    %v1663 = vpop.xlane.xlu0 %1662
    %v1664 = vsel %vm1272, %v1651, -inf
    %1665 = vmax.xlane.f32.xlu0 %v1664
    %v1666 = vpop.xlane.xlu0 %1665
    %v1667 = vsub.f32 %v1647, %v1654
    %v1668 = vsub.f32 %v1648, %v1657
    %v1669 = vsub.f32 %v1649, %v1660
    %v1670 = vsub.f32 %v1650, %v1663
    %v1671 = vsub.f32 %v1651, %v1666
    %v1672 = vmul.f32 %v1667, 1.442695
    %v1673 = vpow.pop %v1672
    %v1674 = vmul.f32 %v1668, 1.442695
    %v1675 = vpow.pop %v1674
    %v1676 = vmul.f32 %v1669, 1.442695
    %v1677 = vpow.pop %v1676
    %v1678 = vmul.f32 %v1670, 1.442695
    %v1679 = vpow.pop %v1678
    %v1680 = vmul.f32 %v1671, 1.442695
    %v1681 = vpow.pop %v1680
    %v1682 = vsel %vm1259, %v1673, 0.0
    %1683 = vadd.xlane.f32.xlu0 %v1682
    %v1684 = vpop.xlane.xlu0 %1683
    %v1685 = vsel %vm1259, %v1675, 0.0
    %1686 = vadd.xlane.f32.xlu0 %v1685
    %v1687 = vpop.xlane.xlu0 %1686
    %v1688 = vsel %vm1259, %v1677, 0.0
    %1689 = vadd.xlane.f32.xlu0 %v1688
    %v1690 = vpop.xlane.xlu0 %1689
    %v1691 = vsel %vm1259, %v1679, 0.0
    %1692 = vadd.xlane.f32.xlu0 %v1691
    %v1693 = vpop.xlane.xlu0 %1692
    %v1694 = vsel %vm1272, %v1681, 0.0
    %1695 = vadd.xlane.f32.xlu0 %v1694
    %v1696 = vpop.xlane.xlu0 %1695
    %v1697 = vrcp.pop %v1684
    %v1698 = vrcp.pop %v1687
    %v1699 = vrcp.pop %v1690
    %v1700 = vrcp.pop %v1693
    %v1701 = vrcp.pop %v1696
    %v1702 = vmul.f32 %v1673, %v1697
    %v1703 = vmul.f32 %v1675, %v1698
    %v1704 = vmul.f32 %v1677, %v1699
    %v1705 = vmul.f32 %v1679, %v1700
    %v1706 = vmul.f32 %v1681, %v1701
    %1707 = vrot.lane.b32.xlu0 %v1168, 96
    %v1708 = vpop.permute.xlu0 %1707
    %1709 = vrot.lane.b32.xlu0 %v1171, 96
    %v1710 = vpop.permute.xlu0 %1709
    %1711 = vrot.lane.b32.xlu0 %v1174, 96
    %v1712 = vpop.permute.xlu0 %1711
    %1713 = vrot.lane.b32.xlu0 %v1177, 96
    %v1714 = vpop.permute.xlu0 %1713
    %1715 = vrot.lane.b32.xlu0 %v1180, 96
    %v1716 = vpop.permute.xlu0 %1715
    %v1722 = vsel %vm1259, %v1702, 0
    %v1725 = vsel %vm1259, %v1703, 0
    %v1728 = vsel %vm1259, %v1704, 0
    %v1731 = vsel %vm1259, %v1705, 0
    %v1734 = vsel %vm1259, %v1706, 0
    %v1736 = vsel %vm845, %v1716, 0
    %1738 = vmatpush.msra.mxu0 0.0
    %1739 = vmatpush.msra.mxu0 0.0
    %1740 = vmatpush.msra.mxu0 0.0
    %1741 = vmatpush.msra.mxu0 0.0
    %1742 = vmatpush.msra.mxu0 0.0
    %1743 = vmatpush.msra.mxu0 0.0
    %1744 = vmatpush.msra.mxu0 0.0
    %1745 = vmatpush.msra.mxu0 0.0
    %1746 = vmatpush.msra.mxu0 0.0
    %1747 = vmatpush.msra.mxu0 0.0
    %1748 = vmatpush.msra.mxu0 0.0
    %1749 = vmatpush.msra.mxu0 %v1736
    %1750 = vmatpush.msra.mxu0 %v1714
    %1751 = vmatpush.msra.mxu0 %v1712
    %1752 = vmatpush.msra.mxu0 %v1710
    %1753 = vmatpush.msra.mxu0 %v1708
    %1754 = vmatmul.f32.gmra.mxu0 %v1722
    %v1755 = vpop.f32.mrf.mxu0
    %v1756 = vadd.f32 0.0, %v1755
    %1757 = vmatmul.f32.gmra.mxu0 %v1725
    %v1758 = vpop.f32.mrf.mxu0
    %v1759 = vadd.f32 0.0, %v1758
    %1760 = vmatmul.f32.gmra.mxu0 %v1728
    %v1761 = vpop.f32.mrf.mxu0
    %v1762 = vadd.f32 0.0, %v1761
    %1763 = vmatmul.f32.gmra.mxu0 %v1731
    %v1764 = vpop.f32.mrf.mxu0
    %v1765 = vadd.f32 0.0, %v1764
    %1766 = vmatmul.f32.gmra.mxu0 %v1734
    %v1767 = vpop.f32.mrf.mxu0
    %v1768 = vadd.f32 0.0, %v1767
    %1769 = vdwg.mxu0
    %1770 = vrot.lane.b32.xlu0 %v1136, 80
    %v1771 = vpop.permute.xlu0 %1770
    %1772 = vrot.lane.b32.xlu0 %v1139, 80
    %v1773 = vpop.permute.xlu0 %1772
    %1774 = vrot.lane.b32.xlu0 %v1142, 80
    %v1775 = vpop.permute.xlu0 %1774
    %1776 = vrot.lane.b32.xlu0 %v1145, 80
    %v1777 = vpop.permute.xlu0 %1776
    %1778 = vrot.lane.b32.xlu0 %v1148, 80
    %v1779 = vpop.permute.xlu0 %1778
    %1780 = vrot.lane.b32.xlu0 %v1136, 16
    %v1781 = vpop.permute.xlu0 %1780
    %1782 = vrot.lane.b32.xlu0 %v1139, 16
    %v1783 = vpop.permute.xlu0 %1782
    %1784 = vrot.lane.b32.xlu0 %v1142, 16
    %v1785 = vpop.permute.xlu0 %1784
    %1786 = vrot.lane.b32.xlu0 %v1145, 16
    %v1787 = vpop.permute.xlu0 %1786
    %1788 = vrot.lane.b32.xlu0 %v1148, 16
    %v1789 = vpop.permute.xlu0 %1788
    %v1790 = vsel %vm588, %v1771, 0
    %v1792 = vsel %vm588, %v1773, 0
    %v1794 = vsel %vm588, %v1775, 0
    %v1796 = vsel %vm588, %v1777, 0
    %v1798 = vsel %vm588, %v1779, 0
    %v1800 = vsel %vm588, %v1781, 0
    %v1802 = vsel %vm588, %v1783, 0
    %v1804 = vsel %vm588, %v1785, 0
    %v1806 = vsel %vm588, %v1787, 0
    %v1808 = vsel %vm588, %v1789, 0
    %1810 = vmatpush.xpose.msra.mxu0 0.0
    %1811 = vmatpush.xpose.msra.mxu0 0.0
    %1812 = vmatpush.xpose.msra.mxu0 0.0
    %1813 = vmatpush.xpose.msra.mxu0 0.0
    %1814 = vmatpush.xpose.msra.mxu0 0.0
    %1815 = vmatpush.xpose.msra.mxu0 0.0
    %1816 = vmatpush.xpose.msra.mxu0 0.0
    %1817 = vmatpush.xpose.msra.mxu0 0.0
    %1818 = vmatpush.xpose.msra.mxu0 0.0
    %1819 = vmatpush.xpose.msra.mxu0 0.0
    %1820 = vmatpush.xpose.msra.mxu0 0.0
    %1821 = vmatpush.xpose.msra.mxu0 %v1808
    %1822 = vmatpush.xpose.msra.mxu0 %v1806
    %1823 = vmatpush.xpose.msra.mxu0 %v1804
    %1824 = vmatpush.xpose.msra.mxu0 %v1802
    %1825 = vmatpush.xpose.msra.mxu0 %v1800
    %1826 = vmatmul.f32.gmra.mxu0 %v1790
    %v1827 = vpop.f32.mrf.mxu0
    %v1828 = vadd.f32 0.0, %v1827
    %1829 = vmatmul.f32.gmra.mxu0 %v1792
    %v1830 = vpop.f32.mrf.mxu0
    %v1831 = vadd.f32 0.0, %v1830
    %1832 = vmatmul.f32.gmra.mxu0 %v1794
    %v1833 = vpop.f32.mrf.mxu0
    %v1834 = vadd.f32 0.0, %v1833
    %1835 = vmatmul.f32.gmra.mxu0 %v1796
    %v1836 = vpop.f32.mrf.mxu0
    %v1837 = vadd.f32 0.0, %v1836
    %1838 = vmatmul.f32.gmra.mxu0 %v1798
    %v1839 = vpop.f32.mrf.mxu0
    %v1840 = vadd.f32 0.0, %v1839
    %1841 = vdwg.mxu0
    %v1842 = vmul.f32 %v1828, 0.25
    %v1843 = vmul.f32 %v1831, 0.25
    %v1844 = vmul.f32 %v1834, 0.25
    %v1845 = vmul.f32 %v1837, 0.25
    %v1846 = vmul.f32 %v1840, 0.25
    %v1847 = vadd.f32 %v1842, %v455
    %v1848 = vadd.f32 %v1843, %v456
    %v1849 = vadd.f32 %v1844, %v457
    %v1850 = vadd.f32 %v1845, %v458
    %v1851 = vadd.f32 %v1846, %v459
    %v1852 = vsel %vm1259, %v1847, -inf
    %1853 = vmax.xlane.f32.xlu0 %v1852
    %v1854 = vpop.xlane.xlu0 %1853
    %v1855 = vsel %vm1259, %v1848, -inf
    %1856 = vmax.xlane.f32.xlu0 %v1855
    %v1857 = vpop.xlane.xlu0 %1856
    %v1858 = vsel %vm1259, %v1849, -inf
    %1859 = vmax.xlane.f32.xlu0 %v1858
    %v1860 = vpop.xlane.xlu0 %1859
    %v1861 = vsel %vm1259, %v1850, -inf
    %1862 = vmax.xlane.f32.xlu0 %v1861
    %v1863 = vpop.xlane.xlu0 %1862
    %v1864 = vsel %vm1272, %v1851, -inf
    %1865 = vmax.xlane.f32.xlu0 %v1864
    %v1866 = vpop.xlane.xlu0 %1865
    %v1867 = vsub.f32 %v1847, %v1854
    %v1868 = vsub.f32 %v1848, %v1857
    %v1869 = vsub.f32 %v1849, %v1860
    %v1870 = vsub.f32 %v1850, %v1863
    %v1871 = vsub.f32 %v1851, %v1866
    %v1872 = vmul.f32 %v1867, 1.442695
    %v1873 = vpow.pop %v1872
    %v1874 = vmul.f32 %v1868, 1.442695
    %v1875 = vpow.pop %v1874
    %v1876 = vmul.f32 %v1869, 1.442695
    %v1877 = vpow.pop %v1876
    %v1878 = vmul.f32 %v1870, 1.442695
    %v1879 = vpow.pop %v1878
    %v1880 = vmul.f32 %v1871, 1.442695
    %v1881 = vpow.pop %v1880
    %v1882 = vsel %vm1259, %v1873, 0.0
    %1883 = vadd.xlane.f32.xlu0 %v1882
    %v1884 = vpop.xlane.xlu0 %1883
    %v1885 = vsel %vm1259, %v1875, 0.0
    %1886 = vadd.xlane.f32.xlu0 %v1885
    %v1887 = vpop.xlane.xlu0 %1886
    %v1888 = vsel %vm1259, %v1877, 0.0
    %1889 = vadd.xlane.f32.xlu0 %v1888
    %v1890 = vpop.xlane.xlu0 %1889
    %v1891 = vsel %vm1259, %v1879, 0.0
    %1892 = vadd.xlane.f32.xlu0 %v1891
    %v1893 = vpop.xlane.xlu0 %1892
    %v1894 = vsel %vm1272, %v1881, 0.0
    %1895 = vadd.xlane.f32.xlu0 %v1894
    %v1896 = vpop.xlane.xlu0 %1895
    %v1897 = vrcp.pop %v1884
    %v1898 = vrcp.pop %v1887
    %v1899 = vrcp.pop %v1890
    %v1900 = vrcp.pop %v1893
    %v1901 = vrcp.pop %v1896
    %v1902 = vmul.f32 %v1873, %v1897
    %v1903 = vmul.f32 %v1875, %v1898
    %v1904 = vmul.f32 %v1877, %v1899
    %v1905 = vmul.f32 %v1879, %v1900
    %v1906 = vmul.f32 %v1881, %v1901
    %1907 = vrot.lane.b32.xlu0 %v1168, 80
    %v1908 = vpop.permute.xlu0 %1907
    %1909 = vrot.lane.b32.xlu0 %v1171, 80
    %v1910 = vpop.permute.xlu0 %1909
    %1911 = vrot.lane.b32.xlu0 %v1174, 80
    %v1912 = vpop.permute.xlu0 %1911
    %1913 = vrot.lane.b32.xlu0 %v1177, 80
    %v1914 = vpop.permute.xlu0 %1913
    %1915 = vrot.lane.b32.xlu0 %v1180, 80
    %v1916 = vpop.permute.xlu0 %1915
    %v1922 = vsel %vm1259, %v1902, 0
    %v1925 = vsel %vm1259, %v1903, 0
    %v1928 = vsel %vm1259, %v1904, 0
    %v1931 = vsel %vm1259, %v1905, 0
    %v1934 = vsel %vm1259, %v1906, 0
    %v1936 = vsel %vm845, %v1916, 0
    %1938 = vmatpush.msra.mxu0 0.0
    %1939 = vmatpush.msra.mxu0 0.0
    %1940 = vmatpush.msra.mxu0 0.0
    %1941 = vmatpush.msra.mxu0 0.0
    %1942 = vmatpush.msra.mxu0 0.0
    %1943 = vmatpush.msra.mxu0 0.0
    %1944 = vmatpush.msra.mxu0 0.0
    %1945 = vmatpush.msra.mxu0 0.0
    %1946 = vmatpush.msra.mxu0 0.0
    %1947 = vmatpush.msra.mxu0 0.0
    %1948 = vmatpush.msra.mxu0 0.0
    %1949 = vmatpush.msra.mxu0 %v1936
    %1950 = vmatpush.msra.mxu0 %v1914
    %1951 = vmatpush.msra.mxu0 %v1912
    %1952 = vmatpush.msra.mxu0 %v1910
    %1953 = vmatpush.msra.mxu0 %v1908
    %1954 = vmatmul.f32.gmra.mxu0 %v1922
    %v1955 = vpop.f32.mrf.mxu0
    %v1956 = vadd.f32 0.0, %v1955
    %1957 = vmatmul.f32.gmra.mxu0 %v1925
    %v1958 = vpop.f32.mrf.mxu0
    %v1959 = vadd.f32 0.0, %v1958
    %1960 = vmatmul.f32.gmra.mxu0 %v1928
    %v1961 = vpop.f32.mrf.mxu0
    %v1962 = vadd.f32 0.0, %v1961
    %1963 = vmatmul.f32.gmra.mxu0 %v1931
    %v1964 = vpop.f32.mrf.mxu0
    %v1965 = vadd.f32 0.0, %v1964
    %1966 = vmatmul.f32.gmra.mxu0 %v1934
    %v1967 = vpop.f32.mrf.mxu0
    %v1968 = vadd.f32 0.0, %v1967
    %1969 = vdwg.mxu0
    %1975 = vrot.lane.b32.xlu0 %v1556, 16
    %v1976 = vpop.permute.xlu0 %1975
    %1977 = vrot.lane.b32.xlu0 %v1559, 16
    %v1978 = vpop.permute.xlu0 %1977
    %1979 = vrot.lane.b32.xlu0 %v1562, 16
    %v1980 = vpop.permute.xlu0 %1979
    %1981 = vrot.lane.b32.xlu0 %v1565, 16
    %v1982 = vpop.permute.xlu0 %1981
    %1983 = vrot.lane.b32.xlu0 %v1568, 16
    %v1984 = vpop.permute.xlu0 %1983
    %1995 = vrot.lane.b32.xlu0 %v1756, 32
    %v1996 = vpop.permute.xlu0 %1995
    %1997 = vrot.lane.b32.xlu0 %v1759, 32
    %v1998 = vpop.permute.xlu0 %1997
    %1999 = vrot.lane.b32.xlu0 %v1762, 32
    %v2000 = vpop.permute.xlu0 %1999
    %2001 = vrot.lane.b32.xlu0 %v1765, 32
    %v2002 = vpop.permute.xlu0 %2001
    %2003 = vrot.lane.b32.xlu0 %v1768, 32
    %v2004 = vpop.permute.xlu0 %2003
    %2015 = vrot.lane.b32.xlu0 %v1956, 48
    %v2016 = vpop.permute.xlu0 %2015
    %2017 = vrot.lane.b32.xlu0 %v1959, 48
    %v2018 = vpop.permute.xlu0 %2017
    %2019 = vrot.lane.b32.xlu0 %v1962, 48
    %v2020 = vpop.permute.xlu0 %2019
    %2021 = vrot.lane.b32.xlu0 %v1965, 48
    %v2022 = vpop.permute.xlu0 %2021
    %2023 = vrot.lane.b32.xlu0 %v1968, 48
    %v2024 = vpop.permute.xlu0 %2023
    %v2030 = vsel %vm588, %v1352, %v1976
    %v2031 = vsel %vm588, %v1355, %v1978
    %v2032 = vsel %vm588, %v1358, %v1980
    %v2033 = vsel %vm588, %v1361, %v1982
    %v2034 = vsel %vm588, %v1364, %v1984
    %v2035 = vsel %vm514, %v2030, %v1996
    %v2036 = vsel %vm514, %v2031, %v1998
    %v2037 = vsel %vm514, %v2032, %v2000
    %v2038 = vsel %vm514, %v2033, %v2002
    %v2039 = vsel %vm514, %v2034, %v2004
    %vm2040 = vcmask 392192
    %v2041 = vsel %vm2040, %v2035, %v2016
    %v2042 = vsel %vm2040, %v2036, %v2018
    %v2043 = vsel %vm2040, %v2037, %v2020
    %v2044 = vsel %vm2040, %v2038, %v2022
    %v2045 = vsel %vm2040, %v2039, %v2024
    %v2047 = vperm.slane %v882, 0
    %v2050 = vsel %vm561, %v2041, 0
    %v2053 = vsel %vm561, %v2042, 0
    %v2056 = vsel %vm561, %v2043, 0
    %v2059 = vsel %vm561, %v2044, 0
    %v2062 = vsel %vm561, %v2045, 0
    %2064 = vmatpush.msra.mxu0 0.0
    %2065 = vmatpush.msra.mxu0 0.0
    %2066 = vmatpush.msra.mxu0 0.0
    %2067 = vmatpush.msra.mxu0 0.0
    %2068 = vmatpush.msra.mxu0 0.0
    %2069 = vmatpush.msra.mxu0 0.0
    %2070 = vmatpush.msra.mxu0 0.0
    %2071 = vmatpush.msra.mxu0 0.0
    %2072 = vmatpush.msra.mxu0 %v881
    %2073 = vmatpush.msra.mxu0 %v880
    %2074 = vmatpush.msra.mxu0 %v879
    %2075 = vmatpush.msra.mxu0 %v878
    %2076 = vmatpush.msra.mxu0 %v877
    %2077 = vmatpush.msra.mxu0 %v876
    %2078 = vmatpush.msra.mxu0 %v875
    %2079 = vmatpush.msra.mxu0 %v874
    %2080 = vmatmul.f32.gmra.mxu0 %v2050
    %v2081 = vpop.f32.mrf.mxu0
    %v2082 = vadd.f32 %v2047, %v2081
    %2083 = vmatmul.f32.gmra.mxu0 %v2053
    %v2084 = vpop.f32.mrf.mxu0
    %v2085 = vadd.f32 %v2047, %v2084
    %2086 = vmatmul.f32.gmra.mxu0 %v2056
    %v2087 = vpop.f32.mrf.mxu0
    %v2088 = vadd.f32 %v2047, %v2087
    %2089 = vmatmul.f32.gmra.mxu0 %v2059
    %v2090 = vpop.f32.mrf.mxu0
    %v2091 = vadd.f32 %v2047, %v2090
    %2092 = vmatmul.f32.gmra.mxu0 %v2062
    %v2093 = vpop.f32.mrf.mxu0
    %v2094 = vadd.f32 %v2047, %v2093
    %2095 = vdwg.mxu0
    %v2096 = vadd.f32 %v852, %v2082
    %v2097 = vadd.f32 %v839, %v2085
    %v2098 = vadd.f32 %v854, %v2088
    %v2099 = vadd.f32 %v848, %v2091
    %v2100 = vadd.f32 %v847, %v2094
    %v2101 = vsel %vm561, %v2096, 0.0
    %2102 = vadd.xlane.f32.xlu0 %v2101
    %v2103 = vpop.xlane.xlu0 %2102
    %v2104 = vsel %vm561, %v2097, 0.0
    %2105 = vadd.xlane.f32.xlu0 %v2104
    %v2106 = vpop.xlane.xlu0 %2105
    %v2107 = vsel %vm561, %v2098, 0.0
    %2108 = vadd.xlane.f32.xlu0 %v2107
    %v2109 = vpop.xlane.xlu0 %2108
    %v2110 = vsel %vm561, %v2099, 0.0
    %2111 = vadd.xlane.f32.xlu0 %v2110
    %v2112 = vpop.xlane.xlu0 %2111
    %v2113 = vsel %vm976, %v2100, 0.0
    %2114 = vadd.xlane.f32.xlu0 %v2113
    %v2115 = vpop.xlane.xlu0 %2114
    %v2116 = vmul.f32 %v2103, %v986
    %v2117 = vmul.f32 %v2106, %v986
    %v2118 = vmul.f32 %v2109, %v986
    %v2119 = vmul.f32 %v2112, %v986
    %v2120 = vmul.f32 %v2115, %v986
    %v2121 = vsub.f32 %v2096, %v2116
    %v2122 = vsub.f32 %v2097, %v2117
    %v2123 = vsub.f32 %v2098, %v2118
    %v2124 = vsub.f32 %v2099, %v2119
    %v2125 = vsub.f32 %v2100, %v2120
    %v2126 = vmul.f32 %v2121, %v2121
    %v2127 = vmul.f32 %v2122, %v2122
    %v2128 = vmul.f32 %v2123, %v2123
    %v2129 = vmul.f32 %v2124, %v2124
    %v2130 = vmul.f32 %v2125, %v2125
    %v2131 = vsel %vm561, %v2126, 0.0
    %2132 = vadd.xlane.f32.xlu0 %v2131
    %v2133 = vpop.xlane.xlu0 %2132
    %v2134 = vsel %vm561, %v2127, 0.0
    %2135 = vadd.xlane.f32.xlu0 %v2134
    %v2136 = vpop.xlane.xlu0 %2135
    %v2137 = vsel %vm561, %v2128, 0.0
    %2138 = vadd.xlane.f32.xlu0 %v2137
    %v2139 = vpop.xlane.xlu0 %2138
    %v2140 = vsel %vm561, %v2129, 0.0
    %2141 = vadd.xlane.f32.xlu0 %v2140
    %v2142 = vpop.xlane.xlu0 %2141
    %v2143 = vsel %vm976, %v2130, 0.0
    %2144 = vadd.xlane.f32.xlu0 %v2143
    %v2145 = vpop.xlane.xlu0 %2144
    %v2146 = vmul.f32 %v2133, %v986
    %v2147 = vmul.f32 %v2136, %v986
    %v2148 = vmul.f32 %v2139, %v986
    %v2149 = vmul.f32 %v2142, %v986
    %v2150 = vmul.f32 %v2145, %v986
    %v2151 = vadd.f32 %v2146, 1e-05
    %v2152 = vadd.f32 %v2147, 1e-05
    %v2153 = vadd.f32 %v2148, 1e-05
    %v2154 = vadd.f32 %v2149, 1e-05
    %v2155 = vadd.f32 %v2150, 1e-05
    %v2156 = vrsqrt.pop %v2151
    %v2157 = vmul.f32 %v2156, %v2151
    %v2158 = vmul.f32 %v2157, %v2156
    %v2159 = vmul.f32 0.5, %v2158
    %v2160 = vsub.f32 1.5, %v2159
    %v2161 = vmul.f32 %v2156, %v2160
    %vm2162 = vweird.f32 %v2151
    %vm2163 = vweird.f32 %v2156
    %vm2164 = vmor %vm2162, %vm2163
    %v2165 = vsel %vm2164, %v2156, %v2161
    %v2166 = vrsqrt.pop %v2152
    %v2167 = vmul.f32 %v2166, %v2152
    %v2168 = vmul.f32 %v2167, %v2166
    %v2169 = vmul.f32 0.5, %v2168
    %v2170 = vsub.f32 1.5, %v2169
    %v2171 = vmul.f32 %v2166, %v2170
    %vm2172 = vweird.f32 %v2152
    %vm2173 = vweird.f32 %v2166
    %vm2174 = vmor %vm2172, %vm2173
    %v2175 = vsel %vm2174, %v2166, %v2171
    %v2176 = vrsqrt.pop %v2153
    %v2177 = vmul.f32 %v2176, %v2153
    %v2178 = vmul.f32 %v2177, %v2176
    %v2179 = vmul.f32 0.5, %v2178
    %v2180 = vsub.f32 1.5, %v2179
    %v2181 = vmul.f32 %v2176, %v2180
    %vm2182 = vweird.f32 %v2153
    %vm2183 = vweird.f32 %v2176
    %vm2184 = vmor %vm2182, %vm2183
    %v2185 = vsel %vm2184, %v2176, %v2181
    %v2186 = vrsqrt.pop %v2154
    %v2187 = vmul.f32 %v2186, %v2154
    %v2188 = vmul.f32 %v2187, %v2186
    %v2189 = vmul.f32 0.5, %v2188
    %v2190 = vsub.f32 1.5, %v2189
    %v2191 = vmul.f32 %v2186, %v2190
    %vm2192 = vweird.f32 %v2154
    %vm2193 = vweird.f32 %v2186
    %vm2194 = vmor %vm2192, %vm2193
    %v2195 = vsel %vm2194, %v2186, %v2191
    %v2196 = vrsqrt.pop %v2155
    %v2197 = vmul.f32 %v2196, %v2155
    %v2198 = vmul.f32 %v2197, %v2196
    %v2199 = vmul.f32 0.5, %v2198
    %v2200 = vsub.f32 1.5, %v2199
    %v2201 = vmul.f32 %v2196, %v2200
    %vm2202 = vweird.f32 %v2155
    %vm2203 = vweird.f32 %v2196
    %vm2204 = vmor %vm2202, %vm2203
    %v2205 = vsel %vm2204, %v2196, %v2201
    %v2206 = vmul.f32 %v2121, %v2165
    %v2207 = vmul.f32 %v2122, %v2175
    %v2208 = vmul.f32 %v2123, %v2185
    %v2209 = vmul.f32 %v2124, %v2195
    %v2210 = vmul.f32 %v2125, %v2205
    %v2212 = vperm.slane %v883, 0
    %v2214 = vmul.f32 %v2206, %v2212
    %v2215 = vmul.f32 %v2207, %v2212
    %v2216 = vmul.f32 %v2208, %v2212
    %v2217 = vmul.f32 %v2209, %v2212
    %v2218 = vmul.f32 %v2210, %v2212
    %v2220 = vperm.slane %v884, 0
    %v2222 = vadd.f32 %v2214, %v2220
    %v2223 = vadd.f32 %v2215, %v2220
    %v2224 = vadd.f32 %v2216, %v2220
    %v2225 = vadd.f32 %v2217, %v2220
    %v2226 = vadd.f32 %v2218, %v2220
    %v2228 = vperm.slane %v893, 0
    %v2231 = vsel %vm561, %v2222, 0
    %v2234 = vsel %vm561, %v2223, 0
    %v2237 = vsel %vm561, %v2224, 0
    %v2240 = vsel %vm561, %v2225, 0
    %v2243 = vsel %vm561, %v2226, 0
    %2245 = vmatpush.msra.mxu0 0.0
    %2246 = vmatpush.msra.mxu0 0.0
    %2247 = vmatpush.msra.mxu0 0.0
    %2248 = vmatpush.msra.mxu0 0.0
    %2249 = vmatpush.msra.mxu0 0.0
    %2250 = vmatpush.msra.mxu0 0.0
    %2251 = vmatpush.msra.mxu0 0.0
    %2252 = vmatpush.msra.mxu0 0.0
    %2253 = vmatpush.msra.mxu0 %v892
    %2254 = vmatpush.msra.mxu0 %v891
    %2255 = vmatpush.msra.mxu0 %v890
    %2256 = vmatpush.msra.mxu0 %v889
    %2257 = vmatpush.msra.mxu0 %v888
    %2258 = vmatpush.msra.mxu0 %v887
    %2259 = vmatpush.msra.mxu0 %v886
    %2260 = vmatpush.msra.mxu0 %v885
    %2261 = vmatmul.f32.gmra.mxu0 %v2231
    %v2262 = vpop.f32.mrf.mxu0
    %v2263 = vadd.f32 %v2228, %v2262
    %2264 = vmatmul.f32.gmra.mxu0 %v2234
    %v2265 = vpop.f32.mrf.mxu0
    %v2266 = vadd.f32 %v2228, %v2265
    %2267 = vmatmul.f32.gmra.mxu0 %v2237
    %v2268 = vpop.f32.mrf.mxu0
    %v2269 = vadd.f32 %v2228, %v2268
    %2270 = vmatmul.f32.gmra.mxu0 %v2240
    %v2271 = vpop.f32.mrf.mxu0
    %v2272 = vadd.f32 %v2228, %v2271
    %2273 = vmatmul.f32.gmra.mxu0 %v2243
    %v2274 = vpop.f32.mrf.mxu0
    %v2275 = vadd.f32 %v2228, %v2274
    %2276 = vdwg.mxu0
    %v2278 = vperm.slane %v902, 0
    %v2281 = vsel %vm561, %v758, 0
    %v2284 = vsel %vm561, %v761, 0
    %2286 = vmatpush.msra.mxu0 0.0
    %2287 = vmatpush.msra.mxu0 0.0
    %2288 = vmatpush.msra.mxu0 0.0
    %2289 = vmatpush.msra.mxu0 0.0
    %2290 = vmatpush.msra.mxu0 0.0
    %2291 = vmatpush.msra.mxu0 0.0
    %2292 = vmatpush.msra.mxu0 0.0
    %2293 = vmatpush.msra.mxu0 0.0
    %2294 = vmatpush.msra.mxu0 %v901
    %2295 = vmatpush.msra.mxu0 %v900
    %2296 = vmatpush.msra.mxu0 %v899
    %2297 = vmatpush.msra.mxu0 %v898
    %2298 = vmatpush.msra.mxu0 %v897
    %2299 = vmatpush.msra.mxu0 %v896
    %2300 = vmatpush.msra.mxu0 %v895
    %2301 = vmatpush.msra.mxu0 %v894
    %2302 = vmatmul.f32.gmra.mxu0 %v2281
    %v2303 = vpop.f32.mrf.mxu0
    %v2304 = vadd.f32 %v2278, %v2303
    %2305 = vmatmul.f32.gmra.mxu0 %v2284
    %v2306 = vpop.f32.mrf.mxu0
    %v2307 = vadd.f32 %v2278, %v2306
    %2308 = vdwg.mxu0
    %v2310 = vsel %vm588, %v2263, 0
    %v2313 = vsel %vm588, %v2266, 0
    %v2316 = vsel %vm588, %v2269, 0
    %v2319 = vsel %vm588, %v2272, 0
    %v2322 = vsel %vm588, %v2275, 0
    %v2325 = vsel %vm588, %v2304, 0
    %v2328 = vsel %vm588, %v2307, 0
    %2330 = vmatpush.xpose.msra.mxu0 0.0
    %2331 = vmatpush.xpose.msra.mxu0 0.0
    %2332 = vmatpush.xpose.msra.mxu0 0.0
    %2333 = vmatpush.xpose.msra.mxu0 0.0
    %2334 = vmatpush.xpose.msra.mxu0 0.0
    %2335 = vmatpush.xpose.msra.mxu0 0.0
    %2336 = vmatpush.xpose.msra.mxu0 0.0
    %2337 = vmatpush.xpose.msra.mxu0 0.0
    %2338 = vmatpush.xpose.msra.mxu0 0.0
    %2339 = vmatpush.xpose.msra.mxu0 0.0
    %2340 = vmatpush.xpose.msra.mxu0 0.0
    %2341 = vmatpush.xpose.msra.mxu0 0.0
    %2342 = vmatpush.xpose.msra.mxu0 0.0
    %2343 = vmatpush.xpose.msra.mxu0 0.0
    %2344 = vmatpush.xpose.msra.mxu0 %v2328
    %2345 = vmatpush.xpose.msra.mxu0 %v2325
    %2346 = vmatmul.f32.gmra.mxu0 %v2310
    %v2347 = vpop.f32.mrf.mxu0
    %v2348 = vadd.f32 0.0, %v2347
    %2349 = vmatmul.f32.gmra.mxu0 %v2313
    %v2350 = vpop.f32.mrf.mxu0
    %v2351 = vadd.f32 0.0, %v2350
    %2352 = vmatmul.f32.gmra.mxu0 %v2316
    %v2353 = vpop.f32.mrf.mxu0
    %v2354 = vadd.f32 0.0, %v2353
    %2355 = vmatmul.f32.gmra.mxu0 %v2319
    %v2356 = vpop.f32.mrf.mxu0
    %v2357 = vadd.f32 0.0, %v2356
    %2358 = vmatmul.f32.gmra.mxu0 %v2322
    %v2359 = vpop.f32.mrf.mxu0
    %v2360 = vadd.f32 0.0, %v2359
    %2361 = vdwg.mxu0
    %v2362 = vmul.f32 %v2348, 0.25
    %v2363 = vmul.f32 %v2351, 0.25
    %v2364 = vmul.f32 %v2354, 0.25
    %v2365 = vmul.f32 %v2357, 0.25
    %v2366 = vmul.f32 %v2360, 0.25
    %v2367 = vadd.f32 %v2362, %v460
    %v2368 = vadd.f32 %v2363, %v461
    %v2369 = vadd.f32 %v2364, %v462
    %v2370 = vadd.f32 %v2365, %v463
    %v2371 = vadd.f32 %v2366, %v464
    %v2372 = vsel %vm588, %v2367, -inf
    %2373 = vmax.xlane.f32.xlu0 %v2372
    %v2374 = vpop.xlane.xlu0 %2373
    %v2375 = vsel %vm588, %v2368, -inf
    %2376 = vmax.xlane.f32.xlu0 %v2375
    %v2377 = vpop.xlane.xlu0 %2376
    %v2378 = vsel %vm588, %v2369, -inf
    %2379 = vmax.xlane.f32.xlu0 %v2378
    %v2380 = vpop.xlane.xlu0 %2379
    %v2381 = vsel %vm588, %v2370, -inf
    %2382 = vmax.xlane.f32.xlu0 %v2381
    %v2383 = vpop.xlane.xlu0 %2382
    %vm2384 = vcmask 123904
    %v2385 = vsel %vm2384, %v2371, -inf
    %2386 = vmax.xlane.f32.xlu0 %v2385
    %v2387 = vpop.xlane.xlu0 %2386
    %v2388 = vsub.f32 %v2367, %v2374
    %v2389 = vsub.f32 %v2368, %v2377
    %v2390 = vsub.f32 %v2369, %v2380
    %v2391 = vsub.f32 %v2370, %v2383
    %v2392 = vsub.f32 %v2371, %v2387
    %v2393 = vmul.f32 %v2388, 1.442695
    %v2394 = vpow.pop %v2393
    %v2395 = vmul.f32 %v2389, 1.442695
    %v2396 = vpow.pop %v2395
    %v2397 = vmul.f32 %v2390, 1.442695
    %v2398 = vpow.pop %v2397
    %v2399 = vmul.f32 %v2391, 1.442695
    %v2400 = vpow.pop %v2399
    %v2401 = vmul.f32 %v2392, 1.442695
    %v2402 = vpow.pop %v2401
    %v2403 = vsel %vm588, %v2394, 0.0
    %2404 = vadd.xlane.f32.xlu0 %v2403
    %v2405 = vpop.xlane.xlu0 %2404
    %v2406 = vsel %vm588, %v2396, 0.0
    %2407 = vadd.xlane.f32.xlu0 %v2406
    %v2408 = vpop.xlane.xlu0 %2407
    %v2409 = vsel %vm588, %v2398, 0.0
    %2410 = vadd.xlane.f32.xlu0 %v2409
    %v2411 = vpop.xlane.xlu0 %2410
    %v2412 = vsel %vm588, %v2400, 0.0
    %2413 = vadd.xlane.f32.xlu0 %v2412
    %v2414 = vpop.xlane.xlu0 %2413
    %v2415 = vsel %vm2384, %v2402, 0.0
    %2416 = vadd.xlane.f32.xlu0 %v2415
    %v2417 = vpop.xlane.xlu0 %2416
    %v2418 = vrcp.pop %v2405
    %v2419 = vrcp.pop %v2408
    %v2420 = vrcp.pop %v2411
    %v2421 = vrcp.pop %v2414
    %v2422 = vrcp.pop %v2417
    %v2423 = vmul.f32 %v2394, %v2418
    %v2424 = vmul.f32 %v2396, %v2419
    %v2425 = vmul.f32 %v2398, %v2420
    %v2426 = vmul.f32 %v2400, %v2421
    %v2427 = vmul.f32 %v2402, %v2422
    %2428 = vrot.lane.b32.xlu0 %v2304, 64
    %v2429 = vpop.permute.xlu0 %2428
    %2430 = vrot.lane.b32.xlu0 %v2307, 64
    %v2431 = vpop.permute.xlu0 %2430
    %v2435 = vsel %vm588, %v2423, 0
    %v2438 = vsel %vm588, %v2424, 0
    %v2441 = vsel %vm588, %v2425, 0
    %v2444 = vsel %vm588, %v2426, 0
    %v2447 = vsel %vm588, %v2427, 0
    %2449 = vmatpush.msra.mxu0 0.0
    %2450 = vmatpush.msra.mxu0 0.0
    %2451 = vmatpush.msra.mxu0 0.0
    %2452 = vmatpush.msra.mxu0 0.0
    %2453 = vmatpush.msra.mxu0 0.0
    %2454 = vmatpush.msra.mxu0 0.0
    %2455 = vmatpush.msra.mxu0 0.0
    %2456 = vmatpush.msra.mxu0 0.0
    %2457 = vmatpush.msra.mxu0 0.0
    %2458 = vmatpush.msra.mxu0 0.0
    %2459 = vmatpush.msra.mxu0 0.0
    %2460 = vmatpush.msra.mxu0 0.0
    %2461 = vmatpush.msra.mxu0 0.0
    %2462 = vmatpush.msra.mxu0 0.0
    %2463 = vmatpush.msra.mxu0 %v2431
    %2464 = vmatpush.msra.mxu0 %v2429
    %2465 = vmatmul.f32.gmra.mxu0 %v2435
    %v2466 = vpop.f32.mrf.mxu0
    %v2467 = vadd.f32 0.0, %v2466
    %2468 = vmatmul.f32.gmra.mxu0 %v2438
    %v2469 = vpop.f32.mrf.mxu0
    %v2470 = vadd.f32 0.0, %v2469
    %2471 = vmatmul.f32.gmra.mxu0 %v2441
    %v2472 = vpop.f32.mrf.mxu0
    %v2473 = vadd.f32 0.0, %v2472
    %2474 = vmatmul.f32.gmra.mxu0 %v2444
    %v2475 = vpop.f32.mrf.mxu0
    %v2476 = vadd.f32 0.0, %v2475
    %2477 = vmatmul.f32.gmra.mxu0 %v2447
    %v2478 = vpop.f32.mrf.mxu0
    %v2479 = vadd.f32 0.0, %v2478
    %2480 = vdwg.mxu0
    %2481 = vrot.lane.b32.xlu0 %v2263, 112
    %v2482 = vpop.permute.xlu0 %2481
    %2483 = vrot.lane.b32.xlu0 %v2266, 112
    %v2484 = vpop.permute.xlu0 %2483
    %2485 = vrot.lane.b32.xlu0 %v2269, 112
    %v2486 = vpop.permute.xlu0 %2485
    %2487 = vrot.lane.b32.xlu0 %v2272, 112
    %v2488 = vpop.permute.xlu0 %2487
    %2489 = vrot.lane.b32.xlu0 %v2275, 112
    %v2490 = vpop.permute.xlu0 %2489
    %2491 = vrot.lane.b32.xlu0 %v2304, 112
    %v2492 = vpop.permute.xlu0 %2491
    %2493 = vrot.lane.b32.xlu0 %v2307, 112
    %v2494 = vpop.permute.xlu0 %2493
    %v2495 = vsel %vm588, %v2482, 0
    %v2497 = vsel %vm588, %v2484, 0
    %v2499 = vsel %vm588, %v2486, 0
    %v2501 = vsel %vm588, %v2488, 0
    %v2503 = vsel %vm588, %v2490, 0
    %v2505 = vsel %vm588, %v2492, 0
    %v2507 = vsel %vm588, %v2494, 0
    %2509 = vmatpush.xpose.msra.mxu0 0.0
    %2510 = vmatpush.xpose.msra.mxu0 0.0
    %2511 = vmatpush.xpose.msra.mxu0 0.0
    %2512 = vmatpush.xpose.msra.mxu0 0.0
    %2513 = vmatpush.xpose.msra.mxu0 0.0
    %2514 = vmatpush.xpose.msra.mxu0 0.0
    %2515 = vmatpush.xpose.msra.mxu0 0.0
    %2516 = vmatpush.xpose.msra.mxu0 0.0
    %2517 = vmatpush.xpose.msra.mxu0 0.0
    %2518 = vmatpush.xpose.msra.mxu0 0.0
    %2519 = vmatpush.xpose.msra.mxu0 0.0
    %2520 = vmatpush.xpose.msra.mxu0 0.0
    %2521 = vmatpush.xpose.msra.mxu0 0.0
    %2522 = vmatpush.xpose.msra.mxu0 0.0
    %2523 = vmatpush.xpose.msra.mxu0 %v2507
    %2524 = vmatpush.xpose.msra.mxu0 %v2505
    %2525 = vmatmul.f32.gmra.mxu0 %v2495
    %v2526 = vpop.f32.mrf.mxu0
    %v2527 = vadd.f32 0.0, %v2526
    %2528 = vmatmul.f32.gmra.mxu0 %v2497
    %v2529 = vpop.f32.mrf.mxu0
    %v2530 = vadd.f32 0.0, %v2529
    %2531 = vmatmul.f32.gmra.mxu0 %v2499
    %v2532 = vpop.f32.mrf.mxu0
    %v2533 = vadd.f32 0.0, %v2532
    %2534 = vmatmul.f32.gmra.mxu0 %v2501
    %v2535 = vpop.f32.mrf.mxu0
    %v2536 = vadd.f32 0.0, %v2535
    %2537 = vmatmul.f32.gmra.mxu0 %v2503
    %v2538 = vpop.f32.mrf.mxu0
    %v2539 = vadd.f32 0.0, %v2538
    %2540 = vdwg.mxu0
    %v2541 = vmul.f32 %v2527, 0.25
    %v2542 = vmul.f32 %v2530, 0.25
    %v2543 = vmul.f32 %v2533, 0.25
    %v2544 = vmul.f32 %v2536, 0.25
    %v2545 = vmul.f32 %v2539, 0.25
    %v2546 = vadd.f32 %v2541, %v460
    %v2547 = vadd.f32 %v2542, %v461
    %v2548 = vadd.f32 %v2543, %v462
    %v2549 = vadd.f32 %v2544, %v463
    %v2550 = vadd.f32 %v2545, %v464
    %v2551 = vsel %vm588, %v2546, -inf
    %2552 = vmax.xlane.f32.xlu0 %v2551
    %v2553 = vpop.xlane.xlu0 %2552
    %v2554 = vsel %vm588, %v2547, -inf
    %2555 = vmax.xlane.f32.xlu0 %v2554
    %v2556 = vpop.xlane.xlu0 %2555
    %v2557 = vsel %vm588, %v2548, -inf
    %2558 = vmax.xlane.f32.xlu0 %v2557
    %v2559 = vpop.xlane.xlu0 %2558
    %v2560 = vsel %vm588, %v2549, -inf
    %2561 = vmax.xlane.f32.xlu0 %v2560
    %v2562 = vpop.xlane.xlu0 %2561
    %v2563 = vsel %vm2384, %v2550, -inf
    %2564 = vmax.xlane.f32.xlu0 %v2563
    %v2565 = vpop.xlane.xlu0 %2564
    %v2566 = vsub.f32 %v2546, %v2553
    %v2567 = vsub.f32 %v2547, %v2556
    %v2568 = vsub.f32 %v2548, %v2559
    %v2569 = vsub.f32 %v2549, %v2562
    %v2570 = vsub.f32 %v2550, %v2565
    %v2571 = vmul.f32 %v2566, 1.442695
    %v2572 = vpow.pop %v2571
    %v2573 = vmul.f32 %v2567, 1.442695
    %v2574 = vpow.pop %v2573
    %v2575 = vmul.f32 %v2568, 1.442695
    %v2576 = vpow.pop %v2575
    %v2577 = vmul.f32 %v2569, 1.442695
    %v2578 = vpow.pop %v2577
    %v2579 = vmul.f32 %v2570, 1.442695
    %v2580 = vpow.pop %v2579
    %v2581 = vsel %vm588, %v2572, 0.0
    %2582 = vadd.xlane.f32.xlu0 %v2581
    %v2583 = vpop.xlane.xlu0 %2582
    %v2584 = vsel %vm588, %v2574, 0.0
    %2585 = vadd.xlane.f32.xlu0 %v2584
    %v2586 = vpop.xlane.xlu0 %2585
    %v2587 = vsel %vm588, %v2576, 0.0
    %2588 = vadd.xlane.f32.xlu0 %v2587
    %v2589 = vpop.xlane.xlu0 %2588
    %v2590 = vsel %vm588, %v2578, 0.0
    %2591 = vadd.xlane.f32.xlu0 %v2590
    %v2592 = vpop.xlane.xlu0 %2591
    %v2593 = vsel %vm2384, %v2580, 0.0
    %2594 = vadd.xlane.f32.xlu0 %v2593
    %v2595 = vpop.xlane.xlu0 %2594
    %v2596 = vrcp.pop %v2583
    %v2597 = vrcp.pop %v2586
    %v2598 = vrcp.pop %v2589
    %v2599 = vrcp.pop %v2592
    %v2600 = vrcp.pop %v2595
    %v2601 = vmul.f32 %v2572, %v2596
    %v2602 = vmul.f32 %v2574, %v2597
    %v2603 = vmul.f32 %v2576, %v2598
    %v2604 = vmul.f32 %v2578, %v2599
    %v2605 = vmul.f32 %v2580, %v2600
    %2606 = vrot.lane.b32.xlu0 %v2304, 48
    %v2607 = vpop.permute.xlu0 %2606
    %2608 = vrot.lane.b32.xlu0 %v2307, 48
    %v2609 = vpop.permute.xlu0 %2608
    %v2613 = vsel %vm588, %v2601, 0
    %v2616 = vsel %vm588, %v2602, 0
    %v2619 = vsel %vm588, %v2603, 0
    %v2622 = vsel %vm588, %v2604, 0
    %v2625 = vsel %vm588, %v2605, 0
    %2627 = vmatpush.msra.mxu0 0.0
    %2628 = vmatpush.msra.mxu0 0.0
    %2629 = vmatpush.msra.mxu0 0.0
    %2630 = vmatpush.msra.mxu0 0.0
    %2631 = vmatpush.msra.mxu0 0.0
    %2632 = vmatpush.msra.mxu0 0.0
    %2633 = vmatpush.msra.mxu0 0.0
    %2634 = vmatpush.msra.mxu0 0.0
    %2635 = vmatpush.msra.mxu0 0.0
    %2636 = vmatpush.msra.mxu0 0.0
    %2637 = vmatpush.msra.mxu0 0.0
    %2638 = vmatpush.msra.mxu0 0.0
    %2639 = vmatpush.msra.mxu0 0.0
    %2640 = vmatpush.msra.mxu0 0.0
    %2641 = vmatpush.msra.mxu0 %v2609
    %2642 = vmatpush.msra.mxu0 %v2607
    %2643 = vmatmul.f32.gmra.mxu0 %v2613
    %v2644 = vpop.f32.mrf.mxu0
    %v2645 = vadd.f32 0.0, %v2644
    %2646 = vmatmul.f32.gmra.mxu0 %v2616
    %v2647 = vpop.f32.mrf.mxu0
    %v2648 = vadd.f32 0.0, %v2647
    %2649 = vmatmul.f32.gmra.mxu0 %v2619
    %v2650 = vpop.f32.mrf.mxu0
    %v2651 = vadd.f32 0.0, %v2650
    %2652 = vmatmul.f32.gmra.mxu0 %v2622
    %v2653 = vpop.f32.mrf.mxu0
    %v2654 = vadd.f32 0.0, %v2653
    %2655 = vmatmul.f32.gmra.mxu0 %v2625
    %v2656 = vpop.f32.mrf.mxu0
    %v2657 = vadd.f32 0.0, %v2656
    %2658 = vdwg.mxu0
    %2659 = vrot.lane.b32.xlu0 %v2263, 96
    %v2660 = vpop.permute.xlu0 %2659
    %2661 = vrot.lane.b32.xlu0 %v2266, 96
    %v2662 = vpop.permute.xlu0 %2661
    %2663 = vrot.lane.b32.xlu0 %v2269, 96
    %v2664 = vpop.permute.xlu0 %2663
    %2665 = vrot.lane.b32.xlu0 %v2272, 96
    %v2666 = vpop.permute.xlu0 %2665
    %2667 = vrot.lane.b32.xlu0 %v2275, 96
    %v2668 = vpop.permute.xlu0 %2667
    %2669 = vrot.lane.b32.xlu0 %v2304, 96
    %v2670 = vpop.permute.xlu0 %2669
    %2671 = vrot.lane.b32.xlu0 %v2307, 96
    %v2672 = vpop.permute.xlu0 %2671
    %v2673 = vsel %vm588, %v2660, 0
    %v2675 = vsel %vm588, %v2662, 0
    %v2677 = vsel %vm588, %v2664, 0
    %v2679 = vsel %vm588, %v2666, 0
    %v2681 = vsel %vm588, %v2668, 0
    %v2683 = vsel %vm588, %v2670, 0
    %v2685 = vsel %vm588, %v2672, 0
    %2687 = vmatpush.xpose.msra.mxu0 0.0
    %2688 = vmatpush.xpose.msra.mxu0 0.0
    %2689 = vmatpush.xpose.msra.mxu0 0.0
    %2690 = vmatpush.xpose.msra.mxu0 0.0
    %2691 = vmatpush.xpose.msra.mxu0 0.0
    %2692 = vmatpush.xpose.msra.mxu0 0.0
    %2693 = vmatpush.xpose.msra.mxu0 0.0
    %2694 = vmatpush.xpose.msra.mxu0 0.0
    %2695 = vmatpush.xpose.msra.mxu0 0.0
    %2696 = vmatpush.xpose.msra.mxu0 0.0
    %2697 = vmatpush.xpose.msra.mxu0 0.0
    %2698 = vmatpush.xpose.msra.mxu0 0.0
    %2699 = vmatpush.xpose.msra.mxu0 0.0
    %2700 = vmatpush.xpose.msra.mxu0 0.0
    %2701 = vmatpush.xpose.msra.mxu0 %v2685
    %2702 = vmatpush.xpose.msra.mxu0 %v2683
    %2703 = vmatmul.f32.gmra.mxu0 %v2673
    %v2704 = vpop.f32.mrf.mxu0
    %v2705 = vadd.f32 0.0, %v2704
    %2706 = vmatmul.f32.gmra.mxu0 %v2675
    %v2707 = vpop.f32.mrf.mxu0
    %v2708 = vadd.f32 0.0, %v2707
    %2709 = vmatmul.f32.gmra.mxu0 %v2677
    %v2710 = vpop.f32.mrf.mxu0
    %v2711 = vadd.f32 0.0, %v2710
    %2712 = vmatmul.f32.gmra.mxu0 %v2679
    %v2713 = vpop.f32.mrf.mxu0
    %v2714 = vadd.f32 0.0, %v2713
    %2715 = vmatmul.f32.gmra.mxu0 %v2681
    %v2716 = vpop.f32.mrf.mxu0
    %v2717 = vadd.f32 0.0, %v2716
    %2718 = vdwg.mxu0
    %v2719 = vmul.f32 %v2705, 0.25
    %v2720 = vmul.f32 %v2708, 0.25
    %v2721 = vmul.f32 %v2711, 0.25
    %v2722 = vmul.f32 %v2714, 0.25
    %v2723 = vmul.f32 %v2717, 0.25
    %v2724 = vadd.f32 %v2719, %v460
    %v2725 = vadd.f32 %v2720, %v461
    %v2726 = vadd.f32 %v2721, %v462
    %v2727 = vadd.f32 %v2722, %v463
    %v2728 = vadd.f32 %v2723, %v464
    %v2729 = vsel %vm588, %v2724, -inf
    %2730 = vmax.xlane.f32.xlu0 %v2729
    %v2731 = vpop.xlane.xlu0 %2730
    %v2732 = vsel %vm588, %v2725, -inf
    %2733 = vmax.xlane.f32.xlu0 %v2732
    %v2734 = vpop.xlane.xlu0 %2733
    %v2735 = vsel %vm588, %v2726, -inf
    %2736 = vmax.xlane.f32.xlu0 %v2735
    %v2737 = vpop.xlane.xlu0 %2736
    %v2738 = vsel %vm588, %v2727, -inf
    %2739 = vmax.xlane.f32.xlu0 %v2738
    %v2740 = vpop.xlane.xlu0 %2739
    %v2741 = vsel %vm2384, %v2728, -inf
    %2742 = vmax.xlane.f32.xlu0 %v2741
    %v2743 = vpop.xlane.xlu0 %2742
    %v2744 = vsub.f32 %v2724, %v2731
    %v2745 = vsub.f32 %v2725, %v2734
    %v2746 = vsub.f32 %v2726, %v2737
    %v2747 = vsub.f32 %v2727, %v2740
    %v2748 = vsub.f32 %v2728, %v2743
    %v2749 = vmul.f32 %v2744, 1.442695
    %v2750 = vpow.pop %v2749
    %v2751 = vmul.f32 %v2745, 1.442695
    %v2752 = vpow.pop %v2751
    %v2753 = vmul.f32 %v2746, 1.442695
    %v2754 = vpow.pop %v2753
    %v2755 = vmul.f32 %v2747, 1.442695
    %v2756 = vpow.pop %v2755
    %v2757 = vmul.f32 %v2748, 1.442695
    %v2758 = vpow.pop %v2757
    %v2759 = vsel %vm588, %v2750, 0.0
    %2760 = vadd.xlane.f32.xlu0 %v2759
    %v2761 = vpop.xlane.xlu0 %2760
    %v2762 = vsel %vm588, %v2752, 0.0
    %2763 = vadd.xlane.f32.xlu0 %v2762
    %v2764 = vpop.xlane.xlu0 %2763
    %v2765 = vsel %vm588, %v2754, 0.0
    %2766 = vadd.xlane.f32.xlu0 %v2765
    %v2767 = vpop.xlane.xlu0 %2766
    %v2768 = vsel %vm588, %v2756, 0.0
    %2769 = vadd.xlane.f32.xlu0 %v2768
    %v2770 = vpop.xlane.xlu0 %2769
    %v2771 = vsel %vm2384, %v2758, 0.0
    %2772 = vadd.xlane.f32.xlu0 %v2771
    %v2773 = vpop.xlane.xlu0 %2772
    %v2774 = vrcp.pop %v2761
    %v2775 = vrcp.pop %v2764
    %v2776 = vrcp.pop %v2767
    %v2777 = vrcp.pop %v2770
    %v2778 = vrcp.pop %v2773
    %v2779 = vmul.f32 %v2750, %v2774
    %v2780 = vmul.f32 %v2752, %v2775
    %v2781 = vmul.f32 %v2754, %v2776
    %v2782 = vmul.f32 %v2756, %v2777
    %v2783 = vmul.f32 %v2758, %v2778
    %2784 = vrot.lane.b32.xlu0 %v2304, 32
    %v2785 = vpop.permute.xlu0 %2784
    %2786 = vrot.lane.b32.xlu0 %v2307, 32
    %v2787 = vpop.permute.xlu0 %2786
    %v2791 = vsel %vm588, %v2779, 0
    %v2794 = vsel %vm588, %v2780, 0
    %v2797 = vsel %vm588, %v2781, 0
    %v2800 = vsel %vm588, %v2782, 0
    %v2803 = vsel %vm588, %v2783, 0
    %2805 = vmatpush.msra.mxu0 0.0
    %2806 = vmatpush.msra.mxu0 0.0
    %2807 = vmatpush.msra.mxu0 0.0
    %2808 = vmatpush.msra.mxu0 0.0
    %2809 = vmatpush.msra.mxu0 0.0
    %2810 = vmatpush.msra.mxu0 0.0
    %2811 = vmatpush.msra.mxu0 0.0
    %2812 = vmatpush.msra.mxu0 0.0
    %2813 = vmatpush.msra.mxu0 0.0
    %2814 = vmatpush.msra.mxu0 0.0
    %2815 = vmatpush.msra.mxu0 0.0
    %2816 = vmatpush.msra.mxu0 0.0
    %2817 = vmatpush.msra.mxu0 0.0
    %2818 = vmatpush.msra.mxu0 0.0
    %2819 = vmatpush.msra.mxu0 %v2787
    %2820 = vmatpush.msra.mxu0 %v2785
    %2821 = vmatmul.f32.gmra.mxu0 %v2791
    %v2822 = vpop.f32.mrf.mxu0
    %v2823 = vadd.f32 0.0, %v2822
    %2824 = vmatmul.f32.gmra.mxu0 %v2794
    %v2825 = vpop.f32.mrf.mxu0
    %v2826 = vadd.f32 0.0, %v2825
    %2827 = vmatmul.f32.gmra.mxu0 %v2797
    %v2828 = vpop.f32.mrf.mxu0
    %v2829 = vadd.f32 0.0, %v2828
    %2830 = vmatmul.f32.gmra.mxu0 %v2800
    %v2831 = vpop.f32.mrf.mxu0
    %v2832 = vadd.f32 0.0, %v2831
    %2833 = vmatmul.f32.gmra.mxu0 %v2803
    %v2834 = vpop.f32.mrf.mxu0
    %v2835 = vadd.f32 0.0, %v2834
    %2836 = vdwg.mxu0
    %2837 = vrot.lane.b32.xlu0 %v2263, 80
    %v2838 = vpop.permute.xlu0 %2837
    %2839 = vrot.lane.b32.xlu0 %v2266, 80
    %v2840 = vpop.permute.xlu0 %2839
    %2841 = vrot.lane.b32.xlu0 %v2269, 80
    %v2842 = vpop.permute.xlu0 %2841
    %2843 = vrot.lane.b32.xlu0 %v2272, 80
    %v2844 = vpop.permute.xlu0 %2843
    %2845 = vrot.lane.b32.xlu0 %v2275, 80
    %v2846 = vpop.permute.xlu0 %2845
    %2847 = vrot.lane.b32.xlu0 %v2304, 80
    %v2848 = vpop.permute.xlu0 %2847
    %2849 = vrot.lane.b32.xlu0 %v2307, 80
    %v2850 = vpop.permute.xlu0 %2849
    %v2851 = vsel %vm588, %v2838, 0
    %v2853 = vsel %vm588, %v2840, 0
    %v2855 = vsel %vm588, %v2842, 0
    %v2857 = vsel %vm588, %v2844, 0
    %v2859 = vsel %vm588, %v2846, 0
    %v2861 = vsel %vm588, %v2848, 0
    %v2863 = vsel %vm588, %v2850, 0
    %2865 = vmatpush.xpose.msra.mxu0 0.0
    %2866 = vmatpush.xpose.msra.mxu0 0.0
    %2867 = vmatpush.xpose.msra.mxu0 0.0
    %2868 = vmatpush.xpose.msra.mxu0 0.0
    %2869 = vmatpush.xpose.msra.mxu0 0.0
    %2870 = vmatpush.xpose.msra.mxu0 0.0
    %2871 = vmatpush.xpose.msra.mxu0 0.0
    %2872 = vmatpush.xpose.msra.mxu0 0.0
    %2873 = vmatpush.xpose.msra.mxu0 0.0
    %2874 = vmatpush.xpose.msra.mxu0 0.0
    %2875 = vmatpush.xpose.msra.mxu0 0.0
    %2876 = vmatpush.xpose.msra.mxu0 0.0
    %2877 = vmatpush.xpose.msra.mxu0 0.0
    %2878 = vmatpush.xpose.msra.mxu0 0.0
    %2879 = vmatpush.xpose.msra.mxu0 %v2863
    %2880 = vmatpush.xpose.msra.mxu0 %v2861
    %2881 = vmatmul.f32.gmra.mxu0 %v2851
    %v2882 = vpop.f32.mrf.mxu0
    %v2883 = vadd.f32 0.0, %v2882
    %2884 = vmatmul.f32.gmra.mxu0 %v2853
    %v2885 = vpop.f32.mrf.mxu0
    %v2886 = vadd.f32 0.0, %v2885
    %2887 = vmatmul.f32.gmra.mxu0 %v2855
    %v2888 = vpop.f32.mrf.mxu0
    %v2889 = vadd.f32 0.0, %v2888
    %2890 = vmatmul.f32.gmra.mxu0 %v2857
    %v2891 = vpop.f32.mrf.mxu0
    %v2892 = vadd.f32 0.0, %v2891
    %2893 = vmatmul.f32.gmra.mxu0 %v2859
    %v2894 = vpop.f32.mrf.mxu0
    %v2895 = vadd.f32 0.0, %v2894
    %2896 = vdwg.mxu0
    %v2897 = vmul.f32 %v2883, 0.25
    %v2898 = vmul.f32 %v2886, 0.25
    %v2899 = vmul.f32 %v2889, 0.25
    %v2900 = vmul.f32 %v2892, 0.25
    %v2901 = vmul.f32 %v2895, 0.25
    %v2902 = vadd.f32 %v2897, %v460
    %v2903 = vadd.f32 %v2898, %v461
    %v2904 = vadd.f32 %v2899, %v462
    %v2905 = vadd.f32 %v2900, %v463
    %v2906 = vadd.f32 %v2901, %v464
    %v2907 = vsel %vm588, %v2902, -inf
    %2908 = vmax.xlane.f32.xlu0 %v2907
    %v2909 = vpop.xlane.xlu0 %2908
    %v2910 = vsel %vm588, %v2903, -inf
    %2911 = vmax.xlane.f32.xlu0 %v2910
    %v2912 = vpop.xlane.xlu0 %2911
    %v2913 = vsel %vm588, %v2904, -inf
    %2914 = vmax.xlane.f32.xlu0 %v2913
    %v2915 = vpop.xlane.xlu0 %2914
    %v2916 = vsel %vm588, %v2905, -inf
    %2917 = vmax.xlane.f32.xlu0 %v2916
    %v2918 = vpop.xlane.xlu0 %2917
    %v2919 = vsel %vm2384, %v2906, -inf
    %2920 = vmax.xlane.f32.xlu0 %v2919
    %v2921 = vpop.xlane.xlu0 %2920
    %v2922 = vsub.f32 %v2902, %v2909
    %v2923 = vsub.f32 %v2903, %v2912
    %v2924 = vsub.f32 %v2904, %v2915
    %v2925 = vsub.f32 %v2905, %v2918
    %v2926 = vsub.f32 %v2906, %v2921
    %v2927 = vmul.f32 %v2922, 1.442695
    %v2928 = vpow.pop %v2927
    %v2929 = vmul.f32 %v2923, 1.442695
    %v2930 = vpow.pop %v2929
    %v2931 = vmul.f32 %v2924, 1.442695
    %v2932 = vpow.pop %v2931
    %v2933 = vmul.f32 %v2925, 1.442695
    %v2934 = vpow.pop %v2933
    %v2935 = vmul.f32 %v2926, 1.442695
    %v2936 = vpow.pop %v2935
    %v2937 = vsel %vm588, %v2928, 0.0
    %2938 = vadd.xlane.f32.xlu0 %v2937
    %v2939 = vpop.xlane.xlu0 %2938
    %v2940 = vsel %vm588, %v2930, 0.0
    %2941 = vadd.xlane.f32.xlu0 %v2940
    %v2942 = vpop.xlane.xlu0 %2941
    %v2943 = vsel %vm588, %v2932, 0.0
    %2944 = vadd.xlane.f32.xlu0 %v2943
    %v2945 = vpop.xlane.xlu0 %2944
    %v2946 = vsel %vm588, %v2934, 0.0
    %2947 = vadd.xlane.f32.xlu0 %v2946
    %v2948 = vpop.xlane.xlu0 %2947
    %v2949 = vsel %vm2384, %v2936, 0.0
    %2950 = vadd.xlane.f32.xlu0 %v2949
    %v2951 = vpop.xlane.xlu0 %2950
    %v2952 = vrcp.pop %v2939
    %v2953 = vrcp.pop %v2942
    %v2954 = vrcp.pop %v2945
    %v2955 = vrcp.pop %v2948
    %v2956 = vrcp.pop %v2951
    %v2957 = vmul.f32 %v2928, %v2952
    %v2958 = vmul.f32 %v2930, %v2953
    %v2959 = vmul.f32 %v2932, %v2954
    %v2960 = vmul.f32 %v2934, %v2955
    %v2961 = vmul.f32 %v2936, %v2956
    %2962 = vrot.lane.b32.xlu0 %v2304, 16
    %v2963 = vpop.permute.xlu0 %2962
    %2964 = vrot.lane.b32.xlu0 %v2307, 16
    %v2965 = vpop.permute.xlu0 %2964
    %v2969 = vsel %vm588, %v2957, 0
    %v2972 = vsel %vm588, %v2958, 0
    %v2975 = vsel %vm588, %v2959, 0
    %v2978 = vsel %vm588, %v2960, 0
    %v2981 = vsel %vm588, %v2961, 0
    %2983 = vmatpush.msra.mxu0 0.0
    %2984 = vmatpush.msra.mxu0 0.0
    %2985 = vmatpush.msra.mxu0 0.0
    %2986 = vmatpush.msra.mxu0 0.0
    %2987 = vmatpush.msra.mxu0 0.0
    %2988 = vmatpush.msra.mxu0 0.0
    %2989 = vmatpush.msra.mxu0 0.0
    %2990 = vmatpush.msra.mxu0 0.0
    %2991 = vmatpush.msra.mxu0 0.0
    %2992 = vmatpush.msra.mxu0 0.0
    %2993 = vmatpush.msra.mxu0 0.0
    %2994 = vmatpush.msra.mxu0 0.0
    %2995 = vmatpush.msra.mxu0 0.0
    %2996 = vmatpush.msra.mxu0 0.0
    %2997 = vmatpush.msra.mxu0 %v2965
    %2998 = vmatpush.msra.mxu0 %v2963
    %2999 = vmatmul.f32.gmra.mxu0 %v2969
    %v3000 = vpop.f32.mrf.mxu0
    %v3001 = vadd.f32 0.0, %v3000
    %3002 = vmatmul.f32.gmra.mxu0 %v2972
    %v3003 = vpop.f32.mrf.mxu0
    %v3004 = vadd.f32 0.0, %v3003
    %3005 = vmatmul.f32.gmra.mxu0 %v2975
    %v3006 = vpop.f32.mrf.mxu0
    %v3007 = vadd.f32 0.0, %v3006
    %3008 = vmatmul.f32.gmra.mxu0 %v2978
    %v3009 = vpop.f32.mrf.mxu0
    %v3010 = vadd.f32 0.0, %v3009
    %3011 = vmatmul.f32.gmra.mxu0 %v2981
    %v3012 = vpop.f32.mrf.mxu0
    %v3013 = vadd.f32 0.0, %v3012
    %3014 = vdwg.mxu0
    %3020 = vrot.lane.b32.xlu0 %v2645, 16
    %v3021 = vpop.permute.xlu0 %3020
    %3022 = vrot.lane.b32.xlu0 %v2648, 16
    %v3023 = vpop.permute.xlu0 %3022
    %3024 = vrot.lane.b32.xlu0 %v2651, 16
    %v3025 = vpop.permute.xlu0 %3024
    %3026 = vrot.lane.b32.xlu0 %v2654, 16
    %v3027 = vpop.permute.xlu0 %3026
    %3028 = vrot.lane.b32.xlu0 %v2657, 16
    %v3029 = vpop.permute.xlu0 %3028
    %3040 = vrot.lane.b32.xlu0 %v2823, 32
    %v3041 = vpop.permute.xlu0 %3040
    %3042 = vrot.lane.b32.xlu0 %v2826, 32
    %v3043 = vpop.permute.xlu0 %3042
    %3044 = vrot.lane.b32.xlu0 %v2829, 32
    %v3045 = vpop.permute.xlu0 %3044
    %3046 = vrot.lane.b32.xlu0 %v2832, 32
    %v3047 = vpop.permute.xlu0 %3046
    %3048 = vrot.lane.b32.xlu0 %v2835, 32
    %v3049 = vpop.permute.xlu0 %3048
    %3060 = vrot.lane.b32.xlu0 %v3001, 48
    %v3061 = vpop.permute.xlu0 %3060
    %3062 = vrot.lane.b32.xlu0 %v3004, 48
    %v3063 = vpop.permute.xlu0 %3062
    %3064 = vrot.lane.b32.xlu0 %v3007, 48
    %v3065 = vpop.permute.xlu0 %3064
    %3066 = vrot.lane.b32.xlu0 %v3010, 48
    %v3067 = vpop.permute.xlu0 %3066
    %3068 = vrot.lane.b32.xlu0 %v3013, 48
    %v3069 = vpop.permute.xlu0 %3068
    %v3075 = vsel %vm588, %v2467, %v3021
    %v3076 = vsel %vm588, %v2470, %v3023
    %v3077 = vsel %vm588, %v2473, %v3025
    %v3078 = vsel %vm588, %v2476, %v3027
    %v3079 = vsel %vm588, %v2479, %v3029
    %v3080 = vsel %vm514, %v3075, %v3041
    %v3081 = vsel %vm514, %v3076, %v3043
    %v3082 = vsel %vm514, %v3077, %v3045
    %v3083 = vsel %vm514, %v3078, %v3047
    %v3084 = vsel %vm514, %v3079, %v3049
    %v3085 = vsel %vm2040, %v3080, %v3061
    %v3086 = vsel %vm2040, %v3081, %v3063
    %v3087 = vsel %vm2040, %v3082, %v3065
    %v3088 = vsel %vm2040, %v3083, %v3067
    %v3089 = vsel %vm2040, %v3084, %v3069
    %v3091 = vperm.slane %v911, 0
    %v3094 = vsel %vm561, %v3085, 0
    %v3097 = vsel %vm561, %v3086, 0
    %v3100 = vsel %vm561, %v3087, 0
    %v3103 = vsel %vm561, %v3088, 0
    %v3106 = vsel %vm561, %v3089, 0
    %3108 = vmatpush.msra.mxu0 0.0
    %3109 = vmatpush.msra.mxu0 0.0
    %3110 = vmatpush.msra.mxu0 0.0
    %3111 = vmatpush.msra.mxu0 0.0
    %3112 = vmatpush.msra.mxu0 0.0
    %3113 = vmatpush.msra.mxu0 0.0
    %3114 = vmatpush.msra.mxu0 0.0
    %3115 = vmatpush.msra.mxu0 0.0
    %3116 = vmatpush.msra.mxu0 %v910
    %3117 = vmatpush.msra.mxu0 %v909
    %3118 = vmatpush.msra.mxu0 %v908
    %3119 = vmatpush.msra.mxu0 %v907
    %3120 = vmatpush.msra.mxu0 %v906
    %3121 = vmatpush.msra.mxu0 %v905
    %3122 = vmatpush.msra.mxu0 %v904
    %3123 = vmatpush.msra.mxu0 %v903
    %3124 = vmatmul.f32.gmra.mxu0 %v3094
    %v3125 = vpop.f32.mrf.mxu0
    %v3126 = vadd.f32 %v3091, %v3125
    %3127 = vmatmul.f32.gmra.mxu0 %v3097
    %v3128 = vpop.f32.mrf.mxu0
    %v3129 = vadd.f32 %v3091, %v3128
    %3130 = vmatmul.f32.gmra.mxu0 %v3100
    %v3131 = vpop.f32.mrf.mxu0
    %v3132 = vadd.f32 %v3091, %v3131
    %3133 = vmatmul.f32.gmra.mxu0 %v3103
    %v3134 = vpop.f32.mrf.mxu0
    %v3135 = vadd.f32 %v3091, %v3134
    %3136 = vmatmul.f32.gmra.mxu0 %v3106
    %v3137 = vpop.f32.mrf.mxu0
    %v3138 = vadd.f32 %v3091, %v3137
    %3139 = vdwg.mxu0
    %v3140 = vadd.f32 %v2096, %v3126
    %v3141 = vadd.f32 %v2097, %v3129
    %v3142 = vadd.f32 %v2098, %v3132
    %v3143 = vadd.f32 %v2099, %v3135
    %v3144 = vadd.f32 %v2100, %v3138
    %v3145 = vsel %vm561, %v3140, 0.0
    %3146 = vadd.xlane.f32.xlu0 %v3145
    %v3147 = vpop.xlane.xlu0 %3146
    %v3148 = vsel %vm561, %v3141, 0.0
    %3149 = vadd.xlane.f32.xlu0 %v3148
    %v3150 = vpop.xlane.xlu0 %3149
    %v3151 = vsel %vm561, %v3142, 0.0
    %3152 = vadd.xlane.f32.xlu0 %v3151
    %v3153 = vpop.xlane.xlu0 %3152
    %v3154 = vsel %vm561, %v3143, 0.0
    %3155 = vadd.xlane.f32.xlu0 %v3154
    %v3156 = vpop.xlane.xlu0 %3155
    %v3157 = vsel %vm976, %v3144, 0.0
    %3158 = vadd.xlane.f32.xlu0 %v3157
    %v3159 = vpop.xlane.xlu0 %3158
    %v3160 = vmul.f32 %v3147, %v986
    %v3161 = vmul.f32 %v3150, %v986
    %v3162 = vmul.f32 %v3153, %v986
    %v3163 = vmul.f32 %v3156, %v986
    %v3164 = vmul.f32 %v3159, %v986
    %v3165 = vsub.f32 %v3140, %v3160
    %v3166 = vsub.f32 %v3141, %v3161
    %v3167 = vsub.f32 %v3142, %v3162
    %v3168 = vsub.f32 %v3143, %v3163
    %v3169 = vsub.f32 %v3144, %v3164
    %v3170 = vmul.f32 %v3165, %v3165
    %v3171 = vmul.f32 %v3166, %v3166
    %v3172 = vmul.f32 %v3167, %v3167
    %v3173 = vmul.f32 %v3168, %v3168
    %v3174 = vmul.f32 %v3169, %v3169
    %v3175 = vsel %vm561, %v3170, 0.0
    %3176 = vadd.xlane.f32.xlu0 %v3175
    %v3177 = vpop.xlane.xlu0 %3176
    %v3178 = vsel %vm561, %v3171, 0.0
    %3179 = vadd.xlane.f32.xlu0 %v3178
    %v3180 = vpop.xlane.xlu0 %3179
    %v3181 = vsel %vm561, %v3172, 0.0
    %3182 = vadd.xlane.f32.xlu0 %v3181
    %v3183 = vpop.xlane.xlu0 %3182
    %v3184 = vsel %vm561, %v3173, 0.0
    %3185 = vadd.xlane.f32.xlu0 %v3184
    %v3186 = vpop.xlane.xlu0 %3185
    %v3187 = vsel %vm976, %v3174, 0.0
    %3188 = vadd.xlane.f32.xlu0 %v3187
    %v3189 = vpop.xlane.xlu0 %3188
    %v3190 = vmul.f32 %v3177, %v986
    %v3191 = vmul.f32 %v3180, %v986
    %v3192 = vmul.f32 %v3183, %v986
    %v3193 = vmul.f32 %v3186, %v986
    %v3194 = vmul.f32 %v3189, %v986
    %v3195 = vadd.f32 %v3190, 1e-05
    %v3196 = vadd.f32 %v3191, 1e-05
    %v3197 = vadd.f32 %v3192, 1e-05
    %v3198 = vadd.f32 %v3193, 1e-05
    %v3199 = vadd.f32 %v3194, 1e-05
    %v3200 = vrsqrt.pop %v3195
    %v3201 = vmul.f32 %v3200, %v3195
    %v3202 = vmul.f32 %v3201, %v3200
    %v3203 = vmul.f32 0.5, %v3202
    %v3204 = vsub.f32 1.5, %v3203
    %v3205 = vmul.f32 %v3200, %v3204
    %vm3206 = vweird.f32 %v3195
    %vm3207 = vweird.f32 %v3200
    %vm3208 = vmor %vm3206, %vm3207
    %v3209 = vsel %vm3208, %v3200, %v3205
    %v3210 = vrsqrt.pop %v3196
    %v3211 = vmul.f32 %v3210, %v3196
    %v3212 = vmul.f32 %v3211, %v3210
    %v3213 = vmul.f32 0.5, %v3212
    %v3214 = vsub.f32 1.5, %v3213
    %v3215 = vmul.f32 %v3210, %v3214
    %vm3216 = vweird.f32 %v3196
    %vm3217 = vweird.f32 %v3210
    %vm3218 = vmor %vm3216, %vm3217
    %v3219 = vsel %vm3218, %v3210, %v3215
    %v3220 = vrsqrt.pop %v3197
    %v3221 = vmul.f32 %v3220, %v3197
    %v3222 = vmul.f32 %v3221, %v3220
    %v3223 = vmul.f32 0.5, %v3222
    %v3224 = vsub.f32 1.5, %v3223
    %v3225 = vmul.f32 %v3220, %v3224
    %vm3226 = vweird.f32 %v3197
    %vm3227 = vweird.f32 %v3220
    %vm3228 = vmor %vm3226, %vm3227
    %v3229 = vsel %vm3228, %v3220, %v3225
    %v3230 = vrsqrt.pop %v3198
    %v3231 = vmul.f32 %v3230, %v3198
    %v3232 = vmul.f32 %v3231, %v3230
    %v3233 = vmul.f32 0.5, %v3232
    %v3234 = vsub.f32 1.5, %v3233
    %v3235 = vmul.f32 %v3230, %v3234
    %vm3236 = vweird.f32 %v3198
    %vm3237 = vweird.f32 %v3230
    %vm3238 = vmor %vm3236, %vm3237
    %v3239 = vsel %vm3238, %v3230, %v3235
    %v3240 = vrsqrt.pop %v3199
    %v3241 = vmul.f32 %v3240, %v3199
    %v3242 = vmul.f32 %v3241, %v3240
    %v3243 = vmul.f32 0.5, %v3242
    %v3244 = vsub.f32 1.5, %v3243
    %v3245 = vmul.f32 %v3240, %v3244
    %vm3246 = vweird.f32 %v3199
    %vm3247 = vweird.f32 %v3240
    %vm3248 = vmor %vm3246, %vm3247
    %v3249 = vsel %vm3248, %v3240, %v3245
    %v3250 = vmul.f32 %v3165, %v3209
    %v3251 = vmul.f32 %v3166, %v3219
    %v3252 = vmul.f32 %v3167, %v3229
    %v3253 = vmul.f32 %v3168, %v3239
    %v3254 = vmul.f32 %v3169, %v3249
    %v3256 = vperm.slane %v912, 0
    %v3258 = vmul.f32 %v3250, %v3256
    %v3259 = vmul.f32 %v3251, %v3256
    %v3260 = vmul.f32 %v3252, %v3256
    %v3261 = vmul.f32 %v3253, %v3256
    %v3262 = vmul.f32 %v3254, %v3256
    %v3264 = vperm.slane %v913, 0
    %v3266 = vadd.f32 %v3258, %v3264
    %v3267 = vadd.f32 %v3259, %v3264
    %v3268 = vadd.f32 %v3260, %v3264
    %v3269 = vadd.f32 %v3261, %v3264
    %v3270 = vadd.f32 %v3262, %v3264
    %v3272 = vperm.slane %v930, 0
    %v3273 = vperm.slane %v930, 1
    %v3277 = vsel %vm561, %v3266, 0
    %v3280 = vsel %vm561, %v3267, 0
    %v3283 = vsel %vm561, %v3268, 0
    %v3286 = vsel %vm561, %v3269, 0
    %v3289 = vsel %vm561, %v3270, 0
    %3291 = vmatpush.msra.mxu0 0.0
    %3292 = vmatpush.msra.mxu0 0.0
    %3293 = vmatpush.msra.mxu0 0.0
    %3294 = vmatpush.msra.mxu0 0.0
    %3295 = vmatpush.msra.mxu0 0.0
    %3296 = vmatpush.msra.mxu0 0.0
    %3297 = vmatpush.msra.mxu0 0.0
    %3298 = vmatpush.msra.mxu0 0.0
    %3299 = vmatpush.msra.mxu0 %v928
    %3300 = vmatpush.msra.mxu0 %v926
    %3301 = vmatpush.msra.mxu0 %v924
    %3302 = vmatpush.msra.mxu0 %v922
    %3303 = vmatpush.msra.mxu0 %v920
    %3304 = vmatpush.msra.mxu0 %v918
    %3305 = vmatpush.msra.mxu0 %v916
    %3306 = vmatpush.msra.mxu0 %v914
    %3307 = vmatmul.f32.gmra.mxu0 %v3277
    %v3308 = vpop.f32.mrf.mxu0
    %v3309 = vadd.f32 %v3272, %v3308
    %3310 = vmatmul.f32.gmra.mxu0 %v3280
    %v3311 = vpop.f32.mrf.mxu0
    %v3312 = vadd.f32 %v3272, %v3311
    %3313 = vmatmul.f32.gmra.mxu0 %v3283
    %v3314 = vpop.f32.mrf.mxu0
    %v3315 = vadd.f32 %v3272, %v3314
    %3316 = vmatmul.f32.gmra.mxu0 %v3286
    %v3317 = vpop.f32.mrf.mxu0
    %v3318 = vadd.f32 %v3272, %v3317
    %3319 = vmatmul.f32.gmra.mxu0 %v3289
    %v3320 = vpop.f32.mrf.mxu0
    %v3321 = vadd.f32 %v3272, %v3320
    %3322 = vdwg.mxu0
    %3323 = vmatpush.msra.mxu0 0.0
    %3324 = vmatpush.msra.mxu0 0.0
    %3325 = vmatpush.msra.mxu0 0.0
    %3326 = vmatpush.msra.mxu0 0.0
    %3327 = vmatpush.msra.mxu0 0.0
    %3328 = vmatpush.msra.mxu0 0.0
    %3329 = vmatpush.msra.mxu0 0.0
    %3330 = vmatpush.msra.mxu0 0.0
    %3331 = vmatpush.msra.mxu0 %v929
    %3332 = vmatpush.msra.mxu0 %v927
    %3333 = vmatpush.msra.mxu0 %v925
    %3334 = vmatpush.msra.mxu0 %v923
    %3335 = vmatpush.msra.mxu0 %v921
    %3336 = vmatpush.msra.mxu0 %v919
    %3337 = vmatpush.msra.mxu0 %v917
    %3338 = vmatpush.msra.mxu0 %v915
    %3339 = vmatmul.f32.gmra.mxu0 %v3277
    %v3340 = vpop.f32.mrf.mxu0
    %v3341 = vadd.f32 %v3273, %v3340
    %3342 = vmatmul.f32.gmra.mxu0 %v3280
    %v3343 = vpop.f32.mrf.mxu0
    %v3344 = vadd.f32 %v3273, %v3343
    %3345 = vmatmul.f32.gmra.mxu0 %v3283
    %v3346 = vpop.f32.mrf.mxu0
    %v3347 = vadd.f32 %v3273, %v3346
    %3348 = vmatmul.f32.gmra.mxu0 %v3286
    %v3349 = vpop.f32.mrf.mxu0
    %v3350 = vadd.f32 %v3273, %v3349
    %3351 = vmatmul.f32.gmra.mxu0 %v3289
    %v3352 = vpop.f32.mrf.mxu0
    %v3353 = vadd.f32 %v3273, %v3352
    %3354 = vdwg.mxu0
    %v3355 = vmul.f32 %v3309, %v3309
    %v3356 = vmul.f32 %v3341, %v3341
    %v3357 = vmul.f32 %v3312, %v3312
    %v3358 = vmul.f32 %v3344, %v3344
    %v3359 = vmul.f32 %v3315, %v3315
    %v3360 = vmul.f32 %v3347, %v3347
    %v3361 = vmul.f32 %v3318, %v3318
    %v3362 = vmul.f32 %v3350, %v3350
    %v3363 = vmul.f32 %v3321, %v3321
    %v3364 = vmul.f32 %v3353, %v3353
    %v3365 = vmul.f32 %v3309, %v3355
    %v3366 = vmul.f32 %v3341, %v3356
    %v3367 = vmul.f32 %v3312, %v3357
    %v3368 = vmul.f32 %v3344, %v3358
    %v3369 = vmul.f32 %v3315, %v3359
    %v3370 = vmul.f32 %v3347, %v3360
    %v3371 = vmul.f32 %v3318, %v3361
    %v3372 = vmul.f32 %v3350, %v3362
    %v3373 = vmul.f32 %v3321, %v3363
    %v3374 = vmul.f32 %v3353, %v3364
    %v3375 = vmul.f32 %v3365, 0.044715
    %v3376 = vmul.f32 %v3366, 0.044715
    %v3377 = vmul.f32 %v3367, 0.044715
    %v3378 = vmul.f32 %v3368, 0.044715
    %v3379 = vmul.f32 %v3369, 0.044715
    %v3380 = vmul.f32 %v3370, 0.044715
    %v3381 = vmul.f32 %v3371, 0.044715
    %v3382 = vmul.f32 %v3372, 0.044715
    %v3383 = vmul.f32 %v3373, 0.044715
    %v3384 = vmul.f32 %v3374, 0.044715
    %v3385 = vadd.f32 %v3309, %v3375
    %v3386 = vadd.f32 %v3341, %v3376
    %v3387 = vadd.f32 %v3312, %v3377
    %v3388 = vadd.f32 %v3344, %v3378
    %v3389 = vadd.f32 %v3315, %v3379
    %v3390 = vadd.f32 %v3347, %v3380
    %v3391 = vadd.f32 %v3318, %v3381
    %v3392 = vadd.f32 %v3350, %v3382
    %v3393 = vadd.f32 %v3321, %v3383
    %v3394 = vadd.f32 %v3353, %v3384
    %v3395 = vmul.f32 %v3385, 0.7978846
    %v3396 = vmul.f32 %v3386, 0.7978846
    %v3397 = vmul.f32 %v3387, 0.7978846
    %v3398 = vmul.f32 %v3388, 0.7978846
    %v3399 = vmul.f32 %v3389, 0.7978846
    %v3400 = vmul.f32 %v3390, 0.7978846
    %v3401 = vmul.f32 %v3391, 0.7978846
    %v3402 = vmul.f32 %v3392, 0.7978846
    %v3403 = vmul.f32 %v3393, 0.7978846
    %v3404 = vmul.f32 %v3394, 0.7978846
    %v3405 = vtanh.pop %v3395
    %v3406 = vtanh.pop %v3396
    %v3407 = vtanh.pop %v3397
    %v3408 = vtanh.pop %v3398
    %v3409 = vtanh.pop %v3399
    %v3410 = vtanh.pop %v3400
    %v3411 = vtanh.pop %v3401
    %v3412 = vtanh.pop %v3402
    %v3413 = vtanh.pop %v3403
    %v3414 = vtanh.pop %v3404
    %v3415 = vadd.f32 %v3405, 1.0
    %v3416 = vadd.f32 %v3406, 1.0
    %v3417 = vadd.f32 %v3407, 1.0
    %v3418 = vadd.f32 %v3408, 1.0
    %v3419 = vadd.f32 %v3409, 1.0
    %v3420 = vadd.f32 %v3410, 1.0
    %v3421 = vadd.f32 %v3411, 1.0
    %v3422 = vadd.f32 %v3412, 1.0
    %v3423 = vadd.f32 %v3413, 1.0
    %v3424 = vadd.f32 %v3414, 1.0
    %v3425 = vmul.f32 %v3415, 0.5
    %v3426 = vmul.f32 %v3416, 0.5
    %v3427 = vmul.f32 %v3417, 0.5
    %v3428 = vmul.f32 %v3418, 0.5
    %v3429 = vmul.f32 %v3419, 0.5
    %v3430 = vmul.f32 %v3420, 0.5
    %v3431 = vmul.f32 %v3421, 0.5
    %v3432 = vmul.f32 %v3422, 0.5
    %v3433 = vmul.f32 %v3423, 0.5
    %v3434 = vmul.f32 %v3424, 0.5
    %v3435 = vmul.f32 %v3309, %v3425
    %v3436 = vmul.f32 %v3341, %v3426
    %v3437 = vmul.f32 %v3312, %v3427
    %v3438 = vmul.f32 %v3344, %v3428
    %v3439 = vmul.f32 %v3315, %v3429
    %v3440 = vmul.f32 %v3347, %v3430
    %v3441 = vmul.f32 %v3318, %v3431
    %v3442 = vmul.f32 %v3350, %v3432
    %v3443 = vmul.f32 %v3321, %v3433
    %v3444 = vmul.f32 %v3353, %v3434
    %v3446 = vperm.slane %v963, 0
    %3448 = vmatpush.msra.mxu0 %v946
    %3449 = vmatpush.msra.mxu0 %v945
    %3450 = vmatpush.msra.mxu0 %v944
    %3451 = vmatpush.msra.mxu0 %v943
    %3452 = vmatpush.msra.mxu0 %v942
    %3453 = vmatpush.msra.mxu0 %v941
    %3454 = vmatpush.msra.mxu0 %v940
    %3455 = vmatpush.msra.mxu0 %v939
    %3456 = vmatpush.msra.mxu0 %v938
    %3457 = vmatpush.msra.mxu0 %v937
    %3458 = vmatpush.msra.mxu0 %v936
    %3459 = vmatpush.msra.mxu0 %v935
    %3460 = vmatpush.msra.mxu0 %v934
    %3461 = vmatpush.msra.mxu0 %v933
    %3462 = vmatpush.msra.mxu0 %v932
    %3463 = vmatpush.msra.mxu0 %v931
    %3464 = vmatmul.f32.gmra.mxu0 %v3435
    %v3465 = vpop.f32.mrf.mxu0
    %v3466 = vadd.f32 %v3446, %v3465
    %3467 = vmatmul.f32.gmra.mxu0 %v3437
    %v3468 = vpop.f32.mrf.mxu0
    %v3469 = vadd.f32 %v3446, %v3468
    %3470 = vmatmul.f32.gmra.mxu0 %v3439
    %v3471 = vpop.f32.mrf.mxu0
    %v3472 = vadd.f32 %v3446, %v3471
    %3473 = vmatmul.f32.gmra.mxu0 %v3441
    %v3474 = vpop.f32.mrf.mxu0
    %v3475 = vadd.f32 %v3446, %v3474
    %3476 = vmatmul.f32.gmra.mxu0 %v3443
    %v3477 = vpop.f32.mrf.mxu0
    %v3478 = vadd.f32 %v3446, %v3477
    %3479 = vdwg.mxu0
    %3480 = vmatpush.msra.mxu0 %v962
    %3481 = vmatpush.msra.mxu0 %v961
    %3482 = vmatpush.msra.mxu0 %v960
    %3483 = vmatpush.msra.mxu0 %v959
    %3484 = vmatpush.msra.mxu0 %v958
    %3485 = vmatpush.msra.mxu0 %v957
    %3486 = vmatpush.msra.mxu0 %v956
    %3487 = vmatpush.msra.mxu0 %v955
    %3488 = vmatpush.msra.mxu0 %v954
    %3489 = vmatpush.msra.mxu0 %v953
    %3490 = vmatpush.msra.mxu0 %v952
    %3491 = vmatpush.msra.mxu0 %v951
    %3492 = vmatpush.msra.mxu0 %v950
    %3493 = vmatpush.msra.mxu0 %v949
    %3494 = vmatpush.msra.mxu0 %v948
    %3495 = vmatpush.msra.mxu0 %v947
    %3496 = vmatmul.f32.gmra.mxu0 %v3436
    %v3497 = vpop.f32.mrf.mxu0
    %v3498 = vadd.f32 %v3466, %v3497
    %3499 = vmatmul.f32.gmra.mxu0 %v3438
    %v3500 = vpop.f32.mrf.mxu0
    %v3501 = vadd.f32 %v3469, %v3500
    %3502 = vmatmul.f32.gmra.mxu0 %v3440
    %v3503 = vpop.f32.mrf.mxu0
    %v3504 = vadd.f32 %v3472, %v3503
    %3505 = vmatmul.f32.gmra.mxu0 %v3442
    %v3506 = vpop.f32.mrf.mxu0
    %v3507 = vadd.f32 %v3475, %v3506
    %3508 = vmatmul.f32.gmra.mxu0 %v3444
    %v3509 = vpop.f32.mrf.mxu0
    %v3510 = vadd.f32 %v3478, %v3509
    %3511 = vdwg.mxu0
    %v3512 = vadd.f32 %v3140, %v3498
    %v3513 = vadd.f32 %v3141, %v3501
    %v3514 = vadd.f32 %v3142, %v3504
    %v3515 = vadd.f32 %v3143, %v3507
    %v3516 = vadd.f32 %v3144, %v3510
    %s3517 = scalar_lea.vmem %s49, 1
    %v3518 = vld [vmem:[%s3517] sm:$0x1]
    %s3519 = scalar_lea.vmem %s51, 1
    %v3520 = vld [vmem:[%s3519] sm:$0x1]
    %s3521 = scalar_lea.vmem %s53, 128
    %v3522 = vld [vmem:[%s3521] sm:$0xff]
    %v3523 = vld [vmem:[%s3521 + $0x8] sm:$0xff]
    %v3524 = vld [vmem:[%s3521 + $0x10] sm:$0xff]
    %v3525 = vld [vmem:[%s3521 + $0x18] sm:$0xff]
    %v3526 = vld [vmem:[%s3521 + $0x20] sm:$0xff]
    %v3527 = vld [vmem:[%s3521 + $0x28] sm:$0xff]
    %v3528 = vld [vmem:[%s3521 + $0x30] sm:$0xff]
    %v3529 = vld [vmem:[%s3521 + $0x38] sm:$0xff]
    %v3530 = vld [vmem:[%s3521 + $0x40] sm:$0xff]
    %v3531 = vld [vmem:[%s3521 + $0x48] sm:$0xff]
    %v3532 = vld [vmem:[%s3521 + $0x50] sm:$0xff]
    %v3533 = vld [vmem:[%s3521 + $0x58] sm:$0xff]
    %v3534 = vld [vmem:[%s3521 + $0x60] sm:$0xff]
    %v3535 = vld [vmem:[%s3521 + $0x68] sm:$0xff]
    %v3536 = vld [vmem:[%s3521 + $0x70] sm:$0xff]
    %v3537 = vld [vmem:[%s3521 + $0x78] sm:$0xff]
    %s3538 = scalar_lea.vmem %s55, 2
    %v3539 = vld [vmem:[%s3538] sm:$0x3]
    %s3540 = scalar_lea.vmem %s57, 64
    %v3541 = vld [vmem:[%s3540] sm:$0xff]
    %v3542 = vld [vmem:[%s3540 + $0x8] sm:$0xff]
    %v3543 = vld [vmem:[%s3540 + $0x10] sm:$0xff]
    %v3544 = vld [vmem:[%s3540 + $0x18] sm:$0xff]
    %v3545 = vld [vmem:[%s3540 + $0x20] sm:$0xff]
    %v3546 = vld [vmem:[%s3540 + $0x28] sm:$0xff]
    %v3547 = vld [vmem:[%s3540 + $0x30] sm:$0xff]
    %v3548 = vld [vmem:[%s3540 + $0x38] sm:$0xff]
    %s3549 = scalar_lea.vmem [#allocation22], 1
    %v3550 = vld [vmem:[%s3549] sm:$0x1]
    %s3551 = scalar_lea.vmem %s61, 1
    %v3552 = vld [vmem:[%s3551] sm:$0x1]
    %s3553 = scalar_lea.vmem %s63, 1
    %v3554 = vld [vmem:[%s3553] sm:$0x1]
    %s3555 = scalar_lea.vmem %s65, 64
    %v3556 = vld [vmem:[%s3555] sm:$0xff]
    %v3557 = vld [vmem:[%s3555 + $0x8] sm:$0xff]
    %v3558 = vld [vmem:[%s3555 + $0x10] sm:$0xff]
    %v3559 = vld [vmem:[%s3555 + $0x18] sm:$0xff]
    %v3560 = vld [vmem:[%s3555 + $0x20] sm:$0xff]
    %v3561 = vld [vmem:[%s3555 + $0x28] sm:$0xff]
    %v3562 = vld [vmem:[%s3555 + $0x30] sm:$0xff]
    %v3563 = vld [vmem:[%s3555 + $0x38] sm:$0xff]
    %s3564 = scalar_lea.vmem [#allocation23], 1
    %v3565 = vld [vmem:[%s3564] sm:$0x1]
    %s3566 = scalar_lea.vmem %s69, 64
    %v3567 = vld [vmem:[%s3566] sm:$0xff]
    %v3568 = vld [vmem:[%s3566 + $0x8] sm:$0xff]
    %v3569 = vld [vmem:[%s3566 + $0x10] sm:$0xff]
    %v3570 = vld [vmem:[%s3566 + $0x18] sm:$0xff]
    %v3571 = vld [vmem:[%s3566 + $0x20] sm:$0xff]
    %v3572 = vld [vmem:[%s3566 + $0x28] sm:$0xff]
    %v3573 = vld [vmem:[%s3566 + $0x30] sm:$0xff]
    %v3574 = vld [vmem:[%s3566 + $0x38] sm:$0xff]
    %s3575 = scalar_lea.vmem [#allocation25], 1
    %v3576 = vld [vmem:[%s3575] sm:$0x1]
    %s3577 = scalar_lea.vmem [#allocation26], 64
    %v3578 = vld [vmem:[%s3577] sm:$0xff]
    %v3579 = vld [vmem:[%s3577 + $0x8] sm:$0xff]
    %v3580 = vld [vmem:[%s3577 + $0x10] sm:$0xff]
    %v3581 = vld [vmem:[%s3577 + $0x18] sm:$0xff]
    %v3582 = vld [vmem:[%s3577 + $0x20] sm:$0xff]
    %v3583 = vld [vmem:[%s3577 + $0x28] sm:$0xff]
    %v3584 = vld [vmem:[%s3577 + $0x30] sm:$0xff]
    %v3585 = vld [vmem:[%s3577 + $0x38] sm:$0xff]
    %s3586 = scalar_lea.vmem [#allocation28], 1
    %v3587 = vld [vmem:[%s3586] sm:$0x1]
    %s3588 = scalar_lea.vmem %s77, 1
    %v3589 = vld [vmem:[%s3588] sm:$0x1]
    %s3590 = scalar_lea.vmem %s79, 1
    %v3591 = vld [vmem:[%s3590] sm:$0x1]
    %s3592 = scalar_lea.vmem %s81, 128
    %v3593 = vld [vmem:[%s3592] sm:$0xff]
    %v3594 = vld [vmem:[%s3592 + $0x8] sm:$0xff]
    %v3595 = vld [vmem:[%s3592 + $0x10] sm:$0xff]
    %v3596 = vld [vmem:[%s3592 + $0x18] sm:$0xff]
    %v3597 = vld [vmem:[%s3592 + $0x20] sm:$0xff]
    %v3598 = vld [vmem:[%s3592 + $0x28] sm:$0xff]
    %v3599 = vld [vmem:[%s3592 + $0x30] sm:$0xff]
    %v3600 = vld [vmem:[%s3592 + $0x38] sm:$0xff]
    %v3601 = vld [vmem:[%s3592 + $0x40] sm:$0xff]
    %v3602 = vld [vmem:[%s3592 + $0x48] sm:$0xff]
    %v3603 = vld [vmem:[%s3592 + $0x50] sm:$0xff]
    %v3604 = vld [vmem:[%s3592 + $0x58] sm:$0xff]
    %v3605 = vld [vmem:[%s3592 + $0x60] sm:$0xff]
    %v3606 = vld [vmem:[%s3592 + $0x68] sm:$0xff]
    %v3607 = vld [vmem:[%s3592 + $0x70] sm:$0xff]
    %v3608 = vld [vmem:[%s3592 + $0x78] sm:$0xff]
    %s3609 = scalar_lea.vmem %s83, 2
    %v3610 = vld [vmem:[%s3609] sm:$0x3]
    %s3611 = scalar_lea.vmem %s85, 256
    %v3612 = vld [vmem:[%s3611] sm:$0xff]
    %v3613 = vld [vmem:[%s3611 + $0x8] sm:$0xff]
    %v3614 = vld [vmem:[%s3611 + $0x10] sm:$0xff]
    %v3615 = vld [vmem:[%s3611 + $0x18] sm:$0xff]
    %v3616 = vld [vmem:[%s3611 + $0x20] sm:$0xff]
    %v3617 = vld [vmem:[%s3611 + $0x28] sm:$0xff]
    %v3618 = vld [vmem:[%s3611 + $0x30] sm:$0xff]
    %v3619 = vld [vmem:[%s3611 + $0x38] sm:$0xff]
    %v3620 = vld [vmem:[%s3611 + $0x40] sm:$0xff]
    %v3621 = vld [vmem:[%s3611 + $0x48] sm:$0xff]
    %v3622 = vld [vmem:[%s3611 + $0x50] sm:$0xff]
    %v3623 = vld [vmem:[%s3611 + $0x58] sm:$0xff]
    %v3624 = vld [vmem:[%s3611 + $0x60] sm:$0xff]
    %v3625 = vld [vmem:[%s3611 + $0x68] sm:$0xff]
    %v3626 = vld [vmem:[%s3611 + $0x70] sm:$0xff]
    %v3627 = vld [vmem:[%s3611 + $0x78] sm:$0xff]
    %v3628 = vld [vmem:[%s3611 + $0x80] sm:$0xff]
    %v3629 = vld [vmem:[%s3611 + $0x88] sm:$0xff]
    %v3630 = vld [vmem:[%s3611 + $0x90] sm:$0xff]
    %v3631 = vld [vmem:[%s3611 + $0x98] sm:$0xff]
    %v3632 = vld [vmem:[%s3611 + $0xa0] sm:$0xff]
    %v3633 = vld [vmem:[%s3611 + $0xa8] sm:$0xff]
    %v3634 = vld [vmem:[%s3611 + $0xb0] sm:$0xff]
    %v3635 = vld [vmem:[%s3611 + $0xb8] sm:$0xff]
    %v3636 = vld [vmem:[%s3611 + $0xc0] sm:$0xff]
    %v3637 = vld [vmem:[%s3611 + $0xc8] sm:$0xff]
    %v3638 = vld [vmem:[%s3611 + $0xd0] sm:$0xff]
    %v3639 = vld [vmem:[%s3611 + $0xd8] sm:$0xff]
    %v3640 = vld [vmem:[%s3611 + $0xe0] sm:$0xff]
    %v3641 = vld [vmem:[%s3611 + $0xe8] sm:$0xff]
    %v3642 = vld [vmem:[%s3611 + $0xf0] sm:$0xff]
    %v3643 = vld [vmem:[%s3611 + $0xf8] sm:$0xff]
    %s3644 = scalar_lea.vmem [#allocation29], 1
    %v3645 = vld [vmem:[%s3644] sm:$0x1]
    %v3646 = vsel %vm561, %v3512, 0.0
    %3647 = vadd.xlane.f32.xlu0 %v3646
    %v3648 = vpop.xlane.xlu0 %3647
    %v3649 = vsel %vm561, %v3513, 0.0
    %3650 = vadd.xlane.f32.xlu0 %v3649
    %v3651 = vpop.xlane.xlu0 %3650
    %v3652 = vsel %vm561, %v3514, 0.0
    %3653 = vadd.xlane.f32.xlu0 %v3652
    %v3654 = vpop.xlane.xlu0 %3653
    %v3655 = vsel %vm561, %v3515, 0.0
    %3656 = vadd.xlane.f32.xlu0 %v3655
    %v3657 = vpop.xlane.xlu0 %3656
    %v3658 = vsel %vm976, %v3516, 0.0
    %3659 = vadd.xlane.f32.xlu0 %v3658
    %v3660 = vpop.xlane.xlu0 %3659
    %v3661 = vmul.f32 %v3648, %v986
    %v3662 = vmul.f32 %v3651, %v986
    %v3663 = vmul.f32 %v3654, %v986
    %v3664 = vmul.f32 %v3657, %v986
    %v3665 = vmul.f32 %v3660, %v986
    %v3666 = vsub.f32 %v3512, %v3661
    %v3667 = vsub.f32 %v3513, %v3662
    %v3668 = vsub.f32 %v3514, %v3663
    %v3669 = vsub.f32 %v3515, %v3664
    %v3670 = vsub.f32 %v3516, %v3665
    %v3671 = vmul.f32 %v3666, %v3666
    %v3672 = vmul.f32 %v3667, %v3667
    %v3673 = vmul.f32 %v3668, %v3668
    %v3674 = vmul.f32 %v3669, %v3669
    %v3675 = vmul.f32 %v3670, %v3670
    %v3676 = vsel %vm561, %v3671, 0.0
    %3677 = vadd.xlane.f32.xlu0 %v3676
    %v3678 = vpop.xlane.xlu0 %3677
    %v3679 = vsel %vm561, %v3672, 0.0
    %3680 = vadd.xlane.f32.xlu0 %v3679
    %v3681 = vpop.xlane.xlu0 %3680
    %v3682 = vsel %vm561, %v3673, 0.0
    %3683 = vadd.xlane.f32.xlu0 %v3682
    %v3684 = vpop.xlane.xlu0 %3683
    %v3685 = vsel %vm561, %v3674, 0.0
    %3686 = vadd.xlane.f32.xlu0 %v3685
    %v3687 = vpop.xlane.xlu0 %3686
    %v3688 = vsel %vm976, %v3675, 0.0
    %3689 = vadd.xlane.f32.xlu0 %v3688
    %v3690 = vpop.xlane.xlu0 %3689
    %v3691 = vmul.f32 %v3678, %v986
    %v3692 = vmul.f32 %v3681, %v986
    %v3693 = vmul.f32 %v3684, %v986
    %v3694 = vmul.f32 %v3687, %v986
    %v3695 = vmul.f32 %v3690, %v986
    %v3696 = vadd.f32 %v3691, 1e-05
    %v3697 = vadd.f32 %v3692, 1e-05
    %v3698 = vadd.f32 %v3693, 1e-05
    %v3699 = vadd.f32 %v3694, 1e-05
    %v3700 = vadd.f32 %v3695, 1e-05
    %v3701 = vrsqrt.pop %v3696
    %v3702 = vmul.f32 %v3701, %v3696
    %v3703 = vmul.f32 %v3702, %v3701
    %v3704 = vmul.f32 0.5, %v3703
    %v3705 = vsub.f32 1.5, %v3704
    %v3706 = vmul.f32 %v3701, %v3705
    %vm3707 = vweird.f32 %v3696
    %vm3708 = vweird.f32 %v3701
    %vm3709 = vmor %vm3707, %vm3708
    %v3710 = vsel %vm3709, %v3701, %v3706
    %v3711 = vrsqrt.pop %v3697
    %v3712 = vmul.f32 %v3711, %v3697
    %v3713 = vmul.f32 %v3712, %v3711
    %v3714 = vmul.f32 0.5, %v3713
    %v3715 = vsub.f32 1.5, %v3714
    %v3716 = vmul.f32 %v3711, %v3715
    %vm3717 = vweird.f32 %v3697
    %vm3718 = vweird.f32 %v3711
    %vm3719 = vmor %vm3717, %vm3718
    %v3720 = vsel %vm3719, %v3711, %v3716
    %v3721 = vrsqrt.pop %v3698
    %v3722 = vmul.f32 %v3721, %v3698
    %v3723 = vmul.f32 %v3722, %v3721
    %v3724 = vmul.f32 0.5, %v3723
    %v3725 = vsub.f32 1.5, %v3724
    %v3726 = vmul.f32 %v3721, %v3725
    %vm3727 = vweird.f32 %v3698
    %vm3728 = vweird.f32 %v3721
    %vm3729 = vmor %vm3727, %vm3728
    %v3730 = vsel %vm3729, %v3721, %v3726
    %v3731 = vrsqrt.pop %v3699
    %v3732 = vmul.f32 %v3731, %v3699
    %v3733 = vmul.f32 %v3732, %v3731
    %v3734 = vmul.f32 0.5, %v3733
    %v3735 = vsub.f32 1.5, %v3734
    %v3736 = vmul.f32 %v3731, %v3735
    %vm3737 = vweird.f32 %v3699
    %vm3738 = vweird.f32 %v3731
    %vm3739 = vmor %vm3737, %vm3738
    %v3740 = vsel %vm3739, %v3731, %v3736
    %v3741 = vrsqrt.pop %v3700
    %v3742 = vmul.f32 %v3741, %v3700
    %v3743 = vmul.f32 %v3742, %v3741
    %v3744 = vmul.f32 0.5, %v3743
    %v3745 = vsub.f32 1.5, %v3744
    %v3746 = vmul.f32 %v3741, %v3745
    %vm3747 = vweird.f32 %v3700
    %vm3748 = vweird.f32 %v3741
    %vm3749 = vmor %vm3747, %vm3748
    %v3750 = vsel %vm3749, %v3741, %v3746
    %v3751 = vmul.f32 %v3666, %v3710
    %v3752 = vmul.f32 %v3667, %v3720
    %v3753 = vmul.f32 %v3668, %v3730
    %v3754 = vmul.f32 %v3669, %v3740
    %v3755 = vmul.f32 %v3670, %v3750
    %v3757 = vperm.slane %v3518, 0
    %v3759 = vmul.f32 %v3751, %v3757
    %v3760 = vmul.f32 %v3752, %v3757
    %v3761 = vmul.f32 %v3753, %v3757
    %v3762 = vmul.f32 %v3754, %v3757
    %v3763 = vmul.f32 %v3755, %v3757
    %v3765 = vperm.slane %v3520, 0
    %v3767 = vadd.f32 %v3759, %v3765
    %v3768 = vadd.f32 %v3760, %v3765
    %v3769 = vadd.f32 %v3761, %v3765
    %v3770 = vadd.f32 %v3762, %v3765
    %v3771 = vadd.f32 %v3763, %v3765
    %v3773 = vperm.slane %v3539, 0
    %v3774 = vperm.slane %v3539, 1
    %v3778 = vsel %vm561, %v3767, 0
    %v3781 = vsel %vm561, %v3768, 0
    %v3784 = vsel %vm561, %v3769, 0
    %v3787 = vsel %vm561, %v3770, 0
    %v3790 = vsel %vm561, %v3771, 0
    %3792 = vmatpush.msra.mxu0 0.0
    %3793 = vmatpush.msra.mxu0 0.0
    %3794 = vmatpush.msra.mxu0 0.0
    %3795 = vmatpush.msra.mxu0 0.0
    %3796 = vmatpush.msra.mxu0 0.0
    %3797 = vmatpush.msra.mxu0 0.0
    %3798 = vmatpush.msra.mxu0 0.0
    %3799 = vmatpush.msra.mxu0 0.0
    %3800 = vmatpush.msra.mxu0 %v3536
    %3801 = vmatpush.msra.mxu0 %v3534
    %3802 = vmatpush.msra.mxu0 %v3532
    %3803 = vmatpush.msra.mxu0 %v3530
    %3804 = vmatpush.msra.mxu0 %v3528
    %3805 = vmatpush.msra.mxu0 %v3526
    %3806 = vmatpush.msra.mxu0 %v3524
    %3807 = vmatpush.msra.mxu0 %v3522
    %3808 = vmatmul.f32.gmra.mxu0 %v3778
    %v3809 = vpop.f32.mrf.mxu0
    %v3810 = vadd.f32 %v3773, %v3809
    %3811 = vmatmul.f32.gmra.mxu0 %v3781
    %v3812 = vpop.f32.mrf.mxu0
    %v3813 = vadd.f32 %v3773, %v3812
    %3814 = vmatmul.f32.gmra.mxu0 %v3784
    %v3815 = vpop.f32.mrf.mxu0
    %v3816 = vadd.f32 %v3773, %v3815
    %3817 = vmatmul.f32.gmra.mxu0 %v3787
    %v3818 = vpop.f32.mrf.mxu0
    %v3819 = vadd.f32 %v3773, %v3818
    %3820 = vmatmul.f32.gmra.mxu0 %v3790
    %v3821 = vpop.f32.mrf.mxu0
    %v3822 = vadd.f32 %v3773, %v3821
    %3823 = vdwg.mxu0
    %3824 = vmatpush.msra.mxu0 0.0
    %3825 = vmatpush.msra.mxu0 0.0
    %3826 = vmatpush.msra.mxu0 0.0
    %3827 = vmatpush.msra.mxu0 0.0
    %3828 = vmatpush.msra.mxu0 0.0
    %3829 = vmatpush.msra.mxu0 0.0
    %3830 = vmatpush.msra.mxu0 0.0
    %3831 = vmatpush.msra.mxu0 0.0
    %3832 = vmatpush.msra.mxu0 %v3537
    %3833 = vmatpush.msra.mxu0 %v3535
    %3834 = vmatpush.msra.mxu0 %v3533
    %3835 = vmatpush.msra.mxu0 %v3531
    %3836 = vmatpush.msra.mxu0 %v3529
    %3837 = vmatpush.msra.mxu0 %v3527
    %3838 = vmatpush.msra.mxu0 %v3525
    %3839 = vmatpush.msra.mxu0 %v3523
    %3840 = vmatmul.f32.gmra.mxu0 %v3778
    %v3841 = vpop.f32.mrf.mxu0
    %v3842 = vadd.f32 %v3774, %v3841
    %3843 = vmatmul.f32.gmra.mxu0 %v3781
    %v3844 = vpop.f32.mrf.mxu0
    %v3845 = vadd.f32 %v3774, %v3844
    %3846 = vmatmul.f32.gmra.mxu0 %v3784
    %v3847 = vpop.f32.mrf.mxu0
    %v3848 = vadd.f32 %v3774, %v3847
    %3849 = vmatmul.f32.gmra.mxu0 %v3787
    %v3850 = vpop.f32.mrf.mxu0
    %v3851 = vadd.f32 %v3774, %v3850
    %3852 = vmatmul.f32.gmra.mxu0 %v3790
    %v3853 = vpop.f32.mrf.mxu0
    %v3854 = vadd.f32 %v3774, %v3853
    %3855 = vdwg.mxu0
    %3861 = vrot.lane.b32.xlu0 %v3810, 64
    %v3862 = vpop.permute.xlu0 %3861
    %3863 = vrot.lane.b32.xlu0 %v3813, 64
    %v3864 = vpop.permute.xlu0 %3863
    %3865 = vrot.lane.b32.xlu0 %v3816, 64
    %v3866 = vpop.permute.xlu0 %3865
    %3867 = vrot.lane.b32.xlu0 %v3819, 64
    %v3868 = vpop.permute.xlu0 %3867
    %3869 = vrot.lane.b32.xlu0 %v3822, 64
    %v3870 = vpop.permute.xlu0 %3869
    %v3871 = vsel %vm588, %v3810, 0
    %v3873 = vsel %vm588, %v3813, 0
    %v3875 = vsel %vm588, %v3816, 0
    %v3877 = vsel %vm588, %v3819, 0
    %v3879 = vsel %vm588, %v3822, 0
    %v3881 = vsel %vm588, %v3862, 0
    %v3883 = vsel %vm588, %v3864, 0
    %v3885 = vsel %vm588, %v3866, 0
    %v3887 = vsel %vm588, %v3868, 0
    %v3889 = vsel %vm588, %v3870, 0
    %3891 = vmatpush.xpose.msra.mxu0 0.0
    %3892 = vmatpush.xpose.msra.mxu0 0.0
    %3893 = vmatpush.xpose.msra.mxu0 0.0
    %3894 = vmatpush.xpose.msra.mxu0 0.0
    %3895 = vmatpush.xpose.msra.mxu0 0.0
    %3896 = vmatpush.xpose.msra.mxu0 0.0
    %3897 = vmatpush.xpose.msra.mxu0 0.0
    %3898 = vmatpush.xpose.msra.mxu0 0.0
    %3899 = vmatpush.xpose.msra.mxu0 0.0
    %3900 = vmatpush.xpose.msra.mxu0 0.0
    %3901 = vmatpush.xpose.msra.mxu0 0.0
    %3902 = vmatpush.xpose.msra.mxu0 %v3889
    %3903 = vmatpush.xpose.msra.mxu0 %v3887
    %3904 = vmatpush.xpose.msra.mxu0 %v3885
    %3905 = vmatpush.xpose.msra.mxu0 %v3883
    %3906 = vmatpush.xpose.msra.mxu0 %v3881
    %3907 = vmatmul.f32.gmra.mxu0 %v3871
    %v3908 = vpop.f32.mrf.mxu0
    %v3909 = vadd.f32 0.0, %v3908
    %3910 = vmatmul.f32.gmra.mxu0 %v3873
    %v3911 = vpop.f32.mrf.mxu0
    %v3912 = vadd.f32 0.0, %v3911
    %3913 = vmatmul.f32.gmra.mxu0 %v3875
    %v3914 = vpop.f32.mrf.mxu0
    %v3915 = vadd.f32 0.0, %v3914
    %3916 = vmatmul.f32.gmra.mxu0 %v3877
    %v3917 = vpop.f32.mrf.mxu0
    %v3918 = vadd.f32 0.0, %v3917
    %3919 = vmatmul.f32.gmra.mxu0 %v3879
    %v3920 = vpop.f32.mrf.mxu0
    %v3921 = vadd.f32 0.0, %v3920
    %3922 = vdwg.mxu0
    %v3923 = vmul.f32 %v3909, 0.25
    %v3924 = vmul.f32 %v3912, 0.25
    %v3925 = vmul.f32 %v3915, 0.25
    %v3926 = vmul.f32 %v3918, 0.25
    %v3927 = vmul.f32 %v3921, 0.25
    %v3928 = vadd.f32 %v3923, %v455
    %v3929 = vadd.f32 %v3924, %v456
    %v3930 = vadd.f32 %v3925, %v457
    %v3931 = vadd.f32 %v3926, %v458
    %v3932 = vadd.f32 %v3927, %v459
    %v3933 = vsel %vm1259, %v3928, -inf
    %3934 = vmax.xlane.f32.xlu0 %v3933
    %v3935 = vpop.xlane.xlu0 %3934
    %v3936 = vsel %vm1259, %v3929, -inf
    %3937 = vmax.xlane.f32.xlu0 %v3936
    %v3938 = vpop.xlane.xlu0 %3937
    %v3939 = vsel %vm1259, %v3930, -inf
    %3940 = vmax.xlane.f32.xlu0 %v3939
    %v3941 = vpop.xlane.xlu0 %3940
    %v3942 = vsel %vm1259, %v3931, -inf
    %3943 = vmax.xlane.f32.xlu0 %v3942
    %v3944 = vpop.xlane.xlu0 %3943
    %v3945 = vsel %vm1272, %v3932, -inf
    %3946 = vmax.xlane.f32.xlu0 %v3945
    %v3947 = vpop.xlane.xlu0 %3946
    %v3948 = vsub.f32 %v3928, %v3935
    %v3949 = vsub.f32 %v3929, %v3938
    %v3950 = vsub.f32 %v3930, %v3941
    %v3951 = vsub.f32 %v3931, %v3944
    %v3952 = vsub.f32 %v3932, %v3947
    %v3953 = vmul.f32 %v3948, 1.442695
    %v3954 = vpow.pop %v3953
    %v3955 = vmul.f32 %v3949, 1.442695
    %v3956 = vpow.pop %v3955
    %v3957 = vmul.f32 %v3950, 1.442695
    %v3958 = vpow.pop %v3957
    %v3959 = vmul.f32 %v3951, 1.442695
    %v3960 = vpow.pop %v3959
    %v3961 = vmul.f32 %v3952, 1.442695
    %v3962 = vpow.pop %v3961
    %v3963 = vsel %vm1259, %v3954, 0.0
    %3964 = vadd.xlane.f32.xlu0 %v3963
    %v3965 = vpop.xlane.xlu0 %3964
    %v3966 = vsel %vm1259, %v3956, 0.0
    %3967 = vadd.xlane.f32.xlu0 %v3966
    %v3968 = vpop.xlane.xlu0 %3967
    %v3969 = vsel %vm1259, %v3958, 0.0
    %3970 = vadd.xlane.f32.xlu0 %v3969
    %v3971 = vpop.xlane.xlu0 %3970
    %v3972 = vsel %vm1259, %v3960, 0.0
    %3973 = vadd.xlane.f32.xlu0 %v3972
    %v3974 = vpop.xlane.xlu0 %3973
    %v3975 = vsel %vm1272, %v3962, 0.0
    %3976 = vadd.xlane.f32.xlu0 %v3975
    %v3977 = vpop.xlane.xlu0 %3976
    %v3978 = vrcp.pop %v3965
    %v3979 = vrcp.pop %v3968
    %v3980 = vrcp.pop %v3971
    %v3981 = vrcp.pop %v3974
    %v3982 = vrcp.pop %v3977
    %v3983 = vmul.f32 %v3954, %v3978
    %v3984 = vmul.f32 %v3956, %v3979
    %v3985 = vmul.f32 %v3958, %v3980
    %v3986 = vmul.f32 %v3960, %v3981
    %v3987 = vmul.f32 %v3962, %v3982
    %v3989 = vsel %vm1259, %v3983, 0
    %v3992 = vsel %vm1259, %v3984, 0
    %v3995 = vsel %vm1259, %v3985, 0
    %v3998 = vsel %vm1259, %v3986, 0
    %v4001 = vsel %vm1259, %v3987, 0
    %v4004 = vsel %vm845, %v3854, 0
    %4006 = vmatpush.msra.mxu0 0.0
    %4007 = vmatpush.msra.mxu0 0.0
    %4008 = vmatpush.msra.mxu0 0.0
    %4009 = vmatpush.msra.mxu0 0.0
    %4010 = vmatpush.msra.mxu0 0.0
    %4011 = vmatpush.msra.mxu0 0.0
    %4012 = vmatpush.msra.mxu0 0.0
    %4013 = vmatpush.msra.mxu0 0.0
    %4014 = vmatpush.msra.mxu0 0.0
    %4015 = vmatpush.msra.mxu0 0.0
    %4016 = vmatpush.msra.mxu0 0.0
    %4017 = vmatpush.msra.mxu0 %v4004
    %4018 = vmatpush.msra.mxu0 %v3851
    %4019 = vmatpush.msra.mxu0 %v3848
    %4020 = vmatpush.msra.mxu0 %v3845
    %4021 = vmatpush.msra.mxu0 %v3842
    %4022 = vmatmul.f32.gmra.mxu0 %v3989
    %v4023 = vpop.f32.mrf.mxu0
    %v4024 = vadd.f32 0.0, %v4023
    %4025 = vmatmul.f32.gmra.mxu0 %v3992
    %v4026 = vpop.f32.mrf.mxu0
    %v4027 = vadd.f32 0.0, %v4026
    %4028 = vmatmul.f32.gmra.mxu0 %v3995
    %v4029 = vpop.f32.mrf.mxu0
    %v4030 = vadd.f32 0.0, %v4029
    %4031 = vmatmul.f32.gmra.mxu0 %v3998
    %v4032 = vpop.f32.mrf.mxu0
    %v4033 = vadd.f32 0.0, %v4032
    %4034 = vmatmul.f32.gmra.mxu0 %v4001
    %v4035 = vpop.f32.mrf.mxu0
    %v4036 = vadd.f32 0.0, %v4035
    %4037 = vdwg.mxu0
    %4038 = vrot.lane.b32.xlu0 %v3810, 112
    %v4039 = vpop.permute.xlu0 %4038
    %4040 = vrot.lane.b32.xlu0 %v3813, 112
    %v4041 = vpop.permute.xlu0 %4040
    %4042 = vrot.lane.b32.xlu0 %v3816, 112
    %v4043 = vpop.permute.xlu0 %4042
    %4044 = vrot.lane.b32.xlu0 %v3819, 112
    %v4045 = vpop.permute.xlu0 %4044
    %4046 = vrot.lane.b32.xlu0 %v3822, 112
    %v4047 = vpop.permute.xlu0 %4046
    %4048 = vrot.lane.b32.xlu0 %v3810, 48
    %v4049 = vpop.permute.xlu0 %4048
    %4050 = vrot.lane.b32.xlu0 %v3813, 48
    %v4051 = vpop.permute.xlu0 %4050
    %4052 = vrot.lane.b32.xlu0 %v3816, 48
    %v4053 = vpop.permute.xlu0 %4052
    %4054 = vrot.lane.b32.xlu0 %v3819, 48
    %v4055 = vpop.permute.xlu0 %4054
    %4056 = vrot.lane.b32.xlu0 %v3822, 48
    %v4057 = vpop.permute.xlu0 %4056
    %v4058 = vsel %vm588, %v4039, 0
    %v4060 = vsel %vm588, %v4041, 0
    %v4062 = vsel %vm588, %v4043, 0
    %v4064 = vsel %vm588, %v4045, 0
    %v4066 = vsel %vm588, %v4047, 0
    %v4068 = vsel %vm588, %v4049, 0
    %v4070 = vsel %vm588, %v4051, 0
    %v4072 = vsel %vm588, %v4053, 0
    %v4074 = vsel %vm588, %v4055, 0
    %v4076 = vsel %vm588, %v4057, 0
    %4078 = vmatpush.xpose.msra.mxu0 0.0
    %4079 = vmatpush.xpose.msra.mxu0 0.0
    %4080 = vmatpush.xpose.msra.mxu0 0.0
    %4081 = vmatpush.xpose.msra.mxu0 0.0
    %4082 = vmatpush.xpose.msra.mxu0 0.0
    %4083 = vmatpush.xpose.msra.mxu0 0.0
    %4084 = vmatpush.xpose.msra.mxu0 0.0
    %4085 = vmatpush.xpose.msra.mxu0 0.0
    %4086 = vmatpush.xpose.msra.mxu0 0.0
    %4087 = vmatpush.xpose.msra.mxu0 0.0
    %4088 = vmatpush.xpose.msra.mxu0 0.0
    %4089 = vmatpush.xpose.msra.mxu0 %v4076
    %4090 = vmatpush.xpose.msra.mxu0 %v4074
    %4091 = vmatpush.xpose.msra.mxu0 %v4072
    %4092 = vmatpush.xpose.msra.mxu0 %v4070
    %4093 = vmatpush.xpose.msra.mxu0 %v4068
    %4094 = vmatmul.f32.gmra.mxu0 %v4058
    %v4095 = vpop.f32.mrf.mxu0
    %v4096 = vadd.f32 0.0, %v4095
    %4097 = vmatmul.f32.gmra.mxu0 %v4060
    %v4098 = vpop.f32.mrf.mxu0
    %v4099 = vadd.f32 0.0, %v4098
    %4100 = vmatmul.f32.gmra.mxu0 %v4062
    %v4101 = vpop.f32.mrf.mxu0
    %v4102 = vadd.f32 0.0, %v4101
    %4103 = vmatmul.f32.gmra.mxu0 %v4064
    %v4104 = vpop.f32.mrf.mxu0
    %v4105 = vadd.f32 0.0, %v4104
    %4106 = vmatmul.f32.gmra.mxu0 %v4066
    %v4107 = vpop.f32.mrf.mxu0
    %v4108 = vadd.f32 0.0, %v4107
    %4109 = vdwg.mxu0
    %v4110 = vmul.f32 %v4096, 0.25
    %v4111 = vmul.f32 %v4099, 0.25
    %v4112 = vmul.f32 %v4102, 0.25
    %v4113 = vmul.f32 %v4105, 0.25
    %v4114 = vmul.f32 %v4108, 0.25
    %v4115 = vadd.f32 %v4110, %v455
    %v4116 = vadd.f32 %v4111, %v456
    %v4117 = vadd.f32 %v4112, %v457
    %v4118 = vadd.f32 %v4113, %v458
    %v4119 = vadd.f32 %v4114, %v459
    %v4120 = vsel %vm1259, %v4115, -inf
    %4121 = vmax.xlane.f32.xlu0 %v4120
    %v4122 = vpop.xlane.xlu0 %4121
    %v4123 = vsel %vm1259, %v4116, -inf
    %4124 = vmax.xlane.f32.xlu0 %v4123
    %v4125 = vpop.xlane.xlu0 %4124
    %v4126 = vsel %vm1259, %v4117, -inf
    %4127 = vmax.xlane.f32.xlu0 %v4126
    %v4128 = vpop.xlane.xlu0 %4127
    %v4129 = vsel %vm1259, %v4118, -inf
    %4130 = vmax.xlane.f32.xlu0 %v4129
    %v4131 = vpop.xlane.xlu0 %4130
    %v4132 = vsel %vm1272, %v4119, -inf
    %4133 = vmax.xlane.f32.xlu0 %v4132
    %v4134 = vpop.xlane.xlu0 %4133
    %v4135 = vsub.f32 %v4115, %v4122
    %v4136 = vsub.f32 %v4116, %v4125
    %v4137 = vsub.f32 %v4117, %v4128
    %v4138 = vsub.f32 %v4118, %v4131
    %v4139 = vsub.f32 %v4119, %v4134
    %v4140 = vmul.f32 %v4135, 1.442695
    %v4141 = vpow.pop %v4140
    %v4142 = vmul.f32 %v4136, 1.442695
    %v4143 = vpow.pop %v4142
    %v4144 = vmul.f32 %v4137, 1.442695
    %v4145 = vpow.pop %v4144
    %v4146 = vmul.f32 %v4138, 1.442695
    %v4147 = vpow.pop %v4146
    %v4148 = vmul.f32 %v4139, 1.442695
    %v4149 = vpow.pop %v4148
    %v4150 = vsel %vm1259, %v4141, 0.0
    %4151 = vadd.xlane.f32.xlu0 %v4150
    %v4152 = vpop.xlane.xlu0 %4151
    %v4153 = vsel %vm1259, %v4143, 0.0
    %4154 = vadd.xlane.f32.xlu0 %v4153
    %v4155 = vpop.xlane.xlu0 %4154
    %v4156 = vsel %vm1259, %v4145, 0.0
    %4157 = vadd.xlane.f32.xlu0 %v4156
    %v4158 = vpop.xlane.xlu0 %4157
    %v4159 = vsel %vm1259, %v4147, 0.0
    %4160 = vadd.xlane.f32.xlu0 %v4159
    %v4161 = vpop.xlane.xlu0 %4160
    %v4162 = vsel %vm1272, %v4149, 0.0
    %4163 = vadd.xlane.f32.xlu0 %v4162
    %v4164 = vpop.xlane.xlu0 %4163
    %v4165 = vrcp.pop %v4152
    %v4166 = vrcp.pop %v4155
    %v4167 = vrcp.pop %v4158
    %v4168 = vrcp.pop %v4161
    %v4169 = vrcp.pop %v4164
    %v4170 = vmul.f32 %v4141, %v4165
    %v4171 = vmul.f32 %v4143, %v4166
    %v4172 = vmul.f32 %v4145, %v4167
    %v4173 = vmul.f32 %v4147, %v4168
    %v4174 = vmul.f32 %v4149, %v4169
    %4179 = vrot.lane.b32.xlu0 %v3842, 112
    %v4180 = vpop.permute.xlu0 %4179
    %4181 = vrot.lane.b32.xlu0 %v3845, 112
    %v4182 = vpop.permute.xlu0 %4181
    %4183 = vrot.lane.b32.xlu0 %v3848, 112
    %v4184 = vpop.permute.xlu0 %4183
    %4185 = vrot.lane.b32.xlu0 %v3851, 112
    %v4186 = vpop.permute.xlu0 %4185
    %4187 = vrot.lane.b32.xlu0 %v3854, 112
    %v4188 = vpop.permute.xlu0 %4187
    %v4194 = vsel %vm1259, %v4170, 0
    %v4197 = vsel %vm1259, %v4171, 0
    %v4200 = vsel %vm1259, %v4172, 0
    %v4203 = vsel %vm1259, %v4173, 0
    %v4206 = vsel %vm1259, %v4174, 0
    %v4208 = vsel %vm845, %v4188, 0
    %4210 = vmatpush.msra.mxu0 0.0
    %4211 = vmatpush.msra.mxu0 0.0
    %4212 = vmatpush.msra.mxu0 0.0
    %4213 = vmatpush.msra.mxu0 0.0
    %4214 = vmatpush.msra.mxu0 0.0
    %4215 = vmatpush.msra.mxu0 0.0
    %4216 = vmatpush.msra.mxu0 0.0
    %4217 = vmatpush.msra.mxu0 0.0
    %4218 = vmatpush.msra.mxu0 0.0
    %4219 = vmatpush.msra.mxu0 0.0
    %4220 = vmatpush.msra.mxu0 0.0
    %4221 = vmatpush.msra.mxu0 %v4208
    %4222 = vmatpush.msra.mxu0 %v4186
    %4223 = vmatpush.msra.mxu0 %v4184
    %4224 = vmatpush.msra.mxu0 %v4182
    %4225 = vmatpush.msra.mxu0 %v4180
    %4226 = vmatmul.f32.gmra.mxu0 %v4194
    %v4227 = vpop.f32.mrf.mxu0
    %v4228 = vadd.f32 0.0, %v4227
    %4229 = vmatmul.f32.gmra.mxu0 %v4197
    %v4230 = vpop.f32.mrf.mxu0
    %v4231 = vadd.f32 0.0, %v4230
    %4232 = vmatmul.f32.gmra.mxu0 %v4200
    %v4233 = vpop.f32.mrf.mxu0
    %v4234 = vadd.f32 0.0, %v4233
    %4235 = vmatmul.f32.gmra.mxu0 %v4203
    %v4236 = vpop.f32.mrf.mxu0
    %v4237 = vadd.f32 0.0, %v4236
    %4238 = vmatmul.f32.gmra.mxu0 %v4206
    %v4239 = vpop.f32.mrf.mxu0
    %v4240 = vadd.f32 0.0, %v4239
    %4241 = vdwg.mxu0
    %4242 = vrot.lane.b32.xlu0 %v3810, 96
    %v4243 = vpop.permute.xlu0 %4242
    %4244 = vrot.lane.b32.xlu0 %v3813, 96
    %v4245 = vpop.permute.xlu0 %4244
    %4246 = vrot.lane.b32.xlu0 %v3816, 96
    %v4247 = vpop.permute.xlu0 %4246
    %4248 = vrot.lane.b32.xlu0 %v3819, 96
    %v4249 = vpop.permute.xlu0 %4248
    %4250 = vrot.lane.b32.xlu0 %v3822, 96
    %v4251 = vpop.permute.xlu0 %4250
    %4252 = vrot.lane.b32.xlu0 %v3810, 32
    %v4253 = vpop.permute.xlu0 %4252
    %4254 = vrot.lane.b32.xlu0 %v3813, 32
    %v4255 = vpop.permute.xlu0 %4254
    %4256 = vrot.lane.b32.xlu0 %v3816, 32
    %v4257 = vpop.permute.xlu0 %4256
    %4258 = vrot.lane.b32.xlu0 %v3819, 32
    %v4259 = vpop.permute.xlu0 %4258
    %4260 = vrot.lane.b32.xlu0 %v3822, 32
    %v4261 = vpop.permute.xlu0 %4260
    %v4262 = vsel %vm588, %v4243, 0
    %v4264 = vsel %vm588, %v4245, 0
    %v4266 = vsel %vm588, %v4247, 0
    %v4268 = vsel %vm588, %v4249, 0
    %v4270 = vsel %vm588, %v4251, 0
    %v4272 = vsel %vm588, %v4253, 0
    %v4274 = vsel %vm588, %v4255, 0
    %v4276 = vsel %vm588, %v4257, 0
    %v4278 = vsel %vm588, %v4259, 0
    %v4280 = vsel %vm588, %v4261, 0
    %4282 = vmatpush.xpose.msra.mxu0 0.0
    %4283 = vmatpush.xpose.msra.mxu0 0.0
    %4284 = vmatpush.xpose.msra.mxu0 0.0
    %4285 = vmatpush.xpose.msra.mxu0 0.0
    %4286 = vmatpush.xpose.msra.mxu0 0.0
    %4287 = vmatpush.xpose.msra.mxu0 0.0
    %4288 = vmatpush.xpose.msra.mxu0 0.0
    %4289 = vmatpush.xpose.msra.mxu0 0.0
    %4290 = vmatpush.xpose.msra.mxu0 0.0
    %4291 = vmatpush.xpose.msra.mxu0 0.0
    %4292 = vmatpush.xpose.msra.mxu0 0.0
    %4293 = vmatpush.xpose.msra.mxu0 %v4280
    %4294 = vmatpush.xpose.msra.mxu0 %v4278
    %4295 = vmatpush.xpose.msra.mxu0 %v4276
    %4296 = vmatpush.xpose.msra.mxu0 %v4274
    %4297 = vmatpush.xpose.msra.mxu0 %v4272
    %4298 = vmatmul.f32.gmra.mxu0 %v4262
    %v4299 = vpop.f32.mrf.mxu0
    %v4300 = vadd.f32 0.0, %v4299
    %4301 = vmatmul.f32.gmra.mxu0 %v4264
    %v4302 = vpop.f32.mrf.mxu0
    %v4303 = vadd.f32 0.0, %v4302
    %4304 = vmatmul.f32.gmra.mxu0 %v4266
    %v4305 = vpop.f32.mrf.mxu0
    %v4306 = vadd.f32 0.0, %v4305
    %4307 = vmatmul.f32.gmra.mxu0 %v4268
    %v4308 = vpop.f32.mrf.mxu0
    %v4309 = vadd.f32 0.0, %v4308
    %4310 = vmatmul.f32.gmra.mxu0 %v4270
    %v4311 = vpop.f32.mrf.mxu0
    %v4312 = vadd.f32 0.0, %v4311
    %4313 = vdwg.mxu0
    %v4314 = vmul.f32 %v4300, 0.25
    %v4315 = vmul.f32 %v4303, 0.25
    %v4316 = vmul.f32 %v4306, 0.25
    %v4317 = vmul.f32 %v4309, 0.25
    %v4318 = vmul.f32 %v4312, 0.25
    %v4319 = vadd.f32 %v4314, %v455
    %v4320 = vadd.f32 %v4315, %v456
    %v4321 = vadd.f32 %v4316, %v457
    %v4322 = vadd.f32 %v4317, %v458
    %v4323 = vadd.f32 %v4318, %v459
    %v4324 = vsel %vm1259, %v4319, -inf
    %4325 = vmax.xlane.f32.xlu0 %v4324
    %v4326 = vpop.xlane.xlu0 %4325
    %v4327 = vsel %vm1259, %v4320, -inf
    %4328 = vmax.xlane.f32.xlu0 %v4327
    %v4329 = vpop.xlane.xlu0 %4328
    %v4330 = vsel %vm1259, %v4321, -inf
    %4331 = vmax.xlane.f32.xlu0 %v4330
    %v4332 = vpop.xlane.xlu0 %4331
    %v4333 = vsel %vm1259, %v4322, -inf
    %4334 = vmax.xlane.f32.xlu0 %v4333
    %v4335 = vpop.xlane.xlu0 %4334
    %v4336 = vsel %vm1272, %v4323, -inf
    %4337 = vmax.xlane.f32.xlu0 %v4336
    %v4338 = vpop.xlane.xlu0 %4337
    %v4339 = vsub.f32 %v4319, %v4326
    %v4340 = vsub.f32 %v4320, %v4329
    %v4341 = vsub.f32 %v4321, %v4332
    %v4342 = vsub.f32 %v4322, %v4335
    %v4343 = vsub.f32 %v4323, %v4338
    %v4344 = vmul.f32 %v4339, 1.442695
    %v4345 = vpow.pop %v4344
    %v4346 = vmul.f32 %v4340, 1.442695
    %v4347 = vpow.pop %v4346
    %v4348 = vmul.f32 %v4341, 1.442695
    %v4349 = vpow.pop %v4348
    %v4350 = vmul.f32 %v4342, 1.442695
    %v4351 = vpow.pop %v4350
    %v4352 = vmul.f32 %v4343, 1.442695
    %v4353 = vpow.pop %v4352
    %v4354 = vsel %vm1259, %v4345, 0.0
    %4355 = vadd.xlane.f32.xlu0 %v4354
    %v4356 = vpop.xlane.xlu0 %4355
    %v4357 = vsel %vm1259, %v4347, 0.0
    %4358 = vadd.xlane.f32.xlu0 %v4357
    %v4359 = vpop.xlane.xlu0 %4358
    %v4360 = vsel %vm1259, %v4349, 0.0
    %4361 = vadd.xlane.f32.xlu0 %v4360
    %v4362 = vpop.xlane.xlu0 %4361
    %v4363 = vsel %vm1259, %v4351, 0.0
    %4364 = vadd.xlane.f32.xlu0 %v4363
    %v4365 = vpop.xlane.xlu0 %4364
    %v4366 = vsel %vm1272, %v4353, 0.0
    %4367 = vadd.xlane.f32.xlu0 %v4366
    %v4368 = vpop.xlane.xlu0 %4367
    %v4369 = vrcp.pop %v4356
    %v4370 = vrcp.pop %v4359
    %v4371 = vrcp.pop %v4362
    %v4372 = vrcp.pop %v4365
    %v4373 = vrcp.pop %v4368
    %v4374 = vmul.f32 %v4345, %v4369
    %v4375 = vmul.f32 %v4347, %v4370
    %v4376 = vmul.f32 %v4349, %v4371
    %v4377 = vmul.f32 %v4351, %v4372
    %v4378 = vmul.f32 %v4353, %v4373
    %4379 = vrot.lane.b32.xlu0 %v3842, 96
    %v4380 = vpop.permute.xlu0 %4379
    %4381 = vrot.lane.b32.xlu0 %v3845, 96
    %v4382 = vpop.permute.xlu0 %4381
    %4383 = vrot.lane.b32.xlu0 %v3848, 96
    %v4384 = vpop.permute.xlu0 %4383
    %4385 = vrot.lane.b32.xlu0 %v3851, 96
    %v4386 = vpop.permute.xlu0 %4385
    %4387 = vrot.lane.b32.xlu0 %v3854, 96
    %v4388 = vpop.permute.xlu0 %4387
    %v4394 = vsel %vm1259, %v4374, 0
    %v4397 = vsel %vm1259, %v4375, 0
    %v4400 = vsel %vm1259, %v4376, 0
    %v4403 = vsel %vm1259, %v4377, 0
    %v4406 = vsel %vm1259, %v4378, 0
    %v4408 = vsel %vm845, %v4388, 0
    %4410 = vmatpush.msra.mxu0 0.0
    %4411 = vmatpush.msra.mxu0 0.0
    %4412 = vmatpush.msra.mxu0 0.0
    %4413 = vmatpush.msra.mxu0 0.0
    %4414 = vmatpush.msra.mxu0 0.0
    %4415 = vmatpush.msra.mxu0 0.0
    %4416 = vmatpush.msra.mxu0 0.0
    %4417 = vmatpush.msra.mxu0 0.0
    %4418 = vmatpush.msra.mxu0 0.0
    %4419 = vmatpush.msra.mxu0 0.0
    %4420 = vmatpush.msra.mxu0 0.0
    %4421 = vmatpush.msra.mxu0 %v4408
    %4422 = vmatpush.msra.mxu0 %v4386
    %4423 = vmatpush.msra.mxu0 %v4384
    %4424 = vmatpush.msra.mxu0 %v4382
    %4425 = vmatpush.msra.mxu0 %v4380
    %4426 = vmatmul.f32.gmra.mxu0 %v4394
    %v4427 = vpop.f32.mrf.mxu0
    %v4428 = vadd.f32 0.0, %v4427
    %4429 = vmatmul.f32.gmra.mxu0 %v4397
    %v4430 = vpop.f32.mrf.mxu0
    %v4431 = vadd.f32 0.0, %v4430
    %4432 = vmatmul.f32.gmra.mxu0 %v4400
    %v4433 = vpop.f32.mrf.mxu0
    %v4434 = vadd.f32 0.0, %v4433
    %4435 = vmatmul.f32.gmra.mxu0 %v4403
    %v4436 = vpop.f32.mrf.mxu0
    %v4437 = vadd.f32 0.0, %v4436
    %4438 = vmatmul.f32.gmra.mxu0 %v4406
    %v4439 = vpop.f32.mrf.mxu0
    %v4440 = vadd.f32 0.0, %v4439
    %4441 = vdwg.mxu0
    %4442 = vrot.lane.b32.xlu0 %v3810, 80
    %v4443 = vpop.permute.xlu0 %4442
    %4444 = vrot.lane.b32.xlu0 %v3813, 80
    %v4445 = vpop.permute.xlu0 %4444
    %4446 = vrot.lane.b32.xlu0 %v3816, 80
    %v4447 = vpop.permute.xlu0 %4446
    %4448 = vrot.lane.b32.xlu0 %v3819, 80
    %v4449 = vpop.permute.xlu0 %4448
    %4450 = vrot.lane.b32.xlu0 %v3822, 80
    %v4451 = vpop.permute.xlu0 %4450
    %4452 = vrot.lane.b32.xlu0 %v3810, 16
    %v4453 = vpop.permute.xlu0 %4452
    %4454 = vrot.lane.b32.xlu0 %v3813, 16
    %v4455 = vpop.permute.xlu0 %4454
    %4456 = vrot.lane.b32.xlu0 %v3816, 16
    %v4457 = vpop.permute.xlu0 %4456
    %4458 = vrot.lane.b32.xlu0 %v3819, 16
    %v4459 = vpop.permute.xlu0 %4458
    %4460 = vrot.lane.b32.xlu0 %v3822, 16
    %v4461 = vpop.permute.xlu0 %4460
    %v4462 = vsel %vm588, %v4443, 0
    %v4464 = vsel %vm588, %v4445, 0
    %v4466 = vsel %vm588, %v4447, 0
    %v4468 = vsel %vm588, %v4449, 0
    %v4470 = vsel %vm588, %v4451, 0
    %v4472 = vsel %vm588, %v4453, 0
    %v4474 = vsel %vm588, %v4455, 0
    %v4476 = vsel %vm588, %v4457, 0
    %v4478 = vsel %vm588, %v4459, 0
    %v4480 = vsel %vm588, %v4461, 0
    %4482 = vmatpush.xpose.msra.mxu0 0.0
    %4483 = vmatpush.xpose.msra.mxu0 0.0
    %4484 = vmatpush.xpose.msra.mxu0 0.0
    %4485 = vmatpush.xpose.msra.mxu0 0.0
    %4486 = vmatpush.xpose.msra.mxu0 0.0
    %4487 = vmatpush.xpose.msra.mxu0 0.0
    %4488 = vmatpush.xpose.msra.mxu0 0.0
    %4489 = vmatpush.xpose.msra.mxu0 0.0
    %4490 = vmatpush.xpose.msra.mxu0 0.0
    %4491 = vmatpush.xpose.msra.mxu0 0.0
    %4492 = vmatpush.xpose.msra.mxu0 0.0
    %4493 = vmatpush.xpose.msra.mxu0 %v4480
    %4494 = vmatpush.xpose.msra.mxu0 %v4478
    %4495 = vmatpush.xpose.msra.mxu0 %v4476
    %4496 = vmatpush.xpose.msra.mxu0 %v4474
    %4497 = vmatpush.xpose.msra.mxu0 %v4472
    %4498 = vmatmul.f32.gmra.mxu0 %v4462
    %v4499 = vpop.f32.mrf.mxu0
    %v4500 = vadd.f32 0.0, %v4499
    %4501 = vmatmul.f32.gmra.mxu0 %v4464
    %v4502 = vpop.f32.mrf.mxu0
    %v4503 = vadd.f32 0.0, %v4502
    %4504 = vmatmul.f32.gmra.mxu0 %v4466
    %v4505 = vpop.f32.mrf.mxu0
    %v4506 = vadd.f32 0.0, %v4505
    %4507 = vmatmul.f32.gmra.mxu0 %v4468
    %v4508 = vpop.f32.mrf.mxu0
    %v4509 = vadd.f32 0.0, %v4508
    %4510 = vmatmul.f32.gmra.mxu0 %v4470
    %v4511 = vpop.f32.mrf.mxu0
    %v4512 = vadd.f32 0.0, %v4511
    %4513 = vdwg.mxu0
    %v4514 = vmul.f32 %v4500, 0.25
    %v4515 = vmul.f32 %v4503, 0.25
    %v4516 = vmul.f32 %v4506, 0.25
    %v4517 = vmul.f32 %v4509, 0.25
    %v4518 = vmul.f32 %v4512, 0.25
    %v4519 = vadd.f32 %v4514, %v455
    %v4520 = vadd.f32 %v4515, %v456
    %v4521 = vadd.f32 %v4516, %v457
    %v4522 = vadd.f32 %v4517, %v458
    %v4523 = vadd.f32 %v4518, %v459
    %v4524 = vsel %vm1259, %v4519, -inf
    %4525 = vmax.xlane.f32.xlu0 %v4524
    %v4526 = vpop.xlane.xlu0 %4525
    %v4527 = vsel %vm1259, %v4520, -inf
    %4528 = vmax.xlane.f32.xlu0 %v4527
    %v4529 = vpop.xlane.xlu0 %4528
    %v4530 = vsel %vm1259, %v4521, -inf
    %4531 = vmax.xlane.f32.xlu0 %v4530
    %v4532 = vpop.xlane.xlu0 %4531
    %v4533 = vsel %vm1259, %v4522, -inf
    %4534 = vmax.xlane.f32.xlu0 %v4533
    %v4535 = vpop.xlane.xlu0 %4534
    %v4536 = vsel %vm1272, %v4523, -inf
    %4537 = vmax.xlane.f32.xlu0 %v4536
    %v4538 = vpop.xlane.xlu0 %4537
    %v4539 = vsub.f32 %v4519, %v4526
    %v4540 = vsub.f32 %v4520, %v4529
    %v4541 = vsub.f32 %v4521, %v4532
    %v4542 = vsub.f32 %v4522, %v4535
    %v4543 = vsub.f32 %v4523, %v4538
    %v4544 = vmul.f32 %v4539, 1.442695
    %v4545 = vpow.pop %v4544
    %v4546 = vmul.f32 %v4540, 1.442695
    %v4547 = vpow.pop %v4546
    %v4548 = vmul.f32 %v4541, 1.442695
    %v4549 = vpow.pop %v4548
    %v4550 = vmul.f32 %v4542, 1.442695
    %v4551 = vpow.pop %v4550
    %v4552 = vmul.f32 %v4543, 1.442695
    %v4553 = vpow.pop %v4552
    %v4554 = vsel %vm1259, %v4545, 0.0
    %4555 = vadd.xlane.f32.xlu0 %v4554
    %v4556 = vpop.xlane.xlu0 %4555
    %v4557 = vsel %vm1259, %v4547, 0.0
    %4558 = vadd.xlane.f32.xlu0 %v4557
    %v4559 = vpop.xlane.xlu0 %4558
    %v4560 = vsel %vm1259, %v4549, 0.0
    %4561 = vadd.xlane.f32.xlu0 %v4560
    %v4562 = vpop.xlane.xlu0 %4561
    %v4563 = vsel %vm1259, %v4551, 0.0
    %4564 = vadd.xlane.f32.xlu0 %v4563
    %v4565 = vpop.xlane.xlu0 %4564
    %v4566 = vsel %vm1272, %v4553, 0.0
    %4567 = vadd.xlane.f32.xlu0 %v4566
    %v4568 = vpop.xlane.xlu0 %4567
    %v4569 = vrcp.pop %v4556
    %v4570 = vrcp.pop %v4559
    %v4571 = vrcp.pop %v4562
    %v4572 = vrcp.pop %v4565
    %v4573 = vrcp.pop %v4568
    %v4574 = vmul.f32 %v4545, %v4569
    %v4575 = vmul.f32 %v4547, %v4570
    %v4576 = vmul.f32 %v4549, %v4571
    %v4577 = vmul.f32 %v4551, %v4572
    %v4578 = vmul.f32 %v4553, %v4573
    %4579 = vrot.lane.b32.xlu0 %v3842, 80
    %v4580 = vpop.permute.xlu0 %4579
    %4581 = vrot.lane.b32.xlu0 %v3845, 80
    %v4582 = vpop.permute.xlu0 %4581
    %4583 = vrot.lane.b32.xlu0 %v3848, 80
    %v4584 = vpop.permute.xlu0 %4583
    %4585 = vrot.lane.b32.xlu0 %v3851, 80
    %v4586 = vpop.permute.xlu0 %4585
    %4587 = vrot.lane.b32.xlu0 %v3854, 80
    %v4588 = vpop.permute.xlu0 %4587
    %v4594 = vsel %vm1259, %v4574, 0
    %v4597 = vsel %vm1259, %v4575, 0
    %v4600 = vsel %vm1259, %v4576, 0
    %v4603 = vsel %vm1259, %v4577, 0
    %v4606 = vsel %vm1259, %v4578, 0
    %v4608 = vsel %vm845, %v4588, 0
    %4610 = vmatpush.msra.mxu0 0.0
    %4611 = vmatpush.msra.mxu0 0.0
    %4612 = vmatpush.msra.mxu0 0.0
    %4613 = vmatpush.msra.mxu0 0.0
    %4614 = vmatpush.msra.mxu0 0.0
    %4615 = vmatpush.msra.mxu0 0.0
    %4616 = vmatpush.msra.mxu0 0.0
    %4617 = vmatpush.msra.mxu0 0.0
    %4618 = vmatpush.msra.mxu0 0.0
    %4619 = vmatpush.msra.mxu0 0.0
    %4620 = vmatpush.msra.mxu0 0.0
    %4621 = vmatpush.msra.mxu0 %v4608
    %4622 = vmatpush.msra.mxu0 %v4586
    %4623 = vmatpush.msra.mxu0 %v4584
    %4624 = vmatpush.msra.mxu0 %v4582
    %4625 = vmatpush.msra.mxu0 %v4580
    %4626 = vmatmul.f32.gmra.mxu0 %v4594
    %v4627 = vpop.f32.mrf.mxu0
    %v4628 = vadd.f32 0.0, %v4627
    %4629 = vmatmul.f32.gmra.mxu0 %v4597
    %v4630 = vpop.f32.mrf.mxu0
    %v4631 = vadd.f32 0.0, %v4630
    %4632 = vmatmul.f32.gmra.mxu0 %v4600
    %v4633 = vpop.f32.mrf.mxu0
    %v4634 = vadd.f32 0.0, %v4633
    %4635 = vmatmul.f32.gmra.mxu0 %v4603
    %v4636 = vpop.f32.mrf.mxu0
    %v4637 = vadd.f32 0.0, %v4636
    %4638 = vmatmul.f32.gmra.mxu0 %v4606
    %v4639 = vpop.f32.mrf.mxu0
    %v4640 = vadd.f32 0.0, %v4639
    %4641 = vdwg.mxu0
    %4647 = vrot.lane.b32.xlu0 %v4228, 16
    %v4648 = vpop.permute.xlu0 %4647
    %4649 = vrot.lane.b32.xlu0 %v4231, 16
    %v4650 = vpop.permute.xlu0 %4649
    %4651 = vrot.lane.b32.xlu0 %v4234, 16
    %v4652 = vpop.permute.xlu0 %4651
    %4653 = vrot.lane.b32.xlu0 %v4237, 16
    %v4654 = vpop.permute.xlu0 %4653
    %4655 = vrot.lane.b32.xlu0 %v4240, 16
    %v4656 = vpop.permute.xlu0 %4655
    %4667 = vrot.lane.b32.xlu0 %v4428, 32
    %v4668 = vpop.permute.xlu0 %4667
    %4669 = vrot.lane.b32.xlu0 %v4431, 32
    %v4670 = vpop.permute.xlu0 %4669
    %4671 = vrot.lane.b32.xlu0 %v4434, 32
    %v4672 = vpop.permute.xlu0 %4671
    %4673 = vrot.lane.b32.xlu0 %v4437, 32
    %v4674 = vpop.permute.xlu0 %4673
    %4675 = vrot.lane.b32.xlu0 %v4440, 32
    %v4676 = vpop.permute.xlu0 %4675
    %4687 = vrot.lane.b32.xlu0 %v4628, 48
    %v4688 = vpop.permute.xlu0 %4687
    %4689 = vrot.lane.b32.xlu0 %v4631, 48
    %v4690 = vpop.permute.xlu0 %4689
    %4691 = vrot.lane.b32.xlu0 %v4634, 48
    %v4692 = vpop.permute.xlu0 %4691
    %4693 = vrot.lane.b32.xlu0 %v4637, 48
    %v4694 = vpop.permute.xlu0 %4693
    %4695 = vrot.lane.b32.xlu0 %v4640, 48
    %v4696 = vpop.permute.xlu0 %4695
    %v4702 = vsel %vm588, %v4024, %v4648
    %v4703 = vsel %vm588, %v4027, %v4650
    %v4704 = vsel %vm588, %v4030, %v4652
    %v4705 = vsel %vm588, %v4033, %v4654
    %v4706 = vsel %vm588, %v4036, %v4656
    %v4707 = vsel %vm514, %v4702, %v4668
    %v4708 = vsel %vm514, %v4703, %v4670
    %v4709 = vsel %vm514, %v4704, %v4672
    %v4710 = vsel %vm514, %v4705, %v4674
    %v4711 = vsel %vm514, %v4706, %v4676
    %v4712 = vsel %vm2040, %v4707, %v4688
    %v4713 = vsel %vm2040, %v4708, %v4690
    %v4714 = vsel %vm2040, %v4709, %v4692
    %v4715 = vsel %vm2040, %v4710, %v4694
    %v4716 = vsel %vm2040, %v4711, %v4696
    %v4718 = vperm.slane %v3550, 0
    %v4721 = vsel %vm561, %v4712, 0
    %v4724 = vsel %vm561, %v4713, 0
    %v4727 = vsel %vm561, %v4714, 0
    %v4730 = vsel %vm561, %v4715, 0
    %v4733 = vsel %vm561, %v4716, 0
    %4735 = vmatpush.msra.mxu0 0.0
    %4736 = vmatpush.msra.mxu0 0.0
    %4737 = vmatpush.msra.mxu0 0.0
    %4738 = vmatpush.msra.mxu0 0.0
    %4739 = vmatpush.msra.mxu0 0.0
    %4740 = vmatpush.msra.mxu0 0.0
    %4741 = vmatpush.msra.mxu0 0.0
    %4742 = vmatpush.msra.mxu0 0.0
    %4743 = vmatpush.msra.mxu0 %v3548
    %4744 = vmatpush.msra.mxu0 %v3547
    %4745 = vmatpush.msra.mxu0 %v3546
    %4746 = vmatpush.msra.mxu0 %v3545
    %4747 = vmatpush.msra.mxu0 %v3544
    %4748 = vmatpush.msra.mxu0 %v3543
    %4749 = vmatpush.msra.mxu0 %v3542
    %4750 = vmatpush.msra.mxu0 %v3541
    %4751 = vmatmul.f32.gmra.mxu0 %v4721
    %v4752 = vpop.f32.mrf.mxu0
    %v4753 = vadd.f32 %v4718, %v4752
    %4754 = vmatmul.f32.gmra.mxu0 %v4724
    %v4755 = vpop.f32.mrf.mxu0
    %v4756 = vadd.f32 %v4718, %v4755
    %4757 = vmatmul.f32.gmra.mxu0 %v4727
    %v4758 = vpop.f32.mrf.mxu0
    %v4759 = vadd.f32 %v4718, %v4758
    %4760 = vmatmul.f32.gmra.mxu0 %v4730
    %v4761 = vpop.f32.mrf.mxu0
    %v4762 = vadd.f32 %v4718, %v4761
    %4763 = vmatmul.f32.gmra.mxu0 %v4733
    %v4764 = vpop.f32.mrf.mxu0
    %v4765 = vadd.f32 %v4718, %v4764
    %4766 = vdwg.mxu0
    %v4767 = vadd.f32 %v3512, %v4753
    %v4768 = vadd.f32 %v3513, %v4756
    %v4769 = vadd.f32 %v3514, %v4759
    %v4770 = vadd.f32 %v3515, %v4762
    %v4771 = vadd.f32 %v3516, %v4765
    %v4772 = vsel %vm561, %v4767, 0.0
    %4773 = vadd.xlane.f32.xlu0 %v4772
    %v4774 = vpop.xlane.xlu0 %4773
    %v4775 = vsel %vm561, %v4768, 0.0
    %4776 = vadd.xlane.f32.xlu0 %v4775
    %v4777 = vpop.xlane.xlu0 %4776
    %v4778 = vsel %vm561, %v4769, 0.0
    %4779 = vadd.xlane.f32.xlu0 %v4778
    %v4780 = vpop.xlane.xlu0 %4779
    %v4781 = vsel %vm561, %v4770, 0.0
    %4782 = vadd.xlane.f32.xlu0 %v4781
    %v4783 = vpop.xlane.xlu0 %4782
    %v4784 = vsel %vm976, %v4771, 0.0
    %4785 = vadd.xlane.f32.xlu0 %v4784
    %v4786 = vpop.xlane.xlu0 %4785
    %v4787 = vmul.f32 %v4774, %v986
    %v4788 = vmul.f32 %v4777, %v986
    %v4789 = vmul.f32 %v4780, %v986
    %v4790 = vmul.f32 %v4783, %v986
    %v4791 = vmul.f32 %v4786, %v986
    %v4792 = vsub.f32 %v4767, %v4787
    %v4793 = vsub.f32 %v4768, %v4788
    %v4794 = vsub.f32 %v4769, %v4789
    %v4795 = vsub.f32 %v4770, %v4790
    %v4796 = vsub.f32 %v4771, %v4791
    %v4797 = vmul.f32 %v4792, %v4792
    %v4798 = vmul.f32 %v4793, %v4793
    %v4799 = vmul.f32 %v4794, %v4794
    %v4800 = vmul.f32 %v4795, %v4795
    %v4801 = vmul.f32 %v4796, %v4796
    %v4802 = vsel %vm561, %v4797, 0.0
    %4803 = vadd.xlane.f32.xlu0 %v4802
    %v4804 = vpop.xlane.xlu0 %4803
    %v4805 = vsel %vm561, %v4798, 0.0
    %4806 = vadd.xlane.f32.xlu0 %v4805
    %v4807 = vpop.xlane.xlu0 %4806
    %v4808 = vsel %vm561, %v4799, 0.0
    %4809 = vadd.xlane.f32.xlu0 %v4808
    %v4810 = vpop.xlane.xlu0 %4809
    %v4811 = vsel %vm561, %v4800, 0.0
    %4812 = vadd.xlane.f32.xlu0 %v4811
    %v4813 = vpop.xlane.xlu0 %4812
    %v4814 = vsel %vm976, %v4801, 0.0
    %4815 = vadd.xlane.f32.xlu0 %v4814
    %v4816 = vpop.xlane.xlu0 %4815
    %v4817 = vmul.f32 %v4804, %v986
    %v4818 = vmul.f32 %v4807, %v986
    %v4819 = vmul.f32 %v4810, %v986
    %v4820 = vmul.f32 %v4813, %v986
    %v4821 = vmul.f32 %v4816, %v986
    %v4822 = vadd.f32 %v4817, 1e-05
    %v4823 = vadd.f32 %v4818, 1e-05
    %v4824 = vadd.f32 %v4819, 1e-05
    %v4825 = vadd.f32 %v4820, 1e-05
    %v4826 = vadd.f32 %v4821, 1e-05
    %v4827 = vrsqrt.pop %v4822
    %v4828 = vmul.f32 %v4827, %v4822
    %v4829 = vmul.f32 %v4828, %v4827
    %v4830 = vmul.f32 0.5, %v4829
    %v4831 = vsub.f32 1.5, %v4830
    %v4832 = vmul.f32 %v4827, %v4831
    %vm4833 = vweird.f32 %v4822
    %vm4834 = vweird.f32 %v4827
    %vm4835 = vmor %vm4833, %vm4834
    %v4836 = vsel %vm4835, %v4827, %v4832
    %v4837 = vrsqrt.pop %v4823
    %v4838 = vmul.f32 %v4837, %v4823
    %v4839 = vmul.f32 %v4838, %v4837
    %v4840 = vmul.f32 0.5, %v4839
    %v4841 = vsub.f32 1.5, %v4840
    %v4842 = vmul.f32 %v4837, %v4841
    %vm4843 = vweird.f32 %v4823
    %vm4844 = vweird.f32 %v4837
    %vm4845 = vmor %vm4843, %vm4844
    %v4846 = vsel %vm4845, %v4837, %v4842
    %v4847 = vrsqrt.pop %v4824
    %v4848 = vmul.f32 %v4847, %v4824
    %v4849 = vmul.f32 %v4848, %v4847
    %v4850 = vmul.f32 0.5, %v4849
    %v4851 = vsub.f32 1.5, %v4850
    %v4852 = vmul.f32 %v4847, %v4851
    %vm4853 = vweird.f32 %v4824
    %vm4854 = vweird.f32 %v4847
    %vm4855 = vmor %vm4853, %vm4854
    %v4856 = vsel %vm4855, %v4847, %v4852
    %v4857 = vrsqrt.pop %v4825
    %v4858 = vmul.f32 %v4857, %v4825
    %v4859 = vmul.f32 %v4858, %v4857
    %v4860 = vmul.f32 0.5, %v4859
    %v4861 = vsub.f32 1.5, %v4860
    %v4862 = vmul.f32 %v4857, %v4861
    %vm4863 = vweird.f32 %v4825
    %vm4864 = vweird.f32 %v4857
    %vm4865 = vmor %vm4863, %vm4864
    %v4866 = vsel %vm4865, %v4857, %v4862
    %v4867 = vrsqrt.pop %v4826
    %v4868 = vmul.f32 %v4867, %v4826
    %v4869 = vmul.f32 %v4868, %v4867
    %v4870 = vmul.f32 0.5, %v4869
    %v4871 = vsub.f32 1.5, %v4870
    %v4872 = vmul.f32 %v4867, %v4871
    %vm4873 = vweird.f32 %v4826
    %vm4874 = vweird.f32 %v4867
    %vm4875 = vmor %vm4873, %vm4874
    %v4876 = vsel %vm4875, %v4867, %v4872
    %v4877 = vmul.f32 %v4792, %v4836
    %v4878 = vmul.f32 %v4793, %v4846
    %v4879 = vmul.f32 %v4794, %v4856
    %v4880 = vmul.f32 %v4795, %v4866
    %v4881 = vmul.f32 %v4796, %v4876
    %v4883 = vperm.slane %v3552, 0
    %v4885 = vmul.f32 %v4877, %v4883
    %v4886 = vmul.f32 %v4878, %v4883
    %v4887 = vmul.f32 %v4879, %v4883
    %v4888 = vmul.f32 %v4880, %v4883
    %v4889 = vmul.f32 %v4881, %v4883
    %v4891 = vperm.slane %v3554, 0
    %v4893 = vadd.f32 %v4885, %v4891
    %v4894 = vadd.f32 %v4886, %v4891
    %v4895 = vadd.f32 %v4887, %v4891
    %v4896 = vadd.f32 %v4888, %v4891
    %v4897 = vadd.f32 %v4889, %v4891
    %v4899 = vperm.slane %v3565, 0
    %v4902 = vsel %vm561, %v4893, 0
    %v4905 = vsel %vm561, %v4894, 0
    %v4908 = vsel %vm561, %v4895, 0
    %v4911 = vsel %vm561, %v4896, 0
    %v4914 = vsel %vm561, %v4897, 0
    %4916 = vmatpush.msra.mxu0 0.0
    %4917 = vmatpush.msra.mxu0 0.0
    %4918 = vmatpush.msra.mxu0 0.0
    %4919 = vmatpush.msra.mxu0 0.0
    %4920 = vmatpush.msra.mxu0 0.0
    %4921 = vmatpush.msra.mxu0 0.0
    %4922 = vmatpush.msra.mxu0 0.0
    %4923 = vmatpush.msra.mxu0 0.0
    %4924 = vmatpush.msra.mxu0 %v3563
    %4925 = vmatpush.msra.mxu0 %v3562
    %4926 = vmatpush.msra.mxu0 %v3561
    %4927 = vmatpush.msra.mxu0 %v3560
    %4928 = vmatpush.msra.mxu0 %v3559
    %4929 = vmatpush.msra.mxu0 %v3558
    %4930 = vmatpush.msra.mxu0 %v3557
    %4931 = vmatpush.msra.mxu0 %v3556
    %4932 = vmatmul.f32.gmra.mxu0 %v4902
    %v4933 = vpop.f32.mrf.mxu0
    %v4934 = vadd.f32 %v4899, %v4933
    %4935 = vmatmul.f32.gmra.mxu0 %v4905
    %v4936 = vpop.f32.mrf.mxu0
    %v4937 = vadd.f32 %v4899, %v4936
    %4938 = vmatmul.f32.gmra.mxu0 %v4908
    %v4939 = vpop.f32.mrf.mxu0
    %v4940 = vadd.f32 %v4899, %v4939
    %4941 = vmatmul.f32.gmra.mxu0 %v4911
    %v4942 = vpop.f32.mrf.mxu0
    %v4943 = vadd.f32 %v4899, %v4942
    %4944 = vmatmul.f32.gmra.mxu0 %v4914
    %v4945 = vpop.f32.mrf.mxu0
    %v4946 = vadd.f32 %v4899, %v4945
    %4947 = vdwg.mxu0
    %v4949 = vperm.slane %v3576, 0
    %4951 = vmatpush.msra.mxu0 0.0
    %4952 = vmatpush.msra.mxu0 0.0
    %4953 = vmatpush.msra.mxu0 0.0
    %4954 = vmatpush.msra.mxu0 0.0
    %4955 = vmatpush.msra.mxu0 0.0
    %4956 = vmatpush.msra.mxu0 0.0
    %4957 = vmatpush.msra.mxu0 0.0
    %4958 = vmatpush.msra.mxu0 0.0
    %4959 = vmatpush.msra.mxu0 %v3574
    %4960 = vmatpush.msra.mxu0 %v3573
    %4961 = vmatpush.msra.mxu0 %v3572
    %4962 = vmatpush.msra.mxu0 %v3571
    %4963 = vmatpush.msra.mxu0 %v3570
    %4964 = vmatpush.msra.mxu0 %v3569
    %4965 = vmatpush.msra.mxu0 %v3568
    %4966 = vmatpush.msra.mxu0 %v3567
    %4967 = vmatmul.f32.gmra.mxu0 %v2281
    %v4968 = vpop.f32.mrf.mxu0
    %v4969 = vadd.f32 %v4949, %v4968
    %4970 = vmatmul.f32.gmra.mxu0 %v2284
    %v4971 = vpop.f32.mrf.mxu0
    %v4972 = vadd.f32 %v4949, %v4971
    %4973 = vdwg.mxu0
    %v4975 = vsel %vm588, %v4934, 0
    %v4978 = vsel %vm588, %v4937, 0
    %v4981 = vsel %vm588, %v4940, 0
    %v4984 = vsel %vm588, %v4943, 0
    %v4987 = vsel %vm588, %v4946, 0
    %v4990 = vsel %vm588, %v4969, 0
    %v4993 = vsel %vm588, %v4972, 0
    %4995 = vmatpush.xpose.msra.mxu0 0.0
    %4996 = vmatpush.xpose.msra.mxu0 0.0
    %4997 = vmatpush.xpose.msra.mxu0 0.0
    %4998 = vmatpush.xpose.msra.mxu0 0.0
    %4999 = vmatpush.xpose.msra.mxu0 0.0
    %5000 = vmatpush.xpose.msra.mxu0 0.0
    %5001 = vmatpush.xpose.msra.mxu0 0.0
    %5002 = vmatpush.xpose.msra.mxu0 0.0
    %5003 = vmatpush.xpose.msra.mxu0 0.0
    %5004 = vmatpush.xpose.msra.mxu0 0.0
    %5005 = vmatpush.xpose.msra.mxu0 0.0
    %5006 = vmatpush.xpose.msra.mxu0 0.0
    %5007 = vmatpush.xpose.msra.mxu0 0.0
    %5008 = vmatpush.xpose.msra.mxu0 0.0
    %5009 = vmatpush.xpose.msra.mxu0 %v4993
    %5010 = vmatpush.xpose.msra.mxu0 %v4990
    %5011 = vmatmul.f32.gmra.mxu0 %v4975
    %v5012 = vpop.f32.mrf.mxu0
    %v5013 = vadd.f32 0.0, %v5012
    %5014 = vmatmul.f32.gmra.mxu0 %v4978
    %v5015 = vpop.f32.mrf.mxu0
    %v5016 = vadd.f32 0.0, %v5015
    %5017 = vmatmul.f32.gmra.mxu0 %v4981
    %v5018 = vpop.f32.mrf.mxu0
    %v5019 = vadd.f32 0.0, %v5018
    %5020 = vmatmul.f32.gmra.mxu0 %v4984
    %v5021 = vpop.f32.mrf.mxu0
    %v5022 = vadd.f32 0.0, %v5021
    %5023 = vmatmul.f32.gmra.mxu0 %v4987
    %v5024 = vpop.f32.mrf.mxu0
    %v5025 = vadd.f32 0.0, %v5024
    %5026 = vdwg.mxu0
    %v5027 = vmul.f32 %v5013, 0.25
    %v5028 = vmul.f32 %v5016, 0.25
    %v5029 = vmul.f32 %v5019, 0.25
    %v5030 = vmul.f32 %v5022, 0.25
    %v5031 = vmul.f32 %v5025, 0.25
    %v5032 = vadd.f32 %v5027, %v460
    %v5033 = vadd.f32 %v5028, %v461
    %v5034 = vadd.f32 %v5029, %v462
    %v5035 = vadd.f32 %v5030, %v463
    %v5036 = vadd.f32 %v5031, %v464
    %v5037 = vsel %vm588, %v5032, -inf
    %5038 = vmax.xlane.f32.xlu0 %v5037
    %v5039 = vpop.xlane.xlu0 %5038
    %v5040 = vsel %vm588, %v5033, -inf
    %5041 = vmax.xlane.f32.xlu0 %v5040
    %v5042 = vpop.xlane.xlu0 %5041
    %v5043 = vsel %vm588, %v5034, -inf
    %5044 = vmax.xlane.f32.xlu0 %v5043
    %v5045 = vpop.xlane.xlu0 %5044
    %v5046 = vsel %vm588, %v5035, -inf
    %5047 = vmax.xlane.f32.xlu0 %v5046
    %v5048 = vpop.xlane.xlu0 %5047
    %v5049 = vsel %vm2384, %v5036, -inf
    %5050 = vmax.xlane.f32.xlu0 %v5049
    %v5051 = vpop.xlane.xlu0 %5050
    %v5052 = vsub.f32 %v5032, %v5039
    %v5053 = vsub.f32 %v5033, %v5042
    %v5054 = vsub.f32 %v5034, %v5045
    %v5055 = vsub.f32 %v5035, %v5048
    %v5056 = vsub.f32 %v5036, %v5051
    %v5057 = vmul.f32 %v5052, 1.442695
    %v5058 = vpow.pop %v5057
    %v5059 = vmul.f32 %v5053, 1.442695
    %v5060 = vpow.pop %v5059
    %v5061 = vmul.f32 %v5054, 1.442695
    %v5062 = vpow.pop %v5061
    %v5063 = vmul.f32 %v5055, 1.442695
    %v5064 = vpow.pop %v5063
    %v5065 = vmul.f32 %v5056, 1.442695
    %v5066 = vpow.pop %v5065
    %v5067 = vsel %vm588, %v5058, 0.0
    %5068 = vadd.xlane.f32.xlu0 %v5067
    %v5069 = vpop.xlane.xlu0 %5068
    %v5070 = vsel %vm588, %v5060, 0.0
    %5071 = vadd.xlane.f32.xlu0 %v5070
    %v5072 = vpop.xlane.xlu0 %5071
    %v5073 = vsel %vm588, %v5062, 0.0
    %5074 = vadd.xlane.f32.xlu0 %v5073
    %v5075 = vpop.xlane.xlu0 %5074
    %v5076 = vsel %vm588, %v5064, 0.0
    %5077 = vadd.xlane.f32.xlu0 %v5076
    %v5078 = vpop.xlane.xlu0 %5077
    %v5079 = vsel %vm2384, %v5066, 0.0
    %5080 = vadd.xlane.f32.xlu0 %v5079
    %v5081 = vpop.xlane.xlu0 %5080
    %v5082 = vrcp.pop %v5069
    %v5083 = vrcp.pop %v5072
    %v5084 = vrcp.pop %v5075
    %v5085 = vrcp.pop %v5078
    %v5086 = vrcp.pop %v5081
    %v5087 = vmul.f32 %v5058, %v5082
    %v5088 = vmul.f32 %v5060, %v5083
    %v5089 = vmul.f32 %v5062, %v5084
    %v5090 = vmul.f32 %v5064, %v5085
    %v5091 = vmul.f32 %v5066, %v5086
    %5092 = vrot.lane.b32.xlu0 %v4969, 64
    %v5093 = vpop.permute.xlu0 %5092
    %5094 = vrot.lane.b32.xlu0 %v4972, 64
    %v5095 = vpop.permute.xlu0 %5094
    %v5099 = vsel %vm588, %v5087, 0
    %v5102 = vsel %vm588, %v5088, 0
    %v5105 = vsel %vm588, %v5089, 0
    %v5108 = vsel %vm588, %v5090, 0
    %v5111 = vsel %vm588, %v5091, 0
    %5113 = vmatpush.msra.mxu0 0.0
    %5114 = vmatpush.msra.mxu0 0.0
    %5115 = vmatpush.msra.mxu0 0.0
    %5116 = vmatpush.msra.mxu0 0.0
    %5117 = vmatpush.msra.mxu0 0.0
    %5118 = vmatpush.msra.mxu0 0.0
    %5119 = vmatpush.msra.mxu0 0.0
    %5120 = vmatpush.msra.mxu0 0.0
    %5121 = vmatpush.msra.mxu0 0.0
    %5122 = vmatpush.msra.mxu0 0.0
    %5123 = vmatpush.msra.mxu0 0.0
    %5124 = vmatpush.msra.mxu0 0.0
    %5125 = vmatpush.msra.mxu0 0.0
    %5126 = vmatpush.msra.mxu0 0.0
    %5127 = vmatpush.msra.mxu0 %v5095
    %5128 = vmatpush.msra.mxu0 %v5093
    %5129 = vmatmul.f32.gmra.mxu0 %v5099
    %v5130 = vpop.f32.mrf.mxu0
    %v5131 = vadd.f32 0.0, %v5130
    %5132 = vmatmul.f32.gmra.mxu0 %v5102
    %v5133 = vpop.f32.mrf.mxu0
    %v5134 = vadd.f32 0.0, %v5133
    %5135 = vmatmul.f32.gmra.mxu0 %v5105
    %v5136 = vpop.f32.mrf.mxu0
    %v5137 = vadd.f32 0.0, %v5136
    %5138 = vmatmul.f32.gmra.mxu0 %v5108
    %v5139 = vpop.f32.mrf.mxu0
    %v5140 = vadd.f32 0.0, %v5139
    %5141 = vmatmul.f32.gmra.mxu0 %v5111
    %v5142 = vpop.f32.mrf.mxu0
    %v5143 = vadd.f32 0.0, %v5142
    %5144 = vdwg.mxu0
    %5145 = vrot.lane.b32.xlu0 %v4934, 112
    %v5146 = vpop.permute.xlu0 %5145
    %5147 = vrot.lane.b32.xlu0 %v4937, 112
    %v5148 = vpop.permute.xlu0 %5147
    %5149 = vrot.lane.b32.xlu0 %v4940, 112
    %v5150 = vpop.permute.xlu0 %5149
    %5151 = vrot.lane.b32.xlu0 %v4943, 112
    %v5152 = vpop.permute.xlu0 %5151
    %5153 = vrot.lane.b32.xlu0 %v4946, 112
    %v5154 = vpop.permute.xlu0 %5153
    %5155 = vrot.lane.b32.xlu0 %v4969, 112
    %v5156 = vpop.permute.xlu0 %5155
    %5157 = vrot.lane.b32.xlu0 %v4972, 112
    %v5158 = vpop.permute.xlu0 %5157
    %v5159 = vsel %vm588, %v5146, 0
    %v5161 = vsel %vm588, %v5148, 0
    %v5163 = vsel %vm588, %v5150, 0
    %v5165 = vsel %vm588, %v5152, 0
    %v5167 = vsel %vm588, %v5154, 0
    %v5169 = vsel %vm588, %v5156, 0
    %v5171 = vsel %vm588, %v5158, 0
    %5173 = vmatpush.xpose.msra.mxu0 0.0
    %5174 = vmatpush.xpose.msra.mxu0 0.0
    %5175 = vmatpush.xpose.msra.mxu0 0.0
    %5176 = vmatpush.xpose.msra.mxu0 0.0
    %5177 = vmatpush.xpose.msra.mxu0 0.0
    %5178 = vmatpush.xpose.msra.mxu0 0.0
    %5179 = vmatpush.xpose.msra.mxu0 0.0
    %5180 = vmatpush.xpose.msra.mxu0 0.0
    %5181 = vmatpush.xpose.msra.mxu0 0.0
    %5182 = vmatpush.xpose.msra.mxu0 0.0
    %5183 = vmatpush.xpose.msra.mxu0 0.0
    %5184 = vmatpush.xpose.msra.mxu0 0.0
    %5185 = vmatpush.xpose.msra.mxu0 0.0
    %5186 = vmatpush.xpose.msra.mxu0 0.0
    %5187 = vmatpush.xpose.msra.mxu0 %v5171
    %5188 = vmatpush.xpose.msra.mxu0 %v5169
    %5189 = vmatmul.f32.gmra.mxu0 %v5159
    %v5190 = vpop.f32.mrf.mxu0
    %v5191 = vadd.f32 0.0, %v5190
    %5192 = vmatmul.f32.gmra.mxu0 %v5161
    %v5193 = vpop.f32.mrf.mxu0
    %v5194 = vadd.f32 0.0, %v5193
    %5195 = vmatmul.f32.gmra.mxu0 %v5163
    %v5196 = vpop.f32.mrf.mxu0
    %v5197 = vadd.f32 0.0, %v5196
    %5198 = vmatmul.f32.gmra.mxu0 %v5165
    %v5199 = vpop.f32.mrf.mxu0
    %v5200 = vadd.f32 0.0, %v5199
    %5201 = vmatmul.f32.gmra.mxu0 %v5167
    %v5202 = vpop.f32.mrf.mxu0
    %v5203 = vadd.f32 0.0, %v5202
    %5204 = vdwg.mxu0
    %v5205 = vmul.f32 %v5191, 0.25
    %v5206 = vmul.f32 %v5194, 0.25
    %v5207 = vmul.f32 %v5197, 0.25
    %v5208 = vmul.f32 %v5200, 0.25
    %v5209 = vmul.f32 %v5203, 0.25
    %v5210 = vadd.f32 %v5205, %v460
    %v5211 = vadd.f32 %v5206, %v461
    %v5212 = vadd.f32 %v5207, %v462
    %v5213 = vadd.f32 %v5208, %v463
    %v5214 = vadd.f32 %v5209, %v464
    %v5215 = vsel %vm588, %v5210, -inf
    %5216 = vmax.xlane.f32.xlu0 %v5215
    %v5217 = vpop.xlane.xlu0 %5216
    %v5218 = vsel %vm588, %v5211, -inf
    %5219 = vmax.xlane.f32.xlu0 %v5218
    %v5220 = vpop.xlane.xlu0 %5219
    %v5221 = vsel %vm588, %v5212, -inf
    %5222 = vmax.xlane.f32.xlu0 %v5221
    %v5223 = vpop.xlane.xlu0 %5222
    %v5224 = vsel %vm588, %v5213, -inf
    %5225 = vmax.xlane.f32.xlu0 %v5224
    %v5226 = vpop.xlane.xlu0 %5225
    %v5227 = vsel %vm2384, %v5214, -inf
    %5228 = vmax.xlane.f32.xlu0 %v5227
    %v5229 = vpop.xlane.xlu0 %5228
    %v5230 = vsub.f32 %v5210, %v5217
    %v5231 = vsub.f32 %v5211, %v5220
    %v5232 = vsub.f32 %v5212, %v5223
    %v5233 = vsub.f32 %v5213, %v5226
    %v5234 = vsub.f32 %v5214, %v5229
    %v5235 = vmul.f32 %v5230, 1.442695
    %v5236 = vpow.pop %v5235
    %v5237 = vmul.f32 %v5231, 1.442695
    %v5238 = vpow.pop %v5237
    %v5239 = vmul.f32 %v5232, 1.442695
    %v5240 = vpow.pop %v5239
    %v5241 = vmul.f32 %v5233, 1.442695
    %v5242 = vpow.pop %v5241
    %v5243 = vmul.f32 %v5234, 1.442695
    %v5244 = vpow.pop %v5243
    %v5245 = vsel %vm588, %v5236, 0.0
    %5246 = vadd.xlane.f32.xlu0 %v5245
    %v5247 = vpop.xlane.xlu0 %5246
    %v5248 = vsel %vm588, %v5238, 0.0
    %5249 = vadd.xlane.f32.xlu0 %v5248
    %v5250 = vpop.xlane.xlu0 %5249
    %v5251 = vsel %vm588, %v5240, 0.0
    %5252 = vadd.xlane.f32.xlu0 %v5251
    %v5253 = vpop.xlane.xlu0 %5252
    %v5254 = vsel %vm588, %v5242, 0.0
    %5255 = vadd.xlane.f32.xlu0 %v5254
    %v5256 = vpop.xlane.xlu0 %5255
    %v5257 = vsel %vm2384, %v5244, 0.0
    %5258 = vadd.xlane.f32.xlu0 %v5257
    %v5259 = vpop.xlane.xlu0 %5258
    %v5260 = vrcp.pop %v5247
    %v5261 = vrcp.pop %v5250
    %v5262 = vrcp.pop %v5253
    %v5263 = vrcp.pop %v5256
    %v5264 = vrcp.pop %v5259
    %v5265 = vmul.f32 %v5236, %v5260
    %v5266 = vmul.f32 %v5238, %v5261
    %v5267 = vmul.f32 %v5240, %v5262
    %v5268 = vmul.f32 %v5242, %v5263
    %v5269 = vmul.f32 %v5244, %v5264
    %5270 = vrot.lane.b32.xlu0 %v4969, 48
    %v5271 = vpop.permute.xlu0 %5270
    %5272 = vrot.lane.b32.xlu0 %v4972, 48
    %v5273 = vpop.permute.xlu0 %5272
    %v5277 = vsel %vm588, %v5265, 0
    %v5280 = vsel %vm588, %v5266, 0
    %v5283 = vsel %vm588, %v5267, 0
    %v5286 = vsel %vm588, %v5268, 0
    %v5289 = vsel %vm588, %v5269, 0
    %5291 = vmatpush.msra.mxu0 0.0
    %5292 = vmatpush.msra.mxu0 0.0
    %5293 = vmatpush.msra.mxu0 0.0
    %5294 = vmatpush.msra.mxu0 0.0
    %5295 = vmatpush.msra.mxu0 0.0
    %5296 = vmatpush.msra.mxu0 0.0
    %5297 = vmatpush.msra.mxu0 0.0
    %5298 = vmatpush.msra.mxu0 0.0
    %5299 = vmatpush.msra.mxu0 0.0
    %5300 = vmatpush.msra.mxu0 0.0
    %5301 = vmatpush.msra.mxu0 0.0
    %5302 = vmatpush.msra.mxu0 0.0
    %5303 = vmatpush.msra.mxu0 0.0
    %5304 = vmatpush.msra.mxu0 0.0
    %5305 = vmatpush.msra.mxu0 %v5273
    %5306 = vmatpush.msra.mxu0 %v5271
    %5307 = vmatmul.f32.gmra.mxu0 %v5277
    %v5308 = vpop.f32.mrf.mxu0
    %v5309 = vadd.f32 0.0, %v5308
    %5310 = vmatmul.f32.gmra.mxu0 %v5280
    %v5311 = vpop.f32.mrf.mxu0
    %v5312 = vadd.f32 0.0, %v5311
    %5313 = vmatmul.f32.gmra.mxu0 %v5283
    %v5314 = vpop.f32.mrf.mxu0
    %v5315 = vadd.f32 0.0, %v5314
    %5316 = vmatmul.f32.gmra.mxu0 %v5286
    %v5317 = vpop.f32.mrf.mxu0
    %v5318 = vadd.f32 0.0, %v5317
    %5319 = vmatmul.f32.gmra.mxu0 %v5289
    %v5320 = vpop.f32.mrf.mxu0
    %v5321 = vadd.f32 0.0, %v5320
    %5322 = vdwg.mxu0
    %5323 = vrot.lane.b32.xlu0 %v4934, 96
    %v5324 = vpop.permute.xlu0 %5323
    %5325 = vrot.lane.b32.xlu0 %v4937, 96
    %v5326 = vpop.permute.xlu0 %5325
    %5327 = vrot.lane.b32.xlu0 %v4940, 96
    %v5328 = vpop.permute.xlu0 %5327
    %5329 = vrot.lane.b32.xlu0 %v4943, 96
    %v5330 = vpop.permute.xlu0 %5329
    %5331 = vrot.lane.b32.xlu0 %v4946, 96
    %v5332 = vpop.permute.xlu0 %5331
    %5333 = vrot.lane.b32.xlu0 %v4969, 96
    %v5334 = vpop.permute.xlu0 %5333
    %5335 = vrot.lane.b32.xlu0 %v4972, 96
    %v5336 = vpop.permute.xlu0 %5335
    %v5337 = vsel %vm588, %v5324, 0
    %v5339 = vsel %vm588, %v5326, 0
    %v5341 = vsel %vm588, %v5328, 0
    %v5343 = vsel %vm588, %v5330, 0
    %v5345 = vsel %vm588, %v5332, 0
    %v5347 = vsel %vm588, %v5334, 0
    %v5349 = vsel %vm588, %v5336, 0
    %5351 = vmatpush.xpose.msra.mxu0 0.0
    %5352 = vmatpush.xpose.msra.mxu0 0.0
    %5353 = vmatpush.xpose.msra.mxu0 0.0
    %5354 = vmatpush.xpose.msra.mxu0 0.0
    %5355 = vmatpush.xpose.msra.mxu0 0.0
    %5356 = vmatpush.xpose.msra.mxu0 0.0
    %5357 = vmatpush.xpose.msra.mxu0 0.0
    %5358 = vmatpush.xpose.msra.mxu0 0.0
    %5359 = vmatpush.xpose.msra.mxu0 0.0
    %5360 = vmatpush.xpose.msra.mxu0 0.0
    %5361 = vmatpush.xpose.msra.mxu0 0.0
    %5362 = vmatpush.xpose.msra.mxu0 0.0
    %5363 = vmatpush.xpose.msra.mxu0 0.0
    %5364 = vmatpush.xpose.msra.mxu0 0.0
    %5365 = vmatpush.xpose.msra.mxu0 %v5349
    %5366 = vmatpush.xpose.msra.mxu0 %v5347
    %5367 = vmatmul.f32.gmra.mxu0 %v5337
    %v5368 = vpop.f32.mrf.mxu0
    %v5369 = vadd.f32 0.0, %v5368
    %5370 = vmatmul.f32.gmra.mxu0 %v5339
    %v5371 = vpop.f32.mrf.mxu0
    %v5372 = vadd.f32 0.0, %v5371
    %5373 = vmatmul.f32.gmra.mxu0 %v5341
    %v5374 = vpop.f32.mrf.mxu0
    %v5375 = vadd.f32 0.0, %v5374
    %5376 = vmatmul.f32.gmra.mxu0 %v5343
    %v5377 = vpop.f32.mrf.mxu0
    %v5378 = vadd.f32 0.0, %v5377
    %5379 = vmatmul.f32.gmra.mxu0 %v5345
    %v5380 = vpop.f32.mrf.mxu0
    %v5381 = vadd.f32 0.0, %v5380
    %5382 = vdwg.mxu0
    %v5383 = vmul.f32 %v5369, 0.25
    %v5384 = vmul.f32 %v5372, 0.25
    %v5385 = vmul.f32 %v5375, 0.25
    %v5386 = vmul.f32 %v5378, 0.25
    %v5387 = vmul.f32 %v5381, 0.25
    %v5388 = vadd.f32 %v5383, %v460
    %v5389 = vadd.f32 %v5384, %v461
    %v5390 = vadd.f32 %v5385, %v462
    %v5391 = vadd.f32 %v5386, %v463
    %v5392 = vadd.f32 %v5387, %v464
    %v5393 = vsel %vm588, %v5388, -inf
    %5394 = vmax.xlane.f32.xlu0 %v5393
    %v5395 = vpop.xlane.xlu0 %5394
    %v5396 = vsel %vm588, %v5389, -inf
    %5397 = vmax.xlane.f32.xlu0 %v5396
    %v5398 = vpop.xlane.xlu0 %5397
    %v5399 = vsel %vm588, %v5390, -inf
    %5400 = vmax.xlane.f32.xlu0 %v5399
    %v5401 = vpop.xlane.xlu0 %5400
    %v5402 = vsel %vm588, %v5391, -inf
    %5403 = vmax.xlane.f32.xlu0 %v5402
    %v5404 = vpop.xlane.xlu0 %5403
    %v5405 = vsel %vm2384, %v5392, -inf
    %5406 = vmax.xlane.f32.xlu0 %v5405
    %v5407 = vpop.xlane.xlu0 %5406
    %v5408 = vsub.f32 %v5388, %v5395
    %v5409 = vsub.f32 %v5389, %v5398
    %v5410 = vsub.f32 %v5390, %v5401
    %v5411 = vsub.f32 %v5391, %v5404
    %v5412 = vsub.f32 %v5392, %v5407
    %v5413 = vmul.f32 %v5408, 1.442695
    %v5414 = vpow.pop %v5413
    %v5415 = vmul.f32 %v5409, 1.442695
    %v5416 = vpow.pop %v5415
    %v5417 = vmul.f32 %v5410, 1.442695
    %v5418 = vpow.pop %v5417
    %v5419 = vmul.f32 %v5411, 1.442695
    %v5420 = vpow.pop %v5419
    %v5421 = vmul.f32 %v5412, 1.442695
    %v5422 = vpow.pop %v5421
    %v5423 = vsel %vm588, %v5414, 0.0
    %5424 = vadd.xlane.f32.xlu0 %v5423
    %v5425 = vpop.xlane.xlu0 %5424
    %v5426 = vsel %vm588, %v5416, 0.0
    %5427 = vadd.xlane.f32.xlu0 %v5426
    %v5428 = vpop.xlane.xlu0 %5427
    %v5429 = vsel %vm588, %v5418, 0.0
    %5430 = vadd.xlane.f32.xlu0 %v5429
    %v5431 = vpop.xlane.xlu0 %5430
    %v5432 = vsel %vm588, %v5420, 0.0
    %5433 = vadd.xlane.f32.xlu0 %v5432
    %v5434 = vpop.xlane.xlu0 %5433
    %v5435 = vsel %vm2384, %v5422, 0.0
    %5436 = vadd.xlane.f32.xlu0 %v5435
    %v5437 = vpop.xlane.xlu0 %5436
    %v5438 = vrcp.pop %v5425
    %v5439 = vrcp.pop %v5428
    %v5440 = vrcp.pop %v5431
    %v5441 = vrcp.pop %v5434
    %v5442 = vrcp.pop %v5437
    %v5443 = vmul.f32 %v5414, %v5438
    %v5444 = vmul.f32 %v5416, %v5439
    %v5445 = vmul.f32 %v5418, %v5440
    %v5446 = vmul.f32 %v5420, %v5441
    %v5447 = vmul.f32 %v5422, %v5442
    %5448 = vrot.lane.b32.xlu0 %v4969, 32
    %v5449 = vpop.permute.xlu0 %5448
    %5450 = vrot.lane.b32.xlu0 %v4972, 32
    %v5451 = vpop.permute.xlu0 %5450
    %v5455 = vsel %vm588, %v5443, 0
    %v5458 = vsel %vm588, %v5444, 0
    %v5461 = vsel %vm588, %v5445, 0
    %v5464 = vsel %vm588, %v5446, 0
    %v5467 = vsel %vm588, %v5447, 0
    %5469 = vmatpush.msra.mxu0 0.0
    %5470 = vmatpush.msra.mxu0 0.0
    %5471 = vmatpush.msra.mxu0 0.0
    %5472 = vmatpush.msra.mxu0 0.0
    %5473 = vmatpush.msra.mxu0 0.0
    %5474 = vmatpush.msra.mxu0 0.0
    %5475 = vmatpush.msra.mxu0 0.0
    %5476 = vmatpush.msra.mxu0 0.0
    %5477 = vmatpush.msra.mxu0 0.0
    %5478 = vmatpush.msra.mxu0 0.0
    %5479 = vmatpush.msra.mxu0 0.0
    %5480 = vmatpush.msra.mxu0 0.0
    %5481 = vmatpush.msra.mxu0 0.0
    %5482 = vmatpush.msra.mxu0 0.0
    %5483 = vmatpush.msra.mxu0 %v5451
    %5484 = vmatpush.msra.mxu0 %v5449
    %5485 = vmatmul.f32.gmra.mxu0 %v5455
    %v5486 = vpop.f32.mrf.mxu0
    %v5487 = vadd.f32 0.0, %v5486
    %5488 = vmatmul.f32.gmra.mxu0 %v5458
    %v5489 = vpop.f32.mrf.mxu0
    %v5490 = vadd.f32 0.0, %v5489
    %5491 = vmatmul.f32.gmra.mxu0 %v5461
    %v5492 = vpop.f32.mrf.mxu0
    %v5493 = vadd.f32 0.0, %v5492
    %5494 = vmatmul.f32.gmra.mxu0 %v5464
    %v5495 = vpop.f32.mrf.mxu0
    %v5496 = vadd.f32 0.0, %v5495
    %5497 = vmatmul.f32.gmra.mxu0 %v5467
    %v5498 = vpop.f32.mrf.mxu0
    %v5499 = vadd.f32 0.0, %v5498
    %5500 = vdwg.mxu0
    %5501 = vrot.lane.b32.xlu0 %v4934, 80
    %v5502 = vpop.permute.xlu0 %5501
    %5503 = vrot.lane.b32.xlu0 %v4937, 80
    %v5504 = vpop.permute.xlu0 %5503
    %5505 = vrot.lane.b32.xlu0 %v4940, 80
    %v5506 = vpop.permute.xlu0 %5505
    %5507 = vrot.lane.b32.xlu0 %v4943, 80
    %v5508 = vpop.permute.xlu0 %5507
    %5509 = vrot.lane.b32.xlu0 %v4946, 80
    %v5510 = vpop.permute.xlu0 %5509
    %5511 = vrot.lane.b32.xlu0 %v4969, 80
    %v5512 = vpop.permute.xlu0 %5511
    %5513 = vrot.lane.b32.xlu0 %v4972, 80
    %v5514 = vpop.permute.xlu0 %5513
    %v5515 = vsel %vm588, %v5502, 0
    %v5517 = vsel %vm588, %v5504, 0
    %v5519 = vsel %vm588, %v5506, 0
    %v5521 = vsel %vm588, %v5508, 0
    %v5523 = vsel %vm588, %v5510, 0
    %v5525 = vsel %vm588, %v5512, 0
    %v5527 = vsel %vm588, %v5514, 0
    %5529 = vmatpush.xpose.msra.mxu0 0.0
    %5530 = vmatpush.xpose.msra.mxu0 0.0
    %5531 = vmatpush.xpose.msra.mxu0 0.0
    %5532 = vmatpush.xpose.msra.mxu0 0.0
    %5533 = vmatpush.xpose.msra.mxu0 0.0
    %5534 = vmatpush.xpose.msra.mxu0 0.0
    %5535 = vmatpush.xpose.msra.mxu0 0.0
    %5536 = vmatpush.xpose.msra.mxu0 0.0
    %5537 = vmatpush.xpose.msra.mxu0 0.0
    %5538 = vmatpush.xpose.msra.mxu0 0.0
    %5539 = vmatpush.xpose.msra.mxu0 0.0
    %5540 = vmatpush.xpose.msra.mxu0 0.0
    %5541 = vmatpush.xpose.msra.mxu0 0.0
    %5542 = vmatpush.xpose.msra.mxu0 0.0
    %5543 = vmatpush.xpose.msra.mxu0 %v5527
    %5544 = vmatpush.xpose.msra.mxu0 %v5525
    %5545 = vmatmul.f32.gmra.mxu0 %v5515
    %v5546 = vpop.f32.mrf.mxu0
    %v5547 = vadd.f32 0.0, %v5546
    %5548 = vmatmul.f32.gmra.mxu0 %v5517
    %v5549 = vpop.f32.mrf.mxu0
    %v5550 = vadd.f32 0.0, %v5549
    %5551 = vmatmul.f32.gmra.mxu0 %v5519
    %v5552 = vpop.f32.mrf.mxu0
    %v5553 = vadd.f32 0.0, %v5552
    %5554 = vmatmul.f32.gmra.mxu0 %v5521
    %v5555 = vpop.f32.mrf.mxu0
    %v5556 = vadd.f32 0.0, %v5555
    %5557 = vmatmul.f32.gmra.mxu0 %v5523
    %v5558 = vpop.f32.mrf.mxu0
    %v5559 = vadd.f32 0.0, %v5558
    %5560 = vdwg.mxu0
    %v5561 = vmul.f32 %v5547, 0.25
    %v5562 = vmul.f32 %v5550, 0.25
    %v5563 = vmul.f32 %v5553, 0.25
    %v5564 = vmul.f32 %v5556, 0.25
    %v5565 = vmul.f32 %v5559, 0.25
    %v5566 = vadd.f32 %v5561, %v460
    %v5567 = vadd.f32 %v5562, %v461
    %v5568 = vadd.f32 %v5563, %v462
    %v5569 = vadd.f32 %v5564, %v463
    %v5570 = vadd.f32 %v5565, %v464
    %v5571 = vsel %vm588, %v5566, -inf
    %5572 = vmax.xlane.f32.xlu0 %v5571
    %v5573 = vpop.xlane.xlu0 %5572
    %v5574 = vsel %vm588, %v5567, -inf
    %5575 = vmax.xlane.f32.xlu0 %v5574
    %v5576 = vpop.xlane.xlu0 %5575
    %v5577 = vsel %vm588, %v5568, -inf
    %5578 = vmax.xlane.f32.xlu0 %v5577
    %v5579 = vpop.xlane.xlu0 %5578
    %v5580 = vsel %vm588, %v5569, -inf
    %5581 = vmax.xlane.f32.xlu0 %v5580
    %v5582 = vpop.xlane.xlu0 %5581
    %v5583 = vsel %vm2384, %v5570, -inf
    %5584 = vmax.xlane.f32.xlu0 %v5583
    %v5585 = vpop.xlane.xlu0 %5584
    %v5586 = vsub.f32 %v5566, %v5573
    %v5587 = vsub.f32 %v5567, %v5576
    %v5588 = vsub.f32 %v5568, %v5579
    %v5589 = vsub.f32 %v5569, %v5582
    %v5590 = vsub.f32 %v5570, %v5585
    %v5591 = vmul.f32 %v5586, 1.442695
    %v5592 = vpow.pop %v5591
    %v5593 = vmul.f32 %v5587, 1.442695
    %v5594 = vpow.pop %v5593
    %v5595 = vmul.f32 %v5588, 1.442695
    %v5596 = vpow.pop %v5595
    %v5597 = vmul.f32 %v5589, 1.442695
    %v5598 = vpow.pop %v5597
    %v5599 = vmul.f32 %v5590, 1.442695
    %v5600 = vpow.pop %v5599
    %v5601 = vsel %vm588, %v5592, 0.0
    %5602 = vadd.xlane.f32.xlu0 %v5601
    %v5603 = vpop.xlane.xlu0 %5602
    %v5604 = vsel %vm588, %v5594, 0.0
    %5605 = vadd.xlane.f32.xlu0 %v5604
    %v5606 = vpop.xlane.xlu0 %5605
    %v5607 = vsel %vm588, %v5596, 0.0
    %5608 = vadd.xlane.f32.xlu0 %v5607
    %v5609 = vpop.xlane.xlu0 %5608
    %v5610 = vsel %vm588, %v5598, 0.0
    %5611 = vadd.xlane.f32.xlu0 %v5610
    %v5612 = vpop.xlane.xlu0 %5611
    %v5613 = vsel %vm2384, %v5600, 0.0
    %5614 = vadd.xlane.f32.xlu0 %v5613
    %v5615 = vpop.xlane.xlu0 %5614
    %v5616 = vrcp.pop %v5603
    %v5617 = vrcp.pop %v5606
    %v5618 = vrcp.pop %v5609
    %v5619 = vrcp.pop %v5612
    %v5620 = vrcp.pop %v5615
    %v5621 = vmul.f32 %v5592, %v5616
    %v5622 = vmul.f32 %v5594, %v5617
    %v5623 = vmul.f32 %v5596, %v5618
    %v5624 = vmul.f32 %v5598, %v5619
    %v5625 = vmul.f32 %v5600, %v5620
    %5626 = vrot.lane.b32.xlu0 %v4969, 16
    %v5627 = vpop.permute.xlu0 %5626
    %5628 = vrot.lane.b32.xlu0 %v4972, 16
    %v5629 = vpop.permute.xlu0 %5628
    %v5633 = vsel %vm588, %v5621, 0
    %v5636 = vsel %vm588, %v5622, 0
    %v5639 = vsel %vm588, %v5623, 0
    %v5642 = vsel %vm588, %v5624, 0
    %v5645 = vsel %vm588, %v5625, 0
    %5647 = vmatpush.msra.mxu0 0.0
    %5648 = vmatpush.msra.mxu0 0.0
    %5649 = vmatpush.msra.mxu0 0.0
    %5650 = vmatpush.msra.mxu0 0.0
    %5651 = vmatpush.msra.mxu0 0.0
    %5652 = vmatpush.msra.mxu0 0.0
    %5653 = vmatpush.msra.mxu0 0.0
    %5654 = vmatpush.msra.mxu0 0.0
    %5655 = vmatpush.msra.mxu0 0.0
    %5656 = vmatpush.msra.mxu0 0.0
    %5657 = vmatpush.msra.mxu0 0.0
    %5658 = vmatpush.msra.mxu0 0.0
    %5659 = vmatpush.msra.mxu0 0.0
    %5660 = vmatpush.msra.mxu0 0.0
    %5661 = vmatpush.msra.mxu0 %v5629
    %5662 = vmatpush.msra.mxu0 %v5627
    %5663 = vmatmul.f32.gmra.mxu0 %v5633
    %v5664 = vpop.f32.mrf.mxu0
    %v5665 = vadd.f32 0.0, %v5664
    %5666 = vmatmul.f32.gmra.mxu0 %v5636
    %v5667 = vpop.f32.mrf.mxu0
    %v5668 = vadd.f32 0.0, %v5667
    %5669 = vmatmul.f32.gmra.mxu0 %v5639
    %v5670 = vpop.f32.mrf.mxu0
    %v5671 = vadd.f32 0.0, %v5670
    %5672 = vmatmul.f32.gmra.mxu0 %v5642
    %v5673 = vpop.f32.mrf.mxu0
    %v5674 = vadd.f32 0.0, %v5673
    %5675 = vmatmul.f32.gmra.mxu0 %v5645
    %v5676 = vpop.f32.mrf.mxu0
    %v5677 = vadd.f32 0.0, %v5676
    %5678 = vdwg.mxu0
    %5684 = vrot.lane.b32.xlu0 %v5309, 16
    %v5685 = vpop.permute.xlu0 %5684
    %5686 = vrot.lane.b32.xlu0 %v5312, 16
    %v5687 = vpop.permute.xlu0 %5686
    %5688 = vrot.lane.b32.xlu0 %v5315, 16
    %v5689 = vpop.permute.xlu0 %5688
    %5690 = vrot.lane.b32.xlu0 %v5318, 16
    %v5691 = vpop.permute.xlu0 %5690
    %5692 = vrot.lane.b32.xlu0 %v5321, 16
    %v5693 = vpop.permute.xlu0 %5692
    %5704 = vrot.lane.b32.xlu0 %v5487, 32
    %v5705 = vpop.permute.xlu0 %5704
    %5706 = vrot.lane.b32.xlu0 %v5490, 32
    %v5707 = vpop.permute.xlu0 %5706
    %5708 = vrot.lane.b32.xlu0 %v5493, 32
    %v5709 = vpop.permute.xlu0 %5708
    %5710 = vrot.lane.b32.xlu0 %v5496, 32
    %v5711 = vpop.permute.xlu0 %5710
    %5712 = vrot.lane.b32.xlu0 %v5499, 32
    %v5713 = vpop.permute.xlu0 %5712
    %5724 = vrot.lane.b32.xlu0 %v5665, 48
    %v5725 = vpop.permute.xlu0 %5724
    %5726 = vrot.lane.b32.xlu0 %v5668, 48
    %v5727 = vpop.permute.xlu0 %5726
    %5728 = vrot.lane.b32.xlu0 %v5671, 48
    %v5729 = vpop.permute.xlu0 %5728
    %5730 = vrot.lane.b32.xlu0 %v5674, 48
    %v5731 = vpop.permute.xlu0 %5730
    %5732 = vrot.lane.b32.xlu0 %v5677, 48
    %v5733 = vpop.permute.xlu0 %5732
    %v5739 = vsel %vm588, %v5131, %v5685
    %v5740 = vsel %vm588, %v5134, %v5687
    %v5741 = vsel %vm588, %v5137, %v5689
    %v5742 = vsel %vm588, %v5140, %v5691
    %v5743 = vsel %vm588, %v5143, %v5693
    %v5744 = vsel %vm514, %v5739, %v5705
    %v5745 = vsel %vm514, %v5740, %v5707
    %v5746 = vsel %vm514, %v5741, %v5709
    %v5747 = vsel %vm514, %v5742, %v5711
    %v5748 = vsel %vm514, %v5743, %v5713
    %v5749 = vsel %vm2040, %v5744, %v5725
    %v5750 = vsel %vm2040, %v5745, %v5727
    %v5751 = vsel %vm2040, %v5746, %v5729
    %v5752 = vsel %vm2040, %v5747, %v5731
    %v5753 = vsel %vm2040, %v5748, %v5733
    %v5755 = vperm.slane %v3587, 0
    %v5758 = vsel %vm561, %v5749, 0
    %v5761 = vsel %vm561, %v5750, 0
    %v5764 = vsel %vm561, %v5751, 0
    %v5767 = vsel %vm561, %v5752, 0
    %v5770 = vsel %vm561, %v5753, 0
    %5772 = vmatpush.msra.mxu0 0.0
    %5773 = vmatpush.msra.mxu0 0.0
    %5774 = vmatpush.msra.mxu0 0.0
    %5775 = vmatpush.msra.mxu0 0.0
    %5776 = vmatpush.msra.mxu0 0.0
    %5777 = vmatpush.msra.mxu0 0.0
    %5778 = vmatpush.msra.mxu0 0.0
    %5779 = vmatpush.msra.mxu0 0.0
    %5780 = vmatpush.msra.mxu0 %v3585
    %5781 = vmatpush.msra.mxu0 %v3584
    %5782 = vmatpush.msra.mxu0 %v3583
    %5783 = vmatpush.msra.mxu0 %v3582
    %5784 = vmatpush.msra.mxu0 %v3581
    %5785 = vmatpush.msra.mxu0 %v3580
    %5786 = vmatpush.msra.mxu0 %v3579
    %5787 = vmatpush.msra.mxu0 %v3578
    %5788 = vmatmul.f32.gmra.mxu0 %v5758
    %v5789 = vpop.f32.mrf.mxu0
    %v5790 = vadd.f32 %v5755, %v5789
    %5791 = vmatmul.f32.gmra.mxu0 %v5761
    %v5792 = vpop.f32.mrf.mxu0
    %v5793 = vadd.f32 %v5755, %v5792
    %5794 = vmatmul.f32.gmra.mxu0 %v5764
    %v5795 = vpop.f32.mrf.mxu0
    %v5796 = vadd.f32 %v5755, %v5795
    %5797 = vmatmul.f32.gmra.mxu0 %v5767
    %v5798 = vpop.f32.mrf.mxu0
    %v5799 = vadd.f32 %v5755, %v5798
    %5800 = vmatmul.f32.gmra.mxu0 %v5770
    %v5801 = vpop.f32.mrf.mxu0
    %v5802 = vadd.f32 %v5755, %v5801
    %5803 = vdwg.mxu0
    %v5804 = vadd.f32 %v4767, %v5790
    %v5805 = vadd.f32 %v4768, %v5793
    %v5806 = vadd.f32 %v4769, %v5796
    %v5807 = vadd.f32 %v4770, %v5799
    %v5808 = vadd.f32 %v4771, %v5802
    %v5809 = vsel %vm561, %v5804, 0.0
    %5810 = vadd.xlane.f32.xlu0 %v5809
    %v5811 = vpop.xlane.xlu0 %5810
    %v5812 = vsel %vm561, %v5805, 0.0
    %5813 = vadd.xlane.f32.xlu0 %v5812
    %v5814 = vpop.xlane.xlu0 %5813
    %v5815 = vsel %vm561, %v5806, 0.0
    %5816 = vadd.xlane.f32.xlu0 %v5815
    %v5817 = vpop.xlane.xlu0 %5816
    %v5818 = vsel %vm561, %v5807, 0.0
    %5819 = vadd.xlane.f32.xlu0 %v5818
    %v5820 = vpop.xlane.xlu0 %5819
    %v5821 = vsel %vm976, %v5808, 0.0
    %5822 = vadd.xlane.f32.xlu0 %v5821
    %v5823 = vpop.xlane.xlu0 %5822
    %v5824 = vmul.f32 %v5811, %v986
    %v5825 = vmul.f32 %v5814, %v986
    %v5826 = vmul.f32 %v5817, %v986
    %v5827 = vmul.f32 %v5820, %v986
    %v5828 = vmul.f32 %v5823, %v986
    %v5829 = vsub.f32 %v5804, %v5824
    %v5830 = vsub.f32 %v5805, %v5825
    %v5831 = vsub.f32 %v5806, %v5826
    %v5832 = vsub.f32 %v5807, %v5827
    %v5833 = vsub.f32 %v5808, %v5828
    %v5834 = vmul.f32 %v5829, %v5829
    %v5835 = vmul.f32 %v5830, %v5830
    %v5836 = vmul.f32 %v5831, %v5831
    %v5837 = vmul.f32 %v5832, %v5832
    %v5838 = vmul.f32 %v5833, %v5833
    %v5839 = vsel %vm561, %v5834, 0.0
    %5840 = vadd.xlane.f32.xlu0 %v5839
    %v5841 = vpop.xlane.xlu0 %5840
    %v5842 = vsel %vm561, %v5835, 0.0
    %5843 = vadd.xlane.f32.xlu0 %v5842
    %v5844 = vpop.xlane.xlu0 %5843
    %v5845 = vsel %vm561, %v5836, 0.0
    %5846 = vadd.xlane.f32.xlu0 %v5845
    %v5847 = vpop.xlane.xlu0 %5846
    %v5848 = vsel %vm561, %v5837, 0.0
    %5849 = vadd.xlane.f32.xlu0 %v5848
    %v5850 = vpop.xlane.xlu0 %5849
    %v5851 = vsel %vm976, %v5838, 0.0
    %5852 = vadd.xlane.f32.xlu0 %v5851
    %v5853 = vpop.xlane.xlu0 %5852
    %v5854 = vmul.f32 %v5841, %v986
    %v5855 = vmul.f32 %v5844, %v986
    %v5856 = vmul.f32 %v5847, %v986
    %v5857 = vmul.f32 %v5850, %v986
    %v5858 = vmul.f32 %v5853, %v986
    %v5859 = vadd.f32 %v5854, 1e-05
    %v5860 = vadd.f32 %v5855, 1e-05
    %v5861 = vadd.f32 %v5856, 1e-05
    %v5862 = vadd.f32 %v5857, 1e-05
    %v5863 = vadd.f32 %v5858, 1e-05
    %v5864 = vrsqrt.pop %v5859
    %v5865 = vmul.f32 %v5864, %v5859
    %v5866 = vmul.f32 %v5865, %v5864
    %v5867 = vmul.f32 0.5, %v5866
    %v5868 = vsub.f32 1.5, %v5867
    %v5869 = vmul.f32 %v5864, %v5868
    %vm5870 = vweird.f32 %v5859
    %vm5871 = vweird.f32 %v5864
    %vm5872 = vmor %vm5870, %vm5871
    %v5873 = vsel %vm5872, %v5864, %v5869
    %v5874 = vrsqrt.pop %v5860
    %v5875 = vmul.f32 %v5874, %v5860
    %v5876 = vmul.f32 %v5875, %v5874
    %v5877 = vmul.f32 0.5, %v5876
    %v5878 = vsub.f32 1.5, %v5877
    %v5879 = vmul.f32 %v5874, %v5878
    %vm5880 = vweird.f32 %v5860
    %vm5881 = vweird.f32 %v5874
    %vm5882 = vmor %vm5880, %vm5881
    %v5883 = vsel %vm5882, %v5874, %v5879
    %v5884 = vrsqrt.pop %v5861
    %v5885 = vmul.f32 %v5884, %v5861
    %v5886 = vmul.f32 %v5885, %v5884
    %v5887 = vmul.f32 0.5, %v5886
    %v5888 = vsub.f32 1.5, %v5887
    %v5889 = vmul.f32 %v5884, %v5888
    %vm5890 = vweird.f32 %v5861
    %vm5891 = vweird.f32 %v5884
    %vm5892 = vmor %vm5890, %vm5891
    %v5893 = vsel %vm5892, %v5884, %v5889
    %v5894 = vrsqrt.pop %v5862
    %v5895 = vmul.f32 %v5894, %v5862
    %v5896 = vmul.f32 %v5895, %v5894
    %v5897 = vmul.f32 0.5, %v5896
    %v5898 = vsub.f32 1.5, %v5897
    %v5899 = vmul.f32 %v5894, %v5898
    %vm5900 = vweird.f32 %v5862
    %vm5901 = vweird.f32 %v5894
    %vm5902 = vmor %vm5900, %vm5901
    %v5903 = vsel %vm5902, %v5894, %v5899
    %v5904 = vrsqrt.pop %v5863
    %v5905 = vmul.f32 %v5904, %v5863
    %v5906 = vmul.f32 %v5905, %v5904
    %v5907 = vmul.f32 0.5, %v5906
    %v5908 = vsub.f32 1.5, %v5907
    %v5909 = vmul.f32 %v5904, %v5908
    %vm5910 = vweird.f32 %v5863
    %vm5911 = vweird.f32 %v5904
    %vm5912 = vmor %vm5910, %vm5911
    %v5913 = vsel %vm5912, %v5904, %v5909
    %v5914 = vmul.f32 %v5829, %v5873
    %v5915 = vmul.f32 %v5830, %v5883
    %v5916 = vmul.f32 %v5831, %v5893
    %v5917 = vmul.f32 %v5832, %v5903
    %v5918 = vmul.f32 %v5833, %v5913
    %v5920 = vperm.slane %v3589, 0
    %v5922 = vmul.f32 %v5914, %v5920
    %v5923 = vmul.f32 %v5915, %v5920
    %v5924 = vmul.f32 %v5916, %v5920
    %v5925 = vmul.f32 %v5917, %v5920
    %v5926 = vmul.f32 %v5918, %v5920
    %v5928 = vperm.slane %v3591, 0
    %v5930 = vadd.f32 %v5922, %v5928
    %v5931 = vadd.f32 %v5923, %v5928
    %v5932 = vadd.f32 %v5924, %v5928
    %v5933 = vadd.f32 %v5925, %v5928
    %v5934 = vadd.f32 %v5926, %v5928
    %v5936 = vperm.slane %v3610, 0
    %v5937 = vperm.slane %v3610, 1
    %v5941 = vsel %vm561, %v5930, 0
    %v5944 = vsel %vm561, %v5931, 0
    %v5947 = vsel %vm561, %v5932, 0
    %v5950 = vsel %vm561, %v5933, 0
    %v5953 = vsel %vm561, %v5934, 0
    %5955 = vmatpush.msra.mxu0 0.0
    %5956 = vmatpush.msra.mxu0 0.0
    %5957 = vmatpush.msra.mxu0 0.0
    %5958 = vmatpush.msra.mxu0 0.0
    %5959 = vmatpush.msra.mxu0 0.0
    %5960 = vmatpush.msra.mxu0 0.0
    %5961 = vmatpush.msra.mxu0 0.0
    %5962 = vmatpush.msra.mxu0 0.0
    %5963 = vmatpush.msra.mxu0 %v3607
    %5964 = vmatpush.msra.mxu0 %v3605
    %5965 = vmatpush.msra.mxu0 %v3603
    %5966 = vmatpush.msra.mxu0 %v3601
    %5967 = vmatpush.msra.mxu0 %v3599
    %5968 = vmatpush.msra.mxu0 %v3597
    %5969 = vmatpush.msra.mxu0 %v3595
    %5970 = vmatpush.msra.mxu0 %v3593
    %5971 = vmatmul.f32.gmra.mxu0 %v5941
    %v5972 = vpop.f32.mrf.mxu0
    %v5973 = vadd.f32 %v5936, %v5972
    %5974 = vmatmul.f32.gmra.mxu0 %v5944
    %v5975 = vpop.f32.mrf.mxu0
    %v5976 = vadd.f32 %v5936, %v5975
    %5977 = vmatmul.f32.gmra.mxu0 %v5947
    %v5978 = vpop.f32.mrf.mxu0
    %v5979 = vadd.f32 %v5936, %v5978
    %5980 = vmatmul.f32.gmra.mxu0 %v5950
    %v5981 = vpop.f32.mrf.mxu0
    %v5982 = vadd.f32 %v5936, %v5981
    %5983 = vmatmul.f32.gmra.mxu0 %v5953
    %v5984 = vpop.f32.mrf.mxu0
    %v5985 = vadd.f32 %v5936, %v5984
    %5986 = vdwg.mxu0
    %5987 = vmatpush.msra.mxu0 0.0
    %5988 = vmatpush.msra.mxu0 0.0
    %5989 = vmatpush.msra.mxu0 0.0
    %5990 = vmatpush.msra.mxu0 0.0
    %5991 = vmatpush.msra.mxu0 0.0
    %5992 = vmatpush.msra.mxu0 0.0
    %5993 = vmatpush.msra.mxu0 0.0
    %5994 = vmatpush.msra.mxu0 0.0
    %5995 = vmatpush.msra.mxu0 %v3608
    %5996 = vmatpush.msra.mxu0 %v3606
    %5997 = vmatpush.msra.mxu0 %v3604
    %5998 = vmatpush.msra.mxu0 %v3602
    %5999 = vmatpush.msra.mxu0 %v3600
    %6000 = vmatpush.msra.mxu0 %v3598
    %6001 = vmatpush.msra.mxu0 %v3596
    %6002 = vmatpush.msra.mxu0 %v3594
    %6003 = vmatmul.f32.gmra.mxu0 %v5941
    %v6004 = vpop.f32.mrf.mxu0
    %v6005 = vadd.f32 %v5937, %v6004
    %6006 = vmatmul.f32.gmra.mxu0 %v5944
    %v6007 = vpop.f32.mrf.mxu0
    %v6008 = vadd.f32 %v5937, %v6007
    %6009 = vmatmul.f32.gmra.mxu0 %v5947
    %v6010 = vpop.f32.mrf.mxu0
    %v6011 = vadd.f32 %v5937, %v6010
    %6012 = vmatmul.f32.gmra.mxu0 %v5950
    %v6013 = vpop.f32.mrf.mxu0
    %v6014 = vadd.f32 %v5937, %v6013
    %6015 = vmatmul.f32.gmra.mxu0 %v5953
    %v6016 = vpop.f32.mrf.mxu0
    %v6017 = vadd.f32 %v5937, %v6016
    %6018 = vdwg.mxu0
    %v6019 = vmul.f32 %v5973, %v5973
    %v6020 = vmul.f32 %v6005, %v6005
    %v6021 = vmul.f32 %v5976, %v5976
    %v6022 = vmul.f32 %v6008, %v6008
    %v6023 = vmul.f32 %v5979, %v5979
    %v6024 = vmul.f32 %v6011, %v6011
    %v6025 = vmul.f32 %v5982, %v5982
    %v6026 = vmul.f32 %v6014, %v6014
    %v6027 = vmul.f32 %v5985, %v5985
    %v6028 = vmul.f32 %v6017, %v6017
    %v6029 = vmul.f32 %v5973, %v6019
    %v6030 = vmul.f32 %v6005, %v6020
    %v6031 = vmul.f32 %v5976, %v6021
    %v6032 = vmul.f32 %v6008, %v6022
    %v6033 = vmul.f32 %v5979, %v6023
    %v6034 = vmul.f32 %v6011, %v6024
    %v6035 = vmul.f32 %v5982, %v6025
    %v6036 = vmul.f32 %v6014, %v6026
    %v6037 = vmul.f32 %v5985, %v6027
    %v6038 = vmul.f32 %v6017, %v6028
    %v6039 = vmul.f32 %v6029, 0.044715
    %v6040 = vmul.f32 %v6030, 0.044715
    %v6041 = vmul.f32 %v6031, 0.044715
    %v6042 = vmul.f32 %v6032, 0.044715
    %v6043 = vmul.f32 %v6033, 0.044715
    %v6044 = vmul.f32 %v6034, 0.044715
    %v6045 = vmul.f32 %v6035, 0.044715
    %v6046 = vmul.f32 %v6036, 0.044715
    %v6047 = vmul.f32 %v6037, 0.044715
    %v6048 = vmul.f32 %v6038, 0.044715
    %v6049 = vadd.f32 %v5973, %v6039
    %v6050 = vadd.f32 %v6005, %v6040
    %v6051 = vadd.f32 %v5976, %v6041
    %v6052 = vadd.f32 %v6008, %v6042
    %v6053 = vadd.f32 %v5979, %v6043
    %v6054 = vadd.f32 %v6011, %v6044
    %v6055 = vadd.f32 %v5982, %v6045
    %v6056 = vadd.f32 %v6014, %v6046
    %v6057 = vadd.f32 %v5985, %v6047
    %v6058 = vadd.f32 %v6017, %v6048
    %v6059 = vmul.f32 %v6049, 0.7978846
    %v6060 = vmul.f32 %v6050, 0.7978846
    %v6061 = vmul.f32 %v6051, 0.7978846
    %v6062 = vmul.f32 %v6052, 0.7978846
    %v6063 = vmul.f32 %v6053, 0.7978846
    %v6064 = vmul.f32 %v6054, 0.7978846
    %v6065 = vmul.f32 %v6055, 0.7978846
    %v6066 = vmul.f32 %v6056, 0.7978846
    %v6067 = vmul.f32 %v6057, 0.7978846
    %v6068 = vmul.f32 %v6058, 0.7978846
    %v6069 = vtanh.pop %v6059
    %v6070 = vtanh.pop %v6060
    %v6071 = vtanh.pop %v6061
    %v6072 = vtanh.pop %v6062
    %v6073 = vtanh.pop %v6063
    %v6074 = vtanh.pop %v6064
    %v6075 = vtanh.pop %v6065
    %v6076 = vtanh.pop %v6066
    %v6077 = vtanh.pop %v6067
    %v6078 = vtanh.pop %v6068
    %v6079 = vadd.f32 %v6069, 1.0
    %v6080 = vadd.f32 %v6070, 1.0
    %v6081 = vadd.f32 %v6071, 1.0
    %v6082 = vadd.f32 %v6072, 1.0
    %v6083 = vadd.f32 %v6073, 1.0
    %v6084 = vadd.f32 %v6074, 1.0
    %v6085 = vadd.f32 %v6075, 1.0
    %v6086 = vadd.f32 %v6076, 1.0
    %v6087 = vadd.f32 %v6077, 1.0
    %v6088 = vadd.f32 %v6078, 1.0
    %v6089 = vmul.f32 %v6079, 0.5
    %v6090 = vmul.f32 %v6080, 0.5
    %v6091 = vmul.f32 %v6081, 0.5
    %v6092 = vmul.f32 %v6082, 0.5
    %v6093 = vmul.f32 %v6083, 0.5
    %v6094 = vmul.f32 %v6084, 0.5
    %v6095 = vmul.f32 %v6085, 0.5
    %v6096 = vmul.f32 %v6086, 0.5
    %v6097 = vmul.f32 %v6087, 0.5
    %v6098 = vmul.f32 %v6088, 0.5
    %v6099 = vmul.f32 %v5973, %v6089
    %v6100 = vmul.f32 %v6005, %v6090
    %v6101 = vmul.f32 %v5976, %v6091
    %v6102 = vmul.f32 %v6008, %v6092
    %v6103 = vmul.f32 %v5979, %v6093
    %v6104 = vmul.f32 %v6011, %v6094
    %v6105 = vmul.f32 %v5982, %v6095
    %v6106 = vmul.f32 %v6014, %v6096
    %v6107 = vmul.f32 %v5985, %v6097
    %v6108 = vmul.f32 %v6017, %v6098
    %v6110 = vperm.slane %v3645, 0
    %6112 = vmatpush.msra.mxu0 %v3627
    %6113 = vmatpush.msra.mxu0 %v3626
    %6114 = vmatpush.msra.mxu0 %v3625
    %6115 = vmatpush.msra.mxu0 %v3624
    %6116 = vmatpush.msra.mxu0 %v3623
    %6117 = vmatpush.msra.mxu0 %v3622
    %6118 = vmatpush.msra.mxu0 %v3621
    %6119 = vmatpush.msra.mxu0 %v3620
    %6120 = vmatpush.msra.mxu0 %v3619
    %6121 = vmatpush.msra.mxu0 %v3618
    %6122 = vmatpush.msra.mxu0 %v3617
    %6123 = vmatpush.msra.mxu0 %v3616
    %6124 = vmatpush.msra.mxu0 %v3615
    %6125 = vmatpush.msra.mxu0 %v3614
    %6126 = vmatpush.msra.mxu0 %v3613
    %6127 = vmatpush.msra.mxu0 %v3612
    %6128 = vmatmul.f32.gmra.mxu0 %v6099
    %v6129 = vpop.f32.mrf.mxu0
    %v6130 = vadd.f32 %v6110, %v6129
    %6131 = vmatmul.f32.gmra.mxu0 %v6101
    %v6132 = vpop.f32.mrf.mxu0
    %v6133 = vadd.f32 %v6110, %v6132
    %6134 = vmatmul.f32.gmra.mxu0 %v6103
    %v6135 = vpop.f32.mrf.mxu0
    %v6136 = vadd.f32 %v6110, %v6135
    %6137 = vmatmul.f32.gmra.mxu0 %v6105
    %v6138 = vpop.f32.mrf.mxu0
    %v6139 = vadd.f32 %v6110, %v6138
    %6140 = vmatmul.f32.gmra.mxu0 %v6107
    %v6141 = vpop.f32.mrf.mxu0
    %v6142 = vadd.f32 %v6110, %v6141
    %6143 = vdwg.mxu0
    %6144 = vmatpush.msra.mxu0 %v3643
    %6145 = vmatpush.msra.mxu0 %v3642
    %6146 = vmatpush.msra.mxu0 %v3641
    %6147 = vmatpush.msra.mxu0 %v3640
    %6148 = vmatpush.msra.mxu0 %v3639
    %6149 = vmatpush.msra.mxu0 %v3638
    %6150 = vmatpush.msra.mxu0 %v3637
    %6151 = vmatpush.msra.mxu0 %v3636
    %6152 = vmatpush.msra.mxu0 %v3635
    %6153 = vmatpush.msra.mxu0 %v3634
    %6154 = vmatpush.msra.mxu0 %v3633
    %6155 = vmatpush.msra.mxu0 %v3632
    %6156 = vmatpush.msra.mxu0 %v3631
    %6157 = vmatpush.msra.mxu0 %v3630
    %6158 = vmatpush.msra.mxu0 %v3629
    %6159 = vmatpush.msra.mxu0 %v3628
    %6160 = vmatmul.f32.gmra.mxu0 %v6100
    %v6161 = vpop.f32.mrf.mxu0
    %v6162 = vadd.f32 %v6130, %v6161
    %6163 = vmatmul.f32.gmra.mxu0 %v6102
    %v6164 = vpop.f32.mrf.mxu0
    %v6165 = vadd.f32 %v6133, %v6164
    %6166 = vmatmul.f32.gmra.mxu0 %v6104
    %v6167 = vpop.f32.mrf.mxu0
    %v6168 = vadd.f32 %v6136, %v6167
    %6169 = vmatmul.f32.gmra.mxu0 %v6106
    %v6170 = vpop.f32.mrf.mxu0
    %v6171 = vadd.f32 %v6139, %v6170
    %6172 = vmatmul.f32.gmra.mxu0 %v6108
    %v6173 = vpop.f32.mrf.mxu0
    %v6174 = vadd.f32 %v6142, %v6173
    %6175 = vdwg.mxu0
    %v6176 = vadd.f32 %v5804, %v6162
    %v6177 = vadd.f32 %v5805, %v6165
    %v6178 = vadd.f32 %v5806, %v6168
    %v6179 = vadd.f32 %v5807, %v6171
    %v6180 = vadd.f32 %v5808, %v6174
    %v6181 = vsel %vm561, %v6176, 0.0
    %6182 = vadd.xlane.f32.xlu0 %v6181
    %v6183 = vpop.xlane.xlu0 %6182
    %v6184 = vsel %vm561, %v6177, 0.0
    %6185 = vadd.xlane.f32.xlu0 %v6184
    %v6186 = vpop.xlane.xlu0 %6185
    %v6187 = vsel %vm561, %v6178, 0.0
    %6188 = vadd.xlane.f32.xlu0 %v6187
    %v6189 = vpop.xlane.xlu0 %6188
    %v6190 = vsel %vm561, %v6179, 0.0
    %6191 = vadd.xlane.f32.xlu0 %v6190
    %v6192 = vpop.xlane.xlu0 %6191
    %v6193 = vsel %vm976, %v6180, 0.0
    %6194 = vadd.xlane.f32.xlu0 %v6193
    %v6195 = vpop.xlane.xlu0 %6194
    %v6196 = vmul.f32 %v6183, %v986
    %v6197 = vmul.f32 %v6186, %v986
    %v6198 = vmul.f32 %v6189, %v986
    %v6199 = vmul.f32 %v6192, %v986
    %v6200 = vmul.f32 %v6195, %v986
    %v6201 = vsub.f32 %v6176, %v6196
    %v6202 = vsub.f32 %v6177, %v6197
    %v6203 = vsub.f32 %v6178, %v6198
    %v6204 = vsub.f32 %v6179, %v6199
    %v6205 = vsub.f32 %v6180, %v6200
    %v6206 = vmul.f32 %v6201, %v6201
    %v6207 = vmul.f32 %v6202, %v6202
    %v6208 = vmul.f32 %v6203, %v6203
    %v6209 = vmul.f32 %v6204, %v6204
    %v6210 = vmul.f32 %v6205, %v6205
    %v6211 = vsel %vm561, %v6206, 0.0
    %6212 = vadd.xlane.f32.xlu0 %v6211
    %v6213 = vpop.xlane.xlu0 %6212
    %v6214 = vsel %vm561, %v6207, 0.0
    %6215 = vadd.xlane.f32.xlu0 %v6214
    %v6216 = vpop.xlane.xlu0 %6215
    %v6217 = vsel %vm561, %v6208, 0.0
    %6218 = vadd.xlane.f32.xlu0 %v6217
    %v6219 = vpop.xlane.xlu0 %6218
    %v6220 = vsel %vm561, %v6209, 0.0
    %6221 = vadd.xlane.f32.xlu0 %v6220
    %v6222 = vpop.xlane.xlu0 %6221
    %v6223 = vsel %vm976, %v6210, 0.0
    %6224 = vadd.xlane.f32.xlu0 %v6223
    %v6225 = vpop.xlane.xlu0 %6224
    %v6226 = vmul.f32 %v6213, %v986
    %v6227 = vmul.f32 %v6216, %v986
    %v6228 = vmul.f32 %v6219, %v986
    %v6229 = vmul.f32 %v6222, %v986
    %v6230 = vmul.f32 %v6225, %v986
    %v6231 = vadd.f32 %v6226, 1e-05
    %v6232 = vadd.f32 %v6227, 1e-05
    %v6233 = vadd.f32 %v6228, 1e-05
    %v6234 = vadd.f32 %v6229, 1e-05
    %v6235 = vadd.f32 %v6230, 1e-05
    %v6236 = vrsqrt.pop %v6231
    %v6237 = vmul.f32 %v6236, %v6231
    %v6238 = vmul.f32 %v6237, %v6236
    %v6239 = vmul.f32 0.5, %v6238
    %v6240 = vsub.f32 1.5, %v6239
    %v6241 = vmul.f32 %v6236, %v6240
    %vm6242 = vweird.f32 %v6231
    %vm6243 = vweird.f32 %v6236
    %vm6244 = vmor %vm6242, %vm6243
    %v6245 = vsel %vm6244, %v6236, %v6241
    %v6246 = vrsqrt.pop %v6232
    %v6247 = vmul.f32 %v6246, %v6232
    %v6248 = vmul.f32 %v6247, %v6246
    %v6249 = vmul.f32 0.5, %v6248
    %v6250 = vsub.f32 1.5, %v6249
    %v6251 = vmul.f32 %v6246, %v6250
    %vm6252 = vweird.f32 %v6232
    %vm6253 = vweird.f32 %v6246
    %vm6254 = vmor %vm6252, %vm6253
    %v6255 = vsel %vm6254, %v6246, %v6251
    %v6256 = vrsqrt.pop %v6233
    %v6257 = vmul.f32 %v6256, %v6233
    %v6258 = vmul.f32 %v6257, %v6256
    %v6259 = vmul.f32 0.5, %v6258
    %v6260 = vsub.f32 1.5, %v6259
    %v6261 = vmul.f32 %v6256, %v6260
    %vm6262 = vweird.f32 %v6233
    %vm6263 = vweird.f32 %v6256
    %vm6264 = vmor %vm6262, %vm6263
    %v6265 = vsel %vm6264, %v6256, %v6261
    %v6266 = vrsqrt.pop %v6234
    %v6267 = vmul.f32 %v6266, %v6234
    %v6268 = vmul.f32 %v6267, %v6266
    %v6269 = vmul.f32 0.5, %v6268
    %v6270 = vsub.f32 1.5, %v6269
    %v6271 = vmul.f32 %v6266, %v6270
    %vm6272 = vweird.f32 %v6234
    %vm6273 = vweird.f32 %v6266
    %vm6274 = vmor %vm6272, %vm6273
    %v6275 = vsel %vm6274, %v6266, %v6271
    %v6276 = vrsqrt.pop %v6235
    %v6277 = vmul.f32 %v6276, %v6235
    %v6278 = vmul.f32 %v6277, %v6276
    %v6279 = vmul.f32 0.5, %v6278
    %v6280 = vsub.f32 1.5, %v6279
    %v6281 = vmul.f32 %v6276, %v6280
    %vm6282 = vweird.f32 %v6235
    %vm6283 = vweird.f32 %v6276
    %vm6284 = vmor %vm6282, %vm6283
    %v6285 = vsel %vm6284, %v6276, %v6281
    %v6286 = vmul.f32 %v6201, %v6245
    %v6287 = vmul.f32 %v6202, %v6255
    %v6288 = vmul.f32 %v6203, %v6265
    %v6289 = vmul.f32 %v6204, %v6275
    %v6290 = vmul.f32 %v6205, %v6285
    %v6292 = vperm.slane %v507, 0
    %v6294 = vmul.f32 %v6286, %v6292
    %v6295 = vmul.f32 %v6287, %v6292
    %v6296 = vmul.f32 %v6288, %v6292
    %v6297 = vmul.f32 %v6289, %v6292
    %v6298 = vmul.f32 %v6290, %v6292
    %v6300 = vperm.slane %v508, 0
    %v6302 = vadd.f32 %v6294, %v6300
    %v6303 = vadd.f32 %v6295, %v6300
    %v6304 = vadd.f32 %v6296, %v6300
    %v6305 = vadd.f32 %v6297, %v6300
    %v6306 = vadd.f32 %v6298, %v6300
    %6308 = vset.pattern.permute.xlu0 0
    %6309 = vperm.xlu0 %6308, %v510
    %v6310 = vpop.permute.xlu0 %6309
    %vm6315 = vcmask 1046528
    %v6316 = vrot.slane %v6302, 1
    %v6317 = vrot.slane %v6303, 1
    %v6318 = vsel %vm6315, %v6316, %v6317
    %v6319 = vrot.slane %v6304, 1
    %v6320 = vsel %vm6315, %v6317, %v6319
    %v6322 = vsel %vm561, %v509, 0
    %v6324 = vsel %vm561, %v6318, 0
    %v6326 = vsel %vm561, %v6320, 0
    %6328 = vmatpush.xpose.msra.mxu0 0.0
    %6329 = vmatpush.xpose.msra.mxu0 0.0
    %6330 = vmatpush.xpose.msra.mxu0 0.0
    %6331 = vmatpush.xpose.msra.mxu0 0.0
    %6332 = vmatpush.xpose.msra.mxu0 0.0
    %6333 = vmatpush.xpose.msra.mxu0 0.0
    %6334 = vmatpush.xpose.msra.mxu0 0.0
    %6335 = vmatpush.xpose.msra.mxu0 0.0
    %6336 = vmatpush.xpose.msra.mxu0 0.0
    %6337 = vmatpush.xpose.msra.mxu0 0.0
    %6338 = vmatpush.xpose.msra.mxu0 0.0
    %6339 = vmatpush.xpose.msra.mxu0 0.0
    %6340 = vmatpush.xpose.msra.mxu0 0.0
    %6341 = vmatpush.xpose.msra.mxu0 0.0
    %6342 = vmatpush.xpose.msra.mxu0 %v6326
    %6343 = vmatpush.xpose.msra.mxu0 %v6324
    %6344 = vmatmul.f32.gmra.mxu0 %v6322
    %v6345 = vpop.f32.mrf.mxu0
    %v6346 = vadd.f32 %v6310, %v6345
    %6347 = vdwg.mxu0
    %vm6348 = vcmask 125952
    %6349 = vst.msk [vmem:[#allocation31] sm:$0xf] %vm6348, %v6346
    %vm6352 = vcmask 1045504
    %v6353 = vrot.slane %v6304, 2
    %v6354 = vrot.slane %v6305, 2
    %v6355 = vsel %vm6352, %v6353, %v6354
    %v6356 = vrot.slane %v6306, 2
    %v6357 = vsel %vm6352, %v6354, %v6356
    %v6358 = vsel %vm561, %v6355, 0
    %v6360 = vsel %vm561, %v6357, 0
    %6362 = vmatpush.xpose.msra.mxu0 0.0
    %6363 = vmatpush.xpose.msra.mxu0 0.0
    %6364 = vmatpush.xpose.msra.mxu0 0.0
    %6365 = vmatpush.xpose.msra.mxu0 0.0
    %6366 = vmatpush.xpose.msra.mxu0 0.0
    %6367 = vmatpush.xpose.msra.mxu0 0.0
    %6368 = vmatpush.xpose.msra.mxu0 0.0
    %6369 = vmatpush.xpose.msra.mxu0 0.0
    %6370 = vmatpush.xpose.msra.mxu0 0.0
    %6371 = vmatpush.xpose.msra.mxu0 0.0
    %6372 = vmatpush.xpose.msra.mxu0 0.0
    %6373 = vmatpush.xpose.msra.mxu0 0.0
    %6374 = vmatpush.xpose.msra.mxu0 0.0
    %6375 = vmatpush.xpose.msra.mxu0 0.0
    %6376 = vmatpush.xpose.msra.mxu0 %v6360
    %6377 = vmatpush.xpose.msra.mxu0 %v6358
    %6378 = vmatmul.f32.gmra.mxu0 %v6322
    %v6379 = vpop.f32.mrf.mxu0
    %v6380 = vadd.f32 %v6310, %v6379
    %6381 = vdwg.mxu0
    %s6382 = scalar_lea.vmem [#allocation31], 4
    %6383 = vst.msk [vmem:[%s6382] sm:$0xf] %vm6348, %v6380
    // Predicated region
    $region250: #{conditioned_diffusion_forward.1} parent=1 // pred_check
      _
    $region251: #{conditioned_diffusion_forward.1} parent=1 // pred_check_branch
      %6385 = sbr.rel (0) target = $region253
    $region252: #{conditioned_diffusion_forward.1} parent=1 // pred_region
      %6387 = vsyncadd [#allocation4], 0
      %s6388 = sshll.u32 [#allocation31], 4
      %s6389 = int_to_ptr.vmem [resolvable:$true] %s6388
      %s6390 = sshll.u32 %s89, 4
      %s6391 = int_to_ptr.hbm [resolvable:$true] %s6390
      %6396 = dma.vmem_to_hbm [thread:$0]  %s6389, 128, %s6391, [#allocation4], 64, 64, 4
    $region253: #{conditioned_diffusion_forward.1} parent=1 // pred_fallthru
      _
    // Predicated region
    $region254: #{conditioned_diffusion_forward.1} parent=1 // pred_check
      _
    $region255: #{conditioned_diffusion_forward.1} parent=1 // pred_check_branch
      %6398 = sbr.rel (0) target = $region257
    $region256: #{conditioned_diffusion_forward.1} parent=1 // pred_region
      %6400 = dma.done [#allocation4], 128
    $region257: #{conditioned_diffusion_forward.1} parent=1 // pred_fallthru
      _
    %6401 = vsyncpa [#allocation3], 1
    %6402 = vsyncpa [#allocation6], 1
    %6403 = vsyncpa [#allocation9], 1
    %6404 = vsyncpa [#allocation12], 1
    %6405 = vsyncpa [#allocation15], 1
    %6406 = vsyncpa [#allocation18], 1
    %6407 = vsyncpa [#allocation21], 1
    %6408 = vsyncpa [#allocation24], 1
    %6409 = vsyncpa [#allocation27], 1
    %6410 = vsyncpa [#allocation30], 1
    %6411 = vsyncpa [#allocation4], 1

</llo_original>
